<compile_context>
chip_gen: v7x
topology: tpu7x:2x2x1
jax: 0.10.0
libtpu: 0.0.40
codegen_flags: <defaults>
</compile_context>

<pallas_src>
import functools

import jax
import jax.numpy as jnp
from jax.experimental import pallas as pl
from jax.experimental.pallas import tpu as pltpu


def _round_up(x, m):
    return ((x + m - 1) // m) * m


_FC1_TK = 1024                    # fc1 K padded to a multiple of this at load time
_VMEM_LIMIT = 48 * 1024 * 1024    # <= ~48 MiB: fits v7x's 64 MiB/TC, ample on v5e/v6e


def _single_tensorcore_chip():
    """True on v5e / v6e (one TensorCore per chip)."""
    try:
        kind = jax.devices()[0].device_kind.lower()
    except Exception:
        return False
    return any(t in kind for t in ("v5 lite", "v5litepod", "v5e", "v6 lite", "v6e"))


# ---------------------------------------------------------------------------
# fc1 kernel: resident (tm, K_pad) bf16 activation slab  @  streamed (tk, tn)
# bf16 weight tile, float32 accumulator over the innermost ("arbitrary") K axis.
# ---------------------------------------------------------------------------
def _fc1_kernel(x_ref, w_ref, b_ref, o_ref, acc_ref, *, tk):
    k = pl.program_id(2)

    @pl.when(k == 0)
    def _():
        acc_ref[...] = jnp.zeros_like(acc_ref)

    k_off = pl.multiple_of(k * tk, tk)
    x_blk = x_ref[:, pl.ds(k_off, tk)]
    acc_ref[...] += jnp.dot(x_blk, w_ref[...], preferred_element_type=jnp.float32)

    @pl.when(k == pl.num_programs(2) - 1)
    def _():
        o_ref[...] = (acc_ref[...] + b_ref[...]).astype(o_ref.dtype)


@functools.partial(jax.jit, static_argnames=("tm", "tn", "tk"))
def pallas_fc1(x, w_padded, b, *, tm=8, tn=2048, tk=_FC1_TK):
    """y = x @ w + b.  x: (M, K) f32, w_padded: (K_pad, N) bf16, b: (N,) f32."""
    M, K = x.shape
    K_pad, N = w_padded.shape
    assert K_pad >= K and K_pad % tk == 0 and N % tn == 0

    M_pad = _round_up(M, tm)
    # Tiny per-call work (<=180 KB): pad rows/K and cast the slab to bf16.
    x_p = jnp.zeros((M_pad, K_pad), jnp.bfloat16).at[:M, :K].set(
        x.astype(jnp.bfloat16))
    b_p = b.reshape(1, N)

    grid = (M_pad // tm, N // tn, K_pad // tk)

    out = pl.pallas_call(
        functools.partial(_fc1_kernel, tk=tk),
        out_shape=jax.ShapeDtypeStruct((M_pad, N), jnp.float32),
        grid_spec=pltpu.PrefetchScalarGridSpec(
            num_scalar_prefetch=0,
            grid=grid,
            in_specs=[
                # Resident bf16 activation slab (block index fixed along j, k).
                pl.BlockSpec((tm, K_pad), lambda i, j, k: (i, 0)),
                # Streamed bf16 weight tile (4 MB at tn=2048, 8 MB at tn=4096).
                pl.BlockSpec((tk, tn), lambda i, j, k: (k, j)),
                # f32 bias tile.
                pl.BlockSpec((1, tn), lambda i, j, k: (0, j)),
            ],
            out_specs=pl.BlockSpec((tm, tn), lambda i, j, k: (i, j)),
            scratch_shapes=[pltpu.VMEM((tm, tn), jnp.float32)],
        ),
        compiler_params=pltpu.CompilerParams(
            dimension_semantics=("parallel", "parallel", "arbitrary"),
            vmem_limit_bytes=_VMEM_LIMIT,
        ),
    )(x_p, w_padded, b_p)

    if M_pad != M:
        out = out[:M, :]
    return out


# ---------------------------------------------------------------------------
# Fused fc2+fc3 kernel: both bf16 weight matrices VMEM resident, no K grid,
# no accumulator scratch; only the (batch, 128) result goes back to HBM.
# ---------------------------------------------------------------------------
def _fc23_kernel(x_ref, w2_ref, b2_ref, w3_ref, b3_ref, o_ref):
    h = jnp.dot(x_ref[...], w2_ref[...],
                preferred_element_type=jnp.float32) + b2_ref[...]
    o_ref[...] = (
        jnp.dot(h.astype(jnp.bfloat16), w3_ref[...],
                preferred_element_type=jnp.float32) + b3_ref[...]
    ).astype(o_ref.dtype)


@functools.partial(jax.jit, static_argnames=("tm",))
def pallas_fc23(x, w2, b2, w3, b3, *, tm=8):
    M, K = x.shape         # (batch, 4096)
    K2, N2 = w2.shape      # (4096, 1024)
    K3, N3 = w3.shape      # (1024, 128)
    assert K == K2 and N2 == K3

    M_pad = _round_up(M, tm)
    x_p = jnp.zeros((M_pad, K), jnp.bfloat16).at[:M, :].set(x.astype(jnp.bfloat16))
    b2_p = b2.reshape(1, N2)
    b3_p = b3.reshape(1, N3)

    out = pl.pallas_call(
        _fc23_kernel,
        out_shape=jax.ShapeDtypeStruct((M_pad, N3), jnp.float32),
        grid_spec=pltpu.PrefetchScalarGridSpec(
            num_scalar_prefetch=0,
            grid=(M_pad // tm,),
            in_specs=[
                pl.BlockSpec((tm, K), lambda i: (i, 0)),     # bf16 activation slab
                pl.BlockSpec((K2, N2), lambda i: (0, 0)),    # resident bf16 fc2 weight (8 MB)
                pl.BlockSpec((1, N2), lambda i: (0, 0)),     # f32 fc2 bias
                pl.BlockSpec((K3, N3), lambda i: (0, 0)),    # resident bf16 fc3 weight (256 KB)
                pl.BlockSpec((1, N3), lambda i: (0, 0)),     # f32 fc3 bias
            ],
            out_specs=pl.BlockSpec((tm, N3), lambda i: (i, 0)),
        ),
        compiler_params=pltpu.CompilerParams(
            dimension_semantics=("parallel",),
            vmem_limit_bytes=_VMEM_LIMIT,
        ),
    )(x_p, w2, b2_p, w3, b3_p)

    if M_pad != M:
        out = out[:M, :]
    return out


# ---------------------------------------------------------------------------
# Forward passes.
# ---------------------------------------------------------------------------
def siamese_net_forward(x, padded_params):
    """fc1 -> fc2 -> fc3, same math as the PyTorch SiameseNet.forward."""
    # Full-N contiguous tiles on single-TC chips; keep N/tn >= 2 on multi-TC
    # chips (v7x) so the "parallel" j axis splits the weight stream across TCs.
    tn1 = 4096 if _single_tensorcore_chip() else 2048
    h = pallas_fc1(x, padded_params["w1"], padded_params["b1"],
                   tm=8, tn=tn1, tk=_FC1_TK)
    return pallas_fc23(h, padded_params["w2"], padded_params["b2"],
                       padded_params["w3"], padded_params["b3"], tm=8)


def siamese_twin_forward(x1, x2, padded_params):
    """Both Siamese branches stacked into one pass: weights streamed once."""
    n1 = x1.shape[0]
    y = siamese_net_forward(jnp.concatenate([x1, x2], axis=0), padded_params)
    return y[:n1], y[n1:]


# ---------------------------------------------------------------------------
# Parameters.
# ---------------------------------------------------------------------------
def init_params(key):
    dims = [(11025, 4096), (4096, 1024), (1024, 128)]
    params = {}
    for idx, (fan_in, fan_out) in enumerate(dims, start=1):
        key, kw, kb = jax.random.split(key, 3)
        bound = 1.0 / jnp.sqrt(float(fan_in))
        # Stored as (in_features, out_features) == PyTorch weight.T
        params[f"w{idx}"] = jax.random.uniform(
            kw, (fan_in, fan_out), jnp.float32, -bound, bound)
        params[f"b{idx}"] = jax.random.uniform(
            kb, (fan_out,), jnp.float32, -bound, bound)
    return params


def prepare_params(params):
    """One-time model-load prep: pad fc1 K to a tile multiple, cast weights to bf16.

    Zero-padded K rows of W contribute exactly 0 to x @ W, so padding is exact.
    bf16 halves the weight bytes streamed from HBM; kernels keep f32 accumulators.
    """
    k1, n1 = params["w1"].shape
    k1_pad = _round_up(k1, _FC1_TK)
    w1 = jnp.zeros((k1_pad, n1), jnp.float32).at[:k1, :].set(params["w1"])
    out = {
        "w1": w1.astype(jnp.bfloat16), "b1": params["b1"],
        "w2": params["w2"].astype(jnp.bfloat16), "b2": params["b2"],
        "w3": params["w3"].astype(jnp.bfloat16), "b3": params["b3"],
    }
    return jax.tree_util.tree_map(jax.block_until_ready, out)


if __name__ == "__main__":
    key = jax.random.PRNGKey(0)
    key, kx = jax.random.split(key)

    params = init_params(key)
    padded_params = prepare_params(params)   # padding + bf16 cast hoisted out of jit

    batch = 2
    x = jax.random.normal(kx, (batch, 11025), jnp.float32)

    y = jax.block_until_ready(siamese_net_forward(x, padded_params))
    assert y.shape == (batch, 128), y.shape

    # Twin-branch stacking (same stacked shape -> hits the same jit cache).
    y1, y2 = siamese_twin_forward(x[:1], x[1:], padded_params)
    y1, y2 = jax.block_until_ready((y1, y2))
    assert jnp.allclose(y1, y[:1]) and jnp.allclose(y2, y[1:])

    # Reference mirrors the kernel's bf16-weight / bf16-activation, f32-accumulate
    # math (tolerance loosened accordingly per the bf16 switch).
    y_ref = x
    for i in (1, 2, 3):
        w = params[f"w{i}"].astype(jnp.bfloat16)
        y_ref = jnp.dot(y_ref.astype(jnp.bfloat16), w,
                        preferred_element_type=jnp.float32) + params[f"b{i}"]
    assert jnp.allclose(y, y_ref, rtol=2e-3, atol=2e-3), (
        float(jnp.max(jnp.abs(y - y_ref))))

    print("KERNEL_OK")
</pallas_src>

<mosaic_0001>
module attributes {stable_mosaic.version = 11 : i64} {
  func.func @_fc1_kernel(%arg0: i32, %arg1: i32, %arg2: i32, %arg3: memref<8x11264xbf16, #tpu.memory_space<vmem>>, %arg4: memref<1024x2048xbf16, #tpu.memory_space<vmem>>, %arg5: memref<1x2048xf32, #tpu.memory_space<vmem>>, %arg6: memref<8x2048xf32, #tpu.memory_space<vmem>>, %arg7: memref<8x2048xf32, #tpu.memory_space<vmem>>) attributes {dimension_semantics = [#tpu.dimension_semantics<parallel>, #tpu.dimension_semantics<parallel>, #tpu.dimension_semantics<arbitrary>], iteration_bounds = array<i64: 1, 2, 11>, scalar_prefetch = 0 : i64, scratch_operands = 1 : i64, tpu.core_type = #tpu.core_type<tc>, window_params = [{transform_indices = @transform_0, window_bounds = array<i64: 8, 11264>}, {transform_indices = @transform_1, window_bounds = array<i64: 1024, 2048>}, {transform_indices = @transform_2, window_bounds = array<i64: 1, 2048>}, {transform_indices = @transform_3, window_bounds = array<i64: 8, 2048>}]} {
    %c0_i32 = arith.constant 0 : i32
    %0 = arith.cmpi eq, %arg2, %c0_i32 : i32
    %1 = arith.extui %0 : i1 to i32
    %c0_i32_0 = arith.constant 0 : i32
    %2 = arith.cmpi ne, %1, %c0_i32_0 : i32
    scf.if %2 {
      %cst_8 = arith.constant 0.000000e+00 : f32
      %15 = vector.broadcast %cst_8 : f32 to vector<8x2048xf32>
      %c0_9 = arith.constant 0 : index
      %c0_10 = arith.constant 0 : index
      %16 = vector.load %arg7[%c0_9, %c0_10] : memref<8x2048xf32, #tpu.memory_space<vmem>>, vector<8x2048xf32>
      tpu.vector_store %arg7[%c0_9, %c0_10], %15 {strides = array<i32>} : memref<8x2048xf32, #tpu.memory_space<vmem>>, vector<8x2048xf32>,
    } else {
    }
    %c1024_i32 = arith.constant 1024 : i32
    %3 = arith.muli %arg2, %c1024_i32 : i32
    %4 = tpu.assume_multiple %3, 1024 : i32
    %c0 = arith.constant 0 : index
    %5 = arith.index_cast %4 : i32 to index
    %6 = vector.load %arg3[%c0, %5] : memref<8x11264xbf16, #tpu.memory_space<vmem>>, vector<8x1024xbf16>
    %c0_1 = arith.constant 0 : index
    %c0_2 = arith.constant 0 : index
    %7 = vector.load %arg7[%c0_1, %c0_2] : memref<8x2048xf32, #tpu.memory_space<vmem>>, vector<8x2048xf32>
    %c0_3 = arith.constant 0 : index
    %c0_4 = arith.constant 0 : index
    %8 = vector.load %arg4[%c0_3, %c0_4] : memref<1024x2048xbf16, #tpu.memory_space<vmem>>, vector<1024x2048xbf16>
    %cst = arith.constant dense<0.000000e+00> : vector<8x2048xf32>
    %9 = tpu.matmul %6, %8, %cst {dimension_numbers = #tpu.dot_dimension_numbers<[1], [0], [0], [1], [0, 0, 1, 1], [], []>} : vector<8x1024xbf16>, vector<1024x2048xbf16>, vector<8x2048xf32> -> vector<8x2048xf32>
    %10 = arith.addf %7, %9 : vector<8x2048xf32>
    %c0_5 = arith.constant 0 : index
    %c0_6 = arith.constant 0 : index
    %11 = vector.load %arg7[%c0_5, %c0_6] : memref<8x2048xf32, #tpu.memory_space<vmem>>, vector<8x2048xf32>
    tpu.vector_store %arg7[%c0_5, %c0_6], %10 {strides = array<i32>} : memref<8x2048xf32, #tpu.memory_space<vmem>>, vector<8x2048xf32>,
    %c10_i32 = arith.constant 10 : i32
    %12 = arith.cmpi eq, %arg2, %c10_i32 : i32
    %13 = arith.extui %12 : i1 to i32
    %c0_i32_7 = arith.constant 0 : i32
    %14 = arith.cmpi ne, %13, %c0_i32_7 : i32
    scf.if %14 {
      %c0_8 = arith.constant 0 : index
      %c0_9 = arith.constant 0 : index
      %15 = vector.load %arg7[%c0_8, %c0_9] : memref<8x2048xf32, #tpu.memory_space<vmem>>, vector<8x2048xf32>
      %c0_10 = arith.constant 0 : index
      %c0_11 = arith.constant 0 : index
      %16 = vector.load %arg5[%c0_10, %c0_11] : memref<1x2048xf32, #tpu.memory_space<vmem>>, vector<1x2048xf32>
      %17 = vector.broadcast %16 : vector<1x2048xf32> to vector<8x2048xf32>
      %18 = arith.addf %15, %17 : vector<8x2048xf32>
      %c0_12 = arith.constant 0 : index
      %c0_13 = arith.constant 0 : index
      %19 = vector.load %arg6[%c0_12, %c0_13] : memref<8x2048xf32, #tpu.memory_space<vmem>>, vector<8x2048xf32>
      tpu.vector_store %arg6[%c0_12, %c0_13], %18 {strides = array<i32>} : memref<8x2048xf32, #tpu.memory_space<vmem>>, vector<8x2048xf32>,
    } else {
    }
    return
  }
  func.func @transform_0(%arg0: i32, %arg1: i32, %arg2: i32) -> (i32, i32) {
    %c0_i32 = arith.constant 0 : i32
    %c0_i32_0 = arith.constant 0 : i32
    return %arg0, %c0_i32 : i32, i32
  }
  func.func @transform_1(%arg0: i32, %arg1: i32, %arg2: i32) -> (i32, i32) {
    %c0_i32 = arith.constant 0 : i32
    return %arg2, %arg1 : i32, i32
  }
  func.func @transform_2(%arg0: i32, %arg1: i32, %arg2: i32) -> (i32, i32) {
    %c0_i32 = arith.constant 0 : i32
    %c0_i32_0 = arith.constant 0 : i32
    return %c0_i32, %arg1 : i32, i32
  }
  func.func @transform_3(%arg0: i32, %arg1: i32, %arg2: i32) -> (i32, i32) {
    %c0_i32 = arith.constant 0 : i32
    return %arg0, %arg1 : i32, i32
  }
}

</mosaic_0001>

<llo_original>
// kernel: pallas_fc1.1
$region0: #{pallas_fc1.1}
  #allocation0 [shape = 'u32[]', space=smem, size = 0x4, offset = 0x4, fixed_abs, tag = 'smem constant byte address 0x4 - core index']
  #allocation1 [shape = 'u32[144,128]{1,0:T(1,128)}', space=vmem, size = 0x12000, scoped, tag = 'internal scratch']
  #allocation2 [shape = 'f32[8,2048]{1,0:T(8,128)}', space=vmem, size = 0x10000, scoped, tag = 'scratch operand']
  %s0 = inlined_call_operand.vmem [shape: bf16[8,11264], index: 0, kind: input, shape index: {}]
  %s1 = inlined_call_operand.hbm [shape: bf16[11264,4096], index: 1, kind: input, shape index: {}]
  %s2 = inlined_call_operand.hbm [shape: f32[1,4096], index: 2, kind: input, shape index: {}]
  %s3 = inlined_call_operand.vmem [shape: f32[8,4096], index: 3, kind: output, shape index: {}]
  %s4 = sld [smem:[#allocation0]]
  $region61: #{pallas_fc1.1} parent=0
    _
  %s6 = ssub.s32 1, %s4
  %s7 = scalar_select 0, %s6, %s4
  $region1: #{pallas_fc1.1} parent=0
    #allocation3 [shape = 'u8[8388608]{0}', space=vmem, size = 0x800000, scoped, tag = 'input window, operand 1']
    #allocation4 [shape = 's32[2]{0}', space=sflag, size = 0x8, scoped, tag = 'scoped memory for pallas_fc1.1']
    #allocation5 [shape = 'u8[16384]{0}', space=vmem, size = 0x4000, scoped, tag = 'input window, operand 2']
    #allocation6 [shape = 's32[2]{0}', space=sflag, size = 0x8, scoped, tag = 'scoped memory for pallas_fc1.1']
    %8 = vsyncpa [#allocation4], 0
    %s9 = scalar_lea.sflag [#allocation4], 1
    %10 = vsyncpa %s9, 0
    %11 = vsyncpa [#allocation6], 0
    %s12 = scalar_lea.sflag [#allocation6], 1
    %13 = vsyncpa %s12, 0
    loop: start=0, step=1, limit=24
    $region2: #{pallas_fc1.1} parent=1 // loop_pre_header
      _
    $region3: #{pallas_fc1.1} parent=1 // loop_header
      %s15 = sphi 0, %s19
      %p16 = scmp.ge.s32.totalorder %s15, 24
      %s22 = sphi 0, %s41
      %s23 = sphi 0, %s37
      %s24 = sphi 0, %s33
      %s25 = sphi 0, %s22
      %s26 = sphi 0, %s23
      %s27 = sphi 0, %s24
      %s28 = sphi 0, %s25
      %s29 = sphi 0, %s26
      %s30 = sphi 0, %s27
      %s44 = sphi 0, %s46
      %s47 = sphi 0, %s44
      %s48 = sphi 0, %s47
      %s64 = sphi 0, %s48
      %s72 = sphi 0, %s74
      %s75 = sphi 0, %s72
      %s76 = sphi 0, %s75
      %s92 = sphi 0, %s76
      %s98 = sphi 0, %s100
      %s101 = sphi 0, %s98
      %s102 = sphi 0, %s101
      %s118 = sphi 0, %s102
      %s126 = sphi 0, %s128
      %s129 = sphi 0, %s126
      %s130 = sphi 0, %s129
      %s146 = sphi 0, %s130
    $region4: #{pallas_fc1.1} parent=1 // loop_header_branch
      %18 = sbr.rel (%p16) target = $region8
    $region5: #{pallas_fc1.1} parent=1 // loop_body
      %s20 = ssub.s32 %s15, 1
      %s21 = ssub.s32 %s15, 2
      %s31 = sadd.s32 1, %s24
      %p32 = scmp.ge.s32.totalorder %s31, 11
      %s33 = scalar_select %p32, 0, %s31
      %s34 = sadd.s32 1, %s23
      %s35 = scalar_select %p32, %s34, %s23
      %p36 = scmp.ge.s32.totalorder %s35, 2
      %s37 = scalar_select %p36, 0, %s35
      %s38 = sadd.s32 1, %s22
      %s39 = scalar_select %p36, %s38, %s22
      %p40 = scmp.ge.s32.totalorder %s39, 1
      %s41 = scalar_select %p40, 0, %s39
      %s42 = ssub.s32 %s22, %s41
      %p43 = scmp.eq.s32.totalorder %s42, 0
      %s45 = sadd.s32 %s44, 1
      %s46 = scalar_select %p43, %s44, %s45
      %p49 = pneg %p43
      %p50 = scmp.eq.s32.totalorder %s15, 21
      %p51 = por %p49, %p50
      %p52 = scmp.ne.s32.totalorder %s44, %s47
      %p53 = scmp.eq.s32.totalorder %s15, 0
      %p54 = por %p52, %p53
      %p55 = scmp.ne.s32.totalorder %s44, %s47
      %p56 = scmp.eq.s32.totalorder %s20, 21
      %p57 = por %p55, %p56
      %p58 = scmp.ne.s32.totalorder %s47, %s48
      %p59 = scmp.eq.s32.totalorder %s20, 0
      %p60 = por %p58, %p59
      %p61 = scmp.ne.s32.totalorder %s47, %s48
      %p62 = scmp.eq.s32.totalorder %s21, 21
      %p63 = por %p61, %p62
      %p65 = scmp.ne.s32.totalorder %s48, %s64
      %p66 = scmp.eq.s32.totalorder %s21, 0
      %p67 = por %p65, %p66
      %s68 = ssub.s32 %s24, %s33
      %s69 = ssub.s32 %s23, %s37
      %s70 = sor.u32 %s68, %s69
      %p71 = scmp.eq.s32.totalorder %s70, 0
      %s73 = sadd.s32 %s72, 1
      %s74 = scalar_select %p71, %s72, %s73
      %p77 = pneg %p71
      %p78 = scmp.eq.s32.totalorder %s15, 21
      %p79 = por %p77, %p78
      %p80 = scmp.ne.s32.totalorder %s72, %s75
      %p81 = scmp.eq.s32.totalorder %s15, 0
      %p82 = por %p80, %p81
      %p83 = scmp.ne.s32.totalorder %s72, %s75
      %p84 = scmp.eq.s32.totalorder %s20, 21
      %p85 = por %p83, %p84
      %p86 = scmp.ne.s32.totalorder %s75, %s76
      %p87 = scmp.eq.s32.totalorder %s20, 0
      %p88 = por %p86, %p87
      %p89 = scmp.ne.s32.totalorder %s75, %s76
      %p90 = scmp.eq.s32.totalorder %s21, 21
      %p91 = por %p89, %p90
      %p93 = scmp.ne.s32.totalorder %s76, %s92
      %p94 = scmp.eq.s32.totalorder %s21, 0
      %p95 = por %p93, %p94
      %s96 = ssub.s32 %s23, %s37
      %p97 = scmp.eq.s32.totalorder %s96, 0
      %s99 = sadd.s32 %s98, 1
      %s100 = scalar_select %p97, %s98, %s99
      %p103 = pneg %p97
      %p104 = scmp.eq.s32.totalorder %s15, 21
      %p105 = por %p103, %p104
      %p106 = scmp.ne.s32.totalorder %s98, %s101
      %p107 = scmp.eq.s32.totalorder %s15, 0
      %p108 = por %p106, %p107
      %p109 = scmp.ne.s32.totalorder %s98, %s101
      %p110 = scmp.eq.s32.totalorder %s20, 21
      %p111 = por %p109, %p110
      %p112 = scmp.ne.s32.totalorder %s101, %s102
      %p113 = scmp.eq.s32.totalorder %s20, 0
      %p114 = por %p112, %p113
      %p115 = scmp.ne.s32.totalorder %s101, %s102
      %p116 = scmp.eq.s32.totalorder %s21, 21
      %p117 = por %p115, %p116
      %p119 = scmp.ne.s32.totalorder %s102, %s118
      %p120 = scmp.eq.s32.totalorder %s21, 0
      %p121 = por %p119, %p120
      %s122 = ssub.s32 %s22, %s41
      %s123 = ssub.s32 %s23, %s37
      %s124 = sor.u32 %s122, %s123
      %p125 = scmp.eq.s32.totalorder %s124, 0
      %s127 = sadd.s32 %s126, 1
      %s128 = scalar_select %p125, %s126, %s127
      %p131 = pneg %p125
      %p132 = scmp.eq.s32.totalorder %s15, 21
      %p133 = por %p131, %p132
      %p134 = scmp.ne.s32.totalorder %s126, %s129
      %p135 = scmp.eq.s32.totalorder %s15, 0
      %p136 = por %p134, %p135
      %p137 = scmp.ne.s32.totalorder %s126, %s129
      %p138 = scmp.eq.s32.totalorder %s20, 21
      %p139 = por %p137, %p138
      %p140 = scmp.ne.s32.totalorder %s129, %s130
      %p141 = scmp.eq.s32.totalorder %s20, 0
      %p142 = por %p140, %p141
      %p143 = scmp.ne.s32.totalorder %s129, %s130
      %p144 = scmp.eq.s32.totalorder %s21, 21
      %p145 = por %p143, %p144
      %p147 = scmp.ne.s32.totalorder %s130, %s146
      %p148 = scmp.eq.s32.totalorder %s21, 0
      %p149 = por %p147, %p148
      %p150 = scmp.le.s32.totalorder 1, %s15
      %p151 = scmp.lt.s32.totalorder %s15, 23
      %p152 = pnand %p150, %p151
      %p153 = pneg %p152
      // Predicated region
      $region9: #{pallas_fc1.1} parent=5 // pred_check
        _
      $region10: #{pallas_fc1.1} parent=5 // pred_check_branch
        %155 = sbr.rel (%p152) target = $region12
      $region11: #{pallas_fc1.1} parent=5 // pred_region
        %s156 = ssub.s32 %s15, 1
        // Predicated region
        $region13: #{pallas_fc1.1} parent=11 // pred_check
          %p157 = pneg %p60
        $region14: #{pallas_fc1.1} parent=11 // pred_check_branch
          %159 = sbr.rel (%p157) target = $region16
        $region15: #{pallas_fc1.1} parent=11 // pred_region
          %p160 = scmp.lt.s32.totalorder %s25, 0
          %s161 = scalar_select %p160, %s25, 0
          %s162 = smul.addr %s161, 88
          %s163 = smul.addr %s162, 4
          %s164 = scalar_lea.vmem %s0, %s163
        $region16: #{pallas_fc1.1} parent=11 // pred_fallthru
          _
      $region12: #{pallas_fc1.1} parent=5 // pred_fallthru
        _
      %p165 = scmp.lt.s32.totalorder %s15, 22
      // Predicated region
      $region17: #{pallas_fc1.1} parent=5 // pred_check
        %p166 = pneg %p165
      $region18: #{pallas_fc1.1} parent=5 // pred_check_branch
        %168 = sbr.rel (%p166) target = $region20
      $region19: #{pallas_fc1.1} parent=5 // pred_region
        // Predicated region
        $region21: #{pallas_fc1.1} parent=19 // pred_check
          %p169 = pneg %p82
        $region22: #{pallas_fc1.1} parent=19 // pred_check_branch
          %171 = sbr.rel (%p169) target = $region24
        $region23: #{pallas_fc1.1} parent=19 // pred_region
          %s172 = sand.u32 %s72, 1
          %s173 = scalar_lea.sflag [#allocation4], %s172
          %s174 = sand.u32 %s72, 1
          %s175 = smul.addr %s174, 8192
          %s176 = scalar_lea.vmem [#allocation3], %s175
          %s177 = smul.u32 128, %s24
          %s178 = smul.u32 16, %s23
          %s180 = ssub.s32 131072, 131072
          %181 = vsyncadd %s173, %s180
          %s182 = smul.addr %s177, 32
          %s183 = sadd.s32 %s178, %s182
          %s184 = smul.addr %s183, 64
          %s185 = scalar_lea.hbm %s1, %s184
          %s186 = sshll.u32 %s176, 4
          %s187 = int_to_ptr.vmem [resolvable:$true] %s186
          %192 = dma.hbm_to_vmem [thread:$0]  %s185, 131072, %s187, %s173, 2048, 1024, 64
        $region24: #{pallas_fc1.1} parent=19 // pred_fallthru
          _
        // Predicated region
        $region25: #{pallas_fc1.1} parent=19 // pred_check
          %p193 = pneg %p108
        $region26: #{pallas_fc1.1} parent=19 // pred_check_branch
          %195 = sbr.rel (%p193) target = $region28
        $region27: #{pallas_fc1.1} parent=19 // pred_region
          %s196 = sand.u32 %s98, 1
          %s197 = scalar_lea.sflag [#allocation6], %s196
          %s198 = sand.u32 %s98, 1
          %s199 = smul.addr %s198, 16
          %s200 = scalar_lea.vmem [#allocation5], %s199
          %s201 = smul.u32 16, %s23
          %s203 = ssub.s32 256, 256
          %204 = vsyncadd %s197, %s203
          %s205 = smul.addr %s201, 16
          %s206 = scalar_lea.hbm %s2, %s205
          %s208 = sshll.u32 %s200, 4
          %s209 = int_to_ptr.vmem [resolvable:$true] %s208
          %211 = dma.hbm_to_vmem [thread:$0]  %s206, 256, %s209, %s197
        $region28: #{pallas_fc1.1} parent=19 // pred_fallthru
          _
      $region20: #{pallas_fc1.1} parent=5 // pred_fallthru
        _
      %p212 = scmp.le.s32.totalorder 1, %s15
      %p213 = scmp.lt.s32.totalorder %s15, 23
      %p214 = pnand %p212, %p213
      %p215 = pneg %p214
      // Predicated region
      $region29: #{pallas_fc1.1} parent=5 // pred_check
        _
      $region30: #{pallas_fc1.1} parent=5 // pred_check_branch
        %217 = sbr.rel (%p214) target = $region32
      $region31: #{pallas_fc1.1} parent=5 // pred_region
        %s218 = ssub.s32 %s15, 1
        %s219 = sand.u32 %s75, 1
        %s220 = scalar_lea.sflag [#allocation4], %s219
        %s221 = sand.u32 %s75, 1
        %s222 = smul.addr %s221, 8192
        %s223 = scalar_lea.vmem [#allocation3], %s222
        // Predicated region
        $region33: #{pallas_fc1.1} parent=31 // pred_check
          %p224 = pneg %p88
        $region34: #{pallas_fc1.1} parent=31 // pred_check_branch
          %226 = sbr.rel (%p224) target = $region36
        $region35: #{pallas_fc1.1} parent=31 // pred_region
          %227 = dma.done %s220, 131072
        $region36: #{pallas_fc1.1} parent=31 // pred_fallthru
          _
        %s228 = sand.u32 %s101, 1
        %s229 = scalar_lea.sflag [#allocation6], %s228
        %s230 = sand.u32 %s101, 1
        %s231 = smul.addr %s230, 16
        %s232 = scalar_lea.vmem [#allocation5], %s231
        // Predicated region
        $region37: #{pallas_fc1.1} parent=31 // pred_check
          %p233 = pneg %p114
        $region38: #{pallas_fc1.1} parent=31 // pred_check_branch
          %235 = sbr.rel (%p233) target = $region40
        $region39: #{pallas_fc1.1} parent=31 // pred_region
          %236 = dma.done %s229, 256
        $region40: #{pallas_fc1.1} parent=31 // pred_fallthru
          _
        %p237 = scmp.lt.s32.totalorder %s25, 0
        %s238 = scalar_select %p237, %s25, 0
        %s239 = smul.addr %s238, 88
        %s240 = smul.addr %s239, 4
        %s241 = scalar_lea.vmem %s0, %s240
        %p242 = pneg %p60
        %p243 = pneg %p57
        %s244 = sand.u32 %s75, 1
        %s245 = scalar_lea.sflag [#allocation4], %s244
        %s246 = sand.u32 %s75, 1
        %s247 = smul.addr %s246, 8192
        %s248 = scalar_lea.vmem [#allocation3], %s247
        %p249 = pneg %p88
        %p250 = pneg %p85
        %s251 = sand.u32 %s101, 1
        %s252 = scalar_lea.sflag [#allocation6], %s251
        %s253 = sand.u32 %s101, 1
        %s254 = smul.addr %s253, 16
        %s255 = scalar_lea.vmem [#allocation5], %s254
        %p256 = pneg %p114
        %p257 = pneg %p111
        %p258 = pneg %p142
        %p259 = pneg %p139
        %s260 = smul.u32 16, %s26
        %p261 = scmp.lt.s32.totalorder %s25, 0
        %s262 = scalar_select %p261, %s25, 0
        %p263 = scmp.lt.s32.totalorder %s260, 31
        %s264 = scalar_select %p263, %s260, 31
        %s265 = smul.addr %s262, 32
        %s266 = sadd.s32 %s264, %s265
        %s267 = smul.addr %s266, 8
        %s268 = scalar_lea.vmem %s3, %s267
        %p269 = scmp.lt.s32.totalorder %s25, 0
        %s270 = scalar_select %p269, %s25, 0
        %s271 = smul.addr %s270, 88
        %s272 = smul.addr %s271, 4
        %s273 = scalar_lea.vmem %s0, %s272
        %s274 = smul.u32 128, %s27
        %s275 = smul.u32 16, %s26
        %s276 = smul.u32 16, %s26
        %s277 = smul.u32 16, %s26
        %p278 = scmp.lt.s32.totalorder %s25, 0
        %s279 = scalar_select %p278, %s25, 0
        %p280 = scmp.lt.s32.totalorder %s277, 31
        %s281 = scalar_select %p280, %s277, 31
        %s282 = smul.addr %s279, 32
        %s283 = sadd.s32 %s281, %s282
        %s284 = smul.addr %s283, 8
        %s285 = scalar_lea.vmem %s3, %s284
        %s286 = smul.u32 16, %s26
        %p287 = scmp.eq.s32.totalorder %s27, 0
        // Predicated region
        $region41: #{pallas_fc1.1} parent=31 // pred_check
          %p288 = pneg %p287
        $region42: #{pallas_fc1.1} parent=31 // pred_check_branch
          %290 = sbr.rel (%p288) target = $region44
        $region43: #{pallas_fc1.1} parent=31 // pred_region
          %291 = vst [vmem:[#allocation2] sm:$0xff] 0.0
          %292 = vst [vmem:[#allocation2 + $0x8] sm:$0xff] 0.0
          %293 = vst [vmem:[#allocation2 + $0x10] sm:$0xff] 0.0
          %294 = vst [vmem:[#allocation2 + $0x18] sm:$0xff] 0.0
          %295 = vst [vmem:[#allocation2 + $0x20] sm:$0xff] 0.0
          %296 = vst [vmem:[#allocation2 + $0x28] sm:$0xff] 0.0
          %297 = vst [vmem:[#allocation2 + $0x30] sm:$0xff] 0.0
          %298 = vst [vmem:[#allocation2 + $0x38] sm:$0xff] 0.0
          %299 = vst [vmem:[#allocation2 + $0x40] sm:$0xff] 0.0
          %300 = vst [vmem:[#allocation2 + $0x48] sm:$0xff] 0.0
          %301 = vst [vmem:[#allocation2 + $0x50] sm:$0xff] 0.0
          %302 = vst [vmem:[#allocation2 + $0x58] sm:$0xff] 0.0
          %303 = vst [vmem:[#allocation2 + $0x60] sm:$0xff] 0.0
          %304 = vst [vmem:[#allocation2 + $0x68] sm:$0xff] 0.0
          %305 = vst [vmem:[#allocation2 + $0x70] sm:$0xff] 0.0
          %306 = vst [vmem:[#allocation2 + $0x78] sm:$0xff] 0.0
        $region44: #{pallas_fc1.1} parent=31 // pred_fallthru
          _
        %s307 = smul.u32 %s27, 1024
        %s308 = sshra.s32 %s307, 7
        %s309 = sand.u32 %s307, 127
        %s310 = smul.addr %s308, 4
        %s311 = scalar_lea.vmem %s273, %s310
        %v312 = vld [vmem:[%s311] sm:$0xff]
        %v313 = vld [vmem:[%s311 + $0x8] sm:$0xff]
        %v314 = vld [vmem:[%s311 + $0x10] sm:$0xff]
        %v315 = vld [vmem:[%s311 + $0x18] sm:$0xff]
        %v316 = vld [vmem:[#allocation2] sm:$0xff]
        %v317 = vld [vmem:[#allocation2 + $0x8] sm:$0xff]
        %v318 = vld [vmem:[#allocation2 + $0x10] sm:$0xff]
        %v319 = vld [vmem:[#allocation2 + $0x18] sm:$0xff]
        %v320 = vld [vmem:[#allocation2 + $0x20] sm:$0xff]
        %v321 = vld [vmem:[#allocation2 + $0x28] sm:$0xff]
        %v322 = vld [vmem:[#allocation2 + $0x30] sm:$0xff]
        %v323 = vld [vmem:[#allocation2 + $0x38] sm:$0xff]
        %v324 = vld [vmem:[#allocation2 + $0x40] sm:$0xff]
        %v325 = vld [vmem:[#allocation2 + $0x48] sm:$0xff]
        %v326 = vld [vmem:[#allocation2 + $0x50] sm:$0xff]
        %v327 = vld [vmem:[#allocation2 + $0x58] sm:$0xff]
        %v328 = vld [vmem:[#allocation2 + $0x60] sm:$0xff]
        %v329 = vld [vmem:[#allocation2 + $0x68] sm:$0xff]
        %v330 = vld [vmem:[#allocation2 + $0x70] sm:$0xff]
        %v331 = vld [vmem:[#allocation2 + $0x78] sm:$0xff]
        %v332 = vld [vmem:[%s223] sm:$0xff]
        %v333 = vld [vmem:[%s223 + $0x8] sm:$0xff]
        %v334 = vld [vmem:[%s223 + $0x10] sm:$0xff]
        %v335 = vld [vmem:[%s223 + $0x18] sm:$0xff]
        %v336 = vld [vmem:[%s223 + $0x20] sm:$0xff]
        %v337 = vld [vmem:[%s223 + $0x28] sm:$0xff]
        %v338 = vld [vmem:[%s223 + $0x30] sm:$0xff]
        %v339 = vld [vmem:[%s223 + $0x38] sm:$0xff]
        %v340 = vld [vmem:[%s223 + $0x40] sm:$0xff]
        %v341 = vld [vmem:[%s223 + $0x48] sm:$0xff]
        %v342 = vld [vmem:[%s223 + $0x50] sm:$0xff]
        %v343 = vld [vmem:[%s223 + $0x58] sm:$0xff]
        %v344 = vld [vmem:[%s223 + $0x60] sm:$0xff]
        %v345 = vld [vmem:[%s223 + $0x68] sm:$0xff]
        %v346 = vld [vmem:[%s223 + $0x70] sm:$0xff]
        %v347 = vld [vmem:[%s223 + $0x78] sm:$0xff]
        %v348 = vld [vmem:[%s223 + $0x80] sm:$0xff]
        %v349 = vld [vmem:[%s223 + $0x88] sm:$0xff]
        %v350 = vld [vmem:[%s223 + $0x90] sm:$0xff]
        %v351 = vld [vmem:[%s223 + $0x98] sm:$0xff]
        %v352 = vld [vmem:[%s223 + $0xa0] sm:$0xff]
        %v353 = vld [vmem:[%s223 + $0xa8] sm:$0xff]
        %v354 = vld [vmem:[%s223 + $0xb0] sm:$0xff]
        %v355 = vld [vmem:[%s223 + $0xb8] sm:$0xff]
        %v356 = vld [vmem:[%s223 + $0xc0] sm:$0xff]
        %v357 = vld [vmem:[%s223 + $0xc8] sm:$0xff]
        %v358 = vld [vmem:[%s223 + $0xd0] sm:$0xff]
        %v359 = vld [vmem:[%s223 + $0xd8] sm:$0xff]
        %v360 = vld [vmem:[%s223 + $0xe0] sm:$0xff]
        %v361 = vld [vmem:[%s223 + $0xe8] sm:$0xff]
        %v362 = vld [vmem:[%s223 + $0xf0] sm:$0xff]
        %v363 = vld [vmem:[%s223 + $0xf8] sm:$0xff]
        %v364 = vld [vmem:[%s223 + $0x100] sm:$0xff]
        %v365 = vld [vmem:[%s223 + $0x108] sm:$0xff]
        %v366 = vld [vmem:[%s223 + $0x110] sm:$0xff]
        %v367 = vld [vmem:[%s223 + $0x118] sm:$0xff]
        %v368 = vld [vmem:[%s223 + $0x120] sm:$0xff]
        %v369 = vld [vmem:[%s223 + $0x128] sm:$0xff]
        %v370 = vld [vmem:[%s223 + $0x130] sm:$0xff]
        %v371 = vld [vmem:[%s223 + $0x138] sm:$0xff]
        %v372 = vld [vmem:[%s223 + $0x140] sm:$0xff]
        %v373 = vld [vmem:[%s223 + $0x148] sm:$0xff]
        %v374 = vld [vmem:[%s223 + $0x150] sm:$0xff]
        %v375 = vld [vmem:[%s223 + $0x158] sm:$0xff]
        %v376 = vld [vmem:[%s223 + $0x160] sm:$0xff]
        %v377 = vld [vmem:[%s223 + $0x168] sm:$0xff]
        %v378 = vld [vmem:[%s223 + $0x170] sm:$0xff]
        %v379 = vld [vmem:[%s223 + $0x178] sm:$0xff]
        %v380 = vld [vmem:[%s223 + $0x180] sm:$0xff]
        %v381 = vld [vmem:[%s223 + $0x188] sm:$0xff]
        %v382 = vld [vmem:[%s223 + $0x190] sm:$0xff]
        %v383 = vld [vmem:[%s223 + $0x198] sm:$0xff]
        %v384 = vld [vmem:[%s223 + $0x1a0] sm:$0xff]
        %v385 = vld [vmem:[%s223 + $0x1a8] sm:$0xff]
        %v386 = vld [vmem:[%s223 + $0x1b0] sm:$0xff]
        %v387 = vld [vmem:[%s223 + $0x1b8] sm:$0xff]
        %v388 = vld [vmem:[%s223 + $0x1c0] sm:$0xff]
        %v389 = vld [vmem:[%s223 + $0x1c8] sm:$0xff]
        %v390 = vld [vmem:[%s223 + $0x1d0] sm:$0xff]
        %v391 = vld [vmem:[%s223 + $0x1d8] sm:$0xff]
        %v392 = vld [vmem:[%s223 + $0x1e0] sm:$0xff]
        %v393 = vld [vmem:[%s223 + $0x1e8] sm:$0xff]
        %v394 = vld [vmem:[%s223 + $0x1f0] sm:$0xff]
        %v395 = vld [vmem:[%s223 + $0x1f8] sm:$0xff]
        %v396 = vld [vmem:[%s223 + $0x200] sm:$0xff]
        %v397 = vld [vmem:[%s223 + $0x208] sm:$0xff]
        %v398 = vld [vmem:[%s223 + $0x210] sm:$0xff]
        %v399 = vld [vmem:[%s223 + $0x218] sm:$0xff]
        %v400 = vld [vmem:[%s223 + $0x220] sm:$0xff]
        %v401 = vld [vmem:[%s223 + $0x228] sm:$0xff]
        %v402 = vld [vmem:[%s223 + $0x230] sm:$0xff]
        %v403 = vld [vmem:[%s223 + $0x238] sm:$0xff]
        %v404 = vld [vmem:[%s223 + $0x240] sm:$0xff]
        %v405 = vld [vmem:[%s223 + $0x248] sm:$0xff]
        %v406 = vld [vmem:[%s223 + $0x250] sm:$0xff]
        %v407 = vld [vmem:[%s223 + $0x258] sm:$0xff]
        %v408 = vld [vmem:[%s223 + $0x260] sm:$0xff]
        %v409 = vld [vmem:[%s223 + $0x268] sm:$0xff]
        %v410 = vld [vmem:[%s223 + $0x270] sm:$0xff]
        %v411 = vld [vmem:[%s223 + $0x278] sm:$0xff]
        %v412 = vld [vmem:[%s223 + $0x280] sm:$0xff]
        %v413 = vld [vmem:[%s223 + $0x288] sm:$0xff]
        %v414 = vld [vmem:[%s223 + $0x290] sm:$0xff]
        %v415 = vld [vmem:[%s223 + $0x298] sm:$0xff]
        %v416 = vld [vmem:[%s223 + $0x2a0] sm:$0xff]
        %v417 = vld [vmem:[%s223 + $0x2a8] sm:$0xff]
        %v418 = vld [vmem:[%s223 + $0x2b0] sm:$0xff]
        %v419 = vld [vmem:[%s223 + $0x2b8] sm:$0xff]
        %v420 = vld [vmem:[%s223 + $0x2c0] sm:$0xff]
        %v421 = vld [vmem:[%s223 + $0x2c8] sm:$0xff]
        %v422 = vld [vmem:[%s223 + $0x2d0] sm:$0xff]
        %v423 = vld [vmem:[%s223 + $0x2d8] sm:$0xff]
        %v424 = vld [vmem:[%s223 + $0x2e0] sm:$0xff]
        %v425 = vld [vmem:[%s223 + $0x2e8] sm:$0xff]
        %v426 = vld [vmem:[%s223 + $0x2f0] sm:$0xff]
        %v427 = vld [vmem:[%s223 + $0x2f8] sm:$0xff]
        %v428 = vld [vmem:[%s223 + $0x300] sm:$0xff]
        %v429 = vld [vmem:[%s223 + $0x308] sm:$0xff]
        %v430 = vld [vmem:[%s223 + $0x310] sm:$0xff]
        %v431 = vld [vmem:[%s223 + $0x318] sm:$0xff]
        %v432 = vld [vmem:[%s223 + $0x320] sm:$0xff]
        %v433 = vld [vmem:[%s223 + $0x328] sm:$0xff]
        %v434 = vld [vmem:[%s223 + $0x330] sm:$0xff]
        %v435 = vld [vmem:[%s223 + $0x338] sm:$0xff]
        %v436 = vld [vmem:[%s223 + $0x340] sm:$0xff]
        %v437 = vld [vmem:[%s223 + $0x348] sm:$0xff]
        %v438 = vld [vmem:[%s223 + $0x350] sm:$0xff]
        %v439 = vld [vmem:[%s223 + $0x358] sm:$0xff]
        %v440 = vld [vmem:[%s223 + $0x360] sm:$0xff]
        %v441 = vld [vmem:[%s223 + $0x368] sm:$0xff]
        %v442 = vld [vmem:[%s223 + $0x370] sm:$0xff]
        %v443 = vld [vmem:[%s223 + $0x378] sm:$0xff]
        %v444 = vld [vmem:[%s223 + $0x380] sm:$0xff]
        %v445 = vld [vmem:[%s223 + $0x388] sm:$0xff]
        %v446 = vld [vmem:[%s223 + $0x390] sm:$0xff]
        %v447 = vld [vmem:[%s223 + $0x398] sm:$0xff]
        %v448 = vld [vmem:[%s223 + $0x3a0] sm:$0xff]
        %v449 = vld [vmem:[%s223 + $0x3a8] sm:$0xff]
        %v450 = vld [vmem:[%s223 + $0x3b0] sm:$0xff]
        %v451 = vld [vmem:[%s223 + $0x3b8] sm:$0xff]
        %v452 = vld [vmem:[%s223 + $0x3c0] sm:$0xff]
        %v453 = vld [vmem:[%s223 + $0x3c8] sm:$0xff]
        %v454 = vld [vmem:[%s223 + $0x3d0] sm:$0xff]
        %v455 = vld [vmem:[%s223 + $0x3d8] sm:$0xff]
        %v456 = vld [vmem:[%s223 + $0x3e0] sm:$0xff]
        %v457 = vld [vmem:[%s223 + $0x3e8] sm:$0xff]
        %v458 = vld [vmem:[%s223 + $0x3f0] sm:$0xff]
        %v459 = vld [vmem:[%s223 + $0x3f8] sm:$0xff]
        %v460 = vld [vmem:[%s223 + $0x400] sm:$0xff]
        %v461 = vld [vmem:[%s223 + $0x408] sm:$0xff]
        %v462 = vld [vmem:[%s223 + $0x410] sm:$0xff]
        %v463 = vld [vmem:[%s223 + $0x418] sm:$0xff]
        %v464 = vld [vmem:[%s223 + $0x420] sm:$0xff]
        %v465 = vld [vmem:[%s223 + $0x428] sm:$0xff]
        %v466 = vld [vmem:[%s223 + $0x430] sm:$0xff]
        %v467 = vld [vmem:[%s223 + $0x438] sm:$0xff]
        %v468 = vld [vmem:[%s223 + $0x440] sm:$0xff]
        %v469 = vld [vmem:[%s223 + $0x448] sm:$0xff]
        %v470 = vld [vmem:[%s223 + $0x450] sm:$0xff]
        %v471 = vld [vmem:[%s223 + $0x458] sm:$0xff]
        %v472 = vld [vmem:[%s223 + $0x460] sm:$0xff]
        %v473 = vld [vmem:[%s223 + $0x468] sm:$0xff]
        %v474 = vld [vmem:[%s223 + $0x470] sm:$0xff]
        %v475 = vld [vmem:[%s223 + $0x478] sm:$0xff]
        %v476 = vld [vmem:[%s223 + $0x480] sm:$0xff]
        %v477 = vld [vmem:[%s223 + $0x488] sm:$0xff]
        %v478 = vld [vmem:[%s223 + $0x490] sm:$0xff]
        %v479 = vld [vmem:[%s223 + $0x498] sm:$0xff]
        %v480 = vld [vmem:[%s223 + $0x4a0] sm:$0xff]
        %v481 = vld [vmem:[%s223 + $0x4a8] sm:$0xff]
        %v482 = vld [vmem:[%s223 + $0x4b0] sm:$0xff]
        %v483 = vld [vmem:[%s223 + $0x4b8] sm:$0xff]
        %v484 = vld [vmem:[%s223 + $0x4c0] sm:$0xff]
        %v485 = vld [vmem:[%s223 + $0x4c8] sm:$0xff]
        %v486 = vld [vmem:[%s223 + $0x4d0] sm:$0xff]
        %v487 = vld [vmem:[%s223 + $0x4d8] sm:$0xff]
        %v488 = vld [vmem:[%s223 + $0x4e0] sm:$0xff]
        %v489 = vld [vmem:[%s223 + $0x4e8] sm:$0xff]
        %v490 = vld [vmem:[%s223 + $0x4f0] sm:$0xff]
        %v491 = vld [vmem:[%s223 + $0x4f8] sm:$0xff]
        %v492 = vld [vmem:[%s223 + $0x500] sm:$0xff]
        %v493 = vld [vmem:[%s223 + $0x508] sm:$0xff]
        %v494 = vld [vmem:[%s223 + $0x510] sm:$0xff]
        %v495 = vld [vmem:[%s223 + $0x518] sm:$0xff]
        %v496 = vld [vmem:[%s223 + $0x520] sm:$0xff]
        %v497 = vld [vmem:[%s223 + $0x528] sm:$0xff]
        %v498 = vld [vmem:[%s223 + $0x530] sm:$0xff]
        %v499 = vld [vmem:[%s223 + $0x538] sm:$0xff]
        %v500 = vld [vmem:[%s223 + $0x540] sm:$0xff]
        %v501 = vld [vmem:[%s223 + $0x548] sm:$0xff]
        %v502 = vld [vmem:[%s223 + $0x550] sm:$0xff]
        %v503 = vld [vmem:[%s223 + $0x558] sm:$0xff]
        %v504 = vld [vmem:[%s223 + $0x560] sm:$0xff]
        %v505 = vld [vmem:[%s223 + $0x568] sm:$0xff]
        %v506 = vld [vmem:[%s223 + $0x570] sm:$0xff]
        %v507 = vld [vmem:[%s223 + $0x578] sm:$0xff]
        %v508 = vld [vmem:[%s223 + $0x580] sm:$0xff]
        %v509 = vld [vmem:[%s223 + $0x588] sm:$0xff]
        %v510 = vld [vmem:[%s223 + $0x590] sm:$0xff]
        %v511 = vld [vmem:[%s223 + $0x598] sm:$0xff]
        %v512 = vld [vmem:[%s223 + $0x5a0] sm:$0xff]
        %v513 = vld [vmem:[%s223 + $0x5a8] sm:$0xff]
        %v514 = vld [vmem:[%s223 + $0x5b0] sm:$0xff]
        %v515 = vld [vmem:[%s223 + $0x5b8] sm:$0xff]
        %v516 = vld [vmem:[%s223 + $0x5c0] sm:$0xff]
        %v517 = vld [vmem:[%s223 + $0x5c8] sm:$0xff]
        %v518 = vld [vmem:[%s223 + $0x5d0] sm:$0xff]
        %v519 = vld [vmem:[%s223 + $0x5d8] sm:$0xff]
        %v520 = vld [vmem:[%s223 + $0x5e0] sm:$0xff]
        %v521 = vld [vmem:[%s223 + $0x5e8] sm:$0xff]
        %v522 = vld [vmem:[%s223 + $0x5f0] sm:$0xff]
        %v523 = vld [vmem:[%s223 + $0x5f8] sm:$0xff]
        %v524 = vld [vmem:[%s223 + $0x600] sm:$0xff]
        %v525 = vld [vmem:[%s223 + $0x608] sm:$0xff]
        %v526 = vld [vmem:[%s223 + $0x610] sm:$0xff]
        %v527 = vld [vmem:[%s223 + $0x618] sm:$0xff]
        %v528 = vld [vmem:[%s223 + $0x620] sm:$0xff]
        %v529 = vld [vmem:[%s223 + $0x628] sm:$0xff]
        %v530 = vld [vmem:[%s223 + $0x630] sm:$0xff]
        %v531 = vld [vmem:[%s223 + $0x638] sm:$0xff]
        %v532 = vld [vmem:[%s223 + $0x640] sm:$0xff]
        %v533 = vld [vmem:[%s223 + $0x648] sm:$0xff]
        %v534 = vld [vmem:[%s223 + $0x650] sm:$0xff]
        %v535 = vld [vmem:[%s223 + $0x658] sm:$0xff]
        %v536 = vld [vmem:[%s223 + $0x660] sm:$0xff]
        %v537 = vld [vmem:[%s223 + $0x668] sm:$0xff]
        %v538 = vld [vmem:[%s223 + $0x670] sm:$0xff]
        %v539 = vld [vmem:[%s223 + $0x678] sm:$0xff]
        %v540 = vld [vmem:[%s223 + $0x680] sm:$0xff]
        %v541 = vld [vmem:[%s223 + $0x688] sm:$0xff]
        %v542 = vld [vmem:[%s223 + $0x690] sm:$0xff]
        %v543 = vld [vmem:[%s223 + $0x698] sm:$0xff]
        %v544 = vld [vmem:[%s223 + $0x6a0] sm:$0xff]
        %v545 = vld [vmem:[%s223 + $0x6a8] sm:$0xff]
        %v546 = vld [vmem:[%s223 + $0x6b0] sm:$0xff]
        %v547 = vld [vmem:[%s223 + $0x6b8] sm:$0xff]
        %v548 = vld [vmem:[%s223 + $0x6c0] sm:$0xff]
        %v549 = vld [vmem:[%s223 + $0x6c8] sm:$0xff]
        %v550 = vld [vmem:[%s223 + $0x6d0] sm:$0xff]
        %v551 = vld [vmem:[%s223 + $0x6d8] sm:$0xff]
        %v552 = vld [vmem:[%s223 + $0x6e0] sm:$0xff]
        %v553 = vld [vmem:[%s223 + $0x6e8] sm:$0xff]
        %v554 = vld [vmem:[%s223 + $0x6f0] sm:$0xff]
        %v555 = vld [vmem:[%s223 + $0x6f8] sm:$0xff]
        %v556 = vld [vmem:[%s223 + $0x700] sm:$0xff]
        %v557 = vld [vmem:[%s223 + $0x708] sm:$0xff]
        %v558 = vld [vmem:[%s223 + $0x710] sm:$0xff]
        %v559 = vld [vmem:[%s223 + $0x718] sm:$0xff]
        %v560 = vld [vmem:[%s223 + $0x720] sm:$0xff]
        %v561 = vld [vmem:[%s223 + $0x728] sm:$0xff]
        %v562 = vld [vmem:[%s223 + $0x730] sm:$0xff]
        %v563 = vld [vmem:[%s223 + $0x738] sm:$0xff]
        %v564 = vld [vmem:[%s223 + $0x740] sm:$0xff]
        %v565 = vld [vmem:[%s223 + $0x748] sm:$0xff]
        %v566 = vld [vmem:[%s223 + $0x750] sm:$0xff]
        %v567 = vld [vmem:[%s223 + $0x758] sm:$0xff]
        %v568 = vld [vmem:[%s223 + $0x760] sm:$0xff]
        %v569 = vld [vmem:[%s223 + $0x768] sm:$0xff]
        %v570 = vld [vmem:[%s223 + $0x770] sm:$0xff]
        %v571 = vld [vmem:[%s223 + $0x778] sm:$0xff]
        %v572 = vld [vmem:[%s223 + $0x780] sm:$0xff]
        %v573 = vld [vmem:[%s223 + $0x788] sm:$0xff]
        %v574 = vld [vmem:[%s223 + $0x790] sm:$0xff]
        %v575 = vld [vmem:[%s223 + $0x798] sm:$0xff]
        %v576 = vld [vmem:[%s223 + $0x7a0] sm:$0xff]
        %v577 = vld [vmem:[%s223 + $0x7a8] sm:$0xff]
        %v578 = vld [vmem:[%s223 + $0x7b0] sm:$0xff]
        %v579 = vld [vmem:[%s223 + $0x7b8] sm:$0xff]
        %v580 = vld [vmem:[%s223 + $0x7c0] sm:$0xff]
        %v581 = vld [vmem:[%s223 + $0x7c8] sm:$0xff]
        %v582 = vld [vmem:[%s223 + $0x7d0] sm:$0xff]
        %v583 = vld [vmem:[%s223 + $0x7d8] sm:$0xff]
        %v584 = vld [vmem:[%s223 + $0x7e0] sm:$0xff]
        %v585 = vld [vmem:[%s223 + $0x7e8] sm:$0xff]
        %v586 = vld [vmem:[%s223 + $0x7f0] sm:$0xff]
        %v587 = vld [vmem:[%s223 + $0x7f8] sm:$0xff]
        %v588 = vld [vmem:[%s223 + $0x800] sm:$0xff]
        %v589 = vld [vmem:[%s223 + $0x808] sm:$0xff]
        %v590 = vld [vmem:[%s223 + $0x810] sm:$0xff]
        %v591 = vld [vmem:[%s223 + $0x818] sm:$0xff]
        %v592 = vld [vmem:[%s223 + $0x820] sm:$0xff]
        %v593 = vld [vmem:[%s223 + $0x828] sm:$0xff]
        %v594 = vld [vmem:[%s223 + $0x830] sm:$0xff]
        %v595 = vld [vmem:[%s223 + $0x838] sm:$0xff]
        %v596 = vld [vmem:[%s223 + $0x840] sm:$0xff]
        %v597 = vld [vmem:[%s223 + $0x848] sm:$0xff]
        %v598 = vld [vmem:[%s223 + $0x850] sm:$0xff]
        %v599 = vld [vmem:[%s223 + $0x858] sm:$0xff]
        %v600 = vld [vmem:[%s223 + $0x860] sm:$0xff]
        %v601 = vld [vmem:[%s223 + $0x868] sm:$0xff]
        %v602 = vld [vmem:[%s223 + $0x870] sm:$0xff]
        %v603 = vld [vmem:[%s223 + $0x878] sm:$0xff]
        %v604 = vld [vmem:[%s223 + $0x880] sm:$0xff]
        %v605 = vld [vmem:[%s223 + $0x888] sm:$0xff]
        %v606 = vld [vmem:[%s223 + $0x890] sm:$0xff]
        %v607 = vld [vmem:[%s223 + $0x898] sm:$0xff]
        %v608 = vld [vmem:[%s223 + $0x8a0] sm:$0xff]
        %v609 = vld [vmem:[%s223 + $0x8a8] sm:$0xff]
        %v610 = vld [vmem:[%s223 + $0x8b0] sm:$0xff]
        %v611 = vld [vmem:[%s223 + $0x8b8] sm:$0xff]
        %v612 = vld [vmem:[%s223 + $0x8c0] sm:$0xff]
        %v613 = vld [vmem:[%s223 + $0x8c8] sm:$0xff]
        %v614 = vld [vmem:[%s223 + $0x8d0] sm:$0xff]
        %v615 = vld [vmem:[%s223 + $0x8d8] sm:$0xff]
        %v616 = vld [vmem:[%s223 + $0x8e0] sm:$0xff]
        %v617 = vld [vmem:[%s223 + $0x8e8] sm:$0xff]
        %v618 = vld [vmem:[%s223 + $0x8f0] sm:$0xff]
        %v619 = vld [vmem:[%s223 + $0x8f8] sm:$0xff]
        %v620 = vld [vmem:[%s223 + $0x900] sm:$0xff]
        %v621 = vld [vmem:[%s223 + $0x908] sm:$0xff]
        %v622 = vld [vmem:[%s223 + $0x910] sm:$0xff]
        %v623 = vld [vmem:[%s223 + $0x918] sm:$0xff]
        %v624 = vld [vmem:[%s223 + $0x920] sm:$0xff]
        %v625 = vld [vmem:[%s223 + $0x928] sm:$0xff]
        %v626 = vld [vmem:[%s223 + $0x930] sm:$0xff]
        %v627 = vld [vmem:[%s223 + $0x938] sm:$0xff]
        %v628 = vld [vmem:[%s223 + $0x940] sm:$0xff]
        %v629 = vld [vmem:[%s223 + $0x948] sm:$0xff]
        %v630 = vld [vmem:[%s223 + $0x950] sm:$0xff]
        %v631 = vld [vmem:[%s223 + $0x958] sm:$0xff]
        %v632 = vld [vmem:[%s223 + $0x960] sm:$0xff]
        %v633 = vld [vmem:[%s223 + $0x968] sm:$0xff]
        %v634 = vld [vmem:[%s223 + $0x970] sm:$0xff]
        %v635 = vld [vmem:[%s223 + $0x978] sm:$0xff]
        %v636 = vld [vmem:[%s223 + $0x980] sm:$0xff]
        %v637 = vld [vmem:[%s223 + $0x988] sm:$0xff]
        %v638 = vld [vmem:[%s223 + $0x990] sm:$0xff]
        %v639 = vld [vmem:[%s223 + $0x998] sm:$0xff]
        %v640 = vld [vmem:[%s223 + $0x9a0] sm:$0xff]
        %v641 = vld [vmem:[%s223 + $0x9a8] sm:$0xff]
        %v642 = vld [vmem:[%s223 + $0x9b0] sm:$0xff]
        %v643 = vld [vmem:[%s223 + $0x9b8] sm:$0xff]
        %v644 = vld [vmem:[%s223 + $0x9c0] sm:$0xff]
        %v645 = vld [vmem:[%s223 + $0x9c8] sm:$0xff]
        %v646 = vld [vmem:[%s223 + $0x9d0] sm:$0xff]
        %v647 = vld [vmem:[%s223 + $0x9d8] sm:$0xff]
        %v648 = vld [vmem:[%s223 + $0x9e0] sm:$0xff]
        %v649 = vld [vmem:[%s223 + $0x9e8] sm:$0xff]
        %v650 = vld [vmem:[%s223 + $0x9f0] sm:$0xff]
        %v651 = vld [vmem:[%s223 + $0x9f8] sm:$0xff]
        %v652 = vld [vmem:[%s223 + $0xa00] sm:$0xff]
        %v653 = vld [vmem:[%s223 + $0xa08] sm:$0xff]
        %v654 = vld [vmem:[%s223 + $0xa10] sm:$0xff]
        %v655 = vld [vmem:[%s223 + $0xa18] sm:$0xff]
        %v656 = vld [vmem:[%s223 + $0xa20] sm:$0xff]
        %v657 = vld [vmem:[%s223 + $0xa28] sm:$0xff]
        %v658 = vld [vmem:[%s223 + $0xa30] sm:$0xff]
        %v659 = vld [vmem:[%s223 + $0xa38] sm:$0xff]
        %v660 = vld [vmem:[%s223 + $0xa40] sm:$0xff]
        %v661 = vld [vmem:[%s223 + $0xa48] sm:$0xff]
        %v662 = vld [vmem:[%s223 + $0xa50] sm:$0xff]
        %v663 = vld [vmem:[%s223 + $0xa58] sm:$0xff]
        %v664 = vld [vmem:[%s223 + $0xa60] sm:$0xff]
        %v665 = vld [vmem:[%s223 + $0xa68] sm:$0xff]
        %v666 = vld [vmem:[%s223 + $0xa70] sm:$0xff]
        %v667 = vld [vmem:[%s223 + $0xa78] sm:$0xff]
        %v668 = vld [vmem:[%s223 + $0xa80] sm:$0xff]
        %v669 = vld [vmem:[%s223 + $0xa88] sm:$0xff]
        %v670 = vld [vmem:[%s223 + $0xa90] sm:$0xff]
        %v671 = vld [vmem:[%s223 + $0xa98] sm:$0xff]
        %v672 = vld [vmem:[%s223 + $0xaa0] sm:$0xff]
        %v673 = vld [vmem:[%s223 + $0xaa8] sm:$0xff]
        %v674 = vld [vmem:[%s223 + $0xab0] sm:$0xff]
        %v675 = vld [vmem:[%s223 + $0xab8] sm:$0xff]
        %v676 = vld [vmem:[%s223 + $0xac0] sm:$0xff]
        %v677 = vld [vmem:[%s223 + $0xac8] sm:$0xff]
        %v678 = vld [vmem:[%s223 + $0xad0] sm:$0xff]
        %v679 = vld [vmem:[%s223 + $0xad8] sm:$0xff]
        %v680 = vld [vmem:[%s223 + $0xae0] sm:$0xff]
        %v681 = vld [vmem:[%s223 + $0xae8] sm:$0xff]
        %v682 = vld [vmem:[%s223 + $0xaf0] sm:$0xff]
        %v683 = vld [vmem:[%s223 + $0xaf8] sm:$0xff]
        %v684 = vld [vmem:[%s223 + $0xb00] sm:$0xff]
        %v685 = vld [vmem:[%s223 + $0xb08] sm:$0xff]
        %v686 = vld [vmem:[%s223 + $0xb10] sm:$0xff]
        %v687 = vld [vmem:[%s223 + $0xb18] sm:$0xff]
        %v688 = vld [vmem:[%s223 + $0xb20] sm:$0xff]
        %v689 = vld [vmem:[%s223 + $0xb28] sm:$0xff]
        %v690 = vld [vmem:[%s223 + $0xb30] sm:$0xff]
        %v691 = vld [vmem:[%s223 + $0xb38] sm:$0xff]
        %v692 = vld [vmem:[%s223 + $0xb40] sm:$0xff]
        %v693 = vld [vmem:[%s223 + $0xb48] sm:$0xff]
        %v694 = vld [vmem:[%s223 + $0xb50] sm:$0xff]
        %v695 = vld [vmem:[%s223 + $0xb58] sm:$0xff]
        %v696 = vld [vmem:[%s223 + $0xb60] sm:$0xff]
        %v697 = vld [vmem:[%s223 + $0xb68] sm:$0xff]
        %v698 = vld [vmem:[%s223 + $0xb70] sm:$0xff]
        %v699 = vld [vmem:[%s223 + $0xb78] sm:$0xff]
        %v700 = vld [vmem:[%s223 + $0xb80] sm:$0xff]
        %v701 = vld [vmem:[%s223 + $0xb88] sm:$0xff]
        %v702 = vld [vmem:[%s223 + $0xb90] sm:$0xff]
        %v703 = vld [vmem:[%s223 + $0xb98] sm:$0xff]
        %v704 = vld [vmem:[%s223 + $0xba0] sm:$0xff]
        %v705 = vld [vmem:[%s223 + $0xba8] sm:$0xff]
        %v706 = vld [vmem:[%s223 + $0xbb0] sm:$0xff]
        %v707 = vld [vmem:[%s223 + $0xbb8] sm:$0xff]
        %v708 = vld [vmem:[%s223 + $0xbc0] sm:$0xff]
        %v709 = vld [vmem:[%s223 + $0xbc8] sm:$0xff]
        %v710 = vld [vmem:[%s223 + $0xbd0] sm:$0xff]
        %v711 = vld [vmem:[%s223 + $0xbd8] sm:$0xff]
        %v712 = vld [vmem:[%s223 + $0xbe0] sm:$0xff]
        %v713 = vld [vmem:[%s223 + $0xbe8] sm:$0xff]
        %v714 = vld [vmem:[%s223 + $0xbf0] sm:$0xff]
        %v715 = vld [vmem:[%s223 + $0xbf8] sm:$0xff]
        %v716 = vld [vmem:[%s223 + $0xc00] sm:$0xff]
        %v717 = vld [vmem:[%s223 + $0xc08] sm:$0xff]
        %v718 = vld [vmem:[%s223 + $0xc10] sm:$0xff]
        %v719 = vld [vmem:[%s223 + $0xc18] sm:$0xff]
        %v720 = vld [vmem:[%s223 + $0xc20] sm:$0xff]
        %v721 = vld [vmem:[%s223 + $0xc28] sm:$0xff]
        %v722 = vld [vmem:[%s223 + $0xc30] sm:$0xff]
        %v723 = vld [vmem:[%s223 + $0xc38] sm:$0xff]
        %v724 = vld [vmem:[%s223 + $0xc40] sm:$0xff]
        %v725 = vld [vmem:[%s223 + $0xc48] sm:$0xff]
        %v726 = vld [vmem:[%s223 + $0xc50] sm:$0xff]
        %v727 = vld [vmem:[%s223 + $0xc58] sm:$0xff]
        %v728 = vld [vmem:[%s223 + $0xc60] sm:$0xff]
        %v729 = vld [vmem:[%s223 + $0xc68] sm:$0xff]
        %v730 = vld [vmem:[%s223 + $0xc70] sm:$0xff]
        %v731 = vld [vmem:[%s223 + $0xc78] sm:$0xff]
        %v732 = vld [vmem:[%s223 + $0xc80] sm:$0xff]
        %v733 = vld [vmem:[%s223 + $0xc88] sm:$0xff]
        %v734 = vld [vmem:[%s223 + $0xc90] sm:$0xff]
        %v735 = vld [vmem:[%s223 + $0xc98] sm:$0xff]
        %v736 = vld [vmem:[%s223 + $0xca0] sm:$0xff]
        %v737 = vld [vmem:[%s223 + $0xca8] sm:$0xff]
        %v738 = vld [vmem:[%s223 + $0xcb0] sm:$0xff]
        %v739 = vld [vmem:[%s223 + $0xcb8] sm:$0xff]
        %v740 = vld [vmem:[%s223 + $0xcc0] sm:$0xff]
        %v741 = vld [vmem:[%s223 + $0xcc8] sm:$0xff]
        %v742 = vld [vmem:[%s223 + $0xcd0] sm:$0xff]
        %v743 = vld [vmem:[%s223 + $0xcd8] sm:$0xff]
        %v744 = vld [vmem:[%s223 + $0xce0] sm:$0xff]
        %v745 = vld [vmem:[%s223 + $0xce8] sm:$0xff]
        %v746 = vld [vmem:[%s223 + $0xcf0] sm:$0xff]
        %v747 = vld [vmem:[%s223 + $0xcf8] sm:$0xff]
        %v748 = vld [vmem:[%s223 + $0xd00] sm:$0xff]
        %v749 = vld [vmem:[%s223 + $0xd08] sm:$0xff]
        %v750 = vld [vmem:[%s223 + $0xd10] sm:$0xff]
        %v751 = vld [vmem:[%s223 + $0xd18] sm:$0xff]
        %v752 = vld [vmem:[%s223 + $0xd20] sm:$0xff]
        %v753 = vld [vmem:[%s223 + $0xd28] sm:$0xff]
        %v754 = vld [vmem:[%s223 + $0xd30] sm:$0xff]
        %v755 = vld [vmem:[%s223 + $0xd38] sm:$0xff]
        %v756 = vld [vmem:[%s223 + $0xd40] sm:$0xff]
        %v757 = vld [vmem:[%s223 + $0xd48] sm:$0xff]
        %v758 = vld [vmem:[%s223 + $0xd50] sm:$0xff]
        %v759 = vld [vmem:[%s223 + $0xd58] sm:$0xff]
        %v760 = vld [vmem:[%s223 + $0xd60] sm:$0xff]
        %v761 = vld [vmem:[%s223 + $0xd68] sm:$0xff]
        %v762 = vld [vmem:[%s223 + $0xd70] sm:$0xff]
        %v763 = vld [vmem:[%s223 + $0xd78] sm:$0xff]
        %v764 = vld [vmem:[%s223 + $0xd80] sm:$0xff]
        %v765 = vld [vmem:[%s223 + $0xd88] sm:$0xff]
        %v766 = vld [vmem:[%s223 + $0xd90] sm:$0xff]
        %v767 = vld [vmem:[%s223 + $0xd98] sm:$0xff]
        %v768 = vld [vmem:[%s223 + $0xda0] sm:$0xff]
        %v769 = vld [vmem:[%s223 + $0xda8] sm:$0xff]
        %v770 = vld [vmem:[%s223 + $0xdb0] sm:$0xff]
        %v771 = vld [vmem:[%s223 + $0xdb8] sm:$0xff]
        %v772 = vld [vmem:[%s223 + $0xdc0] sm:$0xff]
        %v773 = vld [vmem:[%s223 + $0xdc8] sm:$0xff]
        %v774 = vld [vmem:[%s223 + $0xdd0] sm:$0xff]
        %v775 = vld [vmem:[%s223 + $0xdd8] sm:$0xff]
        %v776 = vld [vmem:[%s223 + $0xde0] sm:$0xff]
        %v777 = vld [vmem:[%s223 + $0xde8] sm:$0xff]
        %v778 = vld [vmem:[%s223 + $0xdf0] sm:$0xff]
        %v779 = vld [vmem:[%s223 + $0xdf8] sm:$0xff]
        %v780 = vld [vmem:[%s223 + $0xe00] sm:$0xff]
        %v781 = vld [vmem:[%s223 + $0xe08] sm:$0xff]
        %v782 = vld [vmem:[%s223 + $0xe10] sm:$0xff]
        %v783 = vld [vmem:[%s223 + $0xe18] sm:$0xff]
        %v784 = vld [vmem:[%s223 + $0xe20] sm:$0xff]
        %v785 = vld [vmem:[%s223 + $0xe28] sm:$0xff]
        %v786 = vld [vmem:[%s223 + $0xe30] sm:$0xff]
        %v787 = vld [vmem:[%s223 + $0xe38] sm:$0xff]
        %v788 = vld [vmem:[%s223 + $0xe40] sm:$0xff]
        %v789 = vld [vmem:[%s223 + $0xe48] sm:$0xff]
        %v790 = vld [vmem:[%s223 + $0xe50] sm:$0xff]
        %v791 = vld [vmem:[%s223 + $0xe58] sm:$0xff]
        %v792 = vld [vmem:[%s223 + $0xe60] sm:$0xff]
        %v793 = vld [vmem:[%s223 + $0xe68] sm:$0xff]
        %v794 = vld [vmem:[%s223 + $0xe70] sm:$0xff]
        %v795 = vld [vmem:[%s223 + $0xe78] sm:$0xff]
        %v796 = vld [vmem:[%s223 + $0xe80] sm:$0xff]
        %v797 = vld [vmem:[%s223 + $0xe88] sm:$0xff]
        %v798 = vld [vmem:[%s223 + $0xe90] sm:$0xff]
        %v799 = vld [vmem:[%s223 + $0xe98] sm:$0xff]
        %v800 = vld [vmem:[%s223 + $0xea0] sm:$0xff]
        %v801 = vld [vmem:[%s223 + $0xea8] sm:$0xff]
        %v802 = vld [vmem:[%s223 + $0xeb0] sm:$0xff]
        %v803 = vld [vmem:[%s223 + $0xeb8] sm:$0xff]
        %v804 = vld [vmem:[%s223 + $0xec0] sm:$0xff]
        %v805 = vld [vmem:[%s223 + $0xec8] sm:$0xff]
        %v806 = vld [vmem:[%s223 + $0xed0] sm:$0xff]
        %v807 = vld [vmem:[%s223 + $0xed8] sm:$0xff]
        %v808 = vld [vmem:[%s223 + $0xee0] sm:$0xff]
        %v809 = vld [vmem:[%s223 + $0xee8] sm:$0xff]
        %v810 = vld [vmem:[%s223 + $0xef0] sm:$0xff]
        %v811 = vld [vmem:[%s223 + $0xef8] sm:$0xff]
        %v812 = vld [vmem:[%s223 + $0xf00] sm:$0xff]
        %v813 = vld [vmem:[%s223 + $0xf08] sm:$0xff]
        %v814 = vld [vmem:[%s223 + $0xf10] sm:$0xff]
        %v815 = vld [vmem:[%s223 + $0xf18] sm:$0xff]
        %v816 = vld [vmem:[%s223 + $0xf20] sm:$0xff]
        %v817 = vld [vmem:[%s223 + $0xf28] sm:$0xff]
        %v818 = vld [vmem:[%s223 + $0xf30] sm:$0xff]
        %v819 = vld [vmem:[%s223 + $0xf38] sm:$0xff]
        %v820 = vld [vmem:[%s223 + $0xf40] sm:$0xff]
        %v821 = vld [vmem:[%s223 + $0xf48] sm:$0xff]
        %v822 = vld [vmem:[%s223 + $0xf50] sm:$0xff]
        %v823 = vld [vmem:[%s223 + $0xf58] sm:$0xff]
        %v824 = vld [vmem:[%s223 + $0xf60] sm:$0xff]
        %v825 = vld [vmem:[%s223 + $0xf68] sm:$0xff]
        %v826 = vld [vmem:[%s223 + $0xf70] sm:$0xff]
        %v827 = vld [vmem:[%s223 + $0xf78] sm:$0xff]
        %v828 = vld [vmem:[%s223 + $0xf80] sm:$0xff]
        %v829 = vld [vmem:[%s223 + $0xf88] sm:$0xff]
        %v830 = vld [vmem:[%s223 + $0xf90] sm:$0xff]
        %v831 = vld [vmem:[%s223 + $0xf98] sm:$0xff]
        %v832 = vld [vmem:[%s223 + $0xfa0] sm:$0xff]
        %v833 = vld [vmem:[%s223 + $0xfa8] sm:$0xff]
        %v834 = vld [vmem:[%s223 + $0xfb0] sm:$0xff]
        %v835 = vld [vmem:[%s223 + $0xfb8] sm:$0xff]
        %v836 = vld [vmem:[%s223 + $0xfc0] sm:$0xff]
        %v837 = vld [vmem:[%s223 + $0xfc8] sm:$0xff]
        %v838 = vld [vmem:[%s223 + $0xfd0] sm:$0xff]
        %v839 = vld [vmem:[%s223 + $0xfd8] sm:$0xff]
        %v840 = vld [vmem:[%s223 + $0xfe0] sm:$0xff]
        %v841 = vld [vmem:[%s223 + $0xfe8] sm:$0xff]
        %v842 = vld [vmem:[%s223 + $0xff0] sm:$0xff]
        %v843 = vld [vmem:[%s223 + $0xff8] sm:$0xff]
        %v844 = vld [vmem:[%s223 + $0x1000] sm:$0xff]
        %v845 = vld [vmem:[%s223 + $0x1008] sm:$0xff]
        %v846 = vld [vmem:[%s223 + $0x1010] sm:$0xff]
        %v847 = vld [vmem:[%s223 + $0x1018] sm:$0xff]
        %v848 = vld [vmem:[%s223 + $0x1020] sm:$0xff]
        %v849 = vld [vmem:[%s223 + $0x1028] sm:$0xff]
        %v850 = vld [vmem:[%s223 + $0x1030] sm:$0xff]
        %v851 = vld [vmem:[%s223 + $0x1038] sm:$0xff]
        %v852 = vld [vmem:[%s223 + $0x1040] sm:$0xff]
        %v853 = vld [vmem:[%s223 + $0x1048] sm:$0xff]
        %v854 = vld [vmem:[%s223 + $0x1050] sm:$0xff]
        %v855 = vld [vmem:[%s223 + $0x1058] sm:$0xff]
        %v856 = vld [vmem:[%s223 + $0x1060] sm:$0xff]
        %v857 = vld [vmem:[%s223 + $0x1068] sm:$0xff]
        %v858 = vld [vmem:[%s223 + $0x1070] sm:$0xff]
        %v859 = vld [vmem:[%s223 + $0x1078] sm:$0xff]
        %v860 = vld [vmem:[%s223 + $0x1080] sm:$0xff]
        %v861 = vld [vmem:[%s223 + $0x1088] sm:$0xff]
        %v862 = vld [vmem:[%s223 + $0x1090] sm:$0xff]
        %v863 = vld [vmem:[%s223 + $0x1098] sm:$0xff]
        %v864 = vld [vmem:[%s223 + $0x10a0] sm:$0xff]
        %v865 = vld [vmem:[%s223 + $0x10a8] sm:$0xff]
        %v866 = vld [vmem:[%s223 + $0x10b0] sm:$0xff]
        %v867 = vld [vmem:[%s223 + $0x10b8] sm:$0xff]
        %v868 = vld [vmem:[%s223 + $0x10c0] sm:$0xff]
        %v869 = vld [vmem:[%s223 + $0x10c8] sm:$0xff]
        %v870 = vld [vmem:[%s223 + $0x10d0] sm:$0xff]
        %v871 = vld [vmem:[%s223 + $0x10d8] sm:$0xff]
        %v872 = vld [vmem:[%s223 + $0x10e0] sm:$0xff]
        %v873 = vld [vmem:[%s223 + $0x10e8] sm:$0xff]
        %v874 = vld [vmem:[%s223 + $0x10f0] sm:$0xff]
        %v875 = vld [vmem:[%s223 + $0x10f8] sm:$0xff]
        %v876 = vld [vmem:[%s223 + $0x1100] sm:$0xff]
        %v877 = vld [vmem:[%s223 + $0x1108] sm:$0xff]
        %v878 = vld [vmem:[%s223 + $0x1110] sm:$0xff]
        %v879 = vld [vmem:[%s223 + $0x1118] sm:$0xff]
        %v880 = vld [vmem:[%s223 + $0x1120] sm:$0xff]
        %v881 = vld [vmem:[%s223 + $0x1128] sm:$0xff]
        %v882 = vld [vmem:[%s223 + $0x1130] sm:$0xff]
        %v883 = vld [vmem:[%s223 + $0x1138] sm:$0xff]
        %v884 = vld [vmem:[%s223 + $0x1140] sm:$0xff]
        %v885 = vld [vmem:[%s223 + $0x1148] sm:$0xff]
        %v886 = vld [vmem:[%s223 + $0x1150] sm:$0xff]
        %v887 = vld [vmem:[%s223 + $0x1158] sm:$0xff]
        %v888 = vld [vmem:[%s223 + $0x1160] sm:$0xff]
        %v889 = vld [vmem:[%s223 + $0x1168] sm:$0xff]
        %v890 = vld [vmem:[%s223 + $0x1170] sm:$0xff]
        %v891 = vld [vmem:[%s223 + $0x1178] sm:$0xff]
        %v892 = vld [vmem:[%s223 + $0x1180] sm:$0xff]
        %v893 = vld [vmem:[%s223 + $0x1188] sm:$0xff]
        %v894 = vld [vmem:[%s223 + $0x1190] sm:$0xff]
        %v895 = vld [vmem:[%s223 + $0x1198] sm:$0xff]
        %v896 = vld [vmem:[%s223 + $0x11a0] sm:$0xff]
        %v897 = vld [vmem:[%s223 + $0x11a8] sm:$0xff]
        %v898 = vld [vmem:[%s223 + $0x11b0] sm:$0xff]
        %v899 = vld [vmem:[%s223 + $0x11b8] sm:$0xff]
        %v900 = vld [vmem:[%s223 + $0x11c0] sm:$0xff]
        %v901 = vld [vmem:[%s223 + $0x11c8] sm:$0xff]
        %v902 = vld [vmem:[%s223 + $0x11d0] sm:$0xff]
        %v903 = vld [vmem:[%s223 + $0x11d8] sm:$0xff]
        %v904 = vld [vmem:[%s223 + $0x11e0] sm:$0xff]
        %v905 = vld [vmem:[%s223 + $0x11e8] sm:$0xff]
        %v906 = vld [vmem:[%s223 + $0x11f0] sm:$0xff]
        %v907 = vld [vmem:[%s223 + $0x11f8] sm:$0xff]
        %v908 = vld [vmem:[%s223 + $0x1200] sm:$0xff]
        %v909 = vld [vmem:[%s223 + $0x1208] sm:$0xff]
        %v910 = vld [vmem:[%s223 + $0x1210] sm:$0xff]
        %v911 = vld [vmem:[%s223 + $0x1218] sm:$0xff]
        %v912 = vld [vmem:[%s223 + $0x1220] sm:$0xff]
        %v913 = vld [vmem:[%s223 + $0x1228] sm:$0xff]
        %v914 = vld [vmem:[%s223 + $0x1230] sm:$0xff]
        %v915 = vld [vmem:[%s223 + $0x1238] sm:$0xff]
        %v916 = vld [vmem:[%s223 + $0x1240] sm:$0xff]
        %v917 = vld [vmem:[%s223 + $0x1248] sm:$0xff]
        %v918 = vld [vmem:[%s223 + $0x1250] sm:$0xff]
        %v919 = vld [vmem:[%s223 + $0x1258] sm:$0xff]
        %v920 = vld [vmem:[%s223 + $0x1260] sm:$0xff]
        %v921 = vld [vmem:[%s223 + $0x1268] sm:$0xff]
        %v922 = vld [vmem:[%s223 + $0x1270] sm:$0xff]
        %v923 = vld [vmem:[%s223 + $0x1278] sm:$0xff]
        %v924 = vld [vmem:[%s223 + $0x1280] sm:$0xff]
        %v925 = vld [vmem:[%s223 + $0x1288] sm:$0xff]
        %v926 = vld [vmem:[%s223 + $0x1290] sm:$0xff]
        %v927 = vld [vmem:[%s223 + $0x1298] sm:$0xff]
        %v928 = vld [vmem:[%s223 + $0x12a0] sm:$0xff]
        %v929 = vld [vmem:[%s223 + $0x12a8] sm:$0xff]
        %v930 = vld [vmem:[%s223 + $0x12b0] sm:$0xff]
        %v931 = vld [vmem:[%s223 + $0x12b8] sm:$0xff]
        %v932 = vld [vmem:[%s223 + $0x12c0] sm:$0xff]
        %v933 = vld [vmem:[%s223 + $0x12c8] sm:$0xff]
        %v934 = vld [vmem:[%s223 + $0x12d0] sm:$0xff]
        %v935 = vld [vmem:[%s223 + $0x12d8] sm:$0xff]
        %v936 = vld [vmem:[%s223 + $0x12e0] sm:$0xff]
        %v937 = vld [vmem:[%s223 + $0x12e8] sm:$0xff]
        %v938 = vld [vmem:[%s223 + $0x12f0] sm:$0xff]
        %v939 = vld [vmem:[%s223 + $0x12f8] sm:$0xff]
        %v940 = vld [vmem:[%s223 + $0x1300] sm:$0xff]
        %v941 = vld [vmem:[%s223 + $0x1308] sm:$0xff]
        %v942 = vld [vmem:[%s223 + $0x1310] sm:$0xff]
        %v943 = vld [vmem:[%s223 + $0x1318] sm:$0xff]
        %v944 = vld [vmem:[%s223 + $0x1320] sm:$0xff]
        %v945 = vld [vmem:[%s223 + $0x1328] sm:$0xff]
        %v946 = vld [vmem:[%s223 + $0x1330] sm:$0xff]
        %v947 = vld [vmem:[%s223 + $0x1338] sm:$0xff]
        %v948 = vld [vmem:[%s223 + $0x1340] sm:$0xff]
        %v949 = vld [vmem:[%s223 + $0x1348] sm:$0xff]
        %v950 = vld [vmem:[%s223 + $0x1350] sm:$0xff]
        %v951 = vld [vmem:[%s223 + $0x1358] sm:$0xff]
        %v952 = vld [vmem:[%s223 + $0x1360] sm:$0xff]
        %v953 = vld [vmem:[%s223 + $0x1368] sm:$0xff]
        %v954 = vld [vmem:[%s223 + $0x1370] sm:$0xff]
        %v955 = vld [vmem:[%s223 + $0x1378] sm:$0xff]
        %v956 = vld [vmem:[%s223 + $0x1380] sm:$0xff]
        %v957 = vld [vmem:[%s223 + $0x1388] sm:$0xff]
        %v958 = vld [vmem:[%s223 + $0x1390] sm:$0xff]
        %v959 = vld [vmem:[%s223 + $0x1398] sm:$0xff]
        %v960 = vld [vmem:[%s223 + $0x13a0] sm:$0xff]
        %v961 = vld [vmem:[%s223 + $0x13a8] sm:$0xff]
        %v962 = vld [vmem:[%s223 + $0x13b0] sm:$0xff]
        %v963 = vld [vmem:[%s223 + $0x13b8] sm:$0xff]
        %v964 = vld [vmem:[%s223 + $0x13c0] sm:$0xff]
        %v965 = vld [vmem:[%s223 + $0x13c8] sm:$0xff]
        %v966 = vld [vmem:[%s223 + $0x13d0] sm:$0xff]
        %v967 = vld [vmem:[%s223 + $0x13d8] sm:$0xff]
        %v968 = vld [vmem:[%s223 + $0x13e0] sm:$0xff]
        %v969 = vld [vmem:[%s223 + $0x13e8] sm:$0xff]
        %v970 = vld [vmem:[%s223 + $0x13f0] sm:$0xff]
        %v971 = vld [vmem:[%s223 + $0x13f8] sm:$0xff]
        %v972 = vld [vmem:[%s223 + $0x1400] sm:$0xff]
        %v973 = vld [vmem:[%s223 + $0x1408] sm:$0xff]
        %v974 = vld [vmem:[%s223 + $0x1410] sm:$0xff]
        %v975 = vld [vmem:[%s223 + $0x1418] sm:$0xff]
        %v976 = vld [vmem:[%s223 + $0x1420] sm:$0xff]
        %v977 = vld [vmem:[%s223 + $0x1428] sm:$0xff]
        %v978 = vld [vmem:[%s223 + $0x1430] sm:$0xff]
        %v979 = vld [vmem:[%s223 + $0x1438] sm:$0xff]
        %v980 = vld [vmem:[%s223 + $0x1440] sm:$0xff]
        %v981 = vld [vmem:[%s223 + $0x1448] sm:$0xff]
        %v982 = vld [vmem:[%s223 + $0x1450] sm:$0xff]
        %v983 = vld [vmem:[%s223 + $0x1458] sm:$0xff]
        %v984 = vld [vmem:[%s223 + $0x1460] sm:$0xff]
        %v985 = vld [vmem:[%s223 + $0x1468] sm:$0xff]
        %v986 = vld [vmem:[%s223 + $0x1470] sm:$0xff]
        %v987 = vld [vmem:[%s223 + $0x1478] sm:$0xff]
        %v988 = vld [vmem:[%s223 + $0x1480] sm:$0xff]
        %v989 = vld [vmem:[%s223 + $0x1488] sm:$0xff]
        %v990 = vld [vmem:[%s223 + $0x1490] sm:$0xff]
        %v991 = vld [vmem:[%s223 + $0x1498] sm:$0xff]
        %v992 = vld [vmem:[%s223 + $0x14a0] sm:$0xff]
        %v993 = vld [vmem:[%s223 + $0x14a8] sm:$0xff]
        %v994 = vld [vmem:[%s223 + $0x14b0] sm:$0xff]
        %v995 = vld [vmem:[%s223 + $0x14b8] sm:$0xff]
        %v996 = vld [vmem:[%s223 + $0x14c0] sm:$0xff]
        %v997 = vld [vmem:[%s223 + $0x14c8] sm:$0xff]
        %v998 = vld [vmem:[%s223 + $0x14d0] sm:$0xff]
        %v999 = vld [vmem:[%s223 + $0x14d8] sm:$0xff]
        %v1000 = vld [vmem:[%s223 + $0x14e0] sm:$0xff]
        %v1001 = vld [vmem:[%s223 + $0x14e8] sm:$0xff]
        %v1002 = vld [vmem:[%s223 + $0x14f0] sm:$0xff]
        %v1003 = vld [vmem:[%s223 + $0x14f8] sm:$0xff]
        %v1004 = vld [vmem:[%s223 + $0x1500] sm:$0xff]
        %v1005 = vld [vmem:[%s223 + $0x1508] sm:$0xff]
        %v1006 = vld [vmem:[%s223 + $0x1510] sm:$0xff]
        %v1007 = vld [vmem:[%s223 + $0x1518] sm:$0xff]
        %v1008 = vld [vmem:[%s223 + $0x1520] sm:$0xff]
        %v1009 = vld [vmem:[%s223 + $0x1528] sm:$0xff]
        %v1010 = vld [vmem:[%s223 + $0x1530] sm:$0xff]
        %v1011 = vld [vmem:[%s223 + $0x1538] sm:$0xff]
        %v1012 = vld [vmem:[%s223 + $0x1540] sm:$0xff]
        %v1013 = vld [vmem:[%s223 + $0x1548] sm:$0xff]
        %v1014 = vld [vmem:[%s223 + $0x1550] sm:$0xff]
        %v1015 = vld [vmem:[%s223 + $0x1558] sm:$0xff]
        %v1016 = vld [vmem:[%s223 + $0x1560] sm:$0xff]
        %v1017 = vld [vmem:[%s223 + $0x1568] sm:$0xff]
        %v1018 = vld [vmem:[%s223 + $0x1570] sm:$0xff]
        %v1019 = vld [vmem:[%s223 + $0x1578] sm:$0xff]
        %v1020 = vld [vmem:[%s223 + $0x1580] sm:$0xff]
        %v1021 = vld [vmem:[%s223 + $0x1588] sm:$0xff]
        %v1022 = vld [vmem:[%s223 + $0x1590] sm:$0xff]
        %v1023 = vld [vmem:[%s223 + $0x1598] sm:$0xff]
        %v1024 = vld [vmem:[%s223 + $0x15a0] sm:$0xff]
        %v1025 = vld [vmem:[%s223 + $0x15a8] sm:$0xff]
        %v1026 = vld [vmem:[%s223 + $0x15b0] sm:$0xff]
        %v1027 = vld [vmem:[%s223 + $0x15b8] sm:$0xff]
        %v1028 = vld [vmem:[%s223 + $0x15c0] sm:$0xff]
        %v1029 = vld [vmem:[%s223 + $0x15c8] sm:$0xff]
        %v1030 = vld [vmem:[%s223 + $0x15d0] sm:$0xff]
        %v1031 = vld [vmem:[%s223 + $0x15d8] sm:$0xff]
        %v1032 = vld [vmem:[%s223 + $0x15e0] sm:$0xff]
        %v1033 = vld [vmem:[%s223 + $0x15e8] sm:$0xff]
        %v1034 = vld [vmem:[%s223 + $0x15f0] sm:$0xff]
        %v1035 = vld [vmem:[%s223 + $0x15f8] sm:$0xff]
        %v1036 = vld [vmem:[%s223 + $0x1600] sm:$0xff]
        %v1037 = vld [vmem:[%s223 + $0x1608] sm:$0xff]
        %v1038 = vld [vmem:[%s223 + $0x1610] sm:$0xff]
        %v1039 = vld [vmem:[%s223 + $0x1618] sm:$0xff]
        %v1040 = vld [vmem:[%s223 + $0x1620] sm:$0xff]
        %v1041 = vld [vmem:[%s223 + $0x1628] sm:$0xff]
        %v1042 = vld [vmem:[%s223 + $0x1630] sm:$0xff]
        %v1043 = vld [vmem:[%s223 + $0x1638] sm:$0xff]
        %v1044 = vld [vmem:[%s223 + $0x1640] sm:$0xff]
        %v1045 = vld [vmem:[%s223 + $0x1648] sm:$0xff]
        %v1046 = vld [vmem:[%s223 + $0x1650] sm:$0xff]
        %v1047 = vld [vmem:[%s223 + $0x1658] sm:$0xff]
        %v1048 = vld [vmem:[%s223 + $0x1660] sm:$0xff]
        %v1049 = vld [vmem:[%s223 + $0x1668] sm:$0xff]
        %v1050 = vld [vmem:[%s223 + $0x1670] sm:$0xff]
        %v1051 = vld [vmem:[%s223 + $0x1678] sm:$0xff]
        %v1052 = vld [vmem:[%s223 + $0x1680] sm:$0xff]
        %v1053 = vld [vmem:[%s223 + $0x1688] sm:$0xff]
        %v1054 = vld [vmem:[%s223 + $0x1690] sm:$0xff]
        %v1055 = vld [vmem:[%s223 + $0x1698] sm:$0xff]
        %v1056 = vld [vmem:[%s223 + $0x16a0] sm:$0xff]
        %v1057 = vld [vmem:[%s223 + $0x16a8] sm:$0xff]
        %v1058 = vld [vmem:[%s223 + $0x16b0] sm:$0xff]
        %v1059 = vld [vmem:[%s223 + $0x16b8] sm:$0xff]
        %v1060 = vld [vmem:[%s223 + $0x16c0] sm:$0xff]
        %v1061 = vld [vmem:[%s223 + $0x16c8] sm:$0xff]
        %v1062 = vld [vmem:[%s223 + $0x16d0] sm:$0xff]
        %v1063 = vld [vmem:[%s223 + $0x16d8] sm:$0xff]
        %v1064 = vld [vmem:[%s223 + $0x16e0] sm:$0xff]
        %v1065 = vld [vmem:[%s223 + $0x16e8] sm:$0xff]
        %v1066 = vld [vmem:[%s223 + $0x16f0] sm:$0xff]
        %v1067 = vld [vmem:[%s223 + $0x16f8] sm:$0xff]
        %v1068 = vld [vmem:[%s223 + $0x1700] sm:$0xff]
        %v1069 = vld [vmem:[%s223 + $0x1708] sm:$0xff]
        %v1070 = vld [vmem:[%s223 + $0x1710] sm:$0xff]
        %v1071 = vld [vmem:[%s223 + $0x1718] sm:$0xff]
        %v1072 = vld [vmem:[%s223 + $0x1720] sm:$0xff]
        %v1073 = vld [vmem:[%s223 + $0x1728] sm:$0xff]
        %v1074 = vld [vmem:[%s223 + $0x1730] sm:$0xff]
        %v1075 = vld [vmem:[%s223 + $0x1738] sm:$0xff]
        %v1076 = vld [vmem:[%s223 + $0x1740] sm:$0xff]
        %v1077 = vld [vmem:[%s223 + $0x1748] sm:$0xff]
        %v1078 = vld [vmem:[%s223 + $0x1750] sm:$0xff]
        %v1079 = vld [vmem:[%s223 + $0x1758] sm:$0xff]
        %v1080 = vld [vmem:[%s223 + $0x1760] sm:$0xff]
        %v1081 = vld [vmem:[%s223 + $0x1768] sm:$0xff]
        %v1082 = vld [vmem:[%s223 + $0x1770] sm:$0xff]
        %v1083 = vld [vmem:[%s223 + $0x1778] sm:$0xff]
        %v1084 = vld [vmem:[%s223 + $0x1780] sm:$0xff]
        %v1085 = vld [vmem:[%s223 + $0x1788] sm:$0xff]
        %v1086 = vld [vmem:[%s223 + $0x1790] sm:$0xff]
        %v1087 = vld [vmem:[%s223 + $0x1798] sm:$0xff]
        %v1088 = vld [vmem:[%s223 + $0x17a0] sm:$0xff]
        %v1089 = vld [vmem:[%s223 + $0x17a8] sm:$0xff]
        %v1090 = vld [vmem:[%s223 + $0x17b0] sm:$0xff]
        %v1091 = vld [vmem:[%s223 + $0x17b8] sm:$0xff]
        %v1092 = vld [vmem:[%s223 + $0x17c0] sm:$0xff]
        %v1093 = vld [vmem:[%s223 + $0x17c8] sm:$0xff]
        %v1094 = vld [vmem:[%s223 + $0x17d0] sm:$0xff]
        %v1095 = vld [vmem:[%s223 + $0x17d8] sm:$0xff]
        %v1096 = vld [vmem:[%s223 + $0x17e0] sm:$0xff]
        %v1097 = vld [vmem:[%s223 + $0x17e8] sm:$0xff]
        %v1098 = vld [vmem:[%s223 + $0x17f0] sm:$0xff]
        %v1099 = vld [vmem:[%s223 + $0x17f8] sm:$0xff]
        %v1100 = vld [vmem:[%s223 + $0x1800] sm:$0xff]
        %v1101 = vld [vmem:[%s223 + $0x1808] sm:$0xff]
        %v1102 = vld [vmem:[%s223 + $0x1810] sm:$0xff]
        %v1103 = vld [vmem:[%s223 + $0x1818] sm:$0xff]
        %v1104 = vld [vmem:[%s223 + $0x1820] sm:$0xff]
        %v1105 = vld [vmem:[%s223 + $0x1828] sm:$0xff]
        %v1106 = vld [vmem:[%s223 + $0x1830] sm:$0xff]
        %v1107 = vld [vmem:[%s223 + $0x1838] sm:$0xff]
        %v1108 = vld [vmem:[%s223 + $0x1840] sm:$0xff]
        %v1109 = vld [vmem:[%s223 + $0x1848] sm:$0xff]
        %v1110 = vld [vmem:[%s223 + $0x1850] sm:$0xff]
        %v1111 = vld [vmem:[%s223 + $0x1858] sm:$0xff]
        %v1112 = vld [vmem:[%s223 + $0x1860] sm:$0xff]
        %v1113 = vld [vmem:[%s223 + $0x1868] sm:$0xff]
        %v1114 = vld [vmem:[%s223 + $0x1870] sm:$0xff]
        %v1115 = vld [vmem:[%s223 + $0x1878] sm:$0xff]
        %v1116 = vld [vmem:[%s223 + $0x1880] sm:$0xff]
        %v1117 = vld [vmem:[%s223 + $0x1888] sm:$0xff]
        %v1118 = vld [vmem:[%s223 + $0x1890] sm:$0xff]
        %v1119 = vld [vmem:[%s223 + $0x1898] sm:$0xff]
        %v1120 = vld [vmem:[%s223 + $0x18a0] sm:$0xff]
        %v1121 = vld [vmem:[%s223 + $0x18a8] sm:$0xff]
        %v1122 = vld [vmem:[%s223 + $0x18b0] sm:$0xff]
        %v1123 = vld [vmem:[%s223 + $0x18b8] sm:$0xff]
        %v1124 = vld [vmem:[%s223 + $0x18c0] sm:$0xff]
        %v1125 = vld [vmem:[%s223 + $0x18c8] sm:$0xff]
        %v1126 = vld [vmem:[%s223 + $0x18d0] sm:$0xff]
        %v1127 = vld [vmem:[%s223 + $0x18d8] sm:$0xff]
        %v1128 = vld [vmem:[%s223 + $0x18e0] sm:$0xff]
        %v1129 = vld [vmem:[%s223 + $0x18e8] sm:$0xff]
        %v1130 = vld [vmem:[%s223 + $0x18f0] sm:$0xff]
        %v1131 = vld [vmem:[%s223 + $0x18f8] sm:$0xff]
        %v1132 = vld [vmem:[%s223 + $0x1900] sm:$0xff]
        %v1133 = vld [vmem:[%s223 + $0x1908] sm:$0xff]
        %v1134 = vld [vmem:[%s223 + $0x1910] sm:$0xff]
        %v1135 = vld [vmem:[%s223 + $0x1918] sm:$0xff]
        %v1136 = vld [vmem:[%s223 + $0x1920] sm:$0xff]
        %v1137 = vld [vmem:[%s223 + $0x1928] sm:$0xff]
        %v1138 = vld [vmem:[%s223 + $0x1930] sm:$0xff]
        %v1139 = vld [vmem:[%s223 + $0x1938] sm:$0xff]
        %v1140 = vld [vmem:[%s223 + $0x1940] sm:$0xff]
        %v1141 = vld [vmem:[%s223 + $0x1948] sm:$0xff]
        %v1142 = vld [vmem:[%s223 + $0x1950] sm:$0xff]
        %v1143 = vld [vmem:[%s223 + $0x1958] sm:$0xff]
        %v1144 = vld [vmem:[%s223 + $0x1960] sm:$0xff]
        %v1145 = vld [vmem:[%s223 + $0x1968] sm:$0xff]
        %v1146 = vld [vmem:[%s223 + $0x1970] sm:$0xff]
        %v1147 = vld [vmem:[%s223 + $0x1978] sm:$0xff]
        %v1148 = vld [vmem:[%s223 + $0x1980] sm:$0xff]
        %v1149 = vld [vmem:[%s223 + $0x1988] sm:$0xff]
        %v1150 = vld [vmem:[%s223 + $0x1990] sm:$0xff]
        %v1151 = vld [vmem:[%s223 + $0x1998] sm:$0xff]
        %v1152 = vld [vmem:[%s223 + $0x19a0] sm:$0xff]
        %v1153 = vld [vmem:[%s223 + $0x19a8] sm:$0xff]
        %v1154 = vld [vmem:[%s223 + $0x19b0] sm:$0xff]
        %v1155 = vld [vmem:[%s223 + $0x19b8] sm:$0xff]
        %v1156 = vld [vmem:[%s223 + $0x19c0] sm:$0xff]
        %v1157 = vld [vmem:[%s223 + $0x19c8] sm:$0xff]
        %v1158 = vld [vmem:[%s223 + $0x19d0] sm:$0xff]
        %v1159 = vld [vmem:[%s223 + $0x19d8] sm:$0xff]
        %v1160 = vld [vmem:[%s223 + $0x19e0] sm:$0xff]
        %v1161 = vld [vmem:[%s223 + $0x19e8] sm:$0xff]
        %v1162 = vld [vmem:[%s223 + $0x19f0] sm:$0xff]
        %v1163 = vld [vmem:[%s223 + $0x19f8] sm:$0xff]
        %v1164 = vld [vmem:[%s223 + $0x1a00] sm:$0xff]
        %v1165 = vld [vmem:[%s223 + $0x1a08] sm:$0xff]
        %v1166 = vld [vmem:[%s223 + $0x1a10] sm:$0xff]
        %v1167 = vld [vmem:[%s223 + $0x1a18] sm:$0xff]
        %v1168 = vld [vmem:[%s223 + $0x1a20] sm:$0xff]
        %v1169 = vld [vmem:[%s223 + $0x1a28] sm:$0xff]
        %v1170 = vld [vmem:[%s223 + $0x1a30] sm:$0xff]
        %v1171 = vld [vmem:[%s223 + $0x1a38] sm:$0xff]
        %v1172 = vld [vmem:[%s223 + $0x1a40] sm:$0xff]
        %v1173 = vld [vmem:[%s223 + $0x1a48] sm:$0xff]
        %v1174 = vld [vmem:[%s223 + $0x1a50] sm:$0xff]
        %v1175 = vld [vmem:[%s223 + $0x1a58] sm:$0xff]
        %v1176 = vld [vmem:[%s223 + $0x1a60] sm:$0xff]
        %v1177 = vld [vmem:[%s223 + $0x1a68] sm:$0xff]
        %v1178 = vld [vmem:[%s223 + $0x1a70] sm:$0xff]
        %v1179 = vld [vmem:[%s223 + $0x1a78] sm:$0xff]
        %v1180 = vld [vmem:[%s223 + $0x1a80] sm:$0xff]
        %v1181 = vld [vmem:[%s223 + $0x1a88] sm:$0xff]
        %v1182 = vld [vmem:[%s223 + $0x1a90] sm:$0xff]
        %v1183 = vld [vmem:[%s223 + $0x1a98] sm:$0xff]
        %v1184 = vld [vmem:[%s223 + $0x1aa0] sm:$0xff]
        %v1185 = vld [vmem:[%s223 + $0x1aa8] sm:$0xff]
        %v1186 = vld [vmem:[%s223 + $0x1ab0] sm:$0xff]
        %v1187 = vld [vmem:[%s223 + $0x1ab8] sm:$0xff]
        %v1188 = vld [vmem:[%s223 + $0x1ac0] sm:$0xff]
        %v1189 = vld [vmem:[%s223 + $0x1ac8] sm:$0xff]
        %v1190 = vld [vmem:[%s223 + $0x1ad0] sm:$0xff]
        %v1191 = vld [vmem:[%s223 + $0x1ad8] sm:$0xff]
        %v1192 = vld [vmem:[%s223 + $0x1ae0] sm:$0xff]
        %v1193 = vld [vmem:[%s223 + $0x1ae8] sm:$0xff]
        %v1194 = vld [vmem:[%s223 + $0x1af0] sm:$0xff]
        %v1195 = vld [vmem:[%s223 + $0x1af8] sm:$0xff]
        %v1196 = vld [vmem:[%s223 + $0x1b00] sm:$0xff]
        %v1197 = vld [vmem:[%s223 + $0x1b08] sm:$0xff]
        %v1198 = vld [vmem:[%s223 + $0x1b10] sm:$0xff]
        %v1199 = vld [vmem:[%s223 + $0x1b18] sm:$0xff]
        %v1200 = vld [vmem:[%s223 + $0x1b20] sm:$0xff]
        %v1201 = vld [vmem:[%s223 + $0x1b28] sm:$0xff]
        %v1202 = vld [vmem:[%s223 + $0x1b30] sm:$0xff]
        %v1203 = vld [vmem:[%s223 + $0x1b38] sm:$0xff]
        %v1204 = vld [vmem:[%s223 + $0x1b40] sm:$0xff]
        %v1205 = vld [vmem:[%s223 + $0x1b48] sm:$0xff]
        %v1206 = vld [vmem:[%s223 + $0x1b50] sm:$0xff]
        %v1207 = vld [vmem:[%s223 + $0x1b58] sm:$0xff]
        %v1208 = vld [vmem:[%s223 + $0x1b60] sm:$0xff]
        %v1209 = vld [vmem:[%s223 + $0x1b68] sm:$0xff]
        %v1210 = vld [vmem:[%s223 + $0x1b70] sm:$0xff]
        %v1211 = vld [vmem:[%s223 + $0x1b78] sm:$0xff]
        %v1212 = vld [vmem:[%s223 + $0x1b80] sm:$0xff]
        %v1213 = vld [vmem:[%s223 + $0x1b88] sm:$0xff]
        %v1214 = vld [vmem:[%s223 + $0x1b90] sm:$0xff]
        %v1215 = vld [vmem:[%s223 + $0x1b98] sm:$0xff]
        %v1216 = vld [vmem:[%s223 + $0x1ba0] sm:$0xff]
        %v1217 = vld [vmem:[%s223 + $0x1ba8] sm:$0xff]
        %v1218 = vld [vmem:[%s223 + $0x1bb0] sm:$0xff]
        %v1219 = vld [vmem:[%s223 + $0x1bb8] sm:$0xff]
        %v1220 = vld [vmem:[%s223 + $0x1bc0] sm:$0xff]
        %v1221 = vld [vmem:[%s223 + $0x1bc8] sm:$0xff]
        %v1222 = vld [vmem:[%s223 + $0x1bd0] sm:$0xff]
        %v1223 = vld [vmem:[%s223 + $0x1bd8] sm:$0xff]
        %v1224 = vld [vmem:[%s223 + $0x1be0] sm:$0xff]
        %v1225 = vld [vmem:[%s223 + $0x1be8] sm:$0xff]
        %v1226 = vld [vmem:[%s223 + $0x1bf0] sm:$0xff]
        %v1227 = vld [vmem:[%s223 + $0x1bf8] sm:$0xff]
        %v1228 = vld [vmem:[%s223 + $0x1c00] sm:$0xff]
        %v1229 = vld [vmem:[%s223 + $0x1c08] sm:$0xff]
        %v1230 = vld [vmem:[%s223 + $0x1c10] sm:$0xff]
        %v1231 = vld [vmem:[%s223 + $0x1c18] sm:$0xff]
        %v1232 = vld [vmem:[%s223 + $0x1c20] sm:$0xff]
        %v1233 = vld [vmem:[%s223 + $0x1c28] sm:$0xff]
        %v1234 = vld [vmem:[%s223 + $0x1c30] sm:$0xff]
        %v1235 = vld [vmem:[%s223 + $0x1c38] sm:$0xff]
        %v1236 = vld [vmem:[%s223 + $0x1c40] sm:$0xff]
        %v1237 = vld [vmem:[%s223 + $0x1c48] sm:$0xff]
        %v1238 = vld [vmem:[%s223 + $0x1c50] sm:$0xff]
        %v1239 = vld [vmem:[%s223 + $0x1c58] sm:$0xff]
        %v1240 = vld [vmem:[%s223 + $0x1c60] sm:$0xff]
        %v1241 = vld [vmem:[%s223 + $0x1c68] sm:$0xff]
        %v1242 = vld [vmem:[%s223 + $0x1c70] sm:$0xff]
        %v1243 = vld [vmem:[%s223 + $0x1c78] sm:$0xff]
        %v1244 = vld [vmem:[%s223 + $0x1c80] sm:$0xff]
        %v1245 = vld [vmem:[%s223 + $0x1c88] sm:$0xff]
        %v1246 = vld [vmem:[%s223 + $0x1c90] sm:$0xff]
        %v1247 = vld [vmem:[%s223 + $0x1c98] sm:$0xff]
        %v1248 = vld [vmem:[%s223 + $0x1ca0] sm:$0xff]
        %v1249 = vld [vmem:[%s223 + $0x1ca8] sm:$0xff]
        %v1250 = vld [vmem:[%s223 + $0x1cb0] sm:$0xff]
        %v1251 = vld [vmem:[%s223 + $0x1cb8] sm:$0xff]
        %v1252 = vld [vmem:[%s223 + $0x1cc0] sm:$0xff]
        %v1253 = vld [vmem:[%s223 + $0x1cc8] sm:$0xff]
        %v1254 = vld [vmem:[%s223 + $0x1cd0] sm:$0xff]
        %v1255 = vld [vmem:[%s223 + $0x1cd8] sm:$0xff]
        %v1256 = vld [vmem:[%s223 + $0x1ce0] sm:$0xff]
        %v1257 = vld [vmem:[%s223 + $0x1ce8] sm:$0xff]
        %v1258 = vld [vmem:[%s223 + $0x1cf0] sm:$0xff]
        %v1259 = vld [vmem:[%s223 + $0x1cf8] sm:$0xff]
        %v1260 = vld [vmem:[%s223 + $0x1d00] sm:$0xff]
        %v1261 = vld [vmem:[%s223 + $0x1d08] sm:$0xff]
        %v1262 = vld [vmem:[%s223 + $0x1d10] sm:$0xff]
        %v1263 = vld [vmem:[%s223 + $0x1d18] sm:$0xff]
        %v1264 = vld [vmem:[%s223 + $0x1d20] sm:$0xff]
        %v1265 = vld [vmem:[%s223 + $0x1d28] sm:$0xff]
        %v1266 = vld [vmem:[%s223 + $0x1d30] sm:$0xff]
        %v1267 = vld [vmem:[%s223 + $0x1d38] sm:$0xff]
        %v1268 = vld [vmem:[%s223 + $0x1d40] sm:$0xff]
        %v1269 = vld [vmem:[%s223 + $0x1d48] sm:$0xff]
        %v1270 = vld [vmem:[%s223 + $0x1d50] sm:$0xff]
        %v1271 = vld [vmem:[%s223 + $0x1d58] sm:$0xff]
        %v1272 = vld [vmem:[%s223 + $0x1d60] sm:$0xff]
        %v1273 = vld [vmem:[%s223 + $0x1d68] sm:$0xff]
        %v1274 = vld [vmem:[%s223 + $0x1d70] sm:$0xff]
        %v1275 = vld [vmem:[%s223 + $0x1d78] sm:$0xff]
        %v1276 = vld [vmem:[%s223 + $0x1d80] sm:$0xff]
        %v1277 = vld [vmem:[%s223 + $0x1d88] sm:$0xff]
        %v1278 = vld [vmem:[%s223 + $0x1d90] sm:$0xff]
        %v1279 = vld [vmem:[%s223 + $0x1d98] sm:$0xff]
        %v1280 = vld [vmem:[%s223 + $0x1da0] sm:$0xff]
        %v1281 = vld [vmem:[%s223 + $0x1da8] sm:$0xff]
        %v1282 = vld [vmem:[%s223 + $0x1db0] sm:$0xff]
        %v1283 = vld [vmem:[%s223 + $0x1db8] sm:$0xff]
        %v1284 = vld [vmem:[%s223 + $0x1dc0] sm:$0xff]
        %v1285 = vld [vmem:[%s223 + $0x1dc8] sm:$0xff]
        %v1286 = vld [vmem:[%s223 + $0x1dd0] sm:$0xff]
        %v1287 = vld [vmem:[%s223 + $0x1dd8] sm:$0xff]
        %v1288 = vld [vmem:[%s223 + $0x1de0] sm:$0xff]
        %v1289 = vld [vmem:[%s223 + $0x1de8] sm:$0xff]
        %v1290 = vld [vmem:[%s223 + $0x1df0] sm:$0xff]
        %v1291 = vld [vmem:[%s223 + $0x1df8] sm:$0xff]
        %v1292 = vld [vmem:[%s223 + $0x1e00] sm:$0xff]
        %v1293 = vld [vmem:[%s223 + $0x1e08] sm:$0xff]
        %v1294 = vld [vmem:[%s223 + $0x1e10] sm:$0xff]
        %v1295 = vld [vmem:[%s223 + $0x1e18] sm:$0xff]
        %v1296 = vld [vmem:[%s223 + $0x1e20] sm:$0xff]
        %v1297 = vld [vmem:[%s223 + $0x1e28] sm:$0xff]
        %v1298 = vld [vmem:[%s223 + $0x1e30] sm:$0xff]
        %v1299 = vld [vmem:[%s223 + $0x1e38] sm:$0xff]
        %v1300 = vld [vmem:[%s223 + $0x1e40] sm:$0xff]
        %v1301 = vld [vmem:[%s223 + $0x1e48] sm:$0xff]
        %v1302 = vld [vmem:[%s223 + $0x1e50] sm:$0xff]
        %v1303 = vld [vmem:[%s223 + $0x1e58] sm:$0xff]
        %v1304 = vld [vmem:[%s223 + $0x1e60] sm:$0xff]
        %v1305 = vld [vmem:[%s223 + $0x1e68] sm:$0xff]
        %v1306 = vld [vmem:[%s223 + $0x1e70] sm:$0xff]
        %v1307 = vld [vmem:[%s223 + $0x1e78] sm:$0xff]
        %v1308 = vld [vmem:[%s223 + $0x1e80] sm:$0xff]
        %v1309 = vld [vmem:[%s223 + $0x1e88] sm:$0xff]
        %v1310 = vld [vmem:[%s223 + $0x1e90] sm:$0xff]
        %v1311 = vld [vmem:[%s223 + $0x1e98] sm:$0xff]
        %v1312 = vld [vmem:[%s223 + $0x1ea0] sm:$0xff]
        %v1313 = vld [vmem:[%s223 + $0x1ea8] sm:$0xff]
        %v1314 = vld [vmem:[%s223 + $0x1eb0] sm:$0xff]
        %v1315 = vld [vmem:[%s223 + $0x1eb8] sm:$0xff]
        %v1316 = vld [vmem:[%s223 + $0x1ec0] sm:$0xff]
        %v1317 = vld [vmem:[%s223 + $0x1ec8] sm:$0xff]
        %v1318 = vld [vmem:[%s223 + $0x1ed0] sm:$0xff]
        %v1319 = vld [vmem:[%s223 + $0x1ed8] sm:$0xff]
        %v1320 = vld [vmem:[%s223 + $0x1ee0] sm:$0xff]
        %v1321 = vld [vmem:[%s223 + $0x1ee8] sm:$0xff]
        %v1322 = vld [vmem:[%s223 + $0x1ef0] sm:$0xff]
        %v1323 = vld [vmem:[%s223 + $0x1ef8] sm:$0xff]
        %v1324 = vld [vmem:[%s223 + $0x1f00] sm:$0xff]
        %v1325 = vld [vmem:[%s223 + $0x1f08] sm:$0xff]
        %v1326 = vld [vmem:[%s223 + $0x1f10] sm:$0xff]
        %v1327 = vld [vmem:[%s223 + $0x1f18] sm:$0xff]
        %v1328 = vld [vmem:[%s223 + $0x1f20] sm:$0xff]
        %v1329 = vld [vmem:[%s223 + $0x1f28] sm:$0xff]
        %v1330 = vld [vmem:[%s223 + $0x1f30] sm:$0xff]
        %v1331 = vld [vmem:[%s223 + $0x1f38] sm:$0xff]
        %v1332 = vld [vmem:[%s223 + $0x1f40] sm:$0xff]
        %v1333 = vld [vmem:[%s223 + $0x1f48] sm:$0xff]
        %v1334 = vld [vmem:[%s223 + $0x1f50] sm:$0xff]
        %v1335 = vld [vmem:[%s223 + $0x1f58] sm:$0xff]
        %v1336 = vld [vmem:[%s223 + $0x1f60] sm:$0xff]
        %v1337 = vld [vmem:[%s223 + $0x1f68] sm:$0xff]
        %v1338 = vld [vmem:[%s223 + $0x1f70] sm:$0xff]
        %v1339 = vld [vmem:[%s223 + $0x1f78] sm:$0xff]
        %v1340 = vld [vmem:[%s223 + $0x1f80] sm:$0xff]
        %v1341 = vld [vmem:[%s223 + $0x1f88] sm:$0xff]
        %v1342 = vld [vmem:[%s223 + $0x1f90] sm:$0xff]
        %v1343 = vld [vmem:[%s223 + $0x1f98] sm:$0xff]
        %v1344 = vld [vmem:[%s223 + $0x1fa0] sm:$0xff]
        %v1345 = vld [vmem:[%s223 + $0x1fa8] sm:$0xff]
        %v1346 = vld [vmem:[%s223 + $0x1fb0] sm:$0xff]
        %v1347 = vld [vmem:[%s223 + $0x1fb8] sm:$0xff]
        %v1348 = vld [vmem:[%s223 + $0x1fc0] sm:$0xff]
        %v1349 = vld [vmem:[%s223 + $0x1fc8] sm:$0xff]
        %v1350 = vld [vmem:[%s223 + $0x1fd0] sm:$0xff]
        %v1351 = vld [vmem:[%s223 + $0x1fd8] sm:$0xff]
        %v1352 = vld [vmem:[%s223 + $0x1fe0] sm:$0xff]
        %v1353 = vld [vmem:[%s223 + $0x1fe8] sm:$0xff]
        %v1354 = vld [vmem:[%s223 + $0x1ff0] sm:$0xff]
        %v1355 = vld [vmem:[%s223 + $0x1ff8] sm:$0xff]
        %v1360 = vunpack.c.l.b16 %v312
        %v1361 = vunpack.c.h.b16 %v312
        %v1362 = vunpack.c.l.b16 %v313
        %v1363 = vunpack.c.h.b16 %v313
        %v1364 = vunpack.c.l.b16 %v314
        %v1365 = vunpack.c.h.b16 %v314
        %v1366 = vunpack.c.l.b16 %v315
        %v1367 = vunpack.c.h.b16 %v315
        %v1368 = vpack.c.b16 %v1360, %v1360
        %v1369 = vpack.c.b16 %v1361, %v1361
        %v1370 = vpack.c.b16 %v1362, %v1362
        %v1371 = vpack.c.b16 %v1363, %v1363
        %v1372 = vpack.c.b16 %v1364, %v1364
        %v1373 = vpack.c.b16 %v1365, %v1365
        %v1374 = vpack.c.b16 %v1366, %v1366
        %v1375 = vpack.c.b16 %v1367, %v1367
        %v2408 = vunpack.c.l.b16 %v332
        %v2409 = vunpack.c.h.b16 %v332
        %v2410 = vunpack.c.l.b16 %v333
        %v2411 = vunpack.c.h.b16 %v333
        %v2412 = vunpack.c.l.b16 %v334
        %v2413 = vunpack.c.h.b16 %v334
        %v2414 = vunpack.c.l.b16 %v335
        %v2415 = vunpack.c.h.b16 %v335
        %v2416 = vunpack.c.l.b16 %v336
        %v2417 = vunpack.c.h.b16 %v336
        %v2418 = vunpack.c.l.b16 %v337
        %v2419 = vunpack.c.h.b16 %v337
        %v2420 = vunpack.c.l.b16 %v338
        %v2421 = vunpack.c.h.b16 %v338
        %v2422 = vunpack.c.l.b16 %v339
        %v2423 = vunpack.c.h.b16 %v339
        %v2424 = vunpack.c.l.b16 %v340
        %v2425 = vunpack.c.h.b16 %v340
        %v2426 = vunpack.c.l.b16 %v341
        %v2427 = vunpack.c.h.b16 %v341
        %v2428 = vunpack.c.l.b16 %v342
        %v2429 = vunpack.c.h.b16 %v342
        %v2430 = vunpack.c.l.b16 %v343
        %v2431 = vunpack.c.h.b16 %v343
        %v2432 = vunpack.c.l.b16 %v344
        %v2433 = vunpack.c.h.b16 %v344
        %v2434 = vunpack.c.l.b16 %v345
        %v2435 = vunpack.c.h.b16 %v345
        %v2436 = vunpack.c.l.b16 %v346
        %v2437 = vunpack.c.h.b16 %v346
        %v2438 = vunpack.c.l.b16 %v347
        %v2439 = vunpack.c.h.b16 %v347
        %v2440 = vunpack.c.l.b16 %v348
        %v2441 = vunpack.c.h.b16 %v348
        %v2442 = vunpack.c.l.b16 %v349
        %v2443 = vunpack.c.h.b16 %v349
        %v2444 = vunpack.c.l.b16 %v350
        %v2445 = vunpack.c.h.b16 %v350
        %v2446 = vunpack.c.l.b16 %v351
        %v2447 = vunpack.c.h.b16 %v351
        %v2448 = vunpack.c.l.b16 %v352
        %v2449 = vunpack.c.h.b16 %v352
        %v2450 = vunpack.c.l.b16 %v353
        %v2451 = vunpack.c.h.b16 %v353
        %v2452 = vunpack.c.l.b16 %v354
        %v2453 = vunpack.c.h.b16 %v354
        %v2454 = vunpack.c.l.b16 %v355
        %v2455 = vunpack.c.h.b16 %v355
        %v2456 = vunpack.c.l.b16 %v356
        %v2457 = vunpack.c.h.b16 %v356
        %v2458 = vunpack.c.l.b16 %v357
        %v2459 = vunpack.c.h.b16 %v357
        %v2460 = vunpack.c.l.b16 %v358
        %v2461 = vunpack.c.h.b16 %v358
        %v2462 = vunpack.c.l.b16 %v359
        %v2463 = vunpack.c.h.b16 %v359
        %v2464 = vunpack.c.l.b16 %v360
        %v2465 = vunpack.c.h.b16 %v360
        %v2466 = vunpack.c.l.b16 %v361
        %v2467 = vunpack.c.h.b16 %v361
        %v2468 = vunpack.c.l.b16 %v362
        %v2469 = vunpack.c.h.b16 %v362
        %v2470 = vunpack.c.l.b16 %v363
        %v2471 = vunpack.c.h.b16 %v363
        %v2472 = vunpack.c.l.b16 %v364
        %v2473 = vunpack.c.h.b16 %v364
        %v2474 = vunpack.c.l.b16 %v365
        %v2475 = vunpack.c.h.b16 %v365
        %v2476 = vunpack.c.l.b16 %v366
        %v2477 = vunpack.c.h.b16 %v366
        %v2478 = vunpack.c.l.b16 %v367
        %v2479 = vunpack.c.h.b16 %v367
        %v2480 = vunpack.c.l.b16 %v368
        %v2481 = vunpack.c.h.b16 %v368
        %v2482 = vunpack.c.l.b16 %v369
        %v2483 = vunpack.c.h.b16 %v369
        %v2484 = vunpack.c.l.b16 %v370
        %v2485 = vunpack.c.h.b16 %v370
        %v2486 = vunpack.c.l.b16 %v371
        %v2487 = vunpack.c.h.b16 %v371
        %v2488 = vunpack.c.l.b16 %v372
        %v2489 = vunpack.c.h.b16 %v372
        %v2490 = vunpack.c.l.b16 %v373
        %v2491 = vunpack.c.h.b16 %v373
        %v2492 = vunpack.c.l.b16 %v374
        %v2493 = vunpack.c.h.b16 %v374
        %v2494 = vunpack.c.l.b16 %v375
        %v2495 = vunpack.c.h.b16 %v375
        %v2496 = vunpack.c.l.b16 %v376
        %v2497 = vunpack.c.h.b16 %v376
        %v2498 = vunpack.c.l.b16 %v377
        %v2499 = vunpack.c.h.b16 %v377
        %v2500 = vunpack.c.l.b16 %v378
        %v2501 = vunpack.c.h.b16 %v378
        %v2502 = vunpack.c.l.b16 %v379
        %v2503 = vunpack.c.h.b16 %v379
        %v2504 = vunpack.c.l.b16 %v380
        %v2505 = vunpack.c.h.b16 %v380
        %v2506 = vunpack.c.l.b16 %v381
        %v2507 = vunpack.c.h.b16 %v381
        %v2508 = vunpack.c.l.b16 %v382
        %v2509 = vunpack.c.h.b16 %v382
        %v2510 = vunpack.c.l.b16 %v383
        %v2511 = vunpack.c.h.b16 %v383
        %v2512 = vunpack.c.l.b16 %v384
        %v2513 = vunpack.c.h.b16 %v384
        %v2514 = vunpack.c.l.b16 %v385
        %v2515 = vunpack.c.h.b16 %v385
        %v2516 = vunpack.c.l.b16 %v386
        %v2517 = vunpack.c.h.b16 %v386
        %v2518 = vunpack.c.l.b16 %v387
        %v2519 = vunpack.c.h.b16 %v387
        %v2520 = vunpack.c.l.b16 %v388
        %v2521 = vunpack.c.h.b16 %v388
        %v2522 = vunpack.c.l.b16 %v389
        %v2523 = vunpack.c.h.b16 %v389
        %v2524 = vunpack.c.l.b16 %v390
        %v2525 = vunpack.c.h.b16 %v390
        %v2526 = vunpack.c.l.b16 %v391
        %v2527 = vunpack.c.h.b16 %v391
        %v2528 = vunpack.c.l.b16 %v392
        %v2529 = vunpack.c.h.b16 %v392
        %v2530 = vunpack.c.l.b16 %v393
        %v2531 = vunpack.c.h.b16 %v393
        %v2532 = vunpack.c.l.b16 %v394
        %v2533 = vunpack.c.h.b16 %v394
        %v2534 = vunpack.c.l.b16 %v395
        %v2535 = vunpack.c.h.b16 %v395
        %v2536 = vunpack.c.l.b16 %v396
        %v2537 = vunpack.c.h.b16 %v396
        %v2538 = vunpack.c.l.b16 %v397
        %v2539 = vunpack.c.h.b16 %v397
        %v2540 = vunpack.c.l.b16 %v398
        %v2541 = vunpack.c.h.b16 %v398
        %v2542 = vunpack.c.l.b16 %v399
        %v2543 = vunpack.c.h.b16 %v399
        %v2544 = vunpack.c.l.b16 %v400
        %v2545 = vunpack.c.h.b16 %v400
        %v2546 = vunpack.c.l.b16 %v401
        %v2547 = vunpack.c.h.b16 %v401
        %v2548 = vunpack.c.l.b16 %v402
        %v2549 = vunpack.c.h.b16 %v402
        %v2550 = vunpack.c.l.b16 %v403
        %v2551 = vunpack.c.h.b16 %v403
        %v2552 = vunpack.c.l.b16 %v404
        %v2553 = vunpack.c.h.b16 %v404
        %v2554 = vunpack.c.l.b16 %v405
        %v2555 = vunpack.c.h.b16 %v405
        %v2556 = vunpack.c.l.b16 %v406
        %v2557 = vunpack.c.h.b16 %v406
        %v2558 = vunpack.c.l.b16 %v407
        %v2559 = vunpack.c.h.b16 %v407
        %v2560 = vunpack.c.l.b16 %v408
        %v2561 = vunpack.c.h.b16 %v408
        %v2562 = vunpack.c.l.b16 %v409
        %v2563 = vunpack.c.h.b16 %v409
        %v2564 = vunpack.c.l.b16 %v410
        %v2565 = vunpack.c.h.b16 %v410
        %v2566 = vunpack.c.l.b16 %v411
        %v2567 = vunpack.c.h.b16 %v411
        %v2568 = vunpack.c.l.b16 %v412
        %v2569 = vunpack.c.h.b16 %v412
        %v2570 = vunpack.c.l.b16 %v413
        %v2571 = vunpack.c.h.b16 %v413
        %v2572 = vunpack.c.l.b16 %v414
        %v2573 = vunpack.c.h.b16 %v414
        %v2574 = vunpack.c.l.b16 %v415
        %v2575 = vunpack.c.h.b16 %v415
        %v2576 = vunpack.c.l.b16 %v416
        %v2577 = vunpack.c.h.b16 %v416
        %v2578 = vunpack.c.l.b16 %v417
        %v2579 = vunpack.c.h.b16 %v417
        %v2580 = vunpack.c.l.b16 %v418
        %v2581 = vunpack.c.h.b16 %v418
        %v2582 = vunpack.c.l.b16 %v419
        %v2583 = vunpack.c.h.b16 %v419
        %v2584 = vunpack.c.l.b16 %v420
        %v2585 = vunpack.c.h.b16 %v420
        %v2586 = vunpack.c.l.b16 %v421
        %v2587 = vunpack.c.h.b16 %v421
        %v2588 = vunpack.c.l.b16 %v422
        %v2589 = vunpack.c.h.b16 %v422
        %v2590 = vunpack.c.l.b16 %v423
        %v2591 = vunpack.c.h.b16 %v423
        %v2592 = vunpack.c.l.b16 %v424
        %v2593 = vunpack.c.h.b16 %v424
        %v2594 = vunpack.c.l.b16 %v425
        %v2595 = vunpack.c.h.b16 %v425
        %v2596 = vunpack.c.l.b16 %v426
        %v2597 = vunpack.c.h.b16 %v426
        %v2598 = vunpack.c.l.b16 %v427
        %v2599 = vunpack.c.h.b16 %v427
        %v2600 = vunpack.c.l.b16 %v428
        %v2601 = vunpack.c.h.b16 %v428
        %v2602 = vunpack.c.l.b16 %v429
        %v2603 = vunpack.c.h.b16 %v429
        %v2604 = vunpack.c.l.b16 %v430
        %v2605 = vunpack.c.h.b16 %v430
        %v2606 = vunpack.c.l.b16 %v431
        %v2607 = vunpack.c.h.b16 %v431
        %v2608 = vunpack.c.l.b16 %v432
        %v2609 = vunpack.c.h.b16 %v432
        %v2610 = vunpack.c.l.b16 %v433
        %v2611 = vunpack.c.h.b16 %v433
        %v2612 = vunpack.c.l.b16 %v434
        %v2613 = vunpack.c.h.b16 %v434
        %v2614 = vunpack.c.l.b16 %v435
        %v2615 = vunpack.c.h.b16 %v435
        %v2616 = vunpack.c.l.b16 %v436
        %v2617 = vunpack.c.h.b16 %v436
        %v2618 = vunpack.c.l.b16 %v437
        %v2619 = vunpack.c.h.b16 %v437
        %v2620 = vunpack.c.l.b16 %v438
        %v2621 = vunpack.c.h.b16 %v438
        %v2622 = vunpack.c.l.b16 %v439
        %v2623 = vunpack.c.h.b16 %v439
        %v2624 = vunpack.c.l.b16 %v440
        %v2625 = vunpack.c.h.b16 %v440
        %v2626 = vunpack.c.l.b16 %v441
        %v2627 = vunpack.c.h.b16 %v441
        %v2628 = vunpack.c.l.b16 %v442
        %v2629 = vunpack.c.h.b16 %v442
        %v2630 = vunpack.c.l.b16 %v443
        %v2631 = vunpack.c.h.b16 %v443
        %v2632 = vunpack.c.l.b16 %v444
        %v2633 = vunpack.c.h.b16 %v444
        %v2634 = vunpack.c.l.b16 %v445
        %v2635 = vunpack.c.h.b16 %v445
        %v2636 = vunpack.c.l.b16 %v446
        %v2637 = vunpack.c.h.b16 %v446
        %v2638 = vunpack.c.l.b16 %v447
        %v2639 = vunpack.c.h.b16 %v447
        %v2640 = vunpack.c.l.b16 %v448
        %v2641 = vunpack.c.h.b16 %v448
        %v2642 = vunpack.c.l.b16 %v449
        %v2643 = vunpack.c.h.b16 %v449
        %v2644 = vunpack.c.l.b16 %v450
        %v2645 = vunpack.c.h.b16 %v450
        %v2646 = vunpack.c.l.b16 %v451
        %v2647 = vunpack.c.h.b16 %v451
        %v2648 = vunpack.c.l.b16 %v452
        %v2649 = vunpack.c.h.b16 %v452
        %v2650 = vunpack.c.l.b16 %v453
        %v2651 = vunpack.c.h.b16 %v453
        %v2652 = vunpack.c.l.b16 %v454
        %v2653 = vunpack.c.h.b16 %v454
        %v2654 = vunpack.c.l.b16 %v455
        %v2655 = vunpack.c.h.b16 %v455
        %v2656 = vunpack.c.l.b16 %v456
        %v2657 = vunpack.c.h.b16 %v456
        %v2658 = vunpack.c.l.b16 %v457
        %v2659 = vunpack.c.h.b16 %v457
        %v2660 = vunpack.c.l.b16 %v458
        %v2661 = vunpack.c.h.b16 %v458
        %v2662 = vunpack.c.l.b16 %v459
        %v2663 = vunpack.c.h.b16 %v459
        %v2664 = vunpack.c.l.b16 %v460
        %v2665 = vunpack.c.h.b16 %v460
        %v2666 = vunpack.c.l.b16 %v461
        %v2667 = vunpack.c.h.b16 %v461
        %v2668 = vunpack.c.l.b16 %v462
        %v2669 = vunpack.c.h.b16 %v462
        %v2670 = vunpack.c.l.b16 %v463
        %v2671 = vunpack.c.h.b16 %v463
        %v2672 = vunpack.c.l.b16 %v464
        %v2673 = vunpack.c.h.b16 %v464
        %v2674 = vunpack.c.l.b16 %v465
        %v2675 = vunpack.c.h.b16 %v465
        %v2676 = vunpack.c.l.b16 %v466
        %v2677 = vunpack.c.h.b16 %v466
        %v2678 = vunpack.c.l.b16 %v467
        %v2679 = vunpack.c.h.b16 %v467
        %v2680 = vunpack.c.l.b16 %v468
        %v2681 = vunpack.c.h.b16 %v468
        %v2682 = vunpack.c.l.b16 %v469
        %v2683 = vunpack.c.h.b16 %v469
        %v2684 = vunpack.c.l.b16 %v470
        %v2685 = vunpack.c.h.b16 %v470
        %v2686 = vunpack.c.l.b16 %v471
        %v2687 = vunpack.c.h.b16 %v471
        %v2688 = vunpack.c.l.b16 %v472
        %v2689 = vunpack.c.h.b16 %v472
        %v2690 = vunpack.c.l.b16 %v473
        %v2691 = vunpack.c.h.b16 %v473
        %v2692 = vunpack.c.l.b16 %v474
        %v2693 = vunpack.c.h.b16 %v474
        %v2694 = vunpack.c.l.b16 %v475
        %v2695 = vunpack.c.h.b16 %v475
        %v2696 = vunpack.c.l.b16 %v476
        %v2697 = vunpack.c.h.b16 %v476
        %v2698 = vunpack.c.l.b16 %v477
        %v2699 = vunpack.c.h.b16 %v477
        %v2700 = vunpack.c.l.b16 %v478
        %v2701 = vunpack.c.h.b16 %v478
        %v2702 = vunpack.c.l.b16 %v479
        %v2703 = vunpack.c.h.b16 %v479
        %v2704 = vunpack.c.l.b16 %v480
        %v2705 = vunpack.c.h.b16 %v480
        %v2706 = vunpack.c.l.b16 %v481
        %v2707 = vunpack.c.h.b16 %v481
        %v2708 = vunpack.c.l.b16 %v482
        %v2709 = vunpack.c.h.b16 %v482
        %v2710 = vunpack.c.l.b16 %v483
        %v2711 = vunpack.c.h.b16 %v483
        %v2712 = vunpack.c.l.b16 %v484
        %v2713 = vunpack.c.h.b16 %v484
        %v2714 = vunpack.c.l.b16 %v485
        %v2715 = vunpack.c.h.b16 %v485
        %v2716 = vunpack.c.l.b16 %v486
        %v2717 = vunpack.c.h.b16 %v486
        %v2718 = vunpack.c.l.b16 %v487
        %v2719 = vunpack.c.h.b16 %v487
        %v2720 = vunpack.c.l.b16 %v488
        %v2721 = vunpack.c.h.b16 %v488
        %v2722 = vunpack.c.l.b16 %v489
        %v2723 = vunpack.c.h.b16 %v489
        %v2724 = vunpack.c.l.b16 %v490
        %v2725 = vunpack.c.h.b16 %v490
        %v2726 = vunpack.c.l.b16 %v491
        %v2727 = vunpack.c.h.b16 %v491
        %v2728 = vunpack.c.l.b16 %v492
        %v2729 = vunpack.c.h.b16 %v492
        %v2730 = vunpack.c.l.b16 %v493
        %v2731 = vunpack.c.h.b16 %v493
        %v2732 = vunpack.c.l.b16 %v494
        %v2733 = vunpack.c.h.b16 %v494
        %v2734 = vunpack.c.l.b16 %v495
        %v2735 = vunpack.c.h.b16 %v495
        %v2736 = vunpack.c.l.b16 %v496
        %v2737 = vunpack.c.h.b16 %v496
        %v2738 = vunpack.c.l.b16 %v497
        %v2739 = vunpack.c.h.b16 %v497
        %v2740 = vunpack.c.l.b16 %v498
        %v2741 = vunpack.c.h.b16 %v498
        %v2742 = vunpack.c.l.b16 %v499
        %v2743 = vunpack.c.h.b16 %v499
        %v2744 = vunpack.c.l.b16 %v500
        %v2745 = vunpack.c.h.b16 %v500
        %v2746 = vunpack.c.l.b16 %v501
        %v2747 = vunpack.c.h.b16 %v501
        %v2748 = vunpack.c.l.b16 %v502
        %v2749 = vunpack.c.h.b16 %v502
        %v2750 = vunpack.c.l.b16 %v503
        %v2751 = vunpack.c.h.b16 %v503
        %v2752 = vunpack.c.l.b16 %v504
        %v2753 = vunpack.c.h.b16 %v504
        %v2754 = vunpack.c.l.b16 %v505
        %v2755 = vunpack.c.h.b16 %v505
        %v2756 = vunpack.c.l.b16 %v506
        %v2757 = vunpack.c.h.b16 %v506
        %v2758 = vunpack.c.l.b16 %v507
        %v2759 = vunpack.c.h.b16 %v507
        %v2760 = vunpack.c.l.b16 %v508
        %v2761 = vunpack.c.h.b16 %v508
        %v2762 = vunpack.c.l.b16 %v509
        %v2763 = vunpack.c.h.b16 %v509
        %v2764 = vunpack.c.l.b16 %v510
        %v2765 = vunpack.c.h.b16 %v510
        %v2766 = vunpack.c.l.b16 %v511
        %v2767 = vunpack.c.h.b16 %v511
        %v2768 = vunpack.c.l.b16 %v512
        %v2769 = vunpack.c.h.b16 %v512
        %v2770 = vunpack.c.l.b16 %v513
        %v2771 = vunpack.c.h.b16 %v513
        %v2772 = vunpack.c.l.b16 %v514
        %v2773 = vunpack.c.h.b16 %v514
        %v2774 = vunpack.c.l.b16 %v515
        %v2775 = vunpack.c.h.b16 %v515
        %v2776 = vunpack.c.l.b16 %v516
        %v2777 = vunpack.c.h.b16 %v516
        %v2778 = vunpack.c.l.b16 %v517
        %v2779 = vunpack.c.h.b16 %v517
        %v2780 = vunpack.c.l.b16 %v518
        %v2781 = vunpack.c.h.b16 %v518
        %v2782 = vunpack.c.l.b16 %v519
        %v2783 = vunpack.c.h.b16 %v519
        %v2784 = vunpack.c.l.b16 %v520
        %v2785 = vunpack.c.h.b16 %v520
        %v2786 = vunpack.c.l.b16 %v521
        %v2787 = vunpack.c.h.b16 %v521
        %v2788 = vunpack.c.l.b16 %v522
        %v2789 = vunpack.c.h.b16 %v522
        %v2790 = vunpack.c.l.b16 %v523
        %v2791 = vunpack.c.h.b16 %v523
        %v2792 = vunpack.c.l.b16 %v524
        %v2793 = vunpack.c.h.b16 %v524
        %v2794 = vunpack.c.l.b16 %v525
        %v2795 = vunpack.c.h.b16 %v525
        %v2796 = vunpack.c.l.b16 %v526
        %v2797 = vunpack.c.h.b16 %v526
        %v2798 = vunpack.c.l.b16 %v527
        %v2799 = vunpack.c.h.b16 %v527
        %v2800 = vunpack.c.l.b16 %v528
        %v2801 = vunpack.c.h.b16 %v528
        %v2802 = vunpack.c.l.b16 %v529
        %v2803 = vunpack.c.h.b16 %v529
        %v2804 = vunpack.c.l.b16 %v530
        %v2805 = vunpack.c.h.b16 %v530
        %v2806 = vunpack.c.l.b16 %v531
        %v2807 = vunpack.c.h.b16 %v531
        %v2808 = vunpack.c.l.b16 %v532
        %v2809 = vunpack.c.h.b16 %v532
        %v2810 = vunpack.c.l.b16 %v533
        %v2811 = vunpack.c.h.b16 %v533
        %v2812 = vunpack.c.l.b16 %v534
        %v2813 = vunpack.c.h.b16 %v534
        %v2814 = vunpack.c.l.b16 %v535
        %v2815 = vunpack.c.h.b16 %v535
        %v2816 = vunpack.c.l.b16 %v536
        %v2817 = vunpack.c.h.b16 %v536
        %v2818 = vunpack.c.l.b16 %v537
        %v2819 = vunpack.c.h.b16 %v537
        %v2820 = vunpack.c.l.b16 %v538
        %v2821 = vunpack.c.h.b16 %v538
        %v2822 = vunpack.c.l.b16 %v539
        %v2823 = vunpack.c.h.b16 %v539
        %v2824 = vunpack.c.l.b16 %v540
        %v2825 = vunpack.c.h.b16 %v540
        %v2826 = vunpack.c.l.b16 %v541
        %v2827 = vunpack.c.h.b16 %v541
        %v2828 = vunpack.c.l.b16 %v542
        %v2829 = vunpack.c.h.b16 %v542
        %v2830 = vunpack.c.l.b16 %v543
        %v2831 = vunpack.c.h.b16 %v543
        %v2832 = vunpack.c.l.b16 %v544
        %v2833 = vunpack.c.h.b16 %v544
        %v2834 = vunpack.c.l.b16 %v545
        %v2835 = vunpack.c.h.b16 %v545
        %v2836 = vunpack.c.l.b16 %v546
        %v2837 = vunpack.c.h.b16 %v546
        %v2838 = vunpack.c.l.b16 %v547
        %v2839 = vunpack.c.h.b16 %v547
        %v2840 = vunpack.c.l.b16 %v548
        %v2841 = vunpack.c.h.b16 %v548
        %v2842 = vunpack.c.l.b16 %v549
        %v2843 = vunpack.c.h.b16 %v549
        %v2844 = vunpack.c.l.b16 %v550
        %v2845 = vunpack.c.h.b16 %v550
        %v2846 = vunpack.c.l.b16 %v551
        %v2847 = vunpack.c.h.b16 %v551
        %v2848 = vunpack.c.l.b16 %v552
        %v2849 = vunpack.c.h.b16 %v552
        %v2850 = vunpack.c.l.b16 %v553
        %v2851 = vunpack.c.h.b16 %v553
        %v2852 = vunpack.c.l.b16 %v554
        %v2853 = vunpack.c.h.b16 %v554
        %v2854 = vunpack.c.l.b16 %v555
        %v2855 = vunpack.c.h.b16 %v555
        %v2856 = vunpack.c.l.b16 %v556
        %v2857 = vunpack.c.h.b16 %v556
        %v2858 = vunpack.c.l.b16 %v557
        %v2859 = vunpack.c.h.b16 %v557
        %v2860 = vunpack.c.l.b16 %v558
        %v2861 = vunpack.c.h.b16 %v558
        %v2862 = vunpack.c.l.b16 %v559
        %v2863 = vunpack.c.h.b16 %v559
        %v2864 = vunpack.c.l.b16 %v560
        %v2865 = vunpack.c.h.b16 %v560
        %v2866 = vunpack.c.l.b16 %v561
        %v2867 = vunpack.c.h.b16 %v561
        %v2868 = vunpack.c.l.b16 %v562
        %v2869 = vunpack.c.h.b16 %v562
        %v2870 = vunpack.c.l.b16 %v563
        %v2871 = vunpack.c.h.b16 %v563
        %v2872 = vunpack.c.l.b16 %v564
        %v2873 = vunpack.c.h.b16 %v564
        %v2874 = vunpack.c.l.b16 %v565
        %v2875 = vunpack.c.h.b16 %v565
        %v2876 = vunpack.c.l.b16 %v566
        %v2877 = vunpack.c.h.b16 %v566
        %v2878 = vunpack.c.l.b16 %v567
        %v2879 = vunpack.c.h.b16 %v567
        %v2880 = vunpack.c.l.b16 %v568
        %v2881 = vunpack.c.h.b16 %v568
        %v2882 = vunpack.c.l.b16 %v569
        %v2883 = vunpack.c.h.b16 %v569
        %v2884 = vunpack.c.l.b16 %v570
        %v2885 = vunpack.c.h.b16 %v570
        %v2886 = vunpack.c.l.b16 %v571
        %v2887 = vunpack.c.h.b16 %v571
        %v2888 = vunpack.c.l.b16 %v572
        %v2889 = vunpack.c.h.b16 %v572
        %v2890 = vunpack.c.l.b16 %v573
        %v2891 = vunpack.c.h.b16 %v573
        %v2892 = vunpack.c.l.b16 %v574
        %v2893 = vunpack.c.h.b16 %v574
        %v2894 = vunpack.c.l.b16 %v575
        %v2895 = vunpack.c.h.b16 %v575
        %v2896 = vunpack.c.l.b16 %v576
        %v2897 = vunpack.c.h.b16 %v576
        %v2898 = vunpack.c.l.b16 %v577
        %v2899 = vunpack.c.h.b16 %v577
        %v2900 = vunpack.c.l.b16 %v578
        %v2901 = vunpack.c.h.b16 %v578
        %v2902 = vunpack.c.l.b16 %v579
        %v2903 = vunpack.c.h.b16 %v579
        %v2904 = vunpack.c.l.b16 %v580
        %v2905 = vunpack.c.h.b16 %v580
        %v2906 = vunpack.c.l.b16 %v581
        %v2907 = vunpack.c.h.b16 %v581
        %v2908 = vunpack.c.l.b16 %v582
        %v2909 = vunpack.c.h.b16 %v582
        %v2910 = vunpack.c.l.b16 %v583
        %v2911 = vunpack.c.h.b16 %v583
        %v2912 = vunpack.c.l.b16 %v584
        %v2913 = vunpack.c.h.b16 %v584
        %v2914 = vunpack.c.l.b16 %v585
        %v2915 = vunpack.c.h.b16 %v585
        %v2916 = vunpack.c.l.b16 %v586
        %v2917 = vunpack.c.h.b16 %v586
        %v2918 = vunpack.c.l.b16 %v587
        %v2919 = vunpack.c.h.b16 %v587
        %v2920 = vunpack.c.l.b16 %v588
        %v2921 = vunpack.c.h.b16 %v588
        %v2922 = vunpack.c.l.b16 %v589
        %v2923 = vunpack.c.h.b16 %v589
        %v2924 = vunpack.c.l.b16 %v590
        %v2925 = vunpack.c.h.b16 %v590
        %v2926 = vunpack.c.l.b16 %v591
        %v2927 = vunpack.c.h.b16 %v591
        %v2928 = vunpack.c.l.b16 %v592
        %v2929 = vunpack.c.h.b16 %v592
        %v2930 = vunpack.c.l.b16 %v593
        %v2931 = vunpack.c.h.b16 %v593
        %v2932 = vunpack.c.l.b16 %v594
        %v2933 = vunpack.c.h.b16 %v594
        %v2934 = vunpack.c.l.b16 %v595
        %v2935 = vunpack.c.h.b16 %v595
        %v2936 = vunpack.c.l.b16 %v596
        %v2937 = vunpack.c.h.b16 %v596
        %v2938 = vunpack.c.l.b16 %v597
        %v2939 = vunpack.c.h.b16 %v597
        %v2940 = vunpack.c.l.b16 %v598
        %v2941 = vunpack.c.h.b16 %v598
        %v2942 = vunpack.c.l.b16 %v599
        %v2943 = vunpack.c.h.b16 %v599
        %v2944 = vunpack.c.l.b16 %v600
        %v2945 = vunpack.c.h.b16 %v600
        %v2946 = vunpack.c.l.b16 %v601
        %v2947 = vunpack.c.h.b16 %v601
        %v2948 = vunpack.c.l.b16 %v602
        %v2949 = vunpack.c.h.b16 %v602
        %v2950 = vunpack.c.l.b16 %v603
        %v2951 = vunpack.c.h.b16 %v603
        %v2952 = vunpack.c.l.b16 %v604
        %v2953 = vunpack.c.h.b16 %v604
        %v2954 = vunpack.c.l.b16 %v605
        %v2955 = vunpack.c.h.b16 %v605
        %v2956 = vunpack.c.l.b16 %v606
        %v2957 = vunpack.c.h.b16 %v606
        %v2958 = vunpack.c.l.b16 %v607
        %v2959 = vunpack.c.h.b16 %v607
        %v2960 = vunpack.c.l.b16 %v608
        %v2961 = vunpack.c.h.b16 %v608
        %v2962 = vunpack.c.l.b16 %v609
        %v2963 = vunpack.c.h.b16 %v609
        %v2964 = vunpack.c.l.b16 %v610
        %v2965 = vunpack.c.h.b16 %v610
        %v2966 = vunpack.c.l.b16 %v611
        %v2967 = vunpack.c.h.b16 %v611
        %v2968 = vunpack.c.l.b16 %v612
        %v2969 = vunpack.c.h.b16 %v612
        %v2970 = vunpack.c.l.b16 %v613
        %v2971 = vunpack.c.h.b16 %v613
        %v2972 = vunpack.c.l.b16 %v614
        %v2973 = vunpack.c.h.b16 %v614
        %v2974 = vunpack.c.l.b16 %v615
        %v2975 = vunpack.c.h.b16 %v615
        %v2976 = vunpack.c.l.b16 %v616
        %v2977 = vunpack.c.h.b16 %v616
        %v2978 = vunpack.c.l.b16 %v617
        %v2979 = vunpack.c.h.b16 %v617
        %v2980 = vunpack.c.l.b16 %v618
        %v2981 = vunpack.c.h.b16 %v618
        %v2982 = vunpack.c.l.b16 %v619
        %v2983 = vunpack.c.h.b16 %v619
        %v2984 = vunpack.c.l.b16 %v620
        %v2985 = vunpack.c.h.b16 %v620
        %v2986 = vunpack.c.l.b16 %v621
        %v2987 = vunpack.c.h.b16 %v621
        %v2988 = vunpack.c.l.b16 %v622
        %v2989 = vunpack.c.h.b16 %v622
        %v2990 = vunpack.c.l.b16 %v623
        %v2991 = vunpack.c.h.b16 %v623
        %v2992 = vunpack.c.l.b16 %v624
        %v2993 = vunpack.c.h.b16 %v624
        %v2994 = vunpack.c.l.b16 %v625
        %v2995 = vunpack.c.h.b16 %v625
        %v2996 = vunpack.c.l.b16 %v626
        %v2997 = vunpack.c.h.b16 %v626
        %v2998 = vunpack.c.l.b16 %v627
        %v2999 = vunpack.c.h.b16 %v627
        %v3000 = vunpack.c.l.b16 %v628
        %v3001 = vunpack.c.h.b16 %v628
        %v3002 = vunpack.c.l.b16 %v629
        %v3003 = vunpack.c.h.b16 %v629
        %v3004 = vunpack.c.l.b16 %v630
        %v3005 = vunpack.c.h.b16 %v630
        %v3006 = vunpack.c.l.b16 %v631
        %v3007 = vunpack.c.h.b16 %v631
        %v3008 = vunpack.c.l.b16 %v632
        %v3009 = vunpack.c.h.b16 %v632
        %v3010 = vunpack.c.l.b16 %v633
        %v3011 = vunpack.c.h.b16 %v633
        %v3012 = vunpack.c.l.b16 %v634
        %v3013 = vunpack.c.h.b16 %v634
        %v3014 = vunpack.c.l.b16 %v635
        %v3015 = vunpack.c.h.b16 %v635
        %v3016 = vunpack.c.l.b16 %v636
        %v3017 = vunpack.c.h.b16 %v636
        %v3018 = vunpack.c.l.b16 %v637
        %v3019 = vunpack.c.h.b16 %v637
        %v3020 = vunpack.c.l.b16 %v638
        %v3021 = vunpack.c.h.b16 %v638
        %v3022 = vunpack.c.l.b16 %v639
        %v3023 = vunpack.c.h.b16 %v639
        %v3024 = vunpack.c.l.b16 %v640
        %v3025 = vunpack.c.h.b16 %v640
        %v3026 = vunpack.c.l.b16 %v641
        %v3027 = vunpack.c.h.b16 %v641
        %v3028 = vunpack.c.l.b16 %v642
        %v3029 = vunpack.c.h.b16 %v642
        %v3030 = vunpack.c.l.b16 %v643
        %v3031 = vunpack.c.h.b16 %v643
        %v3032 = vunpack.c.l.b16 %v644
        %v3033 = vunpack.c.h.b16 %v644
        %v3034 = vunpack.c.l.b16 %v645
        %v3035 = vunpack.c.h.b16 %v645
        %v3036 = vunpack.c.l.b16 %v646
        %v3037 = vunpack.c.h.b16 %v646
        %v3038 = vunpack.c.l.b16 %v647
        %v3039 = vunpack.c.h.b16 %v647
        %v3040 = vunpack.c.l.b16 %v648
        %v3041 = vunpack.c.h.b16 %v648
        %v3042 = vunpack.c.l.b16 %v649
        %v3043 = vunpack.c.h.b16 %v649
        %v3044 = vunpack.c.l.b16 %v650
        %v3045 = vunpack.c.h.b16 %v650
        %v3046 = vunpack.c.l.b16 %v651
        %v3047 = vunpack.c.h.b16 %v651
        %v3048 = vunpack.c.l.b16 %v652
        %v3049 = vunpack.c.h.b16 %v652
        %v3050 = vunpack.c.l.b16 %v653
        %v3051 = vunpack.c.h.b16 %v653
        %v3052 = vunpack.c.l.b16 %v654
        %v3053 = vunpack.c.h.b16 %v654
        %v3054 = vunpack.c.l.b16 %v655
        %v3055 = vunpack.c.h.b16 %v655
        %v3056 = vunpack.c.l.b16 %v656
        %v3057 = vunpack.c.h.b16 %v656
        %v3058 = vunpack.c.l.b16 %v657
        %v3059 = vunpack.c.h.b16 %v657
        %v3060 = vunpack.c.l.b16 %v658
        %v3061 = vunpack.c.h.b16 %v658
        %v3062 = vunpack.c.l.b16 %v659
        %v3063 = vunpack.c.h.b16 %v659
        %v3064 = vunpack.c.l.b16 %v660
        %v3065 = vunpack.c.h.b16 %v660
        %v3066 = vunpack.c.l.b16 %v661
        %v3067 = vunpack.c.h.b16 %v661
        %v3068 = vunpack.c.l.b16 %v662
        %v3069 = vunpack.c.h.b16 %v662
        %v3070 = vunpack.c.l.b16 %v663
        %v3071 = vunpack.c.h.b16 %v663
        %v3072 = vunpack.c.l.b16 %v664
        %v3073 = vunpack.c.h.b16 %v664
        %v3074 = vunpack.c.l.b16 %v665
        %v3075 = vunpack.c.h.b16 %v665
        %v3076 = vunpack.c.l.b16 %v666
        %v3077 = vunpack.c.h.b16 %v666
        %v3078 = vunpack.c.l.b16 %v667
        %v3079 = vunpack.c.h.b16 %v667
        %v3080 = vunpack.c.l.b16 %v668
        %v3081 = vunpack.c.h.b16 %v668
        %v3082 = vunpack.c.l.b16 %v669
        %v3083 = vunpack.c.h.b16 %v669
        %v3084 = vunpack.c.l.b16 %v670
        %v3085 = vunpack.c.h.b16 %v670
        %v3086 = vunpack.c.l.b16 %v671
        %v3087 = vunpack.c.h.b16 %v671
        %v3088 = vunpack.c.l.b16 %v672
        %v3089 = vunpack.c.h.b16 %v672
        %v3090 = vunpack.c.l.b16 %v673
        %v3091 = vunpack.c.h.b16 %v673
        %v3092 = vunpack.c.l.b16 %v674
        %v3093 = vunpack.c.h.b16 %v674
        %v3094 = vunpack.c.l.b16 %v675
        %v3095 = vunpack.c.h.b16 %v675
        %v3096 = vunpack.c.l.b16 %v676
        %v3097 = vunpack.c.h.b16 %v676
        %v3098 = vunpack.c.l.b16 %v677
        %v3099 = vunpack.c.h.b16 %v677
        %v3100 = vunpack.c.l.b16 %v678
        %v3101 = vunpack.c.h.b16 %v678
        %v3102 = vunpack.c.l.b16 %v679
        %v3103 = vunpack.c.h.b16 %v679
        %v3104 = vunpack.c.l.b16 %v680
        %v3105 = vunpack.c.h.b16 %v680
        %v3106 = vunpack.c.l.b16 %v681
        %v3107 = vunpack.c.h.b16 %v681
        %v3108 = vunpack.c.l.b16 %v682
        %v3109 = vunpack.c.h.b16 %v682
        %v3110 = vunpack.c.l.b16 %v683
        %v3111 = vunpack.c.h.b16 %v683
        %v3112 = vunpack.c.l.b16 %v684
        %v3113 = vunpack.c.h.b16 %v684
        %v3114 = vunpack.c.l.b16 %v685
        %v3115 = vunpack.c.h.b16 %v685
        %v3116 = vunpack.c.l.b16 %v686
        %v3117 = vunpack.c.h.b16 %v686
        %v3118 = vunpack.c.l.b16 %v687
        %v3119 = vunpack.c.h.b16 %v687
        %v3120 = vunpack.c.l.b16 %v688
        %v3121 = vunpack.c.h.b16 %v688
        %v3122 = vunpack.c.l.b16 %v689
        %v3123 = vunpack.c.h.b16 %v689
        %v3124 = vunpack.c.l.b16 %v690
        %v3125 = vunpack.c.h.b16 %v690
        %v3126 = vunpack.c.l.b16 %v691
        %v3127 = vunpack.c.h.b16 %v691
        %v3128 = vunpack.c.l.b16 %v692
        %v3129 = vunpack.c.h.b16 %v692
        %v3130 = vunpack.c.l.b16 %v693
        %v3131 = vunpack.c.h.b16 %v693
        %v3132 = vunpack.c.l.b16 %v694
        %v3133 = vunpack.c.h.b16 %v694
        %v3134 = vunpack.c.l.b16 %v695
        %v3135 = vunpack.c.h.b16 %v695
        %v3136 = vunpack.c.l.b16 %v696
        %v3137 = vunpack.c.h.b16 %v696
        %v3138 = vunpack.c.l.b16 %v697
        %v3139 = vunpack.c.h.b16 %v697
        %v3140 = vunpack.c.l.b16 %v698
        %v3141 = vunpack.c.h.b16 %v698
        %v3142 = vunpack.c.l.b16 %v699
        %v3143 = vunpack.c.h.b16 %v699
        %v3144 = vunpack.c.l.b16 %v700
        %v3145 = vunpack.c.h.b16 %v700
        %v3146 = vunpack.c.l.b16 %v701
        %v3147 = vunpack.c.h.b16 %v701
        %v3148 = vunpack.c.l.b16 %v702
        %v3149 = vunpack.c.h.b16 %v702
        %v3150 = vunpack.c.l.b16 %v703
        %v3151 = vunpack.c.h.b16 %v703
        %v3152 = vunpack.c.l.b16 %v704
        %v3153 = vunpack.c.h.b16 %v704
        %v3154 = vunpack.c.l.b16 %v705
        %v3155 = vunpack.c.h.b16 %v705
        %v3156 = vunpack.c.l.b16 %v706
        %v3157 = vunpack.c.h.b16 %v706
        %v3158 = vunpack.c.l.b16 %v707
        %v3159 = vunpack.c.h.b16 %v707
        %v3160 = vunpack.c.l.b16 %v708
        %v3161 = vunpack.c.h.b16 %v708
        %v3162 = vunpack.c.l.b16 %v709
        %v3163 = vunpack.c.h.b16 %v709
        %v3164 = vunpack.c.l.b16 %v710
        %v3165 = vunpack.c.h.b16 %v710
        %v3166 = vunpack.c.l.b16 %v711
        %v3167 = vunpack.c.h.b16 %v711
        %v3168 = vunpack.c.l.b16 %v712
        %v3169 = vunpack.c.h.b16 %v712
        %v3170 = vunpack.c.l.b16 %v713
        %v3171 = vunpack.c.h.b16 %v713
        %v3172 = vunpack.c.l.b16 %v714
        %v3173 = vunpack.c.h.b16 %v714
        %v3174 = vunpack.c.l.b16 %v715
        %v3175 = vunpack.c.h.b16 %v715
        %v3176 = vunpack.c.l.b16 %v716
        %v3177 = vunpack.c.h.b16 %v716
        %v3178 = vunpack.c.l.b16 %v717
        %v3179 = vunpack.c.h.b16 %v717
        %v3180 = vunpack.c.l.b16 %v718
        %v3181 = vunpack.c.h.b16 %v718
        %v3182 = vunpack.c.l.b16 %v719
        %v3183 = vunpack.c.h.b16 %v719
        %v3184 = vunpack.c.l.b16 %v720
        %v3185 = vunpack.c.h.b16 %v720
        %v3186 = vunpack.c.l.b16 %v721
        %v3187 = vunpack.c.h.b16 %v721
        %v3188 = vunpack.c.l.b16 %v722
        %v3189 = vunpack.c.h.b16 %v722
        %v3190 = vunpack.c.l.b16 %v723
        %v3191 = vunpack.c.h.b16 %v723
        %v3192 = vunpack.c.l.b16 %v724
        %v3193 = vunpack.c.h.b16 %v724
        %v3194 = vunpack.c.l.b16 %v725
        %v3195 = vunpack.c.h.b16 %v725
        %v3196 = vunpack.c.l.b16 %v726
        %v3197 = vunpack.c.h.b16 %v726
        %v3198 = vunpack.c.l.b16 %v727
        %v3199 = vunpack.c.h.b16 %v727
        %v3200 = vunpack.c.l.b16 %v728
        %v3201 = vunpack.c.h.b16 %v728
        %v3202 = vunpack.c.l.b16 %v729
        %v3203 = vunpack.c.h.b16 %v729
        %v3204 = vunpack.c.l.b16 %v730
        %v3205 = vunpack.c.h.b16 %v730
        %v3206 = vunpack.c.l.b16 %v731
        %v3207 = vunpack.c.h.b16 %v731
        %v3208 = vunpack.c.l.b16 %v732
        %v3209 = vunpack.c.h.b16 %v732
        %v3210 = vunpack.c.l.b16 %v733
        %v3211 = vunpack.c.h.b16 %v733
        %v3212 = vunpack.c.l.b16 %v734
        %v3213 = vunpack.c.h.b16 %v734
        %v3214 = vunpack.c.l.b16 %v735
        %v3215 = vunpack.c.h.b16 %v735
        %v3216 = vunpack.c.l.b16 %v736
        %v3217 = vunpack.c.h.b16 %v736
        %v3218 = vunpack.c.l.b16 %v737
        %v3219 = vunpack.c.h.b16 %v737
        %v3220 = vunpack.c.l.b16 %v738
        %v3221 = vunpack.c.h.b16 %v738
        %v3222 = vunpack.c.l.b16 %v739
        %v3223 = vunpack.c.h.b16 %v739
        %v3224 = vunpack.c.l.b16 %v740
        %v3225 = vunpack.c.h.b16 %v740
        %v3226 = vunpack.c.l.b16 %v741
        %v3227 = vunpack.c.h.b16 %v741
        %v3228 = vunpack.c.l.b16 %v742
        %v3229 = vunpack.c.h.b16 %v742
        %v3230 = vunpack.c.l.b16 %v743
        %v3231 = vunpack.c.h.b16 %v743
        %v3232 = vunpack.c.l.b16 %v744
        %v3233 = vunpack.c.h.b16 %v744
        %v3234 = vunpack.c.l.b16 %v745
        %v3235 = vunpack.c.h.b16 %v745
        %v3236 = vunpack.c.l.b16 %v746
        %v3237 = vunpack.c.h.b16 %v746
        %v3238 = vunpack.c.l.b16 %v747
        %v3239 = vunpack.c.h.b16 %v747
        %v3240 = vunpack.c.l.b16 %v748
        %v3241 = vunpack.c.h.b16 %v748
        %v3242 = vunpack.c.l.b16 %v749
        %v3243 = vunpack.c.h.b16 %v749
        %v3244 = vunpack.c.l.b16 %v750
        %v3245 = vunpack.c.h.b16 %v750
        %v3246 = vunpack.c.l.b16 %v751
        %v3247 = vunpack.c.h.b16 %v751
        %v3248 = vunpack.c.l.b16 %v752
        %v3249 = vunpack.c.h.b16 %v752
        %v3250 = vunpack.c.l.b16 %v753
        %v3251 = vunpack.c.h.b16 %v753
        %v3252 = vunpack.c.l.b16 %v754
        %v3253 = vunpack.c.h.b16 %v754
        %v3254 = vunpack.c.l.b16 %v755
        %v3255 = vunpack.c.h.b16 %v755
        %v3256 = vunpack.c.l.b16 %v756
        %v3257 = vunpack.c.h.b16 %v756
        %v3258 = vunpack.c.l.b16 %v757
        %v3259 = vunpack.c.h.b16 %v757
        %v3260 = vunpack.c.l.b16 %v758
        %v3261 = vunpack.c.h.b16 %v758
        %v3262 = vunpack.c.l.b16 %v759
        %v3263 = vunpack.c.h.b16 %v759
        %v3264 = vunpack.c.l.b16 %v760
        %v3265 = vunpack.c.h.b16 %v760
        %v3266 = vunpack.c.l.b16 %v761
        %v3267 = vunpack.c.h.b16 %v761
        %v3268 = vunpack.c.l.b16 %v762
        %v3269 = vunpack.c.h.b16 %v762
        %v3270 = vunpack.c.l.b16 %v763
        %v3271 = vunpack.c.h.b16 %v763
        %v3272 = vunpack.c.l.b16 %v764
        %v3273 = vunpack.c.h.b16 %v764
        %v3274 = vunpack.c.l.b16 %v765
        %v3275 = vunpack.c.h.b16 %v765
        %v3276 = vunpack.c.l.b16 %v766
        %v3277 = vunpack.c.h.b16 %v766
        %v3278 = vunpack.c.l.b16 %v767
        %v3279 = vunpack.c.h.b16 %v767
        %v3280 = vunpack.c.l.b16 %v768
        %v3281 = vunpack.c.h.b16 %v768
        %v3282 = vunpack.c.l.b16 %v769
        %v3283 = vunpack.c.h.b16 %v769
        %v3284 = vunpack.c.l.b16 %v770
        %v3285 = vunpack.c.h.b16 %v770
        %v3286 = vunpack.c.l.b16 %v771
        %v3287 = vunpack.c.h.b16 %v771
        %v3288 = vunpack.c.l.b16 %v772
        %v3289 = vunpack.c.h.b16 %v772
        %v3290 = vunpack.c.l.b16 %v773
        %v3291 = vunpack.c.h.b16 %v773
        %v3292 = vunpack.c.l.b16 %v774
        %v3293 = vunpack.c.h.b16 %v774
        %v3294 = vunpack.c.l.b16 %v775
        %v3295 = vunpack.c.h.b16 %v775
        %v3296 = vunpack.c.l.b16 %v776
        %v3297 = vunpack.c.h.b16 %v776
        %v3298 = vunpack.c.l.b16 %v777
        %v3299 = vunpack.c.h.b16 %v777
        %v3300 = vunpack.c.l.b16 %v778
        %v3301 = vunpack.c.h.b16 %v778
        %v3302 = vunpack.c.l.b16 %v779
        %v3303 = vunpack.c.h.b16 %v779
        %v3304 = vunpack.c.l.b16 %v780
        %v3305 = vunpack.c.h.b16 %v780
        %v3306 = vunpack.c.l.b16 %v781
        %v3307 = vunpack.c.h.b16 %v781
        %v3308 = vunpack.c.l.b16 %v782
        %v3309 = vunpack.c.h.b16 %v782
        %v3310 = vunpack.c.l.b16 %v783
        %v3311 = vunpack.c.h.b16 %v783
        %v3312 = vunpack.c.l.b16 %v784
        %v3313 = vunpack.c.h.b16 %v784
        %v3314 = vunpack.c.l.b16 %v785
        %v3315 = vunpack.c.h.b16 %v785
        %v3316 = vunpack.c.l.b16 %v786
        %v3317 = vunpack.c.h.b16 %v786
        %v3318 = vunpack.c.l.b16 %v787
        %v3319 = vunpack.c.h.b16 %v787
        %v3320 = vunpack.c.l.b16 %v788
        %v3321 = vunpack.c.h.b16 %v788
        %v3322 = vunpack.c.l.b16 %v789
        %v3323 = vunpack.c.h.b16 %v789
        %v3324 = vunpack.c.l.b16 %v790
        %v3325 = vunpack.c.h.b16 %v790
        %v3326 = vunpack.c.l.b16 %v791
        %v3327 = vunpack.c.h.b16 %v791
        %v3328 = vunpack.c.l.b16 %v792
        %v3329 = vunpack.c.h.b16 %v792
        %v3330 = vunpack.c.l.b16 %v793
        %v3331 = vunpack.c.h.b16 %v793
        %v3332 = vunpack.c.l.b16 %v794
        %v3333 = vunpack.c.h.b16 %v794
        %v3334 = vunpack.c.l.b16 %v795
        %v3335 = vunpack.c.h.b16 %v795
        %v3336 = vunpack.c.l.b16 %v796
        %v3337 = vunpack.c.h.b16 %v796
        %v3338 = vunpack.c.l.b16 %v797
        %v3339 = vunpack.c.h.b16 %v797
        %v3340 = vunpack.c.l.b16 %v798
        %v3341 = vunpack.c.h.b16 %v798
        %v3342 = vunpack.c.l.b16 %v799
        %v3343 = vunpack.c.h.b16 %v799
        %v3344 = vunpack.c.l.b16 %v800
        %v3345 = vunpack.c.h.b16 %v800
        %v3346 = vunpack.c.l.b16 %v801
        %v3347 = vunpack.c.h.b16 %v801
        %v3348 = vunpack.c.l.b16 %v802
        %v3349 = vunpack.c.h.b16 %v802
        %v3350 = vunpack.c.l.b16 %v803
        %v3351 = vunpack.c.h.b16 %v803
        %v3352 = vunpack.c.l.b16 %v804
        %v3353 = vunpack.c.h.b16 %v804
        %v3354 = vunpack.c.l.b16 %v805
        %v3355 = vunpack.c.h.b16 %v805
        %v3356 = vunpack.c.l.b16 %v806
        %v3357 = vunpack.c.h.b16 %v806
        %v3358 = vunpack.c.l.b16 %v807
        %v3359 = vunpack.c.h.b16 %v807
        %v3360 = vunpack.c.l.b16 %v808
        %v3361 = vunpack.c.h.b16 %v808
        %v3362 = vunpack.c.l.b16 %v809
        %v3363 = vunpack.c.h.b16 %v809
        %v3364 = vunpack.c.l.b16 %v810
        %v3365 = vunpack.c.h.b16 %v810
        %v3366 = vunpack.c.l.b16 %v811
        %v3367 = vunpack.c.h.b16 %v811
        %v3368 = vunpack.c.l.b16 %v812
        %v3369 = vunpack.c.h.b16 %v812
        %v3370 = vunpack.c.l.b16 %v813
        %v3371 = vunpack.c.h.b16 %v813
        %v3372 = vunpack.c.l.b16 %v814
        %v3373 = vunpack.c.h.b16 %v814
        %v3374 = vunpack.c.l.b16 %v815
        %v3375 = vunpack.c.h.b16 %v815
        %v3376 = vunpack.c.l.b16 %v816
        %v3377 = vunpack.c.h.b16 %v816
        %v3378 = vunpack.c.l.b16 %v817
        %v3379 = vunpack.c.h.b16 %v817
        %v3380 = vunpack.c.l.b16 %v818
        %v3381 = vunpack.c.h.b16 %v818
        %v3382 = vunpack.c.l.b16 %v819
        %v3383 = vunpack.c.h.b16 %v819
        %v3384 = vunpack.c.l.b16 %v820
        %v3385 = vunpack.c.h.b16 %v820
        %v3386 = vunpack.c.l.b16 %v821
        %v3387 = vunpack.c.h.b16 %v821
        %v3388 = vunpack.c.l.b16 %v822
        %v3389 = vunpack.c.h.b16 %v822
        %v3390 = vunpack.c.l.b16 %v823
        %v3391 = vunpack.c.h.b16 %v823
        %v3392 = vunpack.c.l.b16 %v824
        %v3393 = vunpack.c.h.b16 %v824
        %v3394 = vunpack.c.l.b16 %v825
        %v3395 = vunpack.c.h.b16 %v825
        %v3396 = vunpack.c.l.b16 %v826
        %v3397 = vunpack.c.h.b16 %v826
        %v3398 = vunpack.c.l.b16 %v827
        %v3399 = vunpack.c.h.b16 %v827
        %v3400 = vunpack.c.l.b16 %v828
        %v3401 = vunpack.c.h.b16 %v828
        %v3402 = vunpack.c.l.b16 %v829
        %v3403 = vunpack.c.h.b16 %v829
        %v3404 = vunpack.c.l.b16 %v830
        %v3405 = vunpack.c.h.b16 %v830
        %v3406 = vunpack.c.l.b16 %v831
        %v3407 = vunpack.c.h.b16 %v831
        %v3408 = vunpack.c.l.b16 %v832
        %v3409 = vunpack.c.h.b16 %v832
        %v3410 = vunpack.c.l.b16 %v833
        %v3411 = vunpack.c.h.b16 %v833
        %v3412 = vunpack.c.l.b16 %v834
        %v3413 = vunpack.c.h.b16 %v834
        %v3414 = vunpack.c.l.b16 %v835
        %v3415 = vunpack.c.h.b16 %v835
        %v3416 = vunpack.c.l.b16 %v836
        %v3417 = vunpack.c.h.b16 %v836
        %v3418 = vunpack.c.l.b16 %v837
        %v3419 = vunpack.c.h.b16 %v837
        %v3420 = vunpack.c.l.b16 %v838
        %v3421 = vunpack.c.h.b16 %v838
        %v3422 = vunpack.c.l.b16 %v839
        %v3423 = vunpack.c.h.b16 %v839
        %v3424 = vunpack.c.l.b16 %v840
        %v3425 = vunpack.c.h.b16 %v840
        %v3426 = vunpack.c.l.b16 %v841
        %v3427 = vunpack.c.h.b16 %v841
        %v3428 = vunpack.c.l.b16 %v842
        %v3429 = vunpack.c.h.b16 %v842
        %v3430 = vunpack.c.l.b16 %v843
        %v3431 = vunpack.c.h.b16 %v843
        %v3432 = vunpack.c.l.b16 %v844
        %v3433 = vunpack.c.h.b16 %v844
        %v3434 = vunpack.c.l.b16 %v845
        %v3435 = vunpack.c.h.b16 %v845
        %v3436 = vunpack.c.l.b16 %v846
        %v3437 = vunpack.c.h.b16 %v846
        %v3438 = vunpack.c.l.b16 %v847
        %v3439 = vunpack.c.h.b16 %v847
        %v3440 = vunpack.c.l.b16 %v848
        %v3441 = vunpack.c.h.b16 %v848
        %v3442 = vunpack.c.l.b16 %v849
        %v3443 = vunpack.c.h.b16 %v849
        %v3444 = vunpack.c.l.b16 %v850
        %v3445 = vunpack.c.h.b16 %v850
        %v3446 = vunpack.c.l.b16 %v851
        %v3447 = vunpack.c.h.b16 %v851
        %v3448 = vunpack.c.l.b16 %v852
        %v3449 = vunpack.c.h.b16 %v852
        %v3450 = vunpack.c.l.b16 %v853
        %v3451 = vunpack.c.h.b16 %v853
        %v3452 = vunpack.c.l.b16 %v854
        %v3453 = vunpack.c.h.b16 %v854
        %v3454 = vunpack.c.l.b16 %v855
        %v3455 = vunpack.c.h.b16 %v855
        %v3456 = vunpack.c.l.b16 %v856
        %v3457 = vunpack.c.h.b16 %v856
        %v3458 = vunpack.c.l.b16 %v857
        %v3459 = vunpack.c.h.b16 %v857
        %v3460 = vunpack.c.l.b16 %v858
        %v3461 = vunpack.c.h.b16 %v858
        %v3462 = vunpack.c.l.b16 %v859
        %v3463 = vunpack.c.h.b16 %v859
        %v3464 = vunpack.c.l.b16 %v860
        %v3465 = vunpack.c.h.b16 %v860
        %v3466 = vunpack.c.l.b16 %v861
        %v3467 = vunpack.c.h.b16 %v861
        %v3468 = vunpack.c.l.b16 %v862
        %v3469 = vunpack.c.h.b16 %v862
        %v3470 = vunpack.c.l.b16 %v863
        %v3471 = vunpack.c.h.b16 %v863
        %v3472 = vunpack.c.l.b16 %v864
        %v3473 = vunpack.c.h.b16 %v864
        %v3474 = vunpack.c.l.b16 %v865
        %v3475 = vunpack.c.h.b16 %v865
        %v3476 = vunpack.c.l.b16 %v866
        %v3477 = vunpack.c.h.b16 %v866
        %v3478 = vunpack.c.l.b16 %v867
        %v3479 = vunpack.c.h.b16 %v867
        %v3480 = vunpack.c.l.b16 %v868
        %v3481 = vunpack.c.h.b16 %v868
        %v3482 = vunpack.c.l.b16 %v869
        %v3483 = vunpack.c.h.b16 %v869
        %v3484 = vunpack.c.l.b16 %v870
        %v3485 = vunpack.c.h.b16 %v870
        %v3486 = vunpack.c.l.b16 %v871
        %v3487 = vunpack.c.h.b16 %v871
        %v3488 = vunpack.c.l.b16 %v872
        %v3489 = vunpack.c.h.b16 %v872
        %v3490 = vunpack.c.l.b16 %v873
        %v3491 = vunpack.c.h.b16 %v873
        %v3492 = vunpack.c.l.b16 %v874
        %v3493 = vunpack.c.h.b16 %v874
        %v3494 = vunpack.c.l.b16 %v875
        %v3495 = vunpack.c.h.b16 %v875
        %v3496 = vunpack.c.l.b16 %v876
        %v3497 = vunpack.c.h.b16 %v876
        %v3498 = vunpack.c.l.b16 %v877
        %v3499 = vunpack.c.h.b16 %v877
        %v3500 = vunpack.c.l.b16 %v878
        %v3501 = vunpack.c.h.b16 %v878
        %v3502 = vunpack.c.l.b16 %v879
        %v3503 = vunpack.c.h.b16 %v879
        %v3504 = vunpack.c.l.b16 %v880
        %v3505 = vunpack.c.h.b16 %v880
        %v3506 = vunpack.c.l.b16 %v881
        %v3507 = vunpack.c.h.b16 %v881
        %v3508 = vunpack.c.l.b16 %v882
        %v3509 = vunpack.c.h.b16 %v882
        %v3510 = vunpack.c.l.b16 %v883
        %v3511 = vunpack.c.h.b16 %v883
        %v3512 = vunpack.c.l.b16 %v884
        %v3513 = vunpack.c.h.b16 %v884
        %v3514 = vunpack.c.l.b16 %v885
        %v3515 = vunpack.c.h.b16 %v885
        %v3516 = vunpack.c.l.b16 %v886
        %v3517 = vunpack.c.h.b16 %v886
        %v3518 = vunpack.c.l.b16 %v887
        %v3519 = vunpack.c.h.b16 %v887
        %v3520 = vunpack.c.l.b16 %v888
        %v3521 = vunpack.c.h.b16 %v888
        %v3522 = vunpack.c.l.b16 %v889
        %v3523 = vunpack.c.h.b16 %v889
        %v3524 = vunpack.c.l.b16 %v890
        %v3525 = vunpack.c.h.b16 %v890
        %v3526 = vunpack.c.l.b16 %v891
        %v3527 = vunpack.c.h.b16 %v891
        %v3528 = vunpack.c.l.b16 %v892
        %v3529 = vunpack.c.h.b16 %v892
        %v3530 = vunpack.c.l.b16 %v893
        %v3531 = vunpack.c.h.b16 %v893
        %v3532 = vunpack.c.l.b16 %v894
        %v3533 = vunpack.c.h.b16 %v894
        %v3534 = vunpack.c.l.b16 %v895
        %v3535 = vunpack.c.h.b16 %v895
        %v3536 = vunpack.c.l.b16 %v896
        %v3537 = vunpack.c.h.b16 %v896
        %v3538 = vunpack.c.l.b16 %v897
        %v3539 = vunpack.c.h.b16 %v897
        %v3540 = vunpack.c.l.b16 %v898
        %v3541 = vunpack.c.h.b16 %v898
        %v3542 = vunpack.c.l.b16 %v899
        %v3543 = vunpack.c.h.b16 %v899
        %v3544 = vunpack.c.l.b16 %v900
        %v3545 = vunpack.c.h.b16 %v900
        %v3546 = vunpack.c.l.b16 %v901
        %v3547 = vunpack.c.h.b16 %v901
        %v3548 = vunpack.c.l.b16 %v902
        %v3549 = vunpack.c.h.b16 %v902
        %v3550 = vunpack.c.l.b16 %v903
        %v3551 = vunpack.c.h.b16 %v903
        %v3552 = vunpack.c.l.b16 %v904
        %v3553 = vunpack.c.h.b16 %v904
        %v3554 = vunpack.c.l.b16 %v905
        %v3555 = vunpack.c.h.b16 %v905
        %v3556 = vunpack.c.l.b16 %v906
        %v3557 = vunpack.c.h.b16 %v906
        %v3558 = vunpack.c.l.b16 %v907
        %v3559 = vunpack.c.h.b16 %v907
        %v3560 = vunpack.c.l.b16 %v908
        %v3561 = vunpack.c.h.b16 %v908
        %v3562 = vunpack.c.l.b16 %v909
        %v3563 = vunpack.c.h.b16 %v909
        %v3564 = vunpack.c.l.b16 %v910
        %v3565 = vunpack.c.h.b16 %v910
        %v3566 = vunpack.c.l.b16 %v911
        %v3567 = vunpack.c.h.b16 %v911
        %v3568 = vunpack.c.l.b16 %v912
        %v3569 = vunpack.c.h.b16 %v912
        %v3570 = vunpack.c.l.b16 %v913
        %v3571 = vunpack.c.h.b16 %v913
        %v3572 = vunpack.c.l.b16 %v914
        %v3573 = vunpack.c.h.b16 %v914
        %v3574 = vunpack.c.l.b16 %v915
        %v3575 = vunpack.c.h.b16 %v915
        %v3576 = vunpack.c.l.b16 %v916
        %v3577 = vunpack.c.h.b16 %v916
        %v3578 = vunpack.c.l.b16 %v917
        %v3579 = vunpack.c.h.b16 %v917
        %v3580 = vunpack.c.l.b16 %v918
        %v3581 = vunpack.c.h.b16 %v918
        %v3582 = vunpack.c.l.b16 %v919
        %v3583 = vunpack.c.h.b16 %v919
        %v3584 = vunpack.c.l.b16 %v920
        %v3585 = vunpack.c.h.b16 %v920
        %v3586 = vunpack.c.l.b16 %v921
        %v3587 = vunpack.c.h.b16 %v921
        %v3588 = vunpack.c.l.b16 %v922
        %v3589 = vunpack.c.h.b16 %v922
        %v3590 = vunpack.c.l.b16 %v923
        %v3591 = vunpack.c.h.b16 %v923
        %v3592 = vunpack.c.l.b16 %v924
        %v3593 = vunpack.c.h.b16 %v924
        %v3594 = vunpack.c.l.b16 %v925
        %v3595 = vunpack.c.h.b16 %v925
        %v3596 = vunpack.c.l.b16 %v926
        %v3597 = vunpack.c.h.b16 %v926
        %v3598 = vunpack.c.l.b16 %v927
        %v3599 = vunpack.c.h.b16 %v927
        %v3600 = vunpack.c.l.b16 %v928
        %v3601 = vunpack.c.h.b16 %v928
        %v3602 = vunpack.c.l.b16 %v929
        %v3603 = vunpack.c.h.b16 %v929
        %v3604 = vunpack.c.l.b16 %v930
        %v3605 = vunpack.c.h.b16 %v930
        %v3606 = vunpack.c.l.b16 %v931
        %v3607 = vunpack.c.h.b16 %v931
        %v3608 = vunpack.c.l.b16 %v932
        %v3609 = vunpack.c.h.b16 %v932
        %v3610 = vunpack.c.l.b16 %v933
        %v3611 = vunpack.c.h.b16 %v933
        %v3612 = vunpack.c.l.b16 %v934
        %v3613 = vunpack.c.h.b16 %v934
        %v3614 = vunpack.c.l.b16 %v935
        %v3615 = vunpack.c.h.b16 %v935
        %v3616 = vunpack.c.l.b16 %v936
        %v3617 = vunpack.c.h.b16 %v936
        %v3618 = vunpack.c.l.b16 %v937
        %v3619 = vunpack.c.h.b16 %v937
        %v3620 = vunpack.c.l.b16 %v938
        %v3621 = vunpack.c.h.b16 %v938
        %v3622 = vunpack.c.l.b16 %v939
        %v3623 = vunpack.c.h.b16 %v939
        %v3624 = vunpack.c.l.b16 %v940
        %v3625 = vunpack.c.h.b16 %v940
        %v3626 = vunpack.c.l.b16 %v941
        %v3627 = vunpack.c.h.b16 %v941
        %v3628 = vunpack.c.l.b16 %v942
        %v3629 = vunpack.c.h.b16 %v942
        %v3630 = vunpack.c.l.b16 %v943
        %v3631 = vunpack.c.h.b16 %v943
        %v3632 = vunpack.c.l.b16 %v944
        %v3633 = vunpack.c.h.b16 %v944
        %v3634 = vunpack.c.l.b16 %v945
        %v3635 = vunpack.c.h.b16 %v945
        %v3636 = vunpack.c.l.b16 %v946
        %v3637 = vunpack.c.h.b16 %v946
        %v3638 = vunpack.c.l.b16 %v947
        %v3639 = vunpack.c.h.b16 %v947
        %v3640 = vunpack.c.l.b16 %v948
        %v3641 = vunpack.c.h.b16 %v948
        %v3642 = vunpack.c.l.b16 %v949
        %v3643 = vunpack.c.h.b16 %v949
        %v3644 = vunpack.c.l.b16 %v950
        %v3645 = vunpack.c.h.b16 %v950
        %v3646 = vunpack.c.l.b16 %v951
        %v3647 = vunpack.c.h.b16 %v951
        %v3648 = vunpack.c.l.b16 %v952
        %v3649 = vunpack.c.h.b16 %v952
        %v3650 = vunpack.c.l.b16 %v953
        %v3651 = vunpack.c.h.b16 %v953
        %v3652 = vunpack.c.l.b16 %v954
        %v3653 = vunpack.c.h.b16 %v954
        %v3654 = vunpack.c.l.b16 %v955
        %v3655 = vunpack.c.h.b16 %v955
        %v3656 = vunpack.c.l.b16 %v956
        %v3657 = vunpack.c.h.b16 %v956
        %v3658 = vunpack.c.l.b16 %v957
        %v3659 = vunpack.c.h.b16 %v957
        %v3660 = vunpack.c.l.b16 %v958
        %v3661 = vunpack.c.h.b16 %v958
        %v3662 = vunpack.c.l.b16 %v959
        %v3663 = vunpack.c.h.b16 %v959
        %v3664 = vunpack.c.l.b16 %v960
        %v3665 = vunpack.c.h.b16 %v960
        %v3666 = vunpack.c.l.b16 %v961
        %v3667 = vunpack.c.h.b16 %v961
        %v3668 = vunpack.c.l.b16 %v962
        %v3669 = vunpack.c.h.b16 %v962
        %v3670 = vunpack.c.l.b16 %v963
        %v3671 = vunpack.c.h.b16 %v963
        %v3672 = vunpack.c.l.b16 %v964
        %v3673 = vunpack.c.h.b16 %v964
        %v3674 = vunpack.c.l.b16 %v965
        %v3675 = vunpack.c.h.b16 %v965
        %v3676 = vunpack.c.l.b16 %v966
        %v3677 = vunpack.c.h.b16 %v966
        %v3678 = vunpack.c.l.b16 %v967
        %v3679 = vunpack.c.h.b16 %v967
        %v3680 = vunpack.c.l.b16 %v968
        %v3681 = vunpack.c.h.b16 %v968
        %v3682 = vunpack.c.l.b16 %v969
        %v3683 = vunpack.c.h.b16 %v969
        %v3684 = vunpack.c.l.b16 %v970
        %v3685 = vunpack.c.h.b16 %v970
        %v3686 = vunpack.c.l.b16 %v971
        %v3687 = vunpack.c.h.b16 %v971
        %v3688 = vunpack.c.l.b16 %v972
        %v3689 = vunpack.c.h.b16 %v972
        %v3690 = vunpack.c.l.b16 %v973
        %v3691 = vunpack.c.h.b16 %v973
        %v3692 = vunpack.c.l.b16 %v974
        %v3693 = vunpack.c.h.b16 %v974
        %v3694 = vunpack.c.l.b16 %v975
        %v3695 = vunpack.c.h.b16 %v975
        %v3696 = vunpack.c.l.b16 %v976
        %v3697 = vunpack.c.h.b16 %v976
        %v3698 = vunpack.c.l.b16 %v977
        %v3699 = vunpack.c.h.b16 %v977
        %v3700 = vunpack.c.l.b16 %v978
        %v3701 = vunpack.c.h.b16 %v978
        %v3702 = vunpack.c.l.b16 %v979
        %v3703 = vunpack.c.h.b16 %v979
        %v3704 = vunpack.c.l.b16 %v980
        %v3705 = vunpack.c.h.b16 %v980
        %v3706 = vunpack.c.l.b16 %v981
        %v3707 = vunpack.c.h.b16 %v981
        %v3708 = vunpack.c.l.b16 %v982
        %v3709 = vunpack.c.h.b16 %v982
        %v3710 = vunpack.c.l.b16 %v983
        %v3711 = vunpack.c.h.b16 %v983
        %v3712 = vunpack.c.l.b16 %v984
        %v3713 = vunpack.c.h.b16 %v984
        %v3714 = vunpack.c.l.b16 %v985
        %v3715 = vunpack.c.h.b16 %v985
        %v3716 = vunpack.c.l.b16 %v986
        %v3717 = vunpack.c.h.b16 %v986
        %v3718 = vunpack.c.l.b16 %v987
        %v3719 = vunpack.c.h.b16 %v987
        %v3720 = vunpack.c.l.b16 %v988
        %v3721 = vunpack.c.h.b16 %v988
        %v3722 = vunpack.c.l.b16 %v989
        %v3723 = vunpack.c.h.b16 %v989
        %v3724 = vunpack.c.l.b16 %v990
        %v3725 = vunpack.c.h.b16 %v990
        %v3726 = vunpack.c.l.b16 %v991
        %v3727 = vunpack.c.h.b16 %v991
        %v3728 = vunpack.c.l.b16 %v992
        %v3729 = vunpack.c.h.b16 %v992
        %v3730 = vunpack.c.l.b16 %v993
        %v3731 = vunpack.c.h.b16 %v993
        %v3732 = vunpack.c.l.b16 %v994
        %v3733 = vunpack.c.h.b16 %v994
        %v3734 = vunpack.c.l.b16 %v995
        %v3735 = vunpack.c.h.b16 %v995
        %v3736 = vunpack.c.l.b16 %v996
        %v3737 = vunpack.c.h.b16 %v996
        %v3738 = vunpack.c.l.b16 %v997
        %v3739 = vunpack.c.h.b16 %v997
        %v3740 = vunpack.c.l.b16 %v998
        %v3741 = vunpack.c.h.b16 %v998
        %v3742 = vunpack.c.l.b16 %v999
        %v3743 = vunpack.c.h.b16 %v999
        %v3744 = vunpack.c.l.b16 %v1000
        %v3745 = vunpack.c.h.b16 %v1000
        %v3746 = vunpack.c.l.b16 %v1001
        %v3747 = vunpack.c.h.b16 %v1001
        %v3748 = vunpack.c.l.b16 %v1002
        %v3749 = vunpack.c.h.b16 %v1002
        %v3750 = vunpack.c.l.b16 %v1003
        %v3751 = vunpack.c.h.b16 %v1003
        %v3752 = vunpack.c.l.b16 %v1004
        %v3753 = vunpack.c.h.b16 %v1004
        %v3754 = vunpack.c.l.b16 %v1005
        %v3755 = vunpack.c.h.b16 %v1005
        %v3756 = vunpack.c.l.b16 %v1006
        %v3757 = vunpack.c.h.b16 %v1006
        %v3758 = vunpack.c.l.b16 %v1007
        %v3759 = vunpack.c.h.b16 %v1007
        %v3760 = vunpack.c.l.b16 %v1008
        %v3761 = vunpack.c.h.b16 %v1008
        %v3762 = vunpack.c.l.b16 %v1009
        %v3763 = vunpack.c.h.b16 %v1009
        %v3764 = vunpack.c.l.b16 %v1010
        %v3765 = vunpack.c.h.b16 %v1010
        %v3766 = vunpack.c.l.b16 %v1011
        %v3767 = vunpack.c.h.b16 %v1011
        %v3768 = vunpack.c.l.b16 %v1012
        %v3769 = vunpack.c.h.b16 %v1012
        %v3770 = vunpack.c.l.b16 %v1013
        %v3771 = vunpack.c.h.b16 %v1013
        %v3772 = vunpack.c.l.b16 %v1014
        %v3773 = vunpack.c.h.b16 %v1014
        %v3774 = vunpack.c.l.b16 %v1015
        %v3775 = vunpack.c.h.b16 %v1015
        %v3776 = vunpack.c.l.b16 %v1016
        %v3777 = vunpack.c.h.b16 %v1016
        %v3778 = vunpack.c.l.b16 %v1017
        %v3779 = vunpack.c.h.b16 %v1017
        %v3780 = vunpack.c.l.b16 %v1018
        %v3781 = vunpack.c.h.b16 %v1018
        %v3782 = vunpack.c.l.b16 %v1019
        %v3783 = vunpack.c.h.b16 %v1019
        %v3784 = vunpack.c.l.b16 %v1020
        %v3785 = vunpack.c.h.b16 %v1020
        %v3786 = vunpack.c.l.b16 %v1021
        %v3787 = vunpack.c.h.b16 %v1021
        %v3788 = vunpack.c.l.b16 %v1022
        %v3789 = vunpack.c.h.b16 %v1022
        %v3790 = vunpack.c.l.b16 %v1023
        %v3791 = vunpack.c.h.b16 %v1023
        %v3792 = vunpack.c.l.b16 %v1024
        %v3793 = vunpack.c.h.b16 %v1024
        %v3794 = vunpack.c.l.b16 %v1025
        %v3795 = vunpack.c.h.b16 %v1025
        %v3796 = vunpack.c.l.b16 %v1026
        %v3797 = vunpack.c.h.b16 %v1026
        %v3798 = vunpack.c.l.b16 %v1027
        %v3799 = vunpack.c.h.b16 %v1027
        %v3800 = vunpack.c.l.b16 %v1028
        %v3801 = vunpack.c.h.b16 %v1028
        %v3802 = vunpack.c.l.b16 %v1029
        %v3803 = vunpack.c.h.b16 %v1029
        %v3804 = vunpack.c.l.b16 %v1030
        %v3805 = vunpack.c.h.b16 %v1030
        %v3806 = vunpack.c.l.b16 %v1031
        %v3807 = vunpack.c.h.b16 %v1031
        %v3808 = vunpack.c.l.b16 %v1032
        %v3809 = vunpack.c.h.b16 %v1032
        %v3810 = vunpack.c.l.b16 %v1033
        %v3811 = vunpack.c.h.b16 %v1033
        %v3812 = vunpack.c.l.b16 %v1034
        %v3813 = vunpack.c.h.b16 %v1034
        %v3814 = vunpack.c.l.b16 %v1035
        %v3815 = vunpack.c.h.b16 %v1035
        %v3816 = vunpack.c.l.b16 %v1036
        %v3817 = vunpack.c.h.b16 %v1036
        %v3818 = vunpack.c.l.b16 %v1037
        %v3819 = vunpack.c.h.b16 %v1037
        %v3820 = vunpack.c.l.b16 %v1038
        %v3821 = vunpack.c.h.b16 %v1038
        %v3822 = vunpack.c.l.b16 %v1039
        %v3823 = vunpack.c.h.b16 %v1039
        %v3824 = vunpack.c.l.b16 %v1040
        %v3825 = vunpack.c.h.b16 %v1040
        %v3826 = vunpack.c.l.b16 %v1041
        %v3827 = vunpack.c.h.b16 %v1041
        %v3828 = vunpack.c.l.b16 %v1042
        %v3829 = vunpack.c.h.b16 %v1042
        %v3830 = vunpack.c.l.b16 %v1043
        %v3831 = vunpack.c.h.b16 %v1043
        %v3832 = vunpack.c.l.b16 %v1044
        %v3833 = vunpack.c.h.b16 %v1044
        %v3834 = vunpack.c.l.b16 %v1045
        %v3835 = vunpack.c.h.b16 %v1045
        %v3836 = vunpack.c.l.b16 %v1046
        %v3837 = vunpack.c.h.b16 %v1046
        %v3838 = vunpack.c.l.b16 %v1047
        %v3839 = vunpack.c.h.b16 %v1047
        %v3840 = vunpack.c.l.b16 %v1048
        %v3841 = vunpack.c.h.b16 %v1048
        %v3842 = vunpack.c.l.b16 %v1049
        %v3843 = vunpack.c.h.b16 %v1049
        %v3844 = vunpack.c.l.b16 %v1050
        %v3845 = vunpack.c.h.b16 %v1050
        %v3846 = vunpack.c.l.b16 %v1051
        %v3847 = vunpack.c.h.b16 %v1051
        %v3848 = vunpack.c.l.b16 %v1052
        %v3849 = vunpack.c.h.b16 %v1052
        %v3850 = vunpack.c.l.b16 %v1053
        %v3851 = vunpack.c.h.b16 %v1053
        %v3852 = vunpack.c.l.b16 %v1054
        %v3853 = vunpack.c.h.b16 %v1054
        %v3854 = vunpack.c.l.b16 %v1055
        %v3855 = vunpack.c.h.b16 %v1055
        %v3856 = vunpack.c.l.b16 %v1056
        %v3857 = vunpack.c.h.b16 %v1056
        %v3858 = vunpack.c.l.b16 %v1057
        %v3859 = vunpack.c.h.b16 %v1057
        %v3860 = vunpack.c.l.b16 %v1058
        %v3861 = vunpack.c.h.b16 %v1058
        %v3862 = vunpack.c.l.b16 %v1059
        %v3863 = vunpack.c.h.b16 %v1059
        %v3864 = vunpack.c.l.b16 %v1060
        %v3865 = vunpack.c.h.b16 %v1060
        %v3866 = vunpack.c.l.b16 %v1061
        %v3867 = vunpack.c.h.b16 %v1061
        %v3868 = vunpack.c.l.b16 %v1062
        %v3869 = vunpack.c.h.b16 %v1062
        %v3870 = vunpack.c.l.b16 %v1063
        %v3871 = vunpack.c.h.b16 %v1063
        %v3872 = vunpack.c.l.b16 %v1064
        %v3873 = vunpack.c.h.b16 %v1064
        %v3874 = vunpack.c.l.b16 %v1065
        %v3875 = vunpack.c.h.b16 %v1065
        %v3876 = vunpack.c.l.b16 %v1066
        %v3877 = vunpack.c.h.b16 %v1066
        %v3878 = vunpack.c.l.b16 %v1067
        %v3879 = vunpack.c.h.b16 %v1067
        %v3880 = vunpack.c.l.b16 %v1068
        %v3881 = vunpack.c.h.b16 %v1068
        %v3882 = vunpack.c.l.b16 %v1069
        %v3883 = vunpack.c.h.b16 %v1069
        %v3884 = vunpack.c.l.b16 %v1070
        %v3885 = vunpack.c.h.b16 %v1070
        %v3886 = vunpack.c.l.b16 %v1071
        %v3887 = vunpack.c.h.b16 %v1071
        %v3888 = vunpack.c.l.b16 %v1072
        %v3889 = vunpack.c.h.b16 %v1072
        %v3890 = vunpack.c.l.b16 %v1073
        %v3891 = vunpack.c.h.b16 %v1073
        %v3892 = vunpack.c.l.b16 %v1074
        %v3893 = vunpack.c.h.b16 %v1074
        %v3894 = vunpack.c.l.b16 %v1075
        %v3895 = vunpack.c.h.b16 %v1075
        %v3896 = vunpack.c.l.b16 %v1076
        %v3897 = vunpack.c.h.b16 %v1076
        %v3898 = vunpack.c.l.b16 %v1077
        %v3899 = vunpack.c.h.b16 %v1077
        %v3900 = vunpack.c.l.b16 %v1078
        %v3901 = vunpack.c.h.b16 %v1078
        %v3902 = vunpack.c.l.b16 %v1079
        %v3903 = vunpack.c.h.b16 %v1079
        %v3904 = vunpack.c.l.b16 %v1080
        %v3905 = vunpack.c.h.b16 %v1080
        %v3906 = vunpack.c.l.b16 %v1081
        %v3907 = vunpack.c.h.b16 %v1081
        %v3908 = vunpack.c.l.b16 %v1082
        %v3909 = vunpack.c.h.b16 %v1082
        %v3910 = vunpack.c.l.b16 %v1083
        %v3911 = vunpack.c.h.b16 %v1083
        %v3912 = vunpack.c.l.b16 %v1084
        %v3913 = vunpack.c.h.b16 %v1084
        %v3914 = vunpack.c.l.b16 %v1085
        %v3915 = vunpack.c.h.b16 %v1085
        %v3916 = vunpack.c.l.b16 %v1086
        %v3917 = vunpack.c.h.b16 %v1086
        %v3918 = vunpack.c.l.b16 %v1087
        %v3919 = vunpack.c.h.b16 %v1087
        %v3920 = vunpack.c.l.b16 %v1088
        %v3921 = vunpack.c.h.b16 %v1088
        %v3922 = vunpack.c.l.b16 %v1089
        %v3923 = vunpack.c.h.b16 %v1089
        %v3924 = vunpack.c.l.b16 %v1090
        %v3925 = vunpack.c.h.b16 %v1090
        %v3926 = vunpack.c.l.b16 %v1091
        %v3927 = vunpack.c.h.b16 %v1091
        %v3928 = vunpack.c.l.b16 %v1092
        %v3929 = vunpack.c.h.b16 %v1092
        %v3930 = vunpack.c.l.b16 %v1093
        %v3931 = vunpack.c.h.b16 %v1093
        %v3932 = vunpack.c.l.b16 %v1094
        %v3933 = vunpack.c.h.b16 %v1094
        %v3934 = vunpack.c.l.b16 %v1095
        %v3935 = vunpack.c.h.b16 %v1095
        %v3936 = vunpack.c.l.b16 %v1096
        %v3937 = vunpack.c.h.b16 %v1096
        %v3938 = vunpack.c.l.b16 %v1097
        %v3939 = vunpack.c.h.b16 %v1097
        %v3940 = vunpack.c.l.b16 %v1098
        %v3941 = vunpack.c.h.b16 %v1098
        %v3942 = vunpack.c.l.b16 %v1099
        %v3943 = vunpack.c.h.b16 %v1099
        %v3944 = vunpack.c.l.b16 %v1100
        %v3945 = vunpack.c.h.b16 %v1100
        %v3946 = vunpack.c.l.b16 %v1101
        %v3947 = vunpack.c.h.b16 %v1101
        %v3948 = vunpack.c.l.b16 %v1102
        %v3949 = vunpack.c.h.b16 %v1102
        %v3950 = vunpack.c.l.b16 %v1103
        %v3951 = vunpack.c.h.b16 %v1103
        %v3952 = vunpack.c.l.b16 %v1104
        %v3953 = vunpack.c.h.b16 %v1104
        %v3954 = vunpack.c.l.b16 %v1105
        %v3955 = vunpack.c.h.b16 %v1105
        %v3956 = vunpack.c.l.b16 %v1106
        %v3957 = vunpack.c.h.b16 %v1106
        %v3958 = vunpack.c.l.b16 %v1107
        %v3959 = vunpack.c.h.b16 %v1107
        %v3960 = vunpack.c.l.b16 %v1108
        %v3961 = vunpack.c.h.b16 %v1108
        %v3962 = vunpack.c.l.b16 %v1109
        %v3963 = vunpack.c.h.b16 %v1109
        %v3964 = vunpack.c.l.b16 %v1110
        %v3965 = vunpack.c.h.b16 %v1110
        %v3966 = vunpack.c.l.b16 %v1111
        %v3967 = vunpack.c.h.b16 %v1111
        %v3968 = vunpack.c.l.b16 %v1112
        %v3969 = vunpack.c.h.b16 %v1112
        %v3970 = vunpack.c.l.b16 %v1113
        %v3971 = vunpack.c.h.b16 %v1113
        %v3972 = vunpack.c.l.b16 %v1114
        %v3973 = vunpack.c.h.b16 %v1114
        %v3974 = vunpack.c.l.b16 %v1115
        %v3975 = vunpack.c.h.b16 %v1115
        %v3976 = vunpack.c.l.b16 %v1116
        %v3977 = vunpack.c.h.b16 %v1116
        %v3978 = vunpack.c.l.b16 %v1117
        %v3979 = vunpack.c.h.b16 %v1117
        %v3980 = vunpack.c.l.b16 %v1118
        %v3981 = vunpack.c.h.b16 %v1118
        %v3982 = vunpack.c.l.b16 %v1119
        %v3983 = vunpack.c.h.b16 %v1119
        %v3984 = vunpack.c.l.b16 %v1120
        %v3985 = vunpack.c.h.b16 %v1120
        %v3986 = vunpack.c.l.b16 %v1121
        %v3987 = vunpack.c.h.b16 %v1121
        %v3988 = vunpack.c.l.b16 %v1122
        %v3989 = vunpack.c.h.b16 %v1122
        %v3990 = vunpack.c.l.b16 %v1123
        %v3991 = vunpack.c.h.b16 %v1123
        %v3992 = vunpack.c.l.b16 %v1124
        %v3993 = vunpack.c.h.b16 %v1124
        %v3994 = vunpack.c.l.b16 %v1125
        %v3995 = vunpack.c.h.b16 %v1125
        %v3996 = vunpack.c.l.b16 %v1126
        %v3997 = vunpack.c.h.b16 %v1126
        %v3998 = vunpack.c.l.b16 %v1127
        %v3999 = vunpack.c.h.b16 %v1127
        %v4000 = vunpack.c.l.b16 %v1128
        %v4001 = vunpack.c.h.b16 %v1128
        %v4002 = vunpack.c.l.b16 %v1129
        %v4003 = vunpack.c.h.b16 %v1129
        %v4004 = vunpack.c.l.b16 %v1130
        %v4005 = vunpack.c.h.b16 %v1130
        %v4006 = vunpack.c.l.b16 %v1131
        %v4007 = vunpack.c.h.b16 %v1131
        %v4008 = vunpack.c.l.b16 %v1132
        %v4009 = vunpack.c.h.b16 %v1132
        %v4010 = vunpack.c.l.b16 %v1133
        %v4011 = vunpack.c.h.b16 %v1133
        %v4012 = vunpack.c.l.b16 %v1134
        %v4013 = vunpack.c.h.b16 %v1134
        %v4014 = vunpack.c.l.b16 %v1135
        %v4015 = vunpack.c.h.b16 %v1135
        %v4016 = vunpack.c.l.b16 %v1136
        %v4017 = vunpack.c.h.b16 %v1136
        %v4018 = vunpack.c.l.b16 %v1137
        %v4019 = vunpack.c.h.b16 %v1137
        %v4020 = vunpack.c.l.b16 %v1138
        %v4021 = vunpack.c.h.b16 %v1138
        %v4022 = vunpack.c.l.b16 %v1139
        %v4023 = vunpack.c.h.b16 %v1139
        %v4024 = vunpack.c.l.b16 %v1140
        %v4025 = vunpack.c.h.b16 %v1140
        %v4026 = vunpack.c.l.b16 %v1141
        %v4027 = vunpack.c.h.b16 %v1141
        %v4028 = vunpack.c.l.b16 %v1142
        %v4029 = vunpack.c.h.b16 %v1142
        %v4030 = vunpack.c.l.b16 %v1143
        %v4031 = vunpack.c.h.b16 %v1143
        %v4032 = vunpack.c.l.b16 %v1144
        %v4033 = vunpack.c.h.b16 %v1144
        %v4034 = vunpack.c.l.b16 %v1145
        %v4035 = vunpack.c.h.b16 %v1145
        %v4036 = vunpack.c.l.b16 %v1146
        %v4037 = vunpack.c.h.b16 %v1146
        %v4038 = vunpack.c.l.b16 %v1147
        %v4039 = vunpack.c.h.b16 %v1147
        %v4040 = vunpack.c.l.b16 %v1148
        %v4041 = vunpack.c.h.b16 %v1148
        %v4042 = vunpack.c.l.b16 %v1149
        %v4043 = vunpack.c.h.b16 %v1149
        %v4044 = vunpack.c.l.b16 %v1150
        %v4045 = vunpack.c.h.b16 %v1150
        %v4046 = vunpack.c.l.b16 %v1151
        %v4047 = vunpack.c.h.b16 %v1151
        %v4048 = vunpack.c.l.b16 %v1152
        %v4049 = vunpack.c.h.b16 %v1152
        %v4050 = vunpack.c.l.b16 %v1153
        %v4051 = vunpack.c.h.b16 %v1153
        %v4052 = vunpack.c.l.b16 %v1154
        %v4053 = vunpack.c.h.b16 %v1154
        %v4054 = vunpack.c.l.b16 %v1155
        %v4055 = vunpack.c.h.b16 %v1155
        %v4056 = vunpack.c.l.b16 %v1156
        %v4057 = vunpack.c.h.b16 %v1156
        %v4058 = vunpack.c.l.b16 %v1157
        %v4059 = vunpack.c.h.b16 %v1157
        %v4060 = vunpack.c.l.b16 %v1158
        %v4061 = vunpack.c.h.b16 %v1158
        %v4062 = vunpack.c.l.b16 %v1159
        %v4063 = vunpack.c.h.b16 %v1159
        %v4064 = vunpack.c.l.b16 %v1160
        %v4065 = vunpack.c.h.b16 %v1160
        %v4066 = vunpack.c.l.b16 %v1161
        %v4067 = vunpack.c.h.b16 %v1161
        %v4068 = vunpack.c.l.b16 %v1162
        %v4069 = vunpack.c.h.b16 %v1162
        %v4070 = vunpack.c.l.b16 %v1163
        %v4071 = vunpack.c.h.b16 %v1163
        %v4072 = vunpack.c.l.b16 %v1164
        %v4073 = vunpack.c.h.b16 %v1164
        %v4074 = vunpack.c.l.b16 %v1165
        %v4075 = vunpack.c.h.b16 %v1165
        %v4076 = vunpack.c.l.b16 %v1166
        %v4077 = vunpack.c.h.b16 %v1166
        %v4078 = vunpack.c.l.b16 %v1167
        %v4079 = vunpack.c.h.b16 %v1167
        %v4080 = vunpack.c.l.b16 %v1168
        %v4081 = vunpack.c.h.b16 %v1168
        %v4082 = vunpack.c.l.b16 %v1169
        %v4083 = vunpack.c.h.b16 %v1169
        %v4084 = vunpack.c.l.b16 %v1170
        %v4085 = vunpack.c.h.b16 %v1170
        %v4086 = vunpack.c.l.b16 %v1171
        %v4087 = vunpack.c.h.b16 %v1171
        %v4088 = vunpack.c.l.b16 %v1172
        %v4089 = vunpack.c.h.b16 %v1172
        %v4090 = vunpack.c.l.b16 %v1173
        %v4091 = vunpack.c.h.b16 %v1173
        %v4092 = vunpack.c.l.b16 %v1174
        %v4093 = vunpack.c.h.b16 %v1174
        %v4094 = vunpack.c.l.b16 %v1175
        %v4095 = vunpack.c.h.b16 %v1175
        %v4096 = vunpack.c.l.b16 %v1176
        %v4097 = vunpack.c.h.b16 %v1176
        %v4098 = vunpack.c.l.b16 %v1177
        %v4099 = vunpack.c.h.b16 %v1177
        %v4100 = vunpack.c.l.b16 %v1178
        %v4101 = vunpack.c.h.b16 %v1178
        %v4102 = vunpack.c.l.b16 %v1179
        %v4103 = vunpack.c.h.b16 %v1179
        %v4104 = vunpack.c.l.b16 %v1180
        %v4105 = vunpack.c.h.b16 %v1180
        %v4106 = vunpack.c.l.b16 %v1181
        %v4107 = vunpack.c.h.b16 %v1181
        %v4108 = vunpack.c.l.b16 %v1182
        %v4109 = vunpack.c.h.b16 %v1182
        %v4110 = vunpack.c.l.b16 %v1183
        %v4111 = vunpack.c.h.b16 %v1183
        %v4112 = vunpack.c.l.b16 %v1184
        %v4113 = vunpack.c.h.b16 %v1184
        %v4114 = vunpack.c.l.b16 %v1185
        %v4115 = vunpack.c.h.b16 %v1185
        %v4116 = vunpack.c.l.b16 %v1186
        %v4117 = vunpack.c.h.b16 %v1186
        %v4118 = vunpack.c.l.b16 %v1187
        %v4119 = vunpack.c.h.b16 %v1187
        %v4120 = vunpack.c.l.b16 %v1188
        %v4121 = vunpack.c.h.b16 %v1188
        %v4122 = vunpack.c.l.b16 %v1189
        %v4123 = vunpack.c.h.b16 %v1189
        %v4124 = vunpack.c.l.b16 %v1190
        %v4125 = vunpack.c.h.b16 %v1190
        %v4126 = vunpack.c.l.b16 %v1191
        %v4127 = vunpack.c.h.b16 %v1191
        %v4128 = vunpack.c.l.b16 %v1192
        %v4129 = vunpack.c.h.b16 %v1192
        %v4130 = vunpack.c.l.b16 %v1193
        %v4131 = vunpack.c.h.b16 %v1193
        %v4132 = vunpack.c.l.b16 %v1194
        %v4133 = vunpack.c.h.b16 %v1194
        %v4134 = vunpack.c.l.b16 %v1195
        %v4135 = vunpack.c.h.b16 %v1195
        %v4136 = vunpack.c.l.b16 %v1196
        %v4137 = vunpack.c.h.b16 %v1196
        %v4138 = vunpack.c.l.b16 %v1197
        %v4139 = vunpack.c.h.b16 %v1197
        %v4140 = vunpack.c.l.b16 %v1198
        %v4141 = vunpack.c.h.b16 %v1198
        %v4142 = vunpack.c.l.b16 %v1199
        %v4143 = vunpack.c.h.b16 %v1199
        %v4144 = vunpack.c.l.b16 %v1200
        %v4145 = vunpack.c.h.b16 %v1200
        %v4146 = vunpack.c.l.b16 %v1201
        %v4147 = vunpack.c.h.b16 %v1201
        %v4148 = vunpack.c.l.b16 %v1202
        %v4149 = vunpack.c.h.b16 %v1202
        %v4150 = vunpack.c.l.b16 %v1203
        %v4151 = vunpack.c.h.b16 %v1203
        %v4152 = vunpack.c.l.b16 %v1204
        %v4153 = vunpack.c.h.b16 %v1204
        %v4154 = vunpack.c.l.b16 %v1205
        %v4155 = vunpack.c.h.b16 %v1205
        %v4156 = vunpack.c.l.b16 %v1206
        %v4157 = vunpack.c.h.b16 %v1206
        %v4158 = vunpack.c.l.b16 %v1207
        %v4159 = vunpack.c.h.b16 %v1207
        %v4160 = vunpack.c.l.b16 %v1208
        %v4161 = vunpack.c.h.b16 %v1208
        %v4162 = vunpack.c.l.b16 %v1209
        %v4163 = vunpack.c.h.b16 %v1209
        %v4164 = vunpack.c.l.b16 %v1210
        %v4165 = vunpack.c.h.b16 %v1210
        %v4166 = vunpack.c.l.b16 %v1211
        %v4167 = vunpack.c.h.b16 %v1211
        %v4168 = vunpack.c.l.b16 %v1212
        %v4169 = vunpack.c.h.b16 %v1212
        %v4170 = vunpack.c.l.b16 %v1213
        %v4171 = vunpack.c.h.b16 %v1213
        %v4172 = vunpack.c.l.b16 %v1214
        %v4173 = vunpack.c.h.b16 %v1214
        %v4174 = vunpack.c.l.b16 %v1215
        %v4175 = vunpack.c.h.b16 %v1215
        %v4176 = vunpack.c.l.b16 %v1216
        %v4177 = vunpack.c.h.b16 %v1216
        %v4178 = vunpack.c.l.b16 %v1217
        %v4179 = vunpack.c.h.b16 %v1217
        %v4180 = vunpack.c.l.b16 %v1218
        %v4181 = vunpack.c.h.b16 %v1218
        %v4182 = vunpack.c.l.b16 %v1219
        %v4183 = vunpack.c.h.b16 %v1219
        %v4184 = vunpack.c.l.b16 %v1220
        %v4185 = vunpack.c.h.b16 %v1220
        %v4186 = vunpack.c.l.b16 %v1221
        %v4187 = vunpack.c.h.b16 %v1221
        %v4188 = vunpack.c.l.b16 %v1222
        %v4189 = vunpack.c.h.b16 %v1222
        %v4190 = vunpack.c.l.b16 %v1223
        %v4191 = vunpack.c.h.b16 %v1223
        %v4192 = vunpack.c.l.b16 %v1224
        %v4193 = vunpack.c.h.b16 %v1224
        %v4194 = vunpack.c.l.b16 %v1225
        %v4195 = vunpack.c.h.b16 %v1225
        %v4196 = vunpack.c.l.b16 %v1226
        %v4197 = vunpack.c.h.b16 %v1226
        %v4198 = vunpack.c.l.b16 %v1227
        %v4199 = vunpack.c.h.b16 %v1227
        %v4200 = vunpack.c.l.b16 %v1228
        %v4201 = vunpack.c.h.b16 %v1228
        %v4202 = vunpack.c.l.b16 %v1229
        %v4203 = vunpack.c.h.b16 %v1229
        %v4204 = vunpack.c.l.b16 %v1230
        %v4205 = vunpack.c.h.b16 %v1230
        %v4206 = vunpack.c.l.b16 %v1231
        %v4207 = vunpack.c.h.b16 %v1231
        %v4208 = vunpack.c.l.b16 %v1232
        %v4209 = vunpack.c.h.b16 %v1232
        %v4210 = vunpack.c.l.b16 %v1233
        %v4211 = vunpack.c.h.b16 %v1233
        %v4212 = vunpack.c.l.b16 %v1234
        %v4213 = vunpack.c.h.b16 %v1234
        %v4214 = vunpack.c.l.b16 %v1235
        %v4215 = vunpack.c.h.b16 %v1235
        %v4216 = vunpack.c.l.b16 %v1236
        %v4217 = vunpack.c.h.b16 %v1236
        %v4218 = vunpack.c.l.b16 %v1237
        %v4219 = vunpack.c.h.b16 %v1237
        %v4220 = vunpack.c.l.b16 %v1238
        %v4221 = vunpack.c.h.b16 %v1238
        %v4222 = vunpack.c.l.b16 %v1239
        %v4223 = vunpack.c.h.b16 %v1239
        %v4224 = vunpack.c.l.b16 %v1240
        %v4225 = vunpack.c.h.b16 %v1240
        %v4226 = vunpack.c.l.b16 %v1241
        %v4227 = vunpack.c.h.b16 %v1241
        %v4228 = vunpack.c.l.b16 %v1242
        %v4229 = vunpack.c.h.b16 %v1242
        %v4230 = vunpack.c.l.b16 %v1243
        %v4231 = vunpack.c.h.b16 %v1243
        %v4232 = vunpack.c.l.b16 %v1244
        %v4233 = vunpack.c.h.b16 %v1244
        %v4234 = vunpack.c.l.b16 %v1245
        %v4235 = vunpack.c.h.b16 %v1245
        %v4236 = vunpack.c.l.b16 %v1246
        %v4237 = vunpack.c.h.b16 %v1246
        %v4238 = vunpack.c.l.b16 %v1247
        %v4239 = vunpack.c.h.b16 %v1247
        %v4240 = vunpack.c.l.b16 %v1248
        %v4241 = vunpack.c.h.b16 %v1248
        %v4242 = vunpack.c.l.b16 %v1249
        %v4243 = vunpack.c.h.b16 %v1249
        %v4244 = vunpack.c.l.b16 %v1250
        %v4245 = vunpack.c.h.b16 %v1250
        %v4246 = vunpack.c.l.b16 %v1251
        %v4247 = vunpack.c.h.b16 %v1251
        %v4248 = vunpack.c.l.b16 %v1252
        %v4249 = vunpack.c.h.b16 %v1252
        %v4250 = vunpack.c.l.b16 %v1253
        %v4251 = vunpack.c.h.b16 %v1253
        %v4252 = vunpack.c.l.b16 %v1254
        %v4253 = vunpack.c.h.b16 %v1254
        %v4254 = vunpack.c.l.b16 %v1255
        %v4255 = vunpack.c.h.b16 %v1255
        %v4256 = vunpack.c.l.b16 %v1256
        %v4257 = vunpack.c.h.b16 %v1256
        %v4258 = vunpack.c.l.b16 %v1257
        %v4259 = vunpack.c.h.b16 %v1257
        %v4260 = vunpack.c.l.b16 %v1258
        %v4261 = vunpack.c.h.b16 %v1258
        %v4262 = vunpack.c.l.b16 %v1259
        %v4263 = vunpack.c.h.b16 %v1259
        %v4264 = vunpack.c.l.b16 %v1260
        %v4265 = vunpack.c.h.b16 %v1260
        %v4266 = vunpack.c.l.b16 %v1261
        %v4267 = vunpack.c.h.b16 %v1261
        %v4268 = vunpack.c.l.b16 %v1262
        %v4269 = vunpack.c.h.b16 %v1262
        %v4270 = vunpack.c.l.b16 %v1263
        %v4271 = vunpack.c.h.b16 %v1263
        %v4272 = vunpack.c.l.b16 %v1264
        %v4273 = vunpack.c.h.b16 %v1264
        %v4274 = vunpack.c.l.b16 %v1265
        %v4275 = vunpack.c.h.b16 %v1265
        %v4276 = vunpack.c.l.b16 %v1266
        %v4277 = vunpack.c.h.b16 %v1266
        %v4278 = vunpack.c.l.b16 %v1267
        %v4279 = vunpack.c.h.b16 %v1267
        %v4280 = vunpack.c.l.b16 %v1268
        %v4281 = vunpack.c.h.b16 %v1268
        %v4282 = vunpack.c.l.b16 %v1269
        %v4283 = vunpack.c.h.b16 %v1269
        %v4284 = vunpack.c.l.b16 %v1270
        %v4285 = vunpack.c.h.b16 %v1270
        %v4286 = vunpack.c.l.b16 %v1271
        %v4287 = vunpack.c.h.b16 %v1271
        %v4288 = vunpack.c.l.b16 %v1272
        %v4289 = vunpack.c.h.b16 %v1272
        %v4290 = vunpack.c.l.b16 %v1273
        %v4291 = vunpack.c.h.b16 %v1273
        %v4292 = vunpack.c.l.b16 %v1274
        %v4293 = vunpack.c.h.b16 %v1274
        %v4294 = vunpack.c.l.b16 %v1275
        %v4295 = vunpack.c.h.b16 %v1275
        %v4296 = vunpack.c.l.b16 %v1276
        %v4297 = vunpack.c.h.b16 %v1276
        %v4298 = vunpack.c.l.b16 %v1277
        %v4299 = vunpack.c.h.b16 %v1277
        %v4300 = vunpack.c.l.b16 %v1278
        %v4301 = vunpack.c.h.b16 %v1278
        %v4302 = vunpack.c.l.b16 %v1279
        %v4303 = vunpack.c.h.b16 %v1279
        %v4304 = vunpack.c.l.b16 %v1280
        %v4305 = vunpack.c.h.b16 %v1280
        %v4306 = vunpack.c.l.b16 %v1281
        %v4307 = vunpack.c.h.b16 %v1281
        %v4308 = vunpack.c.l.b16 %v1282
        %v4309 = vunpack.c.h.b16 %v1282
        %v4310 = vunpack.c.l.b16 %v1283
        %v4311 = vunpack.c.h.b16 %v1283
        %v4312 = vunpack.c.l.b16 %v1284
        %v4313 = vunpack.c.h.b16 %v1284
        %v4314 = vunpack.c.l.b16 %v1285
        %v4315 = vunpack.c.h.b16 %v1285
        %v4316 = vunpack.c.l.b16 %v1286
        %v4317 = vunpack.c.h.b16 %v1286
        %v4318 = vunpack.c.l.b16 %v1287
        %v4319 = vunpack.c.h.b16 %v1287
        %v4320 = vunpack.c.l.b16 %v1288
        %v4321 = vunpack.c.h.b16 %v1288
        %v4322 = vunpack.c.l.b16 %v1289
        %v4323 = vunpack.c.h.b16 %v1289
        %v4324 = vunpack.c.l.b16 %v1290
        %v4325 = vunpack.c.h.b16 %v1290
        %v4326 = vunpack.c.l.b16 %v1291
        %v4327 = vunpack.c.h.b16 %v1291
        %v4328 = vunpack.c.l.b16 %v1292
        %v4329 = vunpack.c.h.b16 %v1292
        %v4330 = vunpack.c.l.b16 %v1293
        %v4331 = vunpack.c.h.b16 %v1293
        %v4332 = vunpack.c.l.b16 %v1294
        %v4333 = vunpack.c.h.b16 %v1294
        %v4334 = vunpack.c.l.b16 %v1295
        %v4335 = vunpack.c.h.b16 %v1295
        %v4336 = vunpack.c.l.b16 %v1296
        %v4337 = vunpack.c.h.b16 %v1296
        %v4338 = vunpack.c.l.b16 %v1297
        %v4339 = vunpack.c.h.b16 %v1297
        %v4340 = vunpack.c.l.b16 %v1298
        %v4341 = vunpack.c.h.b16 %v1298
        %v4342 = vunpack.c.l.b16 %v1299
        %v4343 = vunpack.c.h.b16 %v1299
        %v4344 = vunpack.c.l.b16 %v1300
        %v4345 = vunpack.c.h.b16 %v1300
        %v4346 = vunpack.c.l.b16 %v1301
        %v4347 = vunpack.c.h.b16 %v1301
        %v4348 = vunpack.c.l.b16 %v1302
        %v4349 = vunpack.c.h.b16 %v1302
        %v4350 = vunpack.c.l.b16 %v1303
        %v4351 = vunpack.c.h.b16 %v1303
        %v4352 = vunpack.c.l.b16 %v1304
        %v4353 = vunpack.c.h.b16 %v1304
        %v4354 = vunpack.c.l.b16 %v1305
        %v4355 = vunpack.c.h.b16 %v1305
        %v4356 = vunpack.c.l.b16 %v1306
        %v4357 = vunpack.c.h.b16 %v1306
        %v4358 = vunpack.c.l.b16 %v1307
        %v4359 = vunpack.c.h.b16 %v1307
        %v4360 = vunpack.c.l.b16 %v1308
        %v4361 = vunpack.c.h.b16 %v1308
        %v4362 = vunpack.c.l.b16 %v1309
        %v4363 = vunpack.c.h.b16 %v1309
        %v4364 = vunpack.c.l.b16 %v1310
        %v4365 = vunpack.c.h.b16 %v1310
        %v4366 = vunpack.c.l.b16 %v1311
        %v4367 = vunpack.c.h.b16 %v1311
        %v4368 = vunpack.c.l.b16 %v1312
        %v4369 = vunpack.c.h.b16 %v1312
        %v4370 = vunpack.c.l.b16 %v1313
        %v4371 = vunpack.c.h.b16 %v1313
        %v4372 = vunpack.c.l.b16 %v1314
        %v4373 = vunpack.c.h.b16 %v1314
        %v4374 = vunpack.c.l.b16 %v1315
        %v4375 = vunpack.c.h.b16 %v1315
        %v4376 = vunpack.c.l.b16 %v1316
        %v4377 = vunpack.c.h.b16 %v1316
        %v4378 = vunpack.c.l.b16 %v1317
        %v4379 = vunpack.c.h.b16 %v1317
        %v4380 = vunpack.c.l.b16 %v1318
        %v4381 = vunpack.c.h.b16 %v1318
        %v4382 = vunpack.c.l.b16 %v1319
        %v4383 = vunpack.c.h.b16 %v1319
        %v4384 = vunpack.c.l.b16 %v1320
        %v4385 = vunpack.c.h.b16 %v1320
        %v4386 = vunpack.c.l.b16 %v1321
        %v4387 = vunpack.c.h.b16 %v1321
        %v4388 = vunpack.c.l.b16 %v1322
        %v4389 = vunpack.c.h.b16 %v1322
        %v4390 = vunpack.c.l.b16 %v1323
        %v4391 = vunpack.c.h.b16 %v1323
        %v4392 = vunpack.c.l.b16 %v1324
        %v4393 = vunpack.c.h.b16 %v1324
        %v4394 = vunpack.c.l.b16 %v1325
        %v4395 = vunpack.c.h.b16 %v1325
        %v4396 = vunpack.c.l.b16 %v1326
        %v4397 = vunpack.c.h.b16 %v1326
        %v4398 = vunpack.c.l.b16 %v1327
        %v4399 = vunpack.c.h.b16 %v1327
        %v4400 = vunpack.c.l.b16 %v1328
        %v4401 = vunpack.c.h.b16 %v1328
        %v4402 = vunpack.c.l.b16 %v1329
        %v4403 = vunpack.c.h.b16 %v1329
        %v4404 = vunpack.c.l.b16 %v1330
        %v4405 = vunpack.c.h.b16 %v1330
        %v4406 = vunpack.c.l.b16 %v1331
        %v4407 = vunpack.c.h.b16 %v1331
        %v4408 = vunpack.c.l.b16 %v1332
        %v4409 = vunpack.c.h.b16 %v1332
        %v4410 = vunpack.c.l.b16 %v1333
        %v4411 = vunpack.c.h.b16 %v1333
        %v4412 = vunpack.c.l.b16 %v1334
        %v4413 = vunpack.c.h.b16 %v1334
        %v4414 = vunpack.c.l.b16 %v1335
        %v4415 = vunpack.c.h.b16 %v1335
        %v4416 = vunpack.c.l.b16 %v1336
        %v4417 = vunpack.c.h.b16 %v1336
        %v4418 = vunpack.c.l.b16 %v1337
        %v4419 = vunpack.c.h.b16 %v1337
        %v4420 = vunpack.c.l.b16 %v1338
        %v4421 = vunpack.c.h.b16 %v1338
        %v4422 = vunpack.c.l.b16 %v1339
        %v4423 = vunpack.c.h.b16 %v1339
        %v4424 = vunpack.c.l.b16 %v1340
        %v4425 = vunpack.c.h.b16 %v1340
        %v4426 = vunpack.c.l.b16 %v1341
        %v4427 = vunpack.c.h.b16 %v1341
        %v4428 = vunpack.c.l.b16 %v1342
        %v4429 = vunpack.c.h.b16 %v1342
        %v4430 = vunpack.c.l.b16 %v1343
        %v4431 = vunpack.c.h.b16 %v1343
        %v4432 = vunpack.c.l.b16 %v1344
        %v4433 = vunpack.c.h.b16 %v1344
        %v4434 = vunpack.c.l.b16 %v1345
        %v4435 = vunpack.c.h.b16 %v1345
        %v4436 = vunpack.c.l.b16 %v1346
        %v4437 = vunpack.c.h.b16 %v1346
        %v4438 = vunpack.c.l.b16 %v1347
        %v4439 = vunpack.c.h.b16 %v1347
        %v4440 = vunpack.c.l.b16 %v1348
        %v4441 = vunpack.c.h.b16 %v1348
        %v4442 = vunpack.c.l.b16 %v1349
        %v4443 = vunpack.c.h.b16 %v1349
        %v4444 = vunpack.c.l.b16 %v1350
        %v4445 = vunpack.c.h.b16 %v1350
        %v4446 = vunpack.c.l.b16 %v1351
        %v4447 = vunpack.c.h.b16 %v1351
        %v4448 = vunpack.c.l.b16 %v1352
        %v4449 = vunpack.c.h.b16 %v1352
        %v4450 = vunpack.c.l.b16 %v1353
        %v4451 = vunpack.c.h.b16 %v1353
        %v4452 = vunpack.c.l.b16 %v1354
        %v4453 = vunpack.c.h.b16 %v1354
        %v4454 = vunpack.c.l.b16 %v1355
        %v4455 = vunpack.c.h.b16 %v1355
        %v4456 = vpack.c.b16 %v2424, %v2408
        %v4457 = vpack.c.b16 %v2425, %v2409
        %v4458 = vpack.c.b16 %v2426, %v2410
        %v4459 = vpack.c.b16 %v2427, %v2411
        %v4460 = vpack.c.b16 %v2428, %v2412
        %v4461 = vpack.c.b16 %v2429, %v2413
        %v4462 = vpack.c.b16 %v2430, %v2414
        %v4463 = vpack.c.b16 %v2431, %v2415
        %v4464 = vpack.c.b16 %v2432, %v2416
        %v4465 = vpack.c.b16 %v2433, %v2417
        %v4466 = vpack.c.b16 %v2434, %v2418
        %v4467 = vpack.c.b16 %v2435, %v2419
        %v4468 = vpack.c.b16 %v2436, %v2420
        %v4469 = vpack.c.b16 %v2437, %v2421
        %v4470 = vpack.c.b16 %v2438, %v2422
        %v4471 = vpack.c.b16 %v2439, %v2423
        %v4472 = vpack.c.b16 %v2456, %v2440
        %v4473 = vpack.c.b16 %v2457, %v2441
        %v4474 = vpack.c.b16 %v2458, %v2442
        %v4475 = vpack.c.b16 %v2459, %v2443
        %v4476 = vpack.c.b16 %v2460, %v2444
        %v4477 = vpack.c.b16 %v2461, %v2445
        %v4478 = vpack.c.b16 %v2462, %v2446
        %v4479 = vpack.c.b16 %v2463, %v2447
        %v4480 = vpack.c.b16 %v2464, %v2448
        %v4481 = vpack.c.b16 %v2465, %v2449
        %v4482 = vpack.c.b16 %v2466, %v2450
        %v4483 = vpack.c.b16 %v2467, %v2451
        %v4484 = vpack.c.b16 %v2468, %v2452
        %v4485 = vpack.c.b16 %v2469, %v2453
        %v4486 = vpack.c.b16 %v2470, %v2454
        %v4487 = vpack.c.b16 %v2471, %v2455
        %v4488 = vpack.c.b16 %v2488, %v2472
        %v4489 = vpack.c.b16 %v2489, %v2473
        %v4490 = vpack.c.b16 %v2490, %v2474
        %v4491 = vpack.c.b16 %v2491, %v2475
        %v4492 = vpack.c.b16 %v2492, %v2476
        %v4493 = vpack.c.b16 %v2493, %v2477
        %v4494 = vpack.c.b16 %v2494, %v2478
        %v4495 = vpack.c.b16 %v2495, %v2479
        %v4496 = vpack.c.b16 %v2496, %v2480
        %v4497 = vpack.c.b16 %v2497, %v2481
        %v4498 = vpack.c.b16 %v2498, %v2482
        %v4499 = vpack.c.b16 %v2499, %v2483
        %v4500 = vpack.c.b16 %v2500, %v2484
        %v4501 = vpack.c.b16 %v2501, %v2485
        %v4502 = vpack.c.b16 %v2502, %v2486
        %v4503 = vpack.c.b16 %v2503, %v2487
        %v4504 = vpack.c.b16 %v2520, %v2504
        %v4505 = vpack.c.b16 %v2521, %v2505
        %v4506 = vpack.c.b16 %v2522, %v2506
        %v4507 = vpack.c.b16 %v2523, %v2507
        %v4508 = vpack.c.b16 %v2524, %v2508
        %v4509 = vpack.c.b16 %v2525, %v2509
        %v4510 = vpack.c.b16 %v2526, %v2510
        %v4511 = vpack.c.b16 %v2527, %v2511
        %v4512 = vpack.c.b16 %v2528, %v2512
        %v4513 = vpack.c.b16 %v2529, %v2513
        %v4514 = vpack.c.b16 %v2530, %v2514
        %v4515 = vpack.c.b16 %v2531, %v2515
        %v4516 = vpack.c.b16 %v2532, %v2516
        %v4517 = vpack.c.b16 %v2533, %v2517
        %v4518 = vpack.c.b16 %v2534, %v2518
        %v4519 = vpack.c.b16 %v2535, %v2519
        %v4520 = vpack.c.b16 %v2552, %v2536
        %v4521 = vpack.c.b16 %v2553, %v2537
        %v4522 = vpack.c.b16 %v2554, %v2538
        %v4523 = vpack.c.b16 %v2555, %v2539
        %v4524 = vpack.c.b16 %v2556, %v2540
        %v4525 = vpack.c.b16 %v2557, %v2541
        %v4526 = vpack.c.b16 %v2558, %v2542
        %v4527 = vpack.c.b16 %v2559, %v2543
        %v4528 = vpack.c.b16 %v2560, %v2544
        %v4529 = vpack.c.b16 %v2561, %v2545
        %v4530 = vpack.c.b16 %v2562, %v2546
        %v4531 = vpack.c.b16 %v2563, %v2547
        %v4532 = vpack.c.b16 %v2564, %v2548
        %v4533 = vpack.c.b16 %v2565, %v2549
        %v4534 = vpack.c.b16 %v2566, %v2550
        %v4535 = vpack.c.b16 %v2567, %v2551
        %v4536 = vpack.c.b16 %v2584, %v2568
        %v4537 = vpack.c.b16 %v2585, %v2569
        %v4538 = vpack.c.b16 %v2586, %v2570
        %v4539 = vpack.c.b16 %v2587, %v2571
        %v4540 = vpack.c.b16 %v2588, %v2572
        %v4541 = vpack.c.b16 %v2589, %v2573
        %v4542 = vpack.c.b16 %v2590, %v2574
        %v4543 = vpack.c.b16 %v2591, %v2575
        %v4544 = vpack.c.b16 %v2592, %v2576
        %v4545 = vpack.c.b16 %v2593, %v2577
        %v4546 = vpack.c.b16 %v2594, %v2578
        %v4547 = vpack.c.b16 %v2595, %v2579
        %v4548 = vpack.c.b16 %v2596, %v2580
        %v4549 = vpack.c.b16 %v2597, %v2581
        %v4550 = vpack.c.b16 %v2598, %v2582
        %v4551 = vpack.c.b16 %v2599, %v2583
        %v4552 = vpack.c.b16 %v2616, %v2600
        %v4553 = vpack.c.b16 %v2617, %v2601
        %v4554 = vpack.c.b16 %v2618, %v2602
        %v4555 = vpack.c.b16 %v2619, %v2603
        %v4556 = vpack.c.b16 %v2620, %v2604
        %v4557 = vpack.c.b16 %v2621, %v2605
        %v4558 = vpack.c.b16 %v2622, %v2606
        %v4559 = vpack.c.b16 %v2623, %v2607
        %v4560 = vpack.c.b16 %v2624, %v2608
        %v4561 = vpack.c.b16 %v2625, %v2609
        %v4562 = vpack.c.b16 %v2626, %v2610
        %v4563 = vpack.c.b16 %v2627, %v2611
        %v4564 = vpack.c.b16 %v2628, %v2612
        %v4565 = vpack.c.b16 %v2629, %v2613
        %v4566 = vpack.c.b16 %v2630, %v2614
        %v4567 = vpack.c.b16 %v2631, %v2615
        %v4568 = vpack.c.b16 %v2648, %v2632
        %v4569 = vpack.c.b16 %v2649, %v2633
        %v4570 = vpack.c.b16 %v2650, %v2634
        %v4571 = vpack.c.b16 %v2651, %v2635
        %v4572 = vpack.c.b16 %v2652, %v2636
        %v4573 = vpack.c.b16 %v2653, %v2637
        %v4574 = vpack.c.b16 %v2654, %v2638
        %v4575 = vpack.c.b16 %v2655, %v2639
        %v4576 = vpack.c.b16 %v2656, %v2640
        %v4577 = vpack.c.b16 %v2657, %v2641
        %v4578 = vpack.c.b16 %v2658, %v2642
        %v4579 = vpack.c.b16 %v2659, %v2643
        %v4580 = vpack.c.b16 %v2660, %v2644
        %v4581 = vpack.c.b16 %v2661, %v2645
        %v4582 = vpack.c.b16 %v2662, %v2646
        %v4583 = vpack.c.b16 %v2663, %v2647
        %v4584 = vpack.c.b16 %v2680, %v2664
        %v4585 = vpack.c.b16 %v2681, %v2665
        %v4586 = vpack.c.b16 %v2682, %v2666
        %v4587 = vpack.c.b16 %v2683, %v2667
        %v4588 = vpack.c.b16 %v2684, %v2668
        %v4589 = vpack.c.b16 %v2685, %v2669
        %v4590 = vpack.c.b16 %v2686, %v2670
        %v4591 = vpack.c.b16 %v2687, %v2671
        %v4592 = vpack.c.b16 %v2688, %v2672
        %v4593 = vpack.c.b16 %v2689, %v2673
        %v4594 = vpack.c.b16 %v2690, %v2674
        %v4595 = vpack.c.b16 %v2691, %v2675
        %v4596 = vpack.c.b16 %v2692, %v2676
        %v4597 = vpack.c.b16 %v2693, %v2677
        %v4598 = vpack.c.b16 %v2694, %v2678
        %v4599 = vpack.c.b16 %v2695, %v2679
        %v4600 = vpack.c.b16 %v2712, %v2696
        %v4601 = vpack.c.b16 %v2713, %v2697
        %v4602 = vpack.c.b16 %v2714, %v2698
        %v4603 = vpack.c.b16 %v2715, %v2699
        %v4604 = vpack.c.b16 %v2716, %v2700
        %v4605 = vpack.c.b16 %v2717, %v2701
        %v4606 = vpack.c.b16 %v2718, %v2702
        %v4607 = vpack.c.b16 %v2719, %v2703
        %v4608 = vpack.c.b16 %v2720, %v2704
        %v4609 = vpack.c.b16 %v2721, %v2705
        %v4610 = vpack.c.b16 %v2722, %v2706
        %v4611 = vpack.c.b16 %v2723, %v2707
        %v4612 = vpack.c.b16 %v2724, %v2708
        %v4613 = vpack.c.b16 %v2725, %v2709
        %v4614 = vpack.c.b16 %v2726, %v2710
        %v4615 = vpack.c.b16 %v2727, %v2711
        %v4616 = vpack.c.b16 %v2744, %v2728
        %v4617 = vpack.c.b16 %v2745, %v2729
        %v4618 = vpack.c.b16 %v2746, %v2730
        %v4619 = vpack.c.b16 %v2747, %v2731
        %v4620 = vpack.c.b16 %v2748, %v2732
        %v4621 = vpack.c.b16 %v2749, %v2733
        %v4622 = vpack.c.b16 %v2750, %v2734
        %v4623 = vpack.c.b16 %v2751, %v2735
        %v4624 = vpack.c.b16 %v2752, %v2736
        %v4625 = vpack.c.b16 %v2753, %v2737
        %v4626 = vpack.c.b16 %v2754, %v2738
        %v4627 = vpack.c.b16 %v2755, %v2739
        %v4628 = vpack.c.b16 %v2756, %v2740
        %v4629 = vpack.c.b16 %v2757, %v2741
        %v4630 = vpack.c.b16 %v2758, %v2742
        %v4631 = vpack.c.b16 %v2759, %v2743
        %v4632 = vpack.c.b16 %v2776, %v2760
        %v4633 = vpack.c.b16 %v2777, %v2761
        %v4634 = vpack.c.b16 %v2778, %v2762
        %v4635 = vpack.c.b16 %v2779, %v2763
        %v4636 = vpack.c.b16 %v2780, %v2764
        %v4637 = vpack.c.b16 %v2781, %v2765
        %v4638 = vpack.c.b16 %v2782, %v2766
        %v4639 = vpack.c.b16 %v2783, %v2767
        %v4640 = vpack.c.b16 %v2784, %v2768
        %v4641 = vpack.c.b16 %v2785, %v2769
        %v4642 = vpack.c.b16 %v2786, %v2770
        %v4643 = vpack.c.b16 %v2787, %v2771
        %v4644 = vpack.c.b16 %v2788, %v2772
        %v4645 = vpack.c.b16 %v2789, %v2773
        %v4646 = vpack.c.b16 %v2790, %v2774
        %v4647 = vpack.c.b16 %v2791, %v2775
        %v4648 = vpack.c.b16 %v2808, %v2792
        %v4649 = vpack.c.b16 %v2809, %v2793
        %v4650 = vpack.c.b16 %v2810, %v2794
        %v4651 = vpack.c.b16 %v2811, %v2795
        %v4652 = vpack.c.b16 %v2812, %v2796
        %v4653 = vpack.c.b16 %v2813, %v2797
        %v4654 = vpack.c.b16 %v2814, %v2798
        %v4655 = vpack.c.b16 %v2815, %v2799
        %v4656 = vpack.c.b16 %v2816, %v2800
        %v4657 = vpack.c.b16 %v2817, %v2801
        %v4658 = vpack.c.b16 %v2818, %v2802
        %v4659 = vpack.c.b16 %v2819, %v2803
        %v4660 = vpack.c.b16 %v2820, %v2804
        %v4661 = vpack.c.b16 %v2821, %v2805
        %v4662 = vpack.c.b16 %v2822, %v2806
        %v4663 = vpack.c.b16 %v2823, %v2807
        %v4664 = vpack.c.b16 %v2840, %v2824
        %v4665 = vpack.c.b16 %v2841, %v2825
        %v4666 = vpack.c.b16 %v2842, %v2826
        %v4667 = vpack.c.b16 %v2843, %v2827
        %v4668 = vpack.c.b16 %v2844, %v2828
        %v4669 = vpack.c.b16 %v2845, %v2829
        %v4670 = vpack.c.b16 %v2846, %v2830
        %v4671 = vpack.c.b16 %v2847, %v2831
        %v4672 = vpack.c.b16 %v2848, %v2832
        %v4673 = vpack.c.b16 %v2849, %v2833
        %v4674 = vpack.c.b16 %v2850, %v2834
        %v4675 = vpack.c.b16 %v2851, %v2835
        %v4676 = vpack.c.b16 %v2852, %v2836
        %v4677 = vpack.c.b16 %v2853, %v2837
        %v4678 = vpack.c.b16 %v2854, %v2838
        %v4679 = vpack.c.b16 %v2855, %v2839
        %v4680 = vpack.c.b16 %v2872, %v2856
        %v4681 = vpack.c.b16 %v2873, %v2857
        %v4682 = vpack.c.b16 %v2874, %v2858
        %v4683 = vpack.c.b16 %v2875, %v2859
        %v4684 = vpack.c.b16 %v2876, %v2860
        %v4685 = vpack.c.b16 %v2877, %v2861
        %v4686 = vpack.c.b16 %v2878, %v2862
        %v4687 = vpack.c.b16 %v2879, %v2863
        %v4688 = vpack.c.b16 %v2880, %v2864
        %v4689 = vpack.c.b16 %v2881, %v2865
        %v4690 = vpack.c.b16 %v2882, %v2866
        %v4691 = vpack.c.b16 %v2883, %v2867
        %v4692 = vpack.c.b16 %v2884, %v2868
        %v4693 = vpack.c.b16 %v2885, %v2869
        %v4694 = vpack.c.b16 %v2886, %v2870
        %v4695 = vpack.c.b16 %v2887, %v2871
        %v4696 = vpack.c.b16 %v2904, %v2888
        %v4697 = vpack.c.b16 %v2905, %v2889
        %v4698 = vpack.c.b16 %v2906, %v2890
        %v4699 = vpack.c.b16 %v2907, %v2891
        %v4700 = vpack.c.b16 %v2908, %v2892
        %v4701 = vpack.c.b16 %v2909, %v2893
        %v4702 = vpack.c.b16 %v2910, %v2894
        %v4703 = vpack.c.b16 %v2911, %v2895
        %v4704 = vpack.c.b16 %v2912, %v2896
        %v4705 = vpack.c.b16 %v2913, %v2897
        %v4706 = vpack.c.b16 %v2914, %v2898
        %v4707 = vpack.c.b16 %v2915, %v2899
        %v4708 = vpack.c.b16 %v2916, %v2900
        %v4709 = vpack.c.b16 %v2917, %v2901
        %v4710 = vpack.c.b16 %v2918, %v2902
        %v4711 = vpack.c.b16 %v2919, %v2903
        %v4712 = vpack.c.b16 %v2936, %v2920
        %v4713 = vpack.c.b16 %v2937, %v2921
        %v4714 = vpack.c.b16 %v2938, %v2922
        %v4715 = vpack.c.b16 %v2939, %v2923
        %v4716 = vpack.c.b16 %v2940, %v2924
        %v4717 = vpack.c.b16 %v2941, %v2925
        %v4718 = vpack.c.b16 %v2942, %v2926
        %v4719 = vpack.c.b16 %v2943, %v2927
        %v4720 = vpack.c.b16 %v2944, %v2928
        %v4721 = vpack.c.b16 %v2945, %v2929
        %v4722 = vpack.c.b16 %v2946, %v2930
        %v4723 = vpack.c.b16 %v2947, %v2931
        %v4724 = vpack.c.b16 %v2948, %v2932
        %v4725 = vpack.c.b16 %v2949, %v2933
        %v4726 = vpack.c.b16 %v2950, %v2934
        %v4727 = vpack.c.b16 %v2951, %v2935
        %v4728 = vpack.c.b16 %v2968, %v2952
        %v4729 = vpack.c.b16 %v2969, %v2953
        %v4730 = vpack.c.b16 %v2970, %v2954
        %v4731 = vpack.c.b16 %v2971, %v2955
        %v4732 = vpack.c.b16 %v2972, %v2956
        %v4733 = vpack.c.b16 %v2973, %v2957
        %v4734 = vpack.c.b16 %v2974, %v2958
        %v4735 = vpack.c.b16 %v2975, %v2959
        %v4736 = vpack.c.b16 %v2976, %v2960
        %v4737 = vpack.c.b16 %v2977, %v2961
        %v4738 = vpack.c.b16 %v2978, %v2962
        %v4739 = vpack.c.b16 %v2979, %v2963
        %v4740 = vpack.c.b16 %v2980, %v2964
        %v4741 = vpack.c.b16 %v2981, %v2965
        %v4742 = vpack.c.b16 %v2982, %v2966
        %v4743 = vpack.c.b16 %v2983, %v2967
        %v4744 = vpack.c.b16 %v3000, %v2984
        %v4745 = vpack.c.b16 %v3001, %v2985
        %v4746 = vpack.c.b16 %v3002, %v2986
        %v4747 = vpack.c.b16 %v3003, %v2987
        %v4748 = vpack.c.b16 %v3004, %v2988
        %v4749 = vpack.c.b16 %v3005, %v2989
        %v4750 = vpack.c.b16 %v3006, %v2990
        %v4751 = vpack.c.b16 %v3007, %v2991
        %v4752 = vpack.c.b16 %v3008, %v2992
        %v4753 = vpack.c.b16 %v3009, %v2993
        %v4754 = vpack.c.b16 %v3010, %v2994
        %v4755 = vpack.c.b16 %v3011, %v2995
        %v4756 = vpack.c.b16 %v3012, %v2996
        %v4757 = vpack.c.b16 %v3013, %v2997
        %v4758 = vpack.c.b16 %v3014, %v2998
        %v4759 = vpack.c.b16 %v3015, %v2999
        %v4760 = vpack.c.b16 %v3032, %v3016
        %v4761 = vpack.c.b16 %v3033, %v3017
        %v4762 = vpack.c.b16 %v3034, %v3018
        %v4763 = vpack.c.b16 %v3035, %v3019
        %v4764 = vpack.c.b16 %v3036, %v3020
        %v4765 = vpack.c.b16 %v3037, %v3021
        %v4766 = vpack.c.b16 %v3038, %v3022
        %v4767 = vpack.c.b16 %v3039, %v3023
        %v4768 = vpack.c.b16 %v3040, %v3024
        %v4769 = vpack.c.b16 %v3041, %v3025
        %v4770 = vpack.c.b16 %v3042, %v3026
        %v4771 = vpack.c.b16 %v3043, %v3027
        %v4772 = vpack.c.b16 %v3044, %v3028
        %v4773 = vpack.c.b16 %v3045, %v3029
        %v4774 = vpack.c.b16 %v3046, %v3030
        %v4775 = vpack.c.b16 %v3047, %v3031
        %v4776 = vpack.c.b16 %v3064, %v3048
        %v4777 = vpack.c.b16 %v3065, %v3049
        %v4778 = vpack.c.b16 %v3066, %v3050
        %v4779 = vpack.c.b16 %v3067, %v3051
        %v4780 = vpack.c.b16 %v3068, %v3052
        %v4781 = vpack.c.b16 %v3069, %v3053
        %v4782 = vpack.c.b16 %v3070, %v3054
        %v4783 = vpack.c.b16 %v3071, %v3055
        %v4784 = vpack.c.b16 %v3072, %v3056
        %v4785 = vpack.c.b16 %v3073, %v3057
        %v4786 = vpack.c.b16 %v3074, %v3058
        %v4787 = vpack.c.b16 %v3075, %v3059
        %v4788 = vpack.c.b16 %v3076, %v3060
        %v4789 = vpack.c.b16 %v3077, %v3061
        %v4790 = vpack.c.b16 %v3078, %v3062
        %v4791 = vpack.c.b16 %v3079, %v3063
        %v4792 = vpack.c.b16 %v3096, %v3080
        %v4793 = vpack.c.b16 %v3097, %v3081
        %v4794 = vpack.c.b16 %v3098, %v3082
        %v4795 = vpack.c.b16 %v3099, %v3083
        %v4796 = vpack.c.b16 %v3100, %v3084
        %v4797 = vpack.c.b16 %v3101, %v3085
        %v4798 = vpack.c.b16 %v3102, %v3086
        %v4799 = vpack.c.b16 %v3103, %v3087
        %v4800 = vpack.c.b16 %v3104, %v3088
        %v4801 = vpack.c.b16 %v3105, %v3089
        %v4802 = vpack.c.b16 %v3106, %v3090
        %v4803 = vpack.c.b16 %v3107, %v3091
        %v4804 = vpack.c.b16 %v3108, %v3092
        %v4805 = vpack.c.b16 %v3109, %v3093
        %v4806 = vpack.c.b16 %v3110, %v3094
        %v4807 = vpack.c.b16 %v3111, %v3095
        %v4808 = vpack.c.b16 %v3128, %v3112
        %v4809 = vpack.c.b16 %v3129, %v3113
        %v4810 = vpack.c.b16 %v3130, %v3114
        %v4811 = vpack.c.b16 %v3131, %v3115
        %v4812 = vpack.c.b16 %v3132, %v3116
        %v4813 = vpack.c.b16 %v3133, %v3117
        %v4814 = vpack.c.b16 %v3134, %v3118
        %v4815 = vpack.c.b16 %v3135, %v3119
        %v4816 = vpack.c.b16 %v3136, %v3120
        %v4817 = vpack.c.b16 %v3137, %v3121
        %v4818 = vpack.c.b16 %v3138, %v3122
        %v4819 = vpack.c.b16 %v3139, %v3123
        %v4820 = vpack.c.b16 %v3140, %v3124
        %v4821 = vpack.c.b16 %v3141, %v3125
        %v4822 = vpack.c.b16 %v3142, %v3126
        %v4823 = vpack.c.b16 %v3143, %v3127
        %v4824 = vpack.c.b16 %v3160, %v3144
        %v4825 = vpack.c.b16 %v3161, %v3145
        %v4826 = vpack.c.b16 %v3162, %v3146
        %v4827 = vpack.c.b16 %v3163, %v3147
        %v4828 = vpack.c.b16 %v3164, %v3148
        %v4829 = vpack.c.b16 %v3165, %v3149
        %v4830 = vpack.c.b16 %v3166, %v3150
        %v4831 = vpack.c.b16 %v3167, %v3151
        %v4832 = vpack.c.b16 %v3168, %v3152
        %v4833 = vpack.c.b16 %v3169, %v3153
        %v4834 = vpack.c.b16 %v3170, %v3154
        %v4835 = vpack.c.b16 %v3171, %v3155
        %v4836 = vpack.c.b16 %v3172, %v3156
        %v4837 = vpack.c.b16 %v3173, %v3157
        %v4838 = vpack.c.b16 %v3174, %v3158
        %v4839 = vpack.c.b16 %v3175, %v3159
        %v4840 = vpack.c.b16 %v3192, %v3176
        %v4841 = vpack.c.b16 %v3193, %v3177
        %v4842 = vpack.c.b16 %v3194, %v3178
        %v4843 = vpack.c.b16 %v3195, %v3179
        %v4844 = vpack.c.b16 %v3196, %v3180
        %v4845 = vpack.c.b16 %v3197, %v3181
        %v4846 = vpack.c.b16 %v3198, %v3182
        %v4847 = vpack.c.b16 %v3199, %v3183
        %v4848 = vpack.c.b16 %v3200, %v3184
        %v4849 = vpack.c.b16 %v3201, %v3185
        %v4850 = vpack.c.b16 %v3202, %v3186
        %v4851 = vpack.c.b16 %v3203, %v3187
        %v4852 = vpack.c.b16 %v3204, %v3188
        %v4853 = vpack.c.b16 %v3205, %v3189
        %v4854 = vpack.c.b16 %v3206, %v3190
        %v4855 = vpack.c.b16 %v3207, %v3191
        %v4856 = vpack.c.b16 %v3224, %v3208
        %v4857 = vpack.c.b16 %v3225, %v3209
        %v4858 = vpack.c.b16 %v3226, %v3210
        %v4859 = vpack.c.b16 %v3227, %v3211
        %v4860 = vpack.c.b16 %v3228, %v3212
        %v4861 = vpack.c.b16 %v3229, %v3213
        %v4862 = vpack.c.b16 %v3230, %v3214
        %v4863 = vpack.c.b16 %v3231, %v3215
        %v4864 = vpack.c.b16 %v3232, %v3216
        %v4865 = vpack.c.b16 %v3233, %v3217
        %v4866 = vpack.c.b16 %v3234, %v3218
        %v4867 = vpack.c.b16 %v3235, %v3219
        %v4868 = vpack.c.b16 %v3236, %v3220
        %v4869 = vpack.c.b16 %v3237, %v3221
        %v4870 = vpack.c.b16 %v3238, %v3222
        %v4871 = vpack.c.b16 %v3239, %v3223
        %v4872 = vpack.c.b16 %v3256, %v3240
        %v4873 = vpack.c.b16 %v3257, %v3241
        %v4874 = vpack.c.b16 %v3258, %v3242
        %v4875 = vpack.c.b16 %v3259, %v3243
        %v4876 = vpack.c.b16 %v3260, %v3244
        %v4877 = vpack.c.b16 %v3261, %v3245
        %v4878 = vpack.c.b16 %v3262, %v3246
        %v4879 = vpack.c.b16 %v3263, %v3247
        %v4880 = vpack.c.b16 %v3264, %v3248
        %v4881 = vpack.c.b16 %v3265, %v3249
        %v4882 = vpack.c.b16 %v3266, %v3250
        %v4883 = vpack.c.b16 %v3267, %v3251
        %v4884 = vpack.c.b16 %v3268, %v3252
        %v4885 = vpack.c.b16 %v3269, %v3253
        %v4886 = vpack.c.b16 %v3270, %v3254
        %v4887 = vpack.c.b16 %v3271, %v3255
        %v4888 = vpack.c.b16 %v3288, %v3272
        %v4889 = vpack.c.b16 %v3289, %v3273
        %v4890 = vpack.c.b16 %v3290, %v3274
        %v4891 = vpack.c.b16 %v3291, %v3275
        %v4892 = vpack.c.b16 %v3292, %v3276
        %v4893 = vpack.c.b16 %v3293, %v3277
        %v4894 = vpack.c.b16 %v3294, %v3278
        %v4895 = vpack.c.b16 %v3295, %v3279
        %v4896 = vpack.c.b16 %v3296, %v3280
        %v4897 = vpack.c.b16 %v3297, %v3281
        %v4898 = vpack.c.b16 %v3298, %v3282
        %v4899 = vpack.c.b16 %v3299, %v3283
        %v4900 = vpack.c.b16 %v3300, %v3284
        %v4901 = vpack.c.b16 %v3301, %v3285
        %v4902 = vpack.c.b16 %v3302, %v3286
        %v4903 = vpack.c.b16 %v3303, %v3287
        %v4904 = vpack.c.b16 %v3320, %v3304
        %v4905 = vpack.c.b16 %v3321, %v3305
        %v4906 = vpack.c.b16 %v3322, %v3306
        %v4907 = vpack.c.b16 %v3323, %v3307
        %v4908 = vpack.c.b16 %v3324, %v3308
        %v4909 = vpack.c.b16 %v3325, %v3309
        %v4910 = vpack.c.b16 %v3326, %v3310
        %v4911 = vpack.c.b16 %v3327, %v3311
        %v4912 = vpack.c.b16 %v3328, %v3312
        %v4913 = vpack.c.b16 %v3329, %v3313
        %v4914 = vpack.c.b16 %v3330, %v3314
        %v4915 = vpack.c.b16 %v3331, %v3315
        %v4916 = vpack.c.b16 %v3332, %v3316
        %v4917 = vpack.c.b16 %v3333, %v3317
        %v4918 = vpack.c.b16 %v3334, %v3318
        %v4919 = vpack.c.b16 %v3335, %v3319
        %v4920 = vpack.c.b16 %v3352, %v3336
        %v4921 = vpack.c.b16 %v3353, %v3337
        %v4922 = vpack.c.b16 %v3354, %v3338
        %v4923 = vpack.c.b16 %v3355, %v3339
        %v4924 = vpack.c.b16 %v3356, %v3340
        %v4925 = vpack.c.b16 %v3357, %v3341
        %v4926 = vpack.c.b16 %v3358, %v3342
        %v4927 = vpack.c.b16 %v3359, %v3343
        %v4928 = vpack.c.b16 %v3360, %v3344
        %v4929 = vpack.c.b16 %v3361, %v3345
        %v4930 = vpack.c.b16 %v3362, %v3346
        %v4931 = vpack.c.b16 %v3363, %v3347
        %v4932 = vpack.c.b16 %v3364, %v3348
        %v4933 = vpack.c.b16 %v3365, %v3349
        %v4934 = vpack.c.b16 %v3366, %v3350
        %v4935 = vpack.c.b16 %v3367, %v3351
        %v4936 = vpack.c.b16 %v3384, %v3368
        %v4937 = vpack.c.b16 %v3385, %v3369
        %v4938 = vpack.c.b16 %v3386, %v3370
        %v4939 = vpack.c.b16 %v3387, %v3371
        %v4940 = vpack.c.b16 %v3388, %v3372
        %v4941 = vpack.c.b16 %v3389, %v3373
        %v4942 = vpack.c.b16 %v3390, %v3374
        %v4943 = vpack.c.b16 %v3391, %v3375
        %v4944 = vpack.c.b16 %v3392, %v3376
        %v4945 = vpack.c.b16 %v3393, %v3377
        %v4946 = vpack.c.b16 %v3394, %v3378
        %v4947 = vpack.c.b16 %v3395, %v3379
        %v4948 = vpack.c.b16 %v3396, %v3380
        %v4949 = vpack.c.b16 %v3397, %v3381
        %v4950 = vpack.c.b16 %v3398, %v3382
        %v4951 = vpack.c.b16 %v3399, %v3383
        %v4952 = vpack.c.b16 %v3416, %v3400
        %v4953 = vpack.c.b16 %v3417, %v3401
        %v4954 = vpack.c.b16 %v3418, %v3402
        %v4955 = vpack.c.b16 %v3419, %v3403
        %v4956 = vpack.c.b16 %v3420, %v3404
        %v4957 = vpack.c.b16 %v3421, %v3405
        %v4958 = vpack.c.b16 %v3422, %v3406
        %v4959 = vpack.c.b16 %v3423, %v3407
        %v4960 = vpack.c.b16 %v3424, %v3408
        %v4961 = vpack.c.b16 %v3425, %v3409
        %v4962 = vpack.c.b16 %v3426, %v3410
        %v4963 = vpack.c.b16 %v3427, %v3411
        %v4964 = vpack.c.b16 %v3428, %v3412
        %v4965 = vpack.c.b16 %v3429, %v3413
        %v4966 = vpack.c.b16 %v3430, %v3414
        %v4967 = vpack.c.b16 %v3431, %v3415
        %v4968 = vpack.c.b16 %v3448, %v3432
        %v4969 = vpack.c.b16 %v3449, %v3433
        %v4970 = vpack.c.b16 %v3450, %v3434
        %v4971 = vpack.c.b16 %v3451, %v3435
        %v4972 = vpack.c.b16 %v3452, %v3436
        %v4973 = vpack.c.b16 %v3453, %v3437
        %v4974 = vpack.c.b16 %v3454, %v3438
        %v4975 = vpack.c.b16 %v3455, %v3439
        %v4976 = vpack.c.b16 %v3456, %v3440
        %v4977 = vpack.c.b16 %v3457, %v3441
        %v4978 = vpack.c.b16 %v3458, %v3442
        %v4979 = vpack.c.b16 %v3459, %v3443
        %v4980 = vpack.c.b16 %v3460, %v3444
        %v4981 = vpack.c.b16 %v3461, %v3445
        %v4982 = vpack.c.b16 %v3462, %v3446
        %v4983 = vpack.c.b16 %v3463, %v3447
        %v4984 = vpack.c.b16 %v3480, %v3464
        %v4985 = vpack.c.b16 %v3481, %v3465
        %v4986 = vpack.c.b16 %v3482, %v3466
        %v4987 = vpack.c.b16 %v3483, %v3467
        %v4988 = vpack.c.b16 %v3484, %v3468
        %v4989 = vpack.c.b16 %v3485, %v3469
        %v4990 = vpack.c.b16 %v3486, %v3470
        %v4991 = vpack.c.b16 %v3487, %v3471
        %v4992 = vpack.c.b16 %v3488, %v3472
        %v4993 = vpack.c.b16 %v3489, %v3473
        %v4994 = vpack.c.b16 %v3490, %v3474
        %v4995 = vpack.c.b16 %v3491, %v3475
        %v4996 = vpack.c.b16 %v3492, %v3476
        %v4997 = vpack.c.b16 %v3493, %v3477
        %v4998 = vpack.c.b16 %v3494, %v3478
        %v4999 = vpack.c.b16 %v3495, %v3479
        %v5000 = vpack.c.b16 %v3512, %v3496
        %v5001 = vpack.c.b16 %v3513, %v3497
        %v5002 = vpack.c.b16 %v3514, %v3498
        %v5003 = vpack.c.b16 %v3515, %v3499
        %v5004 = vpack.c.b16 %v3516, %v3500
        %v5005 = vpack.c.b16 %v3517, %v3501
        %v5006 = vpack.c.b16 %v3518, %v3502
        %v5007 = vpack.c.b16 %v3519, %v3503
        %v5008 = vpack.c.b16 %v3520, %v3504
        %v5009 = vpack.c.b16 %v3521, %v3505
        %v5010 = vpack.c.b16 %v3522, %v3506
        %v5011 = vpack.c.b16 %v3523, %v3507
        %v5012 = vpack.c.b16 %v3524, %v3508
        %v5013 = vpack.c.b16 %v3525, %v3509
        %v5014 = vpack.c.b16 %v3526, %v3510
        %v5015 = vpack.c.b16 %v3527, %v3511
        %v5016 = vpack.c.b16 %v3544, %v3528
        %v5017 = vpack.c.b16 %v3545, %v3529
        %v5018 = vpack.c.b16 %v3546, %v3530
        %v5019 = vpack.c.b16 %v3547, %v3531
        %v5020 = vpack.c.b16 %v3548, %v3532
        %v5021 = vpack.c.b16 %v3549, %v3533
        %v5022 = vpack.c.b16 %v3550, %v3534
        %v5023 = vpack.c.b16 %v3551, %v3535
        %v5024 = vpack.c.b16 %v3552, %v3536
        %v5025 = vpack.c.b16 %v3553, %v3537
        %v5026 = vpack.c.b16 %v3554, %v3538
        %v5027 = vpack.c.b16 %v3555, %v3539
        %v5028 = vpack.c.b16 %v3556, %v3540
        %v5029 = vpack.c.b16 %v3557, %v3541
        %v5030 = vpack.c.b16 %v3558, %v3542
        %v5031 = vpack.c.b16 %v3559, %v3543
        %v5032 = vpack.c.b16 %v3576, %v3560
        %v5033 = vpack.c.b16 %v3577, %v3561
        %v5034 = vpack.c.b16 %v3578, %v3562
        %v5035 = vpack.c.b16 %v3579, %v3563
        %v5036 = vpack.c.b16 %v3580, %v3564
        %v5037 = vpack.c.b16 %v3581, %v3565
        %v5038 = vpack.c.b16 %v3582, %v3566
        %v5039 = vpack.c.b16 %v3583, %v3567
        %v5040 = vpack.c.b16 %v3584, %v3568
        %v5041 = vpack.c.b16 %v3585, %v3569
        %v5042 = vpack.c.b16 %v3586, %v3570
        %v5043 = vpack.c.b16 %v3587, %v3571
        %v5044 = vpack.c.b16 %v3588, %v3572
        %v5045 = vpack.c.b16 %v3589, %v3573
        %v5046 = vpack.c.b16 %v3590, %v3574
        %v5047 = vpack.c.b16 %v3591, %v3575
        %v5048 = vpack.c.b16 %v3608, %v3592
        %v5049 = vpack.c.b16 %v3609, %v3593
        %v5050 = vpack.c.b16 %v3610, %v3594
        %v5051 = vpack.c.b16 %v3611, %v3595
        %v5052 = vpack.c.b16 %v3612, %v3596
        %v5053 = vpack.c.b16 %v3613, %v3597
        %v5054 = vpack.c.b16 %v3614, %v3598
        %v5055 = vpack.c.b16 %v3615, %v3599
        %v5056 = vpack.c.b16 %v3616, %v3600
        %v5057 = vpack.c.b16 %v3617, %v3601
        %v5058 = vpack.c.b16 %v3618, %v3602
        %v5059 = vpack.c.b16 %v3619, %v3603
        %v5060 = vpack.c.b16 %v3620, %v3604
        %v5061 = vpack.c.b16 %v3621, %v3605
        %v5062 = vpack.c.b16 %v3622, %v3606
        %v5063 = vpack.c.b16 %v3623, %v3607
        %v5064 = vpack.c.b16 %v3640, %v3624
        %v5065 = vpack.c.b16 %v3641, %v3625
        %v5066 = vpack.c.b16 %v3642, %v3626
        %v5067 = vpack.c.b16 %v3643, %v3627
        %v5068 = vpack.c.b16 %v3644, %v3628
        %v5069 = vpack.c.b16 %v3645, %v3629
        %v5070 = vpack.c.b16 %v3646, %v3630
        %v5071 = vpack.c.b16 %v3647, %v3631
        %v5072 = vpack.c.b16 %v3648, %v3632
        %v5073 = vpack.c.b16 %v3649, %v3633
        %v5074 = vpack.c.b16 %v3650, %v3634
        %v5075 = vpack.c.b16 %v3651, %v3635
        %v5076 = vpack.c.b16 %v3652, %v3636
        %v5077 = vpack.c.b16 %v3653, %v3637
        %v5078 = vpack.c.b16 %v3654, %v3638
        %v5079 = vpack.c.b16 %v3655, %v3639
        %v5080 = vpack.c.b16 %v3672, %v3656
        %v5081 = vpack.c.b16 %v3673, %v3657
        %v5082 = vpack.c.b16 %v3674, %v3658
        %v5083 = vpack.c.b16 %v3675, %v3659
        %v5084 = vpack.c.b16 %v3676, %v3660
        %v5085 = vpack.c.b16 %v3677, %v3661
        %v5086 = vpack.c.b16 %v3678, %v3662
        %v5087 = vpack.c.b16 %v3679, %v3663
        %v5088 = vpack.c.b16 %v3680, %v3664
        %v5089 = vpack.c.b16 %v3681, %v3665
        %v5090 = vpack.c.b16 %v3682, %v3666
        %v5091 = vpack.c.b16 %v3683, %v3667
        %v5092 = vpack.c.b16 %v3684, %v3668
        %v5093 = vpack.c.b16 %v3685, %v3669
        %v5094 = vpack.c.b16 %v3686, %v3670
        %v5095 = vpack.c.b16 %v3687, %v3671
        %v5096 = vpack.c.b16 %v3704, %v3688
        %v5097 = vpack.c.b16 %v3705, %v3689
        %v5098 = vpack.c.b16 %v3706, %v3690
        %v5099 = vpack.c.b16 %v3707, %v3691
        %v5100 = vpack.c.b16 %v3708, %v3692
        %v5101 = vpack.c.b16 %v3709, %v3693
        %v5102 = vpack.c.b16 %v3710, %v3694
        %v5103 = vpack.c.b16 %v3711, %v3695
        %v5104 = vpack.c.b16 %v3712, %v3696
        %v5105 = vpack.c.b16 %v3713, %v3697
        %v5106 = vpack.c.b16 %v3714, %v3698
        %v5107 = vpack.c.b16 %v3715, %v3699
        %v5108 = vpack.c.b16 %v3716, %v3700
        %v5109 = vpack.c.b16 %v3717, %v3701
        %v5110 = vpack.c.b16 %v3718, %v3702
        %v5111 = vpack.c.b16 %v3719, %v3703
        %v5112 = vpack.c.b16 %v3736, %v3720
        %v5113 = vpack.c.b16 %v3737, %v3721
        %v5114 = vpack.c.b16 %v3738, %v3722
        %v5115 = vpack.c.b16 %v3739, %v3723
        %v5116 = vpack.c.b16 %v3740, %v3724
        %v5117 = vpack.c.b16 %v3741, %v3725
        %v5118 = vpack.c.b16 %v3742, %v3726
        %v5119 = vpack.c.b16 %v3743, %v3727
        %v5120 = vpack.c.b16 %v3744, %v3728
        %v5121 = vpack.c.b16 %v3745, %v3729
        %v5122 = vpack.c.b16 %v3746, %v3730
        %v5123 = vpack.c.b16 %v3747, %v3731
        %v5124 = vpack.c.b16 %v3748, %v3732
        %v5125 = vpack.c.b16 %v3749, %v3733
        %v5126 = vpack.c.b16 %v3750, %v3734
        %v5127 = vpack.c.b16 %v3751, %v3735
        %v5128 = vpack.c.b16 %v3768, %v3752
        %v5129 = vpack.c.b16 %v3769, %v3753
        %v5130 = vpack.c.b16 %v3770, %v3754
        %v5131 = vpack.c.b16 %v3771, %v3755
        %v5132 = vpack.c.b16 %v3772, %v3756
        %v5133 = vpack.c.b16 %v3773, %v3757
        %v5134 = vpack.c.b16 %v3774, %v3758
        %v5135 = vpack.c.b16 %v3775, %v3759
        %v5136 = vpack.c.b16 %v3776, %v3760
        %v5137 = vpack.c.b16 %v3777, %v3761
        %v5138 = vpack.c.b16 %v3778, %v3762
        %v5139 = vpack.c.b16 %v3779, %v3763
        %v5140 = vpack.c.b16 %v3780, %v3764
        %v5141 = vpack.c.b16 %v3781, %v3765
        %v5142 = vpack.c.b16 %v3782, %v3766
        %v5143 = vpack.c.b16 %v3783, %v3767
        %v5144 = vpack.c.b16 %v3800, %v3784
        %v5145 = vpack.c.b16 %v3801, %v3785
        %v5146 = vpack.c.b16 %v3802, %v3786
        %v5147 = vpack.c.b16 %v3803, %v3787
        %v5148 = vpack.c.b16 %v3804, %v3788
        %v5149 = vpack.c.b16 %v3805, %v3789
        %v5150 = vpack.c.b16 %v3806, %v3790
        %v5151 = vpack.c.b16 %v3807, %v3791
        %v5152 = vpack.c.b16 %v3808, %v3792
        %v5153 = vpack.c.b16 %v3809, %v3793
        %v5154 = vpack.c.b16 %v3810, %v3794
        %v5155 = vpack.c.b16 %v3811, %v3795
        %v5156 = vpack.c.b16 %v3812, %v3796
        %v5157 = vpack.c.b16 %v3813, %v3797
        %v5158 = vpack.c.b16 %v3814, %v3798
        %v5159 = vpack.c.b16 %v3815, %v3799
        %v5160 = vpack.c.b16 %v3832, %v3816
        %v5161 = vpack.c.b16 %v3833, %v3817
        %v5162 = vpack.c.b16 %v3834, %v3818
        %v5163 = vpack.c.b16 %v3835, %v3819
        %v5164 = vpack.c.b16 %v3836, %v3820
        %v5165 = vpack.c.b16 %v3837, %v3821
        %v5166 = vpack.c.b16 %v3838, %v3822
        %v5167 = vpack.c.b16 %v3839, %v3823
        %v5168 = vpack.c.b16 %v3840, %v3824
        %v5169 = vpack.c.b16 %v3841, %v3825
        %v5170 = vpack.c.b16 %v3842, %v3826
        %v5171 = vpack.c.b16 %v3843, %v3827
        %v5172 = vpack.c.b16 %v3844, %v3828
        %v5173 = vpack.c.b16 %v3845, %v3829
        %v5174 = vpack.c.b16 %v3846, %v3830
        %v5175 = vpack.c.b16 %v3847, %v3831
        %v5176 = vpack.c.b16 %v3864, %v3848
        %v5177 = vpack.c.b16 %v3865, %v3849
        %v5178 = vpack.c.b16 %v3866, %v3850
        %v5179 = vpack.c.b16 %v3867, %v3851
        %v5180 = vpack.c.b16 %v3868, %v3852
        %v5181 = vpack.c.b16 %v3869, %v3853
        %v5182 = vpack.c.b16 %v3870, %v3854
        %v5183 = vpack.c.b16 %v3871, %v3855
        %v5184 = vpack.c.b16 %v3872, %v3856
        %v5185 = vpack.c.b16 %v3873, %v3857
        %v5186 = vpack.c.b16 %v3874, %v3858
        %v5187 = vpack.c.b16 %v3875, %v3859
        %v5188 = vpack.c.b16 %v3876, %v3860
        %v5189 = vpack.c.b16 %v3877, %v3861
        %v5190 = vpack.c.b16 %v3878, %v3862
        %v5191 = vpack.c.b16 %v3879, %v3863
        %v5192 = vpack.c.b16 %v3896, %v3880
        %v5193 = vpack.c.b16 %v3897, %v3881
        %v5194 = vpack.c.b16 %v3898, %v3882
        %v5195 = vpack.c.b16 %v3899, %v3883
        %v5196 = vpack.c.b16 %v3900, %v3884
        %v5197 = vpack.c.b16 %v3901, %v3885
        %v5198 = vpack.c.b16 %v3902, %v3886
        %v5199 = vpack.c.b16 %v3903, %v3887
        %v5200 = vpack.c.b16 %v3904, %v3888
        %v5201 = vpack.c.b16 %v3905, %v3889
        %v5202 = vpack.c.b16 %v3906, %v3890
        %v5203 = vpack.c.b16 %v3907, %v3891
        %v5204 = vpack.c.b16 %v3908, %v3892
        %v5205 = vpack.c.b16 %v3909, %v3893
        %v5206 = vpack.c.b16 %v3910, %v3894
        %v5207 = vpack.c.b16 %v3911, %v3895
        %v5208 = vpack.c.b16 %v3928, %v3912
        %v5209 = vpack.c.b16 %v3929, %v3913
        %v5210 = vpack.c.b16 %v3930, %v3914
        %v5211 = vpack.c.b16 %v3931, %v3915
        %v5212 = vpack.c.b16 %v3932, %v3916
        %v5213 = vpack.c.b16 %v3933, %v3917
        %v5214 = vpack.c.b16 %v3934, %v3918
        %v5215 = vpack.c.b16 %v3935, %v3919
        %v5216 = vpack.c.b16 %v3936, %v3920
        %v5217 = vpack.c.b16 %v3937, %v3921
        %v5218 = vpack.c.b16 %v3938, %v3922
        %v5219 = vpack.c.b16 %v3939, %v3923
        %v5220 = vpack.c.b16 %v3940, %v3924
        %v5221 = vpack.c.b16 %v3941, %v3925
        %v5222 = vpack.c.b16 %v3942, %v3926
        %v5223 = vpack.c.b16 %v3943, %v3927
        %v5224 = vpack.c.b16 %v3960, %v3944
        %v5225 = vpack.c.b16 %v3961, %v3945
        %v5226 = vpack.c.b16 %v3962, %v3946
        %v5227 = vpack.c.b16 %v3963, %v3947
        %v5228 = vpack.c.b16 %v3964, %v3948
        %v5229 = vpack.c.b16 %v3965, %v3949
        %v5230 = vpack.c.b16 %v3966, %v3950
        %v5231 = vpack.c.b16 %v3967, %v3951
        %v5232 = vpack.c.b16 %v3968, %v3952
        %v5233 = vpack.c.b16 %v3969, %v3953
        %v5234 = vpack.c.b16 %v3970, %v3954
        %v5235 = vpack.c.b16 %v3971, %v3955
        %v5236 = vpack.c.b16 %v3972, %v3956
        %v5237 = vpack.c.b16 %v3973, %v3957
        %v5238 = vpack.c.b16 %v3974, %v3958
        %v5239 = vpack.c.b16 %v3975, %v3959
        %v5240 = vpack.c.b16 %v3992, %v3976
        %v5241 = vpack.c.b16 %v3993, %v3977
        %v5242 = vpack.c.b16 %v3994, %v3978
        %v5243 = vpack.c.b16 %v3995, %v3979
        %v5244 = vpack.c.b16 %v3996, %v3980
        %v5245 = vpack.c.b16 %v3997, %v3981
        %v5246 = vpack.c.b16 %v3998, %v3982
        %v5247 = vpack.c.b16 %v3999, %v3983
        %v5248 = vpack.c.b16 %v4000, %v3984
        %v5249 = vpack.c.b16 %v4001, %v3985
        %v5250 = vpack.c.b16 %v4002, %v3986
        %v5251 = vpack.c.b16 %v4003, %v3987
        %v5252 = vpack.c.b16 %v4004, %v3988
        %v5253 = vpack.c.b16 %v4005, %v3989
        %v5254 = vpack.c.b16 %v4006, %v3990
        %v5255 = vpack.c.b16 %v4007, %v3991
        %v5256 = vpack.c.b16 %v4024, %v4008
        %v5257 = vpack.c.b16 %v4025, %v4009
        %v5258 = vpack.c.b16 %v4026, %v4010
        %v5259 = vpack.c.b16 %v4027, %v4011
        %v5260 = vpack.c.b16 %v4028, %v4012
        %v5261 = vpack.c.b16 %v4029, %v4013
        %v5262 = vpack.c.b16 %v4030, %v4014
        %v5263 = vpack.c.b16 %v4031, %v4015
        %v5264 = vpack.c.b16 %v4032, %v4016
        %v5265 = vpack.c.b16 %v4033, %v4017
        %v5266 = vpack.c.b16 %v4034, %v4018
        %v5267 = vpack.c.b16 %v4035, %v4019
        %v5268 = vpack.c.b16 %v4036, %v4020
        %v5269 = vpack.c.b16 %v4037, %v4021
        %v5270 = vpack.c.b16 %v4038, %v4022
        %v5271 = vpack.c.b16 %v4039, %v4023
        %v5272 = vpack.c.b16 %v4056, %v4040
        %v5273 = vpack.c.b16 %v4057, %v4041
        %v5274 = vpack.c.b16 %v4058, %v4042
        %v5275 = vpack.c.b16 %v4059, %v4043
        %v5276 = vpack.c.b16 %v4060, %v4044
        %v5277 = vpack.c.b16 %v4061, %v4045
        %v5278 = vpack.c.b16 %v4062, %v4046
        %v5279 = vpack.c.b16 %v4063, %v4047
        %v5280 = vpack.c.b16 %v4064, %v4048
        %v5281 = vpack.c.b16 %v4065, %v4049
        %v5282 = vpack.c.b16 %v4066, %v4050
        %v5283 = vpack.c.b16 %v4067, %v4051
        %v5284 = vpack.c.b16 %v4068, %v4052
        %v5285 = vpack.c.b16 %v4069, %v4053
        %v5286 = vpack.c.b16 %v4070, %v4054
        %v5287 = vpack.c.b16 %v4071, %v4055
        %v5288 = vpack.c.b16 %v4088, %v4072
        %v5289 = vpack.c.b16 %v4089, %v4073
        %v5290 = vpack.c.b16 %v4090, %v4074
        %v5291 = vpack.c.b16 %v4091, %v4075
        %v5292 = vpack.c.b16 %v4092, %v4076
        %v5293 = vpack.c.b16 %v4093, %v4077
        %v5294 = vpack.c.b16 %v4094, %v4078
        %v5295 = vpack.c.b16 %v4095, %v4079
        %v5296 = vpack.c.b16 %v4096, %v4080
        %v5297 = vpack.c.b16 %v4097, %v4081
        %v5298 = vpack.c.b16 %v4098, %v4082
        %v5299 = vpack.c.b16 %v4099, %v4083
        %v5300 = vpack.c.b16 %v4100, %v4084
        %v5301 = vpack.c.b16 %v4101, %v4085
        %v5302 = vpack.c.b16 %v4102, %v4086
        %v5303 = vpack.c.b16 %v4103, %v4087
        %v5304 = vpack.c.b16 %v4120, %v4104
        %v5305 = vpack.c.b16 %v4121, %v4105
        %v5306 = vpack.c.b16 %v4122, %v4106
        %v5307 = vpack.c.b16 %v4123, %v4107
        %v5308 = vpack.c.b16 %v4124, %v4108
        %v5309 = vpack.c.b16 %v4125, %v4109
        %v5310 = vpack.c.b16 %v4126, %v4110
        %v5311 = vpack.c.b16 %v4127, %v4111
        %v5312 = vpack.c.b16 %v4128, %v4112
        %v5313 = vpack.c.b16 %v4129, %v4113
        %v5314 = vpack.c.b16 %v4130, %v4114
        %v5315 = vpack.c.b16 %v4131, %v4115
        %v5316 = vpack.c.b16 %v4132, %v4116
        %v5317 = vpack.c.b16 %v4133, %v4117
        %v5318 = vpack.c.b16 %v4134, %v4118
        %v5319 = vpack.c.b16 %v4135, %v4119
        %v5320 = vpack.c.b16 %v4152, %v4136
        %v5321 = vpack.c.b16 %v4153, %v4137
        %v5322 = vpack.c.b16 %v4154, %v4138
        %v5323 = vpack.c.b16 %v4155, %v4139
        %v5324 = vpack.c.b16 %v4156, %v4140
        %v5325 = vpack.c.b16 %v4157, %v4141
        %v5326 = vpack.c.b16 %v4158, %v4142
        %v5327 = vpack.c.b16 %v4159, %v4143
        %v5328 = vpack.c.b16 %v4160, %v4144
        %v5329 = vpack.c.b16 %v4161, %v4145
        %v5330 = vpack.c.b16 %v4162, %v4146
        %v5331 = vpack.c.b16 %v4163, %v4147
        %v5332 = vpack.c.b16 %v4164, %v4148
        %v5333 = vpack.c.b16 %v4165, %v4149
        %v5334 = vpack.c.b16 %v4166, %v4150
        %v5335 = vpack.c.b16 %v4167, %v4151
        %v5336 = vpack.c.b16 %v4184, %v4168
        %v5337 = vpack.c.b16 %v4185, %v4169
        %v5338 = vpack.c.b16 %v4186, %v4170
        %v5339 = vpack.c.b16 %v4187, %v4171
        %v5340 = vpack.c.b16 %v4188, %v4172
        %v5341 = vpack.c.b16 %v4189, %v4173
        %v5342 = vpack.c.b16 %v4190, %v4174
        %v5343 = vpack.c.b16 %v4191, %v4175
        %v5344 = vpack.c.b16 %v4192, %v4176
        %v5345 = vpack.c.b16 %v4193, %v4177
        %v5346 = vpack.c.b16 %v4194, %v4178
        %v5347 = vpack.c.b16 %v4195, %v4179
        %v5348 = vpack.c.b16 %v4196, %v4180
        %v5349 = vpack.c.b16 %v4197, %v4181
        %v5350 = vpack.c.b16 %v4198, %v4182
        %v5351 = vpack.c.b16 %v4199, %v4183
        %v5352 = vpack.c.b16 %v4216, %v4200
        %v5353 = vpack.c.b16 %v4217, %v4201
        %v5354 = vpack.c.b16 %v4218, %v4202
        %v5355 = vpack.c.b16 %v4219, %v4203
        %v5356 = vpack.c.b16 %v4220, %v4204
        %v5357 = vpack.c.b16 %v4221, %v4205
        %v5358 = vpack.c.b16 %v4222, %v4206
        %v5359 = vpack.c.b16 %v4223, %v4207
        %v5360 = vpack.c.b16 %v4224, %v4208
        %v5361 = vpack.c.b16 %v4225, %v4209
        %v5362 = vpack.c.b16 %v4226, %v4210
        %v5363 = vpack.c.b16 %v4227, %v4211
        %v5364 = vpack.c.b16 %v4228, %v4212
        %v5365 = vpack.c.b16 %v4229, %v4213
        %v5366 = vpack.c.b16 %v4230, %v4214
        %v5367 = vpack.c.b16 %v4231, %v4215
        %v5368 = vpack.c.b16 %v4248, %v4232
        %v5369 = vpack.c.b16 %v4249, %v4233
        %v5370 = vpack.c.b16 %v4250, %v4234
        %v5371 = vpack.c.b16 %v4251, %v4235
        %v5372 = vpack.c.b16 %v4252, %v4236
        %v5373 = vpack.c.b16 %v4253, %v4237
        %v5374 = vpack.c.b16 %v4254, %v4238
        %v5375 = vpack.c.b16 %v4255, %v4239
        %v5376 = vpack.c.b16 %v4256, %v4240
        %v5377 = vpack.c.b16 %v4257, %v4241
        %v5378 = vpack.c.b16 %v4258, %v4242
        %v5379 = vpack.c.b16 %v4259, %v4243
        %v5380 = vpack.c.b16 %v4260, %v4244
        %v5381 = vpack.c.b16 %v4261, %v4245
        %v5382 = vpack.c.b16 %v4262, %v4246
        %v5383 = vpack.c.b16 %v4263, %v4247
        %v5384 = vpack.c.b16 %v4280, %v4264
        %v5385 = vpack.c.b16 %v4281, %v4265
        %v5386 = vpack.c.b16 %v4282, %v4266
        %v5387 = vpack.c.b16 %v4283, %v4267
        %v5388 = vpack.c.b16 %v4284, %v4268
        %v5389 = vpack.c.b16 %v4285, %v4269
        %v5390 = vpack.c.b16 %v4286, %v4270
        %v5391 = vpack.c.b16 %v4287, %v4271
        %v5392 = vpack.c.b16 %v4288, %v4272
        %v5393 = vpack.c.b16 %v4289, %v4273
        %v5394 = vpack.c.b16 %v4290, %v4274
        %v5395 = vpack.c.b16 %v4291, %v4275
        %v5396 = vpack.c.b16 %v4292, %v4276
        %v5397 = vpack.c.b16 %v4293, %v4277
        %v5398 = vpack.c.b16 %v4294, %v4278
        %v5399 = vpack.c.b16 %v4295, %v4279
        %v5400 = vpack.c.b16 %v4312, %v4296
        %v5401 = vpack.c.b16 %v4313, %v4297
        %v5402 = vpack.c.b16 %v4314, %v4298
        %v5403 = vpack.c.b16 %v4315, %v4299
        %v5404 = vpack.c.b16 %v4316, %v4300
        %v5405 = vpack.c.b16 %v4317, %v4301
        %v5406 = vpack.c.b16 %v4318, %v4302
        %v5407 = vpack.c.b16 %v4319, %v4303
        %v5408 = vpack.c.b16 %v4320, %v4304
        %v5409 = vpack.c.b16 %v4321, %v4305
        %v5410 = vpack.c.b16 %v4322, %v4306
        %v5411 = vpack.c.b16 %v4323, %v4307
        %v5412 = vpack.c.b16 %v4324, %v4308
        %v5413 = vpack.c.b16 %v4325, %v4309
        %v5414 = vpack.c.b16 %v4326, %v4310
        %v5415 = vpack.c.b16 %v4327, %v4311
        %v5416 = vpack.c.b16 %v4344, %v4328
        %v5417 = vpack.c.b16 %v4345, %v4329
        %v5418 = vpack.c.b16 %v4346, %v4330
        %v5419 = vpack.c.b16 %v4347, %v4331
        %v5420 = vpack.c.b16 %v4348, %v4332
        %v5421 = vpack.c.b16 %v4349, %v4333
        %v5422 = vpack.c.b16 %v4350, %v4334
        %v5423 = vpack.c.b16 %v4351, %v4335
        %v5424 = vpack.c.b16 %v4352, %v4336
        %v5425 = vpack.c.b16 %v4353, %v4337
        %v5426 = vpack.c.b16 %v4354, %v4338
        %v5427 = vpack.c.b16 %v4355, %v4339
        %v5428 = vpack.c.b16 %v4356, %v4340
        %v5429 = vpack.c.b16 %v4357, %v4341
        %v5430 = vpack.c.b16 %v4358, %v4342
        %v5431 = vpack.c.b16 %v4359, %v4343
        %v5432 = vpack.c.b16 %v4376, %v4360
        %v5433 = vpack.c.b16 %v4377, %v4361
        %v5434 = vpack.c.b16 %v4378, %v4362
        %v5435 = vpack.c.b16 %v4379, %v4363
        %v5436 = vpack.c.b16 %v4380, %v4364
        %v5437 = vpack.c.b16 %v4381, %v4365
        %v5438 = vpack.c.b16 %v4382, %v4366
        %v5439 = vpack.c.b16 %v4383, %v4367
        %v5440 = vpack.c.b16 %v4384, %v4368
        %v5441 = vpack.c.b16 %v4385, %v4369
        %v5442 = vpack.c.b16 %v4386, %v4370
        %v5443 = vpack.c.b16 %v4387, %v4371
        %v5444 = vpack.c.b16 %v4388, %v4372
        %v5445 = vpack.c.b16 %v4389, %v4373
        %v5446 = vpack.c.b16 %v4390, %v4374
        %v5447 = vpack.c.b16 %v4391, %v4375
        %v5448 = vpack.c.b16 %v4408, %v4392
        %v5449 = vpack.c.b16 %v4409, %v4393
        %v5450 = vpack.c.b16 %v4410, %v4394
        %v5451 = vpack.c.b16 %v4411, %v4395
        %v5452 = vpack.c.b16 %v4412, %v4396
        %v5453 = vpack.c.b16 %v4413, %v4397
        %v5454 = vpack.c.b16 %v4414, %v4398
        %v5455 = vpack.c.b16 %v4415, %v4399
        %v5456 = vpack.c.b16 %v4416, %v4400
        %v5457 = vpack.c.b16 %v4417, %v4401
        %v5458 = vpack.c.b16 %v4418, %v4402
        %v5459 = vpack.c.b16 %v4419, %v4403
        %v5460 = vpack.c.b16 %v4420, %v4404
        %v5461 = vpack.c.b16 %v4421, %v4405
        %v5462 = vpack.c.b16 %v4422, %v4406
        %v5463 = vpack.c.b16 %v4423, %v4407
        %v5464 = vpack.c.b16 %v4440, %v4424
        %v5465 = vpack.c.b16 %v4441, %v4425
        %v5466 = vpack.c.b16 %v4442, %v4426
        %v5467 = vpack.c.b16 %v4443, %v4427
        %v5468 = vpack.c.b16 %v4444, %v4428
        %v5469 = vpack.c.b16 %v4445, %v4429
        %v5470 = vpack.c.b16 %v4446, %v4430
        %v5471 = vpack.c.b16 %v4447, %v4431
        %v5472 = vpack.c.b16 %v4448, %v4432
        %v5473 = vpack.c.b16 %v4449, %v4433
        %v5474 = vpack.c.b16 %v4450, %v4434
        %v5475 = vpack.c.b16 %v4451, %v4435
        %v5476 = vpack.c.b16 %v4452, %v4436
        %v5477 = vpack.c.b16 %v4453, %v4437
        %v5478 = vpack.c.b16 %v4454, %v4438
        %v5479 = vpack.c.b16 %v4455, %v4439
        %6504 = vmatprep.subr.bf16.mxu0 %v4457
        %6505 = vmatpush1.bf16.msra.mxu0 %v4456
        %6506 = vmatprep.subr.bf16.mxu0 %v4473
        %6507 = vmatpush1.bf16.msra.mxu0 %v4472
        %6508 = vmatprep.subr.bf16.mxu0 %v4489
        %6509 = vmatpush1.bf16.msra.mxu0 %v4488
        %6510 = vmatprep.subr.bf16.mxu0 %v4505
        %6511 = vmatpush1.bf16.msra.mxu0 %v4504
        %6512 = vmatprep.subr.bf16.mxu0 %v4521
        %6513 = vmatpush1.bf16.msra.mxu0 %v4520
        %6514 = vmatprep.subr.bf16.mxu0 %v4537
        %6515 = vmatpush1.bf16.msra.mxu0 %v4536
        %6516 = vmatprep.subr.bf16.mxu0 %v4553
        %6517 = vmatpush1.bf16.msra.mxu0 %v4552
        %6518 = vmatprep.subr.bf16.mxu0 %v4569
        %6519 = vmatpush1.bf16.msra.mxu0 %v4568
        %6520 = vmatprep.subr.bf16.mxu0 %v4585
        %6521 = vmatpush1.bf16.msra.mxu0 %v4584
        %6522 = vmatprep.subr.bf16.mxu0 %v4601
        %6523 = vmatpush1.bf16.msra.mxu0 %v4600
        %6524 = vmatprep.subr.bf16.mxu0 %v4617
        %6525 = vmatpush1.bf16.msra.mxu0 %v4616
        %6526 = vmatprep.subr.bf16.mxu0 %v4633
        %6527 = vmatpush1.bf16.msra.mxu0 %v4632
        %6528 = vmatprep.subr.bf16.mxu0 %v4649
        %6529 = vmatpush1.bf16.msra.mxu0 %v4648
        %6530 = vmatprep.subr.bf16.mxu0 %v4665
        %6531 = vmatpush1.bf16.msra.mxu0 %v4664
        %6532 = vmatprep.subr.bf16.mxu0 %v4681
        %6533 = vmatpush1.bf16.msra.mxu0 %v4680
        %6534 = vmatprep.subr.bf16.mxu0 %v4697
        %6535 = vmatpush1.bf16.msra.mxu0 %v4696
        %6536 = vmatprep.mubr.bf16.mxu0 %v1369
        %6537 = vmatmul.mubr.bf16.gmra.mrb[0].mxu0 %v1368
        %v6538 = vpop.f32.mrb[0].mxu0
        %v6539 = vadd.f32 0.0, %v6538
        %v6540 = vpop.f32.mrb[0].mxu0
        %v6541 = vadd.f32 0.0, %v6540
        %v6542 = vpop.f32.mrb[0].mxu0
        %v6543 = vpop.f32.mrb[0].mxu0
        %6544 = vdwg.mxu0
        %6545 = vmatprep.subr.bf16.mxu0 %v4713
        %6546 = vmatpush1.bf16.msra.mxu0 %v4712
        %6547 = vmatprep.subr.bf16.mxu0 %v4729
        %6548 = vmatpush1.bf16.msra.mxu0 %v4728
        %6549 = vmatprep.subr.bf16.mxu0 %v4745
        %6550 = vmatpush1.bf16.msra.mxu0 %v4744
        %6551 = vmatprep.subr.bf16.mxu0 %v4761
        %6552 = vmatpush1.bf16.msra.mxu0 %v4760
        %6553 = vmatprep.subr.bf16.mxu0 %v4777
        %6554 = vmatpush1.bf16.msra.mxu0 %v4776
        %6555 = vmatprep.subr.bf16.mxu0 %v4793
        %6556 = vmatpush1.bf16.msra.mxu0 %v4792
        %6557 = vmatprep.subr.bf16.mxu0 %v4809
        %6558 = vmatpush1.bf16.msra.mxu0 %v4808
        %6559 = vmatprep.subr.bf16.mxu0 %v4825
        %6560 = vmatpush1.bf16.msra.mxu0 %v4824
        %6561 = vmatprep.subr.bf16.mxu0 %v4841
        %6562 = vmatpush1.bf16.msra.mxu0 %v4840
        %6563 = vmatprep.subr.bf16.mxu0 %v4857
        %6564 = vmatpush1.bf16.msra.mxu0 %v4856
        %6565 = vmatprep.subr.bf16.mxu0 %v4873
        %6566 = vmatpush1.bf16.msra.mxu0 %v4872
        %6567 = vmatprep.subr.bf16.mxu0 %v4889
        %6568 = vmatpush1.bf16.msra.mxu0 %v4888
        %6569 = vmatprep.subr.bf16.mxu0 %v4905
        %6570 = vmatpush1.bf16.msra.mxu0 %v4904
        %6571 = vmatprep.subr.bf16.mxu0 %v4921
        %6572 = vmatpush1.bf16.msra.mxu0 %v4920
        %6573 = vmatprep.subr.bf16.mxu0 %v4937
        %6574 = vmatpush1.bf16.msra.mxu0 %v4936
        %6575 = vmatprep.subr.bf16.mxu0 %v4953
        %6576 = vmatpush1.bf16.msra.mxu0 %v4952
        %6577 = vmatprep.mubr.bf16.mxu0 %v1371
        %6578 = vmatmul.mubr.bf16.gmra.mrb[0].mxu0 %v1370
        %v6579 = vpop.f32.mrb[0].mxu0
        %v6580 = vadd.f32 %v6539, %v6579
        %v6581 = vpop.f32.mrb[0].mxu0
        %v6582 = vadd.f32 %v6541, %v6581
        %v6583 = vpop.f32.mrb[0].mxu0
        %v6584 = vpop.f32.mrb[0].mxu0
        %6585 = vdwg.mxu0
        %6586 = vmatprep.subr.bf16.mxu0 %v4969
        %6587 = vmatpush1.bf16.msra.mxu0 %v4968
        %6588 = vmatprep.subr.bf16.mxu0 %v4985
        %6589 = vmatpush1.bf16.msra.mxu0 %v4984
        %6590 = vmatprep.subr.bf16.mxu0 %v5001
        %6591 = vmatpush1.bf16.msra.mxu0 %v5000
        %6592 = vmatprep.subr.bf16.mxu0 %v5017
        %6593 = vmatpush1.bf16.msra.mxu0 %v5016
        %6594 = vmatprep.subr.bf16.mxu0 %v5033
        %6595 = vmatpush1.bf16.msra.mxu0 %v5032
        %6596 = vmatprep.subr.bf16.mxu0 %v5049
        %6597 = vmatpush1.bf16.msra.mxu0 %v5048
        %6598 = vmatprep.subr.bf16.mxu0 %v5065
        %6599 = vmatpush1.bf16.msra.mxu0 %v5064
        %6600 = vmatprep.subr.bf16.mxu0 %v5081
        %6601 = vmatpush1.bf16.msra.mxu0 %v5080
        %6602 = vmatprep.subr.bf16.mxu0 %v5097
        %6603 = vmatpush1.bf16.msra.mxu0 %v5096
        %6604 = vmatprep.subr.bf16.mxu0 %v5113
        %6605 = vmatpush1.bf16.msra.mxu0 %v5112
        %6606 = vmatprep.subr.bf16.mxu0 %v5129
        %6607 = vmatpush1.bf16.msra.mxu0 %v5128
        %6608 = vmatprep.subr.bf16.mxu0 %v5145
        %6609 = vmatpush1.bf16.msra.mxu0 %v5144
        %6610 = vmatprep.subr.bf16.mxu0 %v5161
        %6611 = vmatpush1.bf16.msra.mxu0 %v5160
        %6612 = vmatprep.subr.bf16.mxu0 %v5177
        %6613 = vmatpush1.bf16.msra.mxu0 %v5176
        %6614 = vmatprep.subr.bf16.mxu0 %v5193
        %6615 = vmatpush1.bf16.msra.mxu0 %v5192
        %6616 = vmatprep.subr.bf16.mxu0 %v5209
        %6617 = vmatpush1.bf16.msra.mxu0 %v5208
        %6618 = vmatprep.mubr.bf16.mxu0 %v1373
        %6619 = vmatmul.mubr.bf16.gmra.mrb[0].mxu0 %v1372
        %v6620 = vpop.f32.mrb[0].mxu0
        %v6621 = vadd.f32 %v6580, %v6620
        %v6622 = vpop.f32.mrb[0].mxu0
        %v6623 = vadd.f32 %v6582, %v6622
        %v6624 = vpop.f32.mrb[0].mxu0
        %v6625 = vpop.f32.mrb[0].mxu0
        %6626 = vdwg.mxu0
        %6627 = vmatprep.subr.bf16.mxu0 %v5225
        %6628 = vmatpush1.bf16.msra.mxu0 %v5224
        %6629 = vmatprep.subr.bf16.mxu0 %v5241
        %6630 = vmatpush1.bf16.msra.mxu0 %v5240
        %6631 = vmatprep.subr.bf16.mxu0 %v5257
        %6632 = vmatpush1.bf16.msra.mxu0 %v5256
        %6633 = vmatprep.subr.bf16.mxu0 %v5273
        %6634 = vmatpush1.bf16.msra.mxu0 %v5272
        %6635 = vmatprep.subr.bf16.mxu0 %v5289
        %6636 = vmatpush1.bf16.msra.mxu0 %v5288
        %6637 = vmatprep.subr.bf16.mxu0 %v5305
        %6638 = vmatpush1.bf16.msra.mxu0 %v5304
        %6639 = vmatprep.subr.bf16.mxu0 %v5321
        %6640 = vmatpush1.bf16.msra.mxu0 %v5320
        %6641 = vmatprep.subr.bf16.mxu0 %v5337
        %6642 = vmatpush1.bf16.msra.mxu0 %v5336
        %6643 = vmatprep.subr.bf16.mxu0 %v5353
        %6644 = vmatpush1.bf16.msra.mxu0 %v5352
        %6645 = vmatprep.subr.bf16.mxu0 %v5369
        %6646 = vmatpush1.bf16.msra.mxu0 %v5368
        %6647 = vmatprep.subr.bf16.mxu0 %v5385
        %6648 = vmatpush1.bf16.msra.mxu0 %v5384
        %6649 = vmatprep.subr.bf16.mxu0 %v5401
        %6650 = vmatpush1.bf16.msra.mxu0 %v5400
        %6651 = vmatprep.subr.bf16.mxu0 %v5417
        %6652 = vmatpush1.bf16.msra.mxu0 %v5416
        %6653 = vmatprep.subr.bf16.mxu0 %v5433
        %6654 = vmatpush1.bf16.msra.mxu0 %v5432
        %6655 = vmatprep.subr.bf16.mxu0 %v5449
        %6656 = vmatpush1.bf16.msra.mxu0 %v5448
        %6657 = vmatprep.subr.bf16.mxu0 %v5465
        %6658 = vmatpush1.bf16.msra.mxu0 %v5464
        %6659 = vmatprep.mubr.bf16.mxu0 %v1375
        %6660 = vmatmul.mubr.bf16.gmra.mrb[0].mxu0 %v1374
        %v6661 = vpop.f32.mrb[0].mxu0
        %v6662 = vadd.f32 %v6621, %v6661
        %v6663 = vpop.f32.mrb[0].mxu0
        %v6664 = vadd.f32 %v6623, %v6663
        %v6665 = vpop.f32.mrb[0].mxu0
        %v6666 = vpop.f32.mrb[0].mxu0
        %6667 = vdwg.mxu0
        %6668 = vmatprep.subr.bf16.mxu0 %v4459
        %6669 = vmatpush1.bf16.msra.mxu0 %v4458
        %6670 = vmatprep.subr.bf16.mxu0 %v4475
        %6671 = vmatpush1.bf16.msra.mxu0 %v4474
        %6672 = vmatprep.subr.bf16.mxu0 %v4491
        %6673 = vmatpush1.bf16.msra.mxu0 %v4490
        %6674 = vmatprep.subr.bf16.mxu0 %v4507
        %6675 = vmatpush1.bf16.msra.mxu0 %v4506
        %6676 = vmatprep.subr.bf16.mxu0 %v4523
        %6677 = vmatpush1.bf16.msra.mxu0 %v4522
        %6678 = vmatprep.subr.bf16.mxu0 %v4539
        %6679 = vmatpush1.bf16.msra.mxu0 %v4538
        %6680 = vmatprep.subr.bf16.mxu0 %v4555
        %6681 = vmatpush1.bf16.msra.mxu0 %v4554
        %6682 = vmatprep.subr.bf16.mxu0 %v4571
        %6683 = vmatpush1.bf16.msra.mxu0 %v4570
        %6684 = vmatprep.subr.bf16.mxu0 %v4587
        %6685 = vmatpush1.bf16.msra.mxu0 %v4586
        %6686 = vmatprep.subr.bf16.mxu0 %v4603
        %6687 = vmatpush1.bf16.msra.mxu0 %v4602
        %6688 = vmatprep.subr.bf16.mxu0 %v4619
        %6689 = vmatpush1.bf16.msra.mxu0 %v4618
        %6690 = vmatprep.subr.bf16.mxu0 %v4635
        %6691 = vmatpush1.bf16.msra.mxu0 %v4634
        %6692 = vmatprep.subr.bf16.mxu0 %v4651
        %6693 = vmatpush1.bf16.msra.mxu0 %v4650
        %6694 = vmatprep.subr.bf16.mxu0 %v4667
        %6695 = vmatpush1.bf16.msra.mxu0 %v4666
        %6696 = vmatprep.subr.bf16.mxu0 %v4683
        %6697 = vmatpush1.bf16.msra.mxu0 %v4682
        %6698 = vmatprep.subr.bf16.mxu0 %v4699
        %6699 = vmatpush1.bf16.msra.mxu0 %v4698
        %6700 = vmatprep.mubr.bf16.mxu0 %v1369
        %6701 = vmatmul.mubr.bf16.gmra.mrb[0].mxu0 %v1368
        %v6702 = vpop.f32.mrb[0].mxu0
        %v6703 = vadd.f32 0.0, %v6702
        %v6704 = vpop.f32.mrb[0].mxu0
        %v6705 = vadd.f32 0.0, %v6704
        %v6706 = vpop.f32.mrb[0].mxu0
        %v6707 = vpop.f32.mrb[0].mxu0
        %6708 = vdwg.mxu0
        %6709 = vmatprep.subr.bf16.mxu0 %v4715
        %6710 = vmatpush1.bf16.msra.mxu0 %v4714
        %6711 = vmatprep.subr.bf16.mxu0 %v4731
        %6712 = vmatpush1.bf16.msra.mxu0 %v4730
        %6713 = vmatprep.subr.bf16.mxu0 %v4747
        %6714 = vmatpush1.bf16.msra.mxu0 %v4746
        %6715 = vmatprep.subr.bf16.mxu0 %v4763
        %6716 = vmatpush1.bf16.msra.mxu0 %v4762
        %6717 = vmatprep.subr.bf16.mxu0 %v4779
        %6718 = vmatpush1.bf16.msra.mxu0 %v4778
        %6719 = vmatprep.subr.bf16.mxu0 %v4795
        %6720 = vmatpush1.bf16.msra.mxu0 %v4794
        %6721 = vmatprep.subr.bf16.mxu0 %v4811
        %6722 = vmatpush1.bf16.msra.mxu0 %v4810
        %6723 = vmatprep.subr.bf16.mxu0 %v4827
        %6724 = vmatpush1.bf16.msra.mxu0 %v4826
        %6725 = vmatprep.subr.bf16.mxu0 %v4843
        %6726 = vmatpush1.bf16.msra.mxu0 %v4842
        %6727 = vmatprep.subr.bf16.mxu0 %v4859
        %6728 = vmatpush1.bf16.msra.mxu0 %v4858
        %6729 = vmatprep.subr.bf16.mxu0 %v4875
        %6730 = vmatpush1.bf16.msra.mxu0 %v4874
        %6731 = vmatprep.subr.bf16.mxu0 %v4891
        %6732 = vmatpush1.bf16.msra.mxu0 %v4890
        %6733 = vmatprep.subr.bf16.mxu0 %v4907
        %6734 = vmatpush1.bf16.msra.mxu0 %v4906
        %6735 = vmatprep.subr.bf16.mxu0 %v4923
        %6736 = vmatpush1.bf16.msra.mxu0 %v4922
        %6737 = vmatprep.subr.bf16.mxu0 %v4939
        %6738 = vmatpush1.bf16.msra.mxu0 %v4938
        %6739 = vmatprep.subr.bf16.mxu0 %v4955
        %6740 = vmatpush1.bf16.msra.mxu0 %v4954
        %6741 = vmatprep.mubr.bf16.mxu0 %v1371
        %6742 = vmatmul.mubr.bf16.gmra.mrb[0].mxu0 %v1370
        %v6743 = vpop.f32.mrb[0].mxu0
        %v6744 = vadd.f32 %v6703, %v6743
        %v6745 = vpop.f32.mrb[0].mxu0
        %v6746 = vadd.f32 %v6705, %v6745
        %v6747 = vpop.f32.mrb[0].mxu0
        %v6748 = vpop.f32.mrb[0].mxu0
        %6749 = vdwg.mxu0
        %6750 = vmatprep.subr.bf16.mxu0 %v4971
        %6751 = vmatpush1.bf16.msra.mxu0 %v4970
        %6752 = vmatprep.subr.bf16.mxu0 %v4987
        %6753 = vmatpush1.bf16.msra.mxu0 %v4986
        %6754 = vmatprep.subr.bf16.mxu0 %v5003
        %6755 = vmatpush1.bf16.msra.mxu0 %v5002
        %6756 = vmatprep.subr.bf16.mxu0 %v5019
        %6757 = vmatpush1.bf16.msra.mxu0 %v5018
        %6758 = vmatprep.subr.bf16.mxu0 %v5035
        %6759 = vmatpush1.bf16.msra.mxu0 %v5034
        %6760 = vmatprep.subr.bf16.mxu0 %v5051
        %6761 = vmatpush1.bf16.msra.mxu0 %v5050
        %6762 = vmatprep.subr.bf16.mxu0 %v5067
        %6763 = vmatpush1.bf16.msra.mxu0 %v5066
        %6764 = vmatprep.subr.bf16.mxu0 %v5083
        %6765 = vmatpush1.bf16.msra.mxu0 %v5082
        %6766 = vmatprep.subr.bf16.mxu0 %v5099
        %6767 = vmatpush1.bf16.msra.mxu0 %v5098
        %6768 = vmatprep.subr.bf16.mxu0 %v5115
        %6769 = vmatpush1.bf16.msra.mxu0 %v5114
        %6770 = vmatprep.subr.bf16.mxu0 %v5131
        %6771 = vmatpush1.bf16.msra.mxu0 %v5130
        %6772 = vmatprep.subr.bf16.mxu0 %v5147
        %6773 = vmatpush1.bf16.msra.mxu0 %v5146
        %6774 = vmatprep.subr.bf16.mxu0 %v5163
        %6775 = vmatpush1.bf16.msra.mxu0 %v5162
        %6776 = vmatprep.subr.bf16.mxu0 %v5179
        %6777 = vmatpush1.bf16.msra.mxu0 %v5178
        %6778 = vmatprep.subr.bf16.mxu0 %v5195
        %6779 = vmatpush1.bf16.msra.mxu0 %v5194
        %6780 = vmatprep.subr.bf16.mxu0 %v5211
        %6781 = vmatpush1.bf16.msra.mxu0 %v5210
        %6782 = vmatprep.mubr.bf16.mxu0 %v1373
        %6783 = vmatmul.mubr.bf16.gmra.mrb[0].mxu0 %v1372
        %v6784 = vpop.f32.mrb[0].mxu0
        %v6785 = vadd.f32 %v6744, %v6784
        %v6786 = vpop.f32.mrb[0].mxu0
        %v6787 = vadd.f32 %v6746, %v6786
        %v6788 = vpop.f32.mrb[0].mxu0
        %v6789 = vpop.f32.mrb[0].mxu0
        %6790 = vdwg.mxu0
        %6791 = vmatprep.subr.bf16.mxu0 %v5227
        %6792 = vmatpush1.bf16.msra.mxu0 %v5226
        %6793 = vmatprep.subr.bf16.mxu0 %v5243
        %6794 = vmatpush1.bf16.msra.mxu0 %v5242
        %6795 = vmatprep.subr.bf16.mxu0 %v5259
        %6796 = vmatpush1.bf16.msra.mxu0 %v5258
        %6797 = vmatprep.subr.bf16.mxu0 %v5275
        %6798 = vmatpush1.bf16.msra.mxu0 %v5274
        %6799 = vmatprep.subr.bf16.mxu0 %v5291
        %6800 = vmatpush1.bf16.msra.mxu0 %v5290
        %6801 = vmatprep.subr.bf16.mxu0 %v5307
        %6802 = vmatpush1.bf16.msra.mxu0 %v5306
        %6803 = vmatprep.subr.bf16.mxu0 %v5323
        %6804 = vmatpush1.bf16.msra.mxu0 %v5322
        %6805 = vmatprep.subr.bf16.mxu0 %v5339
        %6806 = vmatpush1.bf16.msra.mxu0 %v5338
        %6807 = vmatprep.subr.bf16.mxu0 %v5355
        %6808 = vmatpush1.bf16.msra.mxu0 %v5354
        %6809 = vmatprep.subr.bf16.mxu0 %v5371
        %6810 = vmatpush1.bf16.msra.mxu0 %v5370
        %6811 = vmatprep.subr.bf16.mxu0 %v5387
        %6812 = vmatpush1.bf16.msra.mxu0 %v5386
        %6813 = vmatprep.subr.bf16.mxu0 %v5403
        %6814 = vmatpush1.bf16.msra.mxu0 %v5402
        %6815 = vmatprep.subr.bf16.mxu0 %v5419
        %6816 = vmatpush1.bf16.msra.mxu0 %v5418
        %6817 = vmatprep.subr.bf16.mxu0 %v5435
        %6818 = vmatpush1.bf16.msra.mxu0 %v5434
        %6819 = vmatprep.subr.bf16.mxu0 %v5451
        %6820 = vmatpush1.bf16.msra.mxu0 %v5450
        %6821 = vmatprep.subr.bf16.mxu0 %v5467
        %6822 = vmatpush1.bf16.msra.mxu0 %v5466
        %6823 = vmatprep.mubr.bf16.mxu0 %v1375
        %6824 = vmatmul.mubr.bf16.gmra.mrb[0].mxu0 %v1374
        %v6825 = vpop.f32.mrb[0].mxu0
        %v6826 = vadd.f32 %v6785, %v6825
        %v6827 = vpop.f32.mrb[0].mxu0
        %v6828 = vadd.f32 %v6787, %v6827
        %v6829 = vpop.f32.mrb[0].mxu0
        %v6830 = vpop.f32.mrb[0].mxu0
        %6831 = vdwg.mxu0
        %6832 = vmatprep.subr.bf16.mxu0 %v4461
        %6833 = vmatpush1.bf16.msra.mxu0 %v4460
        %6834 = vmatprep.subr.bf16.mxu0 %v4477
        %6835 = vmatpush1.bf16.msra.mxu0 %v4476
        %6836 = vmatprep.subr.bf16.mxu0 %v4493
        %6837 = vmatpush1.bf16.msra.mxu0 %v4492
        %6838 = vmatprep.subr.bf16.mxu0 %v4509
        %6839 = vmatpush1.bf16.msra.mxu0 %v4508
        %6840 = vmatprep.subr.bf16.mxu0 %v4525
        %6841 = vmatpush1.bf16.msra.mxu0 %v4524
        %6842 = vmatprep.subr.bf16.mxu0 %v4541
        %6843 = vmatpush1.bf16.msra.mxu0 %v4540
        %6844 = vmatprep.subr.bf16.mxu0 %v4557
        %6845 = vmatpush1.bf16.msra.mxu0 %v4556
        %6846 = vmatprep.subr.bf16.mxu0 %v4573
        %6847 = vmatpush1.bf16.msra.mxu0 %v4572
        %6848 = vmatprep.subr.bf16.mxu0 %v4589
        %6849 = vmatpush1.bf16.msra.mxu0 %v4588
        %6850 = vmatprep.subr.bf16.mxu0 %v4605
        %6851 = vmatpush1.bf16.msra.mxu0 %v4604
        %6852 = vmatprep.subr.bf16.mxu0 %v4621
        %6853 = vmatpush1.bf16.msra.mxu0 %v4620
        %6854 = vmatprep.subr.bf16.mxu0 %v4637
        %6855 = vmatpush1.bf16.msra.mxu0 %v4636
        %6856 = vmatprep.subr.bf16.mxu0 %v4653
        %6857 = vmatpush1.bf16.msra.mxu0 %v4652
        %6858 = vmatprep.subr.bf16.mxu0 %v4669
        %6859 = vmatpush1.bf16.msra.mxu0 %v4668
        %6860 = vmatprep.subr.bf16.mxu0 %v4685
        %6861 = vmatpush1.bf16.msra.mxu0 %v4684
        %6862 = vmatprep.subr.bf16.mxu0 %v4701
        %6863 = vmatpush1.bf16.msra.mxu0 %v4700
        %6864 = vmatprep.mubr.bf16.mxu0 %v1369
        %6865 = vmatmul.mubr.bf16.gmra.mrb[0].mxu0 %v1368
        %v6866 = vpop.f32.mrb[0].mxu0
        %v6867 = vadd.f32 0.0, %v6866
        %v6868 = vpop.f32.mrb[0].mxu0
        %v6869 = vadd.f32 0.0, %v6868
        %v6870 = vpop.f32.mrb[0].mxu0
        %v6871 = vpop.f32.mrb[0].mxu0
        %6872 = vdwg.mxu0
        %6873 = vmatprep.subr.bf16.mxu0 %v4717
        %6874 = vmatpush1.bf16.msra.mxu0 %v4716
        %6875 = vmatprep.subr.bf16.mxu0 %v4733
        %6876 = vmatpush1.bf16.msra.mxu0 %v4732
        %6877 = vmatprep.subr.bf16.mxu0 %v4749
        %6878 = vmatpush1.bf16.msra.mxu0 %v4748
        %6879 = vmatprep.subr.bf16.mxu0 %v4765
        %6880 = vmatpush1.bf16.msra.mxu0 %v4764
        %6881 = vmatprep.subr.bf16.mxu0 %v4781
        %6882 = vmatpush1.bf16.msra.mxu0 %v4780
        %6883 = vmatprep.subr.bf16.mxu0 %v4797
        %6884 = vmatpush1.bf16.msra.mxu0 %v4796
        %6885 = vmatprep.subr.bf16.mxu0 %v4813
        %6886 = vmatpush1.bf16.msra.mxu0 %v4812
        %6887 = vmatprep.subr.bf16.mxu0 %v4829
        %6888 = vmatpush1.bf16.msra.mxu0 %v4828
        %6889 = vmatprep.subr.bf16.mxu0 %v4845
        %6890 = vmatpush1.bf16.msra.mxu0 %v4844
        %6891 = vmatprep.subr.bf16.mxu0 %v4861
        %6892 = vmatpush1.bf16.msra.mxu0 %v4860
        %6893 = vmatprep.subr.bf16.mxu0 %v4877
        %6894 = vmatpush1.bf16.msra.mxu0 %v4876
        %6895 = vmatprep.subr.bf16.mxu0 %v4893
        %6896 = vmatpush1.bf16.msra.mxu0 %v4892
        %6897 = vmatprep.subr.bf16.mxu0 %v4909
        %6898 = vmatpush1.bf16.msra.mxu0 %v4908
        %6899 = vmatprep.subr.bf16.mxu0 %v4925
        %6900 = vmatpush1.bf16.msra.mxu0 %v4924
        %6901 = vmatprep.subr.bf16.mxu0 %v4941
        %6902 = vmatpush1.bf16.msra.mxu0 %v4940
        %6903 = vmatprep.subr.bf16.mxu0 %v4957
        %6904 = vmatpush1.bf16.msra.mxu0 %v4956
        %6905 = vmatprep.mubr.bf16.mxu0 %v1371
        %6906 = vmatmul.mubr.bf16.gmra.mrb[0].mxu0 %v1370
        %v6907 = vpop.f32.mrb[0].mxu0
        %v6908 = vadd.f32 %v6867, %v6907
        %v6909 = vpop.f32.mrb[0].mxu0
        %v6910 = vadd.f32 %v6869, %v6909
        %v6911 = vpop.f32.mrb[0].mxu0
        %v6912 = vpop.f32.mrb[0].mxu0
        %6913 = vdwg.mxu0
        %6914 = vmatprep.subr.bf16.mxu0 %v4973
        %6915 = vmatpush1.bf16.msra.mxu0 %v4972
        %6916 = vmatprep.subr.bf16.mxu0 %v4989
        %6917 = vmatpush1.bf16.msra.mxu0 %v4988
        %6918 = vmatprep.subr.bf16.mxu0 %v5005
        %6919 = vmatpush1.bf16.msra.mxu0 %v5004
        %6920 = vmatprep.subr.bf16.mxu0 %v5021
        %6921 = vmatpush1.bf16.msra.mxu0 %v5020
        %6922 = vmatprep.subr.bf16.mxu0 %v5037
        %6923 = vmatpush1.bf16.msra.mxu0 %v5036
        %6924 = vmatprep.subr.bf16.mxu0 %v5053
        %6925 = vmatpush1.bf16.msra.mxu0 %v5052
        %6926 = vmatprep.subr.bf16.mxu0 %v5069
        %6927 = vmatpush1.bf16.msra.mxu0 %v5068
        %6928 = vmatprep.subr.bf16.mxu0 %v5085
        %6929 = vmatpush1.bf16.msra.mxu0 %v5084
        %6930 = vmatprep.subr.bf16.mxu0 %v5101
        %6931 = vmatpush1.bf16.msra.mxu0 %v5100
        %6932 = vmatprep.subr.bf16.mxu0 %v5117
        %6933 = vmatpush1.bf16.msra.mxu0 %v5116
        %6934 = vmatprep.subr.bf16.mxu0 %v5133
        %6935 = vmatpush1.bf16.msra.mxu0 %v5132
        %6936 = vmatprep.subr.bf16.mxu0 %v5149
        %6937 = vmatpush1.bf16.msra.mxu0 %v5148
        %6938 = vmatprep.subr.bf16.mxu0 %v5165
        %6939 = vmatpush1.bf16.msra.mxu0 %v5164
        %6940 = vmatprep.subr.bf16.mxu0 %v5181
        %6941 = vmatpush1.bf16.msra.mxu0 %v5180
        %6942 = vmatprep.subr.bf16.mxu0 %v5197
        %6943 = vmatpush1.bf16.msra.mxu0 %v5196
        %6944 = vmatprep.subr.bf16.mxu0 %v5213
        %6945 = vmatpush1.bf16.msra.mxu0 %v5212
        %6946 = vmatprep.mubr.bf16.mxu0 %v1373
        %6947 = vmatmul.mubr.bf16.gmra.mrb[0].mxu0 %v1372
        %v6948 = vpop.f32.mrb[0].mxu0
        %v6949 = vadd.f32 %v6908, %v6948
        %v6950 = vpop.f32.mrb[0].mxu0
        %v6951 = vadd.f32 %v6910, %v6950
        %v6952 = vpop.f32.mrb[0].mxu0
        %v6953 = vpop.f32.mrb[0].mxu0
        %6954 = vdwg.mxu0
        %6955 = vmatprep.subr.bf16.mxu0 %v5229
        %6956 = vmatpush1.bf16.msra.mxu0 %v5228
        %6957 = vmatprep.subr.bf16.mxu0 %v5245
        %6958 = vmatpush1.bf16.msra.mxu0 %v5244
        %6959 = vmatprep.subr.bf16.mxu0 %v5261
        %6960 = vmatpush1.bf16.msra.mxu0 %v5260
        %6961 = vmatprep.subr.bf16.mxu0 %v5277
        %6962 = vmatpush1.bf16.msra.mxu0 %v5276
        %6963 = vmatprep.subr.bf16.mxu0 %v5293
        %6964 = vmatpush1.bf16.msra.mxu0 %v5292
        %6965 = vmatprep.subr.bf16.mxu0 %v5309
        %6966 = vmatpush1.bf16.msra.mxu0 %v5308
        %6967 = vmatprep.subr.bf16.mxu0 %v5325
        %6968 = vmatpush1.bf16.msra.mxu0 %v5324
        %6969 = vmatprep.subr.bf16.mxu0 %v5341
        %6970 = vmatpush1.bf16.msra.mxu0 %v5340
        %6971 = vmatprep.subr.bf16.mxu0 %v5357
        %6972 = vmatpush1.bf16.msra.mxu0 %v5356
        %6973 = vmatprep.subr.bf16.mxu0 %v5373
        %6974 = vmatpush1.bf16.msra.mxu0 %v5372
        %6975 = vmatprep.subr.bf16.mxu0 %v5389
        %6976 = vmatpush1.bf16.msra.mxu0 %v5388
        %6977 = vmatprep.subr.bf16.mxu0 %v5405
        %6978 = vmatpush1.bf16.msra.mxu0 %v5404
        %6979 = vmatprep.subr.bf16.mxu0 %v5421
        %6980 = vmatpush1.bf16.msra.mxu0 %v5420
        %6981 = vmatprep.subr.bf16.mxu0 %v5437
        %6982 = vmatpush1.bf16.msra.mxu0 %v5436
        %6983 = vmatprep.subr.bf16.mxu0 %v5453
        %6984 = vmatpush1.bf16.msra.mxu0 %v5452
        %6985 = vmatprep.subr.bf16.mxu0 %v5469
        %6986 = vmatpush1.bf16.msra.mxu0 %v5468
        %6987 = vmatprep.mubr.bf16.mxu0 %v1375
        %6988 = vmatmul.mubr.bf16.gmra.mrb[0].mxu0 %v1374
        %v6989 = vpop.f32.mrb[0].mxu0
        %v6990 = vadd.f32 %v6949, %v6989
        %v6991 = vpop.f32.mrb[0].mxu0
        %v6992 = vadd.f32 %v6951, %v6991
        %v6993 = vpop.f32.mrb[0].mxu0
        %v6994 = vpop.f32.mrb[0].mxu0
        %6995 = vdwg.mxu0
        %6996 = vmatprep.subr.bf16.mxu0 %v4463
        %6997 = vmatpush1.bf16.msra.mxu0 %v4462
        %6998 = vmatprep.subr.bf16.mxu0 %v4479
        %6999 = vmatpush1.bf16.msra.mxu0 %v4478
        %7000 = vmatprep.subr.bf16.mxu0 %v4495
        %7001 = vmatpush1.bf16.msra.mxu0 %v4494
        %7002 = vmatprep.subr.bf16.mxu0 %v4511
        %7003 = vmatpush1.bf16.msra.mxu0 %v4510
        %7004 = vmatprep.subr.bf16.mxu0 %v4527
        %7005 = vmatpush1.bf16.msra.mxu0 %v4526
        %7006 = vmatprep.subr.bf16.mxu0 %v4543
        %7007 = vmatpush1.bf16.msra.mxu0 %v4542
        %7008 = vmatprep.subr.bf16.mxu0 %v4559
        %7009 = vmatpush1.bf16.msra.mxu0 %v4558
        %7010 = vmatprep.subr.bf16.mxu0 %v4575
        %7011 = vmatpush1.bf16.msra.mxu0 %v4574
        %7012 = vmatprep.subr.bf16.mxu0 %v4591
        %7013 = vmatpush1.bf16.msra.mxu0 %v4590
        %7014 = vmatprep.subr.bf16.mxu0 %v4607
        %7015 = vmatpush1.bf16.msra.mxu0 %v4606
        %7016 = vmatprep.subr.bf16.mxu0 %v4623
        %7017 = vmatpush1.bf16.msra.mxu0 %v4622
        %7018 = vmatprep.subr.bf16.mxu0 %v4639
        %7019 = vmatpush1.bf16.msra.mxu0 %v4638
        %7020 = vmatprep.subr.bf16.mxu0 %v4655
        %7021 = vmatpush1.bf16.msra.mxu0 %v4654
        %7022 = vmatprep.subr.bf16.mxu0 %v4671
        %7023 = vmatpush1.bf16.msra.mxu0 %v4670
        %7024 = vmatprep.subr.bf16.mxu0 %v4687
        %7025 = vmatpush1.bf16.msra.mxu0 %v4686
        %7026 = vmatprep.subr.bf16.mxu0 %v4703
        %7027 = vmatpush1.bf16.msra.mxu0 %v4702
        %7028 = vmatprep.mubr.bf16.mxu0 %v1369
        %7029 = vmatmul.mubr.bf16.gmra.mrb[0].mxu0 %v1368
        %v7030 = vpop.f32.mrb[0].mxu0
        %v7031 = vadd.f32 0.0, %v7030
        %v7032 = vpop.f32.mrb[0].mxu0
        %v7033 = vadd.f32 0.0, %v7032
        %v7034 = vpop.f32.mrb[0].mxu0
        %v7035 = vpop.f32.mrb[0].mxu0
        %7036 = vdwg.mxu0
        %7037 = vmatprep.subr.bf16.mxu0 %v4719
        %7038 = vmatpush1.bf16.msra.mxu0 %v4718
        %7039 = vmatprep.subr.bf16.mxu0 %v4735
        %7040 = vmatpush1.bf16.msra.mxu0 %v4734
        %7041 = vmatprep.subr.bf16.mxu0 %v4751
        %7042 = vmatpush1.bf16.msra.mxu0 %v4750
        %7043 = vmatprep.subr.bf16.mxu0 %v4767
        %7044 = vmatpush1.bf16.msra.mxu0 %v4766
        %7045 = vmatprep.subr.bf16.mxu0 %v4783
        %7046 = vmatpush1.bf16.msra.mxu0 %v4782
        %7047 = vmatprep.subr.bf16.mxu0 %v4799
        %7048 = vmatpush1.bf16.msra.mxu0 %v4798
        %7049 = vmatprep.subr.bf16.mxu0 %v4815
        %7050 = vmatpush1.bf16.msra.mxu0 %v4814
        %7051 = vmatprep.subr.bf16.mxu0 %v4831
        %7052 = vmatpush1.bf16.msra.mxu0 %v4830
        %7053 = vmatprep.subr.bf16.mxu0 %v4847
        %7054 = vmatpush1.bf16.msra.mxu0 %v4846
        %7055 = vmatprep.subr.bf16.mxu0 %v4863
        %7056 = vmatpush1.bf16.msra.mxu0 %v4862
        %7057 = vmatprep.subr.bf16.mxu0 %v4879
        %7058 = vmatpush1.bf16.msra.mxu0 %v4878
        %7059 = vmatprep.subr.bf16.mxu0 %v4895
        %7060 = vmatpush1.bf16.msra.mxu0 %v4894
        %7061 = vmatprep.subr.bf16.mxu0 %v4911
        %7062 = vmatpush1.bf16.msra.mxu0 %v4910
        %7063 = vmatprep.subr.bf16.mxu0 %v4927
        %7064 = vmatpush1.bf16.msra.mxu0 %v4926
        %7065 = vmatprep.subr.bf16.mxu0 %v4943
        %7066 = vmatpush1.bf16.msra.mxu0 %v4942
        %7067 = vmatprep.subr.bf16.mxu0 %v4959
        %7068 = vmatpush1.bf16.msra.mxu0 %v4958
        %7069 = vmatprep.mubr.bf16.mxu0 %v1371
        %7070 = vmatmul.mubr.bf16.gmra.mrb[0].mxu0 %v1370
        %v7071 = vpop.f32.mrb[0].mxu0
        %v7072 = vadd.f32 %v7031, %v7071
        %v7073 = vpop.f32.mrb[0].mxu0
        %v7074 = vadd.f32 %v7033, %v7073
        %v7075 = vpop.f32.mrb[0].mxu0
        %v7076 = vpop.f32.mrb[0].mxu0
        %7077 = vdwg.mxu0
        %7078 = vmatprep.subr.bf16.mxu0 %v4975
        %7079 = vmatpush1.bf16.msra.mxu0 %v4974
        %7080 = vmatprep.subr.bf16.mxu0 %v4991
        %7081 = vmatpush1.bf16.msra.mxu0 %v4990
        %7082 = vmatprep.subr.bf16.mxu0 %v5007
        %7083 = vmatpush1.bf16.msra.mxu0 %v5006
        %7084 = vmatprep.subr.bf16.mxu0 %v5023
        %7085 = vmatpush1.bf16.msra.mxu0 %v5022
        %7086 = vmatprep.subr.bf16.mxu0 %v5039
        %7087 = vmatpush1.bf16.msra.mxu0 %v5038
        %7088 = vmatprep.subr.bf16.mxu0 %v5055
        %7089 = vmatpush1.bf16.msra.mxu0 %v5054
        %7090 = vmatprep.subr.bf16.mxu0 %v5071
        %7091 = vmatpush1.bf16.msra.mxu0 %v5070
        %7092 = vmatprep.subr.bf16.mxu0 %v5087
        %7093 = vmatpush1.bf16.msra.mxu0 %v5086
        %7094 = vmatprep.subr.bf16.mxu0 %v5103
        %7095 = vmatpush1.bf16.msra.mxu0 %v5102
        %7096 = vmatprep.subr.bf16.mxu0 %v5119
        %7097 = vmatpush1.bf16.msra.mxu0 %v5118
        %7098 = vmatprep.subr.bf16.mxu0 %v5135
        %7099 = vmatpush1.bf16.msra.mxu0 %v5134
        %7100 = vmatprep.subr.bf16.mxu0 %v5151
        %7101 = vmatpush1.bf16.msra.mxu0 %v5150
        %7102 = vmatprep.subr.bf16.mxu0 %v5167
        %7103 = vmatpush1.bf16.msra.mxu0 %v5166
        %7104 = vmatprep.subr.bf16.mxu0 %v5183
        %7105 = vmatpush1.bf16.msra.mxu0 %v5182
        %7106 = vmatprep.subr.bf16.mxu0 %v5199
        %7107 = vmatpush1.bf16.msra.mxu0 %v5198
        %7108 = vmatprep.subr.bf16.mxu0 %v5215
        %7109 = vmatpush1.bf16.msra.mxu0 %v5214
        %7110 = vmatprep.mubr.bf16.mxu0 %v1373
        %7111 = vmatmul.mubr.bf16.gmra.mrb[0].mxu0 %v1372
        %v7112 = vpop.f32.mrb[0].mxu0
        %v7113 = vadd.f32 %v7072, %v7112
        %v7114 = vpop.f32.mrb[0].mxu0
        %v7115 = vadd.f32 %v7074, %v7114
        %v7116 = vpop.f32.mrb[0].mxu0
        %v7117 = vpop.f32.mrb[0].mxu0
        %7118 = vdwg.mxu0
        %7119 = vmatprep.subr.bf16.mxu0 %v5231
        %7120 = vmatpush1.bf16.msra.mxu0 %v5230
        %7121 = vmatprep.subr.bf16.mxu0 %v5247
        %7122 = vmatpush1.bf16.msra.mxu0 %v5246
        %7123 = vmatprep.subr.bf16.mxu0 %v5263
        %7124 = vmatpush1.bf16.msra.mxu0 %v5262
        %7125 = vmatprep.subr.bf16.mxu0 %v5279
        %7126 = vmatpush1.bf16.msra.mxu0 %v5278
        %7127 = vmatprep.subr.bf16.mxu0 %v5295
        %7128 = vmatpush1.bf16.msra.mxu0 %v5294
        %7129 = vmatprep.subr.bf16.mxu0 %v5311
        %7130 = vmatpush1.bf16.msra.mxu0 %v5310
        %7131 = vmatprep.subr.bf16.mxu0 %v5327
        %7132 = vmatpush1.bf16.msra.mxu0 %v5326
        %7133 = vmatprep.subr.bf16.mxu0 %v5343
        %7134 = vmatpush1.bf16.msra.mxu0 %v5342
        %7135 = vmatprep.subr.bf16.mxu0 %v5359
        %7136 = vmatpush1.bf16.msra.mxu0 %v5358
        %7137 = vmatprep.subr.bf16.mxu0 %v5375
        %7138 = vmatpush1.bf16.msra.mxu0 %v5374
        %7139 = vmatprep.subr.bf16.mxu0 %v5391
        %7140 = vmatpush1.bf16.msra.mxu0 %v5390
        %7141 = vmatprep.subr.bf16.mxu0 %v5407
        %7142 = vmatpush1.bf16.msra.mxu0 %v5406
        %7143 = vmatprep.subr.bf16.mxu0 %v5423
        %7144 = vmatpush1.bf16.msra.mxu0 %v5422
        %7145 = vmatprep.subr.bf16.mxu0 %v5439
        %7146 = vmatpush1.bf16.msra.mxu0 %v5438
        %7147 = vmatprep.subr.bf16.mxu0 %v5455
        %7148 = vmatpush1.bf16.msra.mxu0 %v5454
        %7149 = vmatprep.subr.bf16.mxu0 %v5471
        %7150 = vmatpush1.bf16.msra.mxu0 %v5470
        %7151 = vmatprep.mubr.bf16.mxu0 %v1375
        %7152 = vmatmul.mubr.bf16.gmra.mrb[0].mxu0 %v1374
        %v7153 = vpop.f32.mrb[0].mxu0
        %v7154 = vadd.f32 %v7113, %v7153
        %v7155 = vpop.f32.mrb[0].mxu0
        %v7156 = vadd.f32 %v7115, %v7155
        %v7157 = vpop.f32.mrb[0].mxu0
        %v7158 = vpop.f32.mrb[0].mxu0
        %7159 = vdwg.mxu0
        %7160 = vmatprep.subr.bf16.mxu0 %v4465
        %7161 = vmatpush1.bf16.msra.mxu0 %v4464
        %7162 = vmatprep.subr.bf16.mxu0 %v4481
        %7163 = vmatpush1.bf16.msra.mxu0 %v4480
        %7164 = vmatprep.subr.bf16.mxu0 %v4497
        %7165 = vmatpush1.bf16.msra.mxu0 %v4496
        %7166 = vmatprep.subr.bf16.mxu0 %v4513
        %7167 = vmatpush1.bf16.msra.mxu0 %v4512
        %7168 = vmatprep.subr.bf16.mxu0 %v4529
        %7169 = vmatpush1.bf16.msra.mxu0 %v4528
        %7170 = vmatprep.subr.bf16.mxu0 %v4545
        %7171 = vmatpush1.bf16.msra.mxu0 %v4544
        %7172 = vmatprep.subr.bf16.mxu0 %v4561
        %7173 = vmatpush1.bf16.msra.mxu0 %v4560
        %7174 = vmatprep.subr.bf16.mxu0 %v4577
        %7175 = vmatpush1.bf16.msra.mxu0 %v4576
        %7176 = vmatprep.subr.bf16.mxu0 %v4593
        %7177 = vmatpush1.bf16.msra.mxu0 %v4592
        %7178 = vmatprep.subr.bf16.mxu0 %v4609
        %7179 = vmatpush1.bf16.msra.mxu0 %v4608
        %7180 = vmatprep.subr.bf16.mxu0 %v4625
        %7181 = vmatpush1.bf16.msra.mxu0 %v4624
        %7182 = vmatprep.subr.bf16.mxu0 %v4641
        %7183 = vmatpush1.bf16.msra.mxu0 %v4640
        %7184 = vmatprep.subr.bf16.mxu0 %v4657
        %7185 = vmatpush1.bf16.msra.mxu0 %v4656
        %7186 = vmatprep.subr.bf16.mxu0 %v4673
        %7187 = vmatpush1.bf16.msra.mxu0 %v4672
        %7188 = vmatprep.subr.bf16.mxu0 %v4689
        %7189 = vmatpush1.bf16.msra.mxu0 %v4688
        %7190 = vmatprep.subr.bf16.mxu0 %v4705
        %7191 = vmatpush1.bf16.msra.mxu0 %v4704
        %7192 = vmatprep.mubr.bf16.mxu0 %v1369
        %7193 = vmatmul.mubr.bf16.gmra.mrb[0].mxu0 %v1368
        %v7194 = vpop.f32.mrb[0].mxu0
        %v7195 = vadd.f32 0.0, %v7194
        %v7196 = vpop.f32.mrb[0].mxu0
        %v7197 = vadd.f32 0.0, %v7196
        %v7198 = vpop.f32.mrb[0].mxu0
        %v7199 = vpop.f32.mrb[0].mxu0
        %7200 = vdwg.mxu0
        %7201 = vmatprep.subr.bf16.mxu0 %v4721
        %7202 = vmatpush1.bf16.msra.mxu0 %v4720
        %7203 = vmatprep.subr.bf16.mxu0 %v4737
        %7204 = vmatpush1.bf16.msra.mxu0 %v4736
        %7205 = vmatprep.subr.bf16.mxu0 %v4753
        %7206 = vmatpush1.bf16.msra.mxu0 %v4752
        %7207 = vmatprep.subr.bf16.mxu0 %v4769
        %7208 = vmatpush1.bf16.msra.mxu0 %v4768
        %7209 = vmatprep.subr.bf16.mxu0 %v4785
        %7210 = vmatpush1.bf16.msra.mxu0 %v4784
        %7211 = vmatprep.subr.bf16.mxu0 %v4801
        %7212 = vmatpush1.bf16.msra.mxu0 %v4800
        %7213 = vmatprep.subr.bf16.mxu0 %v4817
        %7214 = vmatpush1.bf16.msra.mxu0 %v4816
        %7215 = vmatprep.subr.bf16.mxu0 %v4833
        %7216 = vmatpush1.bf16.msra.mxu0 %v4832
        %7217 = vmatprep.subr.bf16.mxu0 %v4849
        %7218 = vmatpush1.bf16.msra.mxu0 %v4848
        %7219 = vmatprep.subr.bf16.mxu0 %v4865
        %7220 = vmatpush1.bf16.msra.mxu0 %v4864
        %7221 = vmatprep.subr.bf16.mxu0 %v4881
        %7222 = vmatpush1.bf16.msra.mxu0 %v4880
        %7223 = vmatprep.subr.bf16.mxu0 %v4897
        %7224 = vmatpush1.bf16.msra.mxu0 %v4896
        %7225 = vmatprep.subr.bf16.mxu0 %v4913
        %7226 = vmatpush1.bf16.msra.mxu0 %v4912
        %7227 = vmatprep.subr.bf16.mxu0 %v4929
        %7228 = vmatpush1.bf16.msra.mxu0 %v4928
        %7229 = vmatprep.subr.bf16.mxu0 %v4945
        %7230 = vmatpush1.bf16.msra.mxu0 %v4944
        %7231 = vmatprep.subr.bf16.mxu0 %v4961
        %7232 = vmatpush1.bf16.msra.mxu0 %v4960
        %7233 = vmatprep.mubr.bf16.mxu0 %v1371
        %7234 = vmatmul.mubr.bf16.gmra.mrb[0].mxu0 %v1370
        %v7235 = vpop.f32.mrb[0].mxu0
        %v7236 = vadd.f32 %v7195, %v7235
        %v7237 = vpop.f32.mrb[0].mxu0
        %v7238 = vadd.f32 %v7197, %v7237
        %v7239 = vpop.f32.mrb[0].mxu0
        %v7240 = vpop.f32.mrb[0].mxu0
        %7241 = vdwg.mxu0
        %7242 = vmatprep.subr.bf16.mxu0 %v4977
        %7243 = vmatpush1.bf16.msra.mxu0 %v4976
        %7244 = vmatprep.subr.bf16.mxu0 %v4993
        %7245 = vmatpush1.bf16.msra.mxu0 %v4992
        %7246 = vmatprep.subr.bf16.mxu0 %v5009
        %7247 = vmatpush1.bf16.msra.mxu0 %v5008
        %7248 = vmatprep.subr.bf16.mxu0 %v5025
        %7249 = vmatpush1.bf16.msra.mxu0 %v5024
        %7250 = vmatprep.subr.bf16.mxu0 %v5041
        %7251 = vmatpush1.bf16.msra.mxu0 %v5040
        %7252 = vmatprep.subr.bf16.mxu0 %v5057
        %7253 = vmatpush1.bf16.msra.mxu0 %v5056
        %7254 = vmatprep.subr.bf16.mxu0 %v5073
        %7255 = vmatpush1.bf16.msra.mxu0 %v5072
        %7256 = vmatprep.subr.bf16.mxu0 %v5089
        %7257 = vmatpush1.bf16.msra.mxu0 %v5088
        %7258 = vmatprep.subr.bf16.mxu0 %v5105
        %7259 = vmatpush1.bf16.msra.mxu0 %v5104
        %7260 = vmatprep.subr.bf16.mxu0 %v5121
        %7261 = vmatpush1.bf16.msra.mxu0 %v5120
        %7262 = vmatprep.subr.bf16.mxu0 %v5137
        %7263 = vmatpush1.bf16.msra.mxu0 %v5136
        %7264 = vmatprep.subr.bf16.mxu0 %v5153
        %7265 = vmatpush1.bf16.msra.mxu0 %v5152
        %7266 = vmatprep.subr.bf16.mxu0 %v5169
        %7267 = vmatpush1.bf16.msra.mxu0 %v5168
        %7268 = vmatprep.subr.bf16.mxu0 %v5185
        %7269 = vmatpush1.bf16.msra.mxu0 %v5184
        %7270 = vmatprep.subr.bf16.mxu0 %v5201
        %7271 = vmatpush1.bf16.msra.mxu0 %v5200
        %7272 = vmatprep.subr.bf16.mxu0 %v5217
        %7273 = vmatpush1.bf16.msra.mxu0 %v5216
        %7274 = vmatprep.mubr.bf16.mxu0 %v1373
        %7275 = vmatmul.mubr.bf16.gmra.mrb[0].mxu0 %v1372
        %v7276 = vpop.f32.mrb[0].mxu0
        %v7277 = vadd.f32 %v7236, %v7276
        %v7278 = vpop.f32.mrb[0].mxu0
        %v7279 = vadd.f32 %v7238, %v7278
        %v7280 = vpop.f32.mrb[0].mxu0
        %v7281 = vpop.f32.mrb[0].mxu0
        %7282 = vdwg.mxu0
        %7283 = vmatprep.subr.bf16.mxu0 %v5233
        %7284 = vmatpush1.bf16.msra.mxu0 %v5232
        %7285 = vmatprep.subr.bf16.mxu0 %v5249
        %7286 = vmatpush1.bf16.msra.mxu0 %v5248
        %7287 = vmatprep.subr.bf16.mxu0 %v5265
        %7288 = vmatpush1.bf16.msra.mxu0 %v5264
        %7289 = vmatprep.subr.bf16.mxu0 %v5281
        %7290 = vmatpush1.bf16.msra.mxu0 %v5280
        %7291 = vmatprep.subr.bf16.mxu0 %v5297
        %7292 = vmatpush1.bf16.msra.mxu0 %v5296
        %7293 = vmatprep.subr.bf16.mxu0 %v5313
        %7294 = vmatpush1.bf16.msra.mxu0 %v5312
        %7295 = vmatprep.subr.bf16.mxu0 %v5329
        %7296 = vmatpush1.bf16.msra.mxu0 %v5328
        %7297 = vmatprep.subr.bf16.mxu0 %v5345
        %7298 = vmatpush1.bf16.msra.mxu0 %v5344
        %7299 = vmatprep.subr.bf16.mxu0 %v5361
        %7300 = vmatpush1.bf16.msra.mxu0 %v5360
        %7301 = vmatprep.subr.bf16.mxu0 %v5377
        %7302 = vmatpush1.bf16.msra.mxu0 %v5376
        %7303 = vmatprep.subr.bf16.mxu0 %v5393
        %7304 = vmatpush1.bf16.msra.mxu0 %v5392
        %7305 = vmatprep.subr.bf16.mxu0 %v5409
        %7306 = vmatpush1.bf16.msra.mxu0 %v5408
        %7307 = vmatprep.subr.bf16.mxu0 %v5425
        %7308 = vmatpush1.bf16.msra.mxu0 %v5424
        %7309 = vmatprep.subr.bf16.mxu0 %v5441
        %7310 = vmatpush1.bf16.msra.mxu0 %v5440
        %7311 = vmatprep.subr.bf16.mxu0 %v5457
        %7312 = vmatpush1.bf16.msra.mxu0 %v5456
        %7313 = vmatprep.subr.bf16.mxu0 %v5473
        %7314 = vmatpush1.bf16.msra.mxu0 %v5472
        %7315 = vmatprep.mubr.bf16.mxu0 %v1375
        %7316 = vmatmul.mubr.bf16.gmra.mrb[0].mxu0 %v1374
        %v7317 = vpop.f32.mrb[0].mxu0
        %v7318 = vadd.f32 %v7277, %v7317
        %v7319 = vpop.f32.mrb[0].mxu0
        %v7320 = vadd.f32 %v7279, %v7319
        %v7321 = vpop.f32.mrb[0].mxu0
        %v7322 = vpop.f32.mrb[0].mxu0
        %7323 = vdwg.mxu0
        %7324 = vmatprep.subr.bf16.mxu0 %v4467
        %7325 = vmatpush1.bf16.msra.mxu0 %v4466
        %7326 = vmatprep.subr.bf16.mxu0 %v4483
        %7327 = vmatpush1.bf16.msra.mxu0 %v4482
        %7328 = vmatprep.subr.bf16.mxu0 %v4499
        %7329 = vmatpush1.bf16.msra.mxu0 %v4498
        %7330 = vmatprep.subr.bf16.mxu0 %v4515
        %7331 = vmatpush1.bf16.msra.mxu0 %v4514
        %7332 = vmatprep.subr.bf16.mxu0 %v4531
        %7333 = vmatpush1.bf16.msra.mxu0 %v4530
        %7334 = vmatprep.subr.bf16.mxu0 %v4547
        %7335 = vmatpush1.bf16.msra.mxu0 %v4546
        %7336 = vmatprep.subr.bf16.mxu0 %v4563
        %7337 = vmatpush1.bf16.msra.mxu0 %v4562
        %7338 = vmatprep.subr.bf16.mxu0 %v4579
        %7339 = vmatpush1.bf16.msra.mxu0 %v4578
        %7340 = vmatprep.subr.bf16.mxu0 %v4595
        %7341 = vmatpush1.bf16.msra.mxu0 %v4594
        %7342 = vmatprep.subr.bf16.mxu0 %v4611
        %7343 = vmatpush1.bf16.msra.mxu0 %v4610
        %7344 = vmatprep.subr.bf16.mxu0 %v4627
        %7345 = vmatpush1.bf16.msra.mxu0 %v4626
        %7346 = vmatprep.subr.bf16.mxu0 %v4643
        %7347 = vmatpush1.bf16.msra.mxu0 %v4642
        %7348 = vmatprep.subr.bf16.mxu0 %v4659
        %7349 = vmatpush1.bf16.msra.mxu0 %v4658
        %7350 = vmatprep.subr.bf16.mxu0 %v4675
        %7351 = vmatpush1.bf16.msra.mxu0 %v4674
        %7352 = vmatprep.subr.bf16.mxu0 %v4691
        %7353 = vmatpush1.bf16.msra.mxu0 %v4690
        %7354 = vmatprep.subr.bf16.mxu0 %v4707
        %7355 = vmatpush1.bf16.msra.mxu0 %v4706
        %7356 = vmatprep.mubr.bf16.mxu0 %v1369
        %7357 = vmatmul.mubr.bf16.gmra.mrb[0].mxu0 %v1368
        %v7358 = vpop.f32.mrb[0].mxu0
        %v7359 = vadd.f32 0.0, %v7358
        %v7360 = vpop.f32.mrb[0].mxu0
        %v7361 = vadd.f32 0.0, %v7360
        %v7362 = vpop.f32.mrb[0].mxu0
        %v7363 = vpop.f32.mrb[0].mxu0
        %7364 = vdwg.mxu0
        %7365 = vmatprep.subr.bf16.mxu0 %v4723
        %7366 = vmatpush1.bf16.msra.mxu0 %v4722
        %7367 = vmatprep.subr.bf16.mxu0 %v4739
        %7368 = vmatpush1.bf16.msra.mxu0 %v4738
        %7369 = vmatprep.subr.bf16.mxu0 %v4755
        %7370 = vmatpush1.bf16.msra.mxu0 %v4754
        %7371 = vmatprep.subr.bf16.mxu0 %v4771
        %7372 = vmatpush1.bf16.msra.mxu0 %v4770
        %7373 = vmatprep.subr.bf16.mxu0 %v4787
        %7374 = vmatpush1.bf16.msra.mxu0 %v4786
        %7375 = vmatprep.subr.bf16.mxu0 %v4803
        %7376 = vmatpush1.bf16.msra.mxu0 %v4802
        %7377 = vmatprep.subr.bf16.mxu0 %v4819
        %7378 = vmatpush1.bf16.msra.mxu0 %v4818
        %7379 = vmatprep.subr.bf16.mxu0 %v4835
        %7380 = vmatpush1.bf16.msra.mxu0 %v4834
        %7381 = vmatprep.subr.bf16.mxu0 %v4851
        %7382 = vmatpush1.bf16.msra.mxu0 %v4850
        %7383 = vmatprep.subr.bf16.mxu0 %v4867
        %7384 = vmatpush1.bf16.msra.mxu0 %v4866
        %7385 = vmatprep.subr.bf16.mxu0 %v4883
        %7386 = vmatpush1.bf16.msra.mxu0 %v4882
        %7387 = vmatprep.subr.bf16.mxu0 %v4899
        %7388 = vmatpush1.bf16.msra.mxu0 %v4898
        %7389 = vmatprep.subr.bf16.mxu0 %v4915
        %7390 = vmatpush1.bf16.msra.mxu0 %v4914
        %7391 = vmatprep.subr.bf16.mxu0 %v4931
        %7392 = vmatpush1.bf16.msra.mxu0 %v4930
        %7393 = vmatprep.subr.bf16.mxu0 %v4947
        %7394 = vmatpush1.bf16.msra.mxu0 %v4946
        %7395 = vmatprep.subr.bf16.mxu0 %v4963
        %7396 = vmatpush1.bf16.msra.mxu0 %v4962
        %7397 = vmatprep.mubr.bf16.mxu0 %v1371
        %7398 = vmatmul.mubr.bf16.gmra.mrb[0].mxu0 %v1370
        %v7399 = vpop.f32.mrb[0].mxu0
        %v7400 = vadd.f32 %v7359, %v7399
        %v7401 = vpop.f32.mrb[0].mxu0
        %v7402 = vadd.f32 %v7361, %v7401
        %v7403 = vpop.f32.mrb[0].mxu0
        %v7404 = vpop.f32.mrb[0].mxu0
        %7405 = vdwg.mxu0
        %7406 = vmatprep.subr.bf16.mxu0 %v4979
        %7407 = vmatpush1.bf16.msra.mxu0 %v4978
        %7408 = vmatprep.subr.bf16.mxu0 %v4995
        %7409 = vmatpush1.bf16.msra.mxu0 %v4994
        %7410 = vmatprep.subr.bf16.mxu0 %v5011
        %7411 = vmatpush1.bf16.msra.mxu0 %v5010
        %7412 = vmatprep.subr.bf16.mxu0 %v5027
        %7413 = vmatpush1.bf16.msra.mxu0 %v5026
        %7414 = vmatprep.subr.bf16.mxu0 %v5043
        %7415 = vmatpush1.bf16.msra.mxu0 %v5042
        %7416 = vmatprep.subr.bf16.mxu0 %v5059
        %7417 = vmatpush1.bf16.msra.mxu0 %v5058
        %7418 = vmatprep.subr.bf16.mxu0 %v5075
        %7419 = vmatpush1.bf16.msra.mxu0 %v5074
        %7420 = vmatprep.subr.bf16.mxu0 %v5091
        %7421 = vmatpush1.bf16.msra.mxu0 %v5090
        %7422 = vmatprep.subr.bf16.mxu0 %v5107
        %7423 = vmatpush1.bf16.msra.mxu0 %v5106
        %7424 = vmatprep.subr.bf16.mxu0 %v5123
        %7425 = vmatpush1.bf16.msra.mxu0 %v5122
        %7426 = vmatprep.subr.bf16.mxu0 %v5139
        %7427 = vmatpush1.bf16.msra.mxu0 %v5138
        %7428 = vmatprep.subr.bf16.mxu0 %v5155
        %7429 = vmatpush1.bf16.msra.mxu0 %v5154
        %7430 = vmatprep.subr.bf16.mxu0 %v5171
        %7431 = vmatpush1.bf16.msra.mxu0 %v5170
        %7432 = vmatprep.subr.bf16.mxu0 %v5187
        %7433 = vmatpush1.bf16.msra.mxu0 %v5186
        %7434 = vmatprep.subr.bf16.mxu0 %v5203
        %7435 = vmatpush1.bf16.msra.mxu0 %v5202
        %7436 = vmatprep.subr.bf16.mxu0 %v5219
        %7437 = vmatpush1.bf16.msra.mxu0 %v5218
        %7438 = vmatprep.mubr.bf16.mxu0 %v1373
        %7439 = vmatmul.mubr.bf16.gmra.mrb[0].mxu0 %v1372
        %v7440 = vpop.f32.mrb[0].mxu0
        %v7441 = vadd.f32 %v7400, %v7440
        %v7442 = vpop.f32.mrb[0].mxu0
        %v7443 = vadd.f32 %v7402, %v7442
        %v7444 = vpop.f32.mrb[0].mxu0
        %v7445 = vpop.f32.mrb[0].mxu0
        %7446 = vdwg.mxu0
        %7447 = vmatprep.subr.bf16.mxu0 %v5235
        %7448 = vmatpush1.bf16.msra.mxu0 %v5234
        %7449 = vmatprep.subr.bf16.mxu0 %v5251
        %7450 = vmatpush1.bf16.msra.mxu0 %v5250
        %7451 = vmatprep.subr.bf16.mxu0 %v5267
        %7452 = vmatpush1.bf16.msra.mxu0 %v5266
        %7453 = vmatprep.subr.bf16.mxu0 %v5283
        %7454 = vmatpush1.bf16.msra.mxu0 %v5282
        %7455 = vmatprep.subr.bf16.mxu0 %v5299
        %7456 = vmatpush1.bf16.msra.mxu0 %v5298
        %7457 = vmatprep.subr.bf16.mxu0 %v5315
        %7458 = vmatpush1.bf16.msra.mxu0 %v5314
        %7459 = vmatprep.subr.bf16.mxu0 %v5331
        %7460 = vmatpush1.bf16.msra.mxu0 %v5330
        %7461 = vmatprep.subr.bf16.mxu0 %v5347
        %7462 = vmatpush1.bf16.msra.mxu0 %v5346
        %7463 = vmatprep.subr.bf16.mxu0 %v5363
        %7464 = vmatpush1.bf16.msra.mxu0 %v5362
        %7465 = vmatprep.subr.bf16.mxu0 %v5379
        %7466 = vmatpush1.bf16.msra.mxu0 %v5378
        %7467 = vmatprep.subr.bf16.mxu0 %v5395
        %7468 = vmatpush1.bf16.msra.mxu0 %v5394
        %7469 = vmatprep.subr.bf16.mxu0 %v5411
        %7470 = vmatpush1.bf16.msra.mxu0 %v5410
        %7471 = vmatprep.subr.bf16.mxu0 %v5427
        %7472 = vmatpush1.bf16.msra.mxu0 %v5426
        %7473 = vmatprep.subr.bf16.mxu0 %v5443
        %7474 = vmatpush1.bf16.msra.mxu0 %v5442
        %7475 = vmatprep.subr.bf16.mxu0 %v5459
        %7476 = vmatpush1.bf16.msra.mxu0 %v5458
        %7477 = vmatprep.subr.bf16.mxu0 %v5475
        %7478 = vmatpush1.bf16.msra.mxu0 %v5474
        %7479 = vmatprep.mubr.bf16.mxu0 %v1375
        %7480 = vmatmul.mubr.bf16.gmra.mrb[0].mxu0 %v1374
        %v7481 = vpop.f32.mrb[0].mxu0
        %v7482 = vadd.f32 %v7441, %v7481
        %v7483 = vpop.f32.mrb[0].mxu0
        %v7484 = vadd.f32 %v7443, %v7483
        %v7485 = vpop.f32.mrb[0].mxu0
        %v7486 = vpop.f32.mrb[0].mxu0
        %7487 = vdwg.mxu0
        %7488 = vmatprep.subr.bf16.mxu0 %v4469
        %7489 = vmatpush1.bf16.msra.mxu0 %v4468
        %7490 = vmatprep.subr.bf16.mxu0 %v4485
        %7491 = vmatpush1.bf16.msra.mxu0 %v4484
        %7492 = vmatprep.subr.bf16.mxu0 %v4501
        %7493 = vmatpush1.bf16.msra.mxu0 %v4500
        %7494 = vmatprep.subr.bf16.mxu0 %v4517
        %7495 = vmatpush1.bf16.msra.mxu0 %v4516
        %7496 = vmatprep.subr.bf16.mxu0 %v4533
        %7497 = vmatpush1.bf16.msra.mxu0 %v4532
        %7498 = vmatprep.subr.bf16.mxu0 %v4549
        %7499 = vmatpush1.bf16.msra.mxu0 %v4548
        %7500 = vmatprep.subr.bf16.mxu0 %v4565
        %7501 = vmatpush1.bf16.msra.mxu0 %v4564
        %7502 = vmatprep.subr.bf16.mxu0 %v4581
        %7503 = vmatpush1.bf16.msra.mxu0 %v4580
        %7504 = vmatprep.subr.bf16.mxu0 %v4597
        %7505 = vmatpush1.bf16.msra.mxu0 %v4596
        %7506 = vmatprep.subr.bf16.mxu0 %v4613
        %7507 = vmatpush1.bf16.msra.mxu0 %v4612
        %7508 = vmatprep.subr.bf16.mxu0 %v4629
        %7509 = vmatpush1.bf16.msra.mxu0 %v4628
        %7510 = vmatprep.subr.bf16.mxu0 %v4645
        %7511 = vmatpush1.bf16.msra.mxu0 %v4644
        %7512 = vmatprep.subr.bf16.mxu0 %v4661
        %7513 = vmatpush1.bf16.msra.mxu0 %v4660
        %7514 = vmatprep.subr.bf16.mxu0 %v4677
        %7515 = vmatpush1.bf16.msra.mxu0 %v4676
        %7516 = vmatprep.subr.bf16.mxu0 %v4693
        %7517 = vmatpush1.bf16.msra.mxu0 %v4692
        %7518 = vmatprep.subr.bf16.mxu0 %v4709
        %7519 = vmatpush1.bf16.msra.mxu0 %v4708
        %7520 = vmatprep.mubr.bf16.mxu0 %v1369
        %7521 = vmatmul.mubr.bf16.gmra.mrb[0].mxu0 %v1368
        %v7522 = vpop.f32.mrb[0].mxu0
        %v7523 = vadd.f32 0.0, %v7522
        %v7524 = vpop.f32.mrb[0].mxu0
        %v7525 = vadd.f32 0.0, %v7524
        %v7526 = vpop.f32.mrb[0].mxu0
        %v7527 = vpop.f32.mrb[0].mxu0
        %7528 = vdwg.mxu0
        %7529 = vmatprep.subr.bf16.mxu0 %v4725
        %7530 = vmatpush1.bf16.msra.mxu0 %v4724
        %7531 = vmatprep.subr.bf16.mxu0 %v4741
        %7532 = vmatpush1.bf16.msra.mxu0 %v4740
        %7533 = vmatprep.subr.bf16.mxu0 %v4757
        %7534 = vmatpush1.bf16.msra.mxu0 %v4756
        %7535 = vmatprep.subr.bf16.mxu0 %v4773
        %7536 = vmatpush1.bf16.msra.mxu0 %v4772
        %7537 = vmatprep.subr.bf16.mxu0 %v4789
        %7538 = vmatpush1.bf16.msra.mxu0 %v4788
        %7539 = vmatprep.subr.bf16.mxu0 %v4805
        %7540 = vmatpush1.bf16.msra.mxu0 %v4804
        %7541 = vmatprep.subr.bf16.mxu0 %v4821
        %7542 = vmatpush1.bf16.msra.mxu0 %v4820
        %7543 = vmatprep.subr.bf16.mxu0 %v4837
        %7544 = vmatpush1.bf16.msra.mxu0 %v4836
        %7545 = vmatprep.subr.bf16.mxu0 %v4853
        %7546 = vmatpush1.bf16.msra.mxu0 %v4852
        %7547 = vmatprep.subr.bf16.mxu0 %v4869
        %7548 = vmatpush1.bf16.msra.mxu0 %v4868
        %7549 = vmatprep.subr.bf16.mxu0 %v4885
        %7550 = vmatpush1.bf16.msra.mxu0 %v4884
        %7551 = vmatprep.subr.bf16.mxu0 %v4901
        %7552 = vmatpush1.bf16.msra.mxu0 %v4900
        %7553 = vmatprep.subr.bf16.mxu0 %v4917
        %7554 = vmatpush1.bf16.msra.mxu0 %v4916
        %7555 = vmatprep.subr.bf16.mxu0 %v4933
        %7556 = vmatpush1.bf16.msra.mxu0 %v4932
        %7557 = vmatprep.subr.bf16.mxu0 %v4949
        %7558 = vmatpush1.bf16.msra.mxu0 %v4948
        %7559 = vmatprep.subr.bf16.mxu0 %v4965
        %7560 = vmatpush1.bf16.msra.mxu0 %v4964
        %7561 = vmatprep.mubr.bf16.mxu0 %v1371
        %7562 = vmatmul.mubr.bf16.gmra.mrb[0].mxu0 %v1370
        %v7563 = vpop.f32.mrb[0].mxu0
        %v7564 = vadd.f32 %v7523, %v7563
        %v7565 = vpop.f32.mrb[0].mxu0
        %v7566 = vadd.f32 %v7525, %v7565
        %v7567 = vpop.f32.mrb[0].mxu0
        %v7568 = vpop.f32.mrb[0].mxu0
        %7569 = vdwg.mxu0
        %7570 = vmatprep.subr.bf16.mxu0 %v4981
        %7571 = vmatpush1.bf16.msra.mxu0 %v4980
        %7572 = vmatprep.subr.bf16.mxu0 %v4997
        %7573 = vmatpush1.bf16.msra.mxu0 %v4996
        %7574 = vmatprep.subr.bf16.mxu0 %v5013
        %7575 = vmatpush1.bf16.msra.mxu0 %v5012
        %7576 = vmatprep.subr.bf16.mxu0 %v5029
        %7577 = vmatpush1.bf16.msra.mxu0 %v5028
        %7578 = vmatprep.subr.bf16.mxu0 %v5045
        %7579 = vmatpush1.bf16.msra.mxu0 %v5044
        %7580 = vmatprep.subr.bf16.mxu0 %v5061
        %7581 = vmatpush1.bf16.msra.mxu0 %v5060
        %7582 = vmatprep.subr.bf16.mxu0 %v5077
        %7583 = vmatpush1.bf16.msra.mxu0 %v5076
        %7584 = vmatprep.subr.bf16.mxu0 %v5093
        %7585 = vmatpush1.bf16.msra.mxu0 %v5092
        %7586 = vmatprep.subr.bf16.mxu0 %v5109
        %7587 = vmatpush1.bf16.msra.mxu0 %v5108
        %7588 = vmatprep.subr.bf16.mxu0 %v5125
        %7589 = vmatpush1.bf16.msra.mxu0 %v5124
        %7590 = vmatprep.subr.bf16.mxu0 %v5141
        %7591 = vmatpush1.bf16.msra.mxu0 %v5140
        %7592 = vmatprep.subr.bf16.mxu0 %v5157
        %7593 = vmatpush1.bf16.msra.mxu0 %v5156
        %7594 = vmatprep.subr.bf16.mxu0 %v5173
        %7595 = vmatpush1.bf16.msra.mxu0 %v5172
        %7596 = vmatprep.subr.bf16.mxu0 %v5189
        %7597 = vmatpush1.bf16.msra.mxu0 %v5188
        %7598 = vmatprep.subr.bf16.mxu0 %v5205
        %7599 = vmatpush1.bf16.msra.mxu0 %v5204
        %7600 = vmatprep.subr.bf16.mxu0 %v5221
        %7601 = vmatpush1.bf16.msra.mxu0 %v5220
        %7602 = vmatprep.mubr.bf16.mxu0 %v1373
        %7603 = vmatmul.mubr.bf16.gmra.mrb[0].mxu0 %v1372
        %v7604 = vpop.f32.mrb[0].mxu0
        %v7605 = vadd.f32 %v7564, %v7604
        %v7606 = vpop.f32.mrb[0].mxu0
        %v7607 = vadd.f32 %v7566, %v7606
        %v7608 = vpop.f32.mrb[0].mxu0
        %v7609 = vpop.f32.mrb[0].mxu0
        %7610 = vdwg.mxu0
        %7611 = vmatprep.subr.bf16.mxu0 %v5237
        %7612 = vmatpush1.bf16.msra.mxu0 %v5236
        %7613 = vmatprep.subr.bf16.mxu0 %v5253
        %7614 = vmatpush1.bf16.msra.mxu0 %v5252
        %7615 = vmatprep.subr.bf16.mxu0 %v5269
        %7616 = vmatpush1.bf16.msra.mxu0 %v5268
        %7617 = vmatprep.subr.bf16.mxu0 %v5285
        %7618 = vmatpush1.bf16.msra.mxu0 %v5284
        %7619 = vmatprep.subr.bf16.mxu0 %v5301
        %7620 = vmatpush1.bf16.msra.mxu0 %v5300
        %7621 = vmatprep.subr.bf16.mxu0 %v5317
        %7622 = vmatpush1.bf16.msra.mxu0 %v5316
        %7623 = vmatprep.subr.bf16.mxu0 %v5333
        %7624 = vmatpush1.bf16.msra.mxu0 %v5332
        %7625 = vmatprep.subr.bf16.mxu0 %v5349
        %7626 = vmatpush1.bf16.msra.mxu0 %v5348
        %7627 = vmatprep.subr.bf16.mxu0 %v5365
        %7628 = vmatpush1.bf16.msra.mxu0 %v5364
        %7629 = vmatprep.subr.bf16.mxu0 %v5381
        %7630 = vmatpush1.bf16.msra.mxu0 %v5380
        %7631 = vmatprep.subr.bf16.mxu0 %v5397
        %7632 = vmatpush1.bf16.msra.mxu0 %v5396
        %7633 = vmatprep.subr.bf16.mxu0 %v5413
        %7634 = vmatpush1.bf16.msra.mxu0 %v5412
        %7635 = vmatprep.subr.bf16.mxu0 %v5429
        %7636 = vmatpush1.bf16.msra.mxu0 %v5428
        %7637 = vmatprep.subr.bf16.mxu0 %v5445
        %7638 = vmatpush1.bf16.msra.mxu0 %v5444
        %7639 = vmatprep.subr.bf16.mxu0 %v5461
        %7640 = vmatpush1.bf16.msra.mxu0 %v5460
        %7641 = vmatprep.subr.bf16.mxu0 %v5477
        %7642 = vmatpush1.bf16.msra.mxu0 %v5476
        %7643 = vmatprep.mubr.bf16.mxu0 %v1375
        %7644 = vmatmul.mubr.bf16.gmra.mrb[0].mxu0 %v1374
        %v7645 = vpop.f32.mrb[0].mxu0
        %v7646 = vadd.f32 %v7605, %v7645
        %v7647 = vpop.f32.mrb[0].mxu0
        %v7648 = vadd.f32 %v7607, %v7647
        %v7649 = vpop.f32.mrb[0].mxu0
        %v7650 = vpop.f32.mrb[0].mxu0
        %7651 = vdwg.mxu0
        %7652 = vmatprep.subr.bf16.mxu0 %v4471
        %7653 = vmatpush1.bf16.msra.mxu0 %v4470
        %7654 = vmatprep.subr.bf16.mxu0 %v4487
        %7655 = vmatpush1.bf16.msra.mxu0 %v4486
        %7656 = vmatprep.subr.bf16.mxu0 %v4503
        %7657 = vmatpush1.bf16.msra.mxu0 %v4502
        %7658 = vmatprep.subr.bf16.mxu0 %v4519
        %7659 = vmatpush1.bf16.msra.mxu0 %v4518
        %7660 = vmatprep.subr.bf16.mxu0 %v4535
        %7661 = vmatpush1.bf16.msra.mxu0 %v4534
        %7662 = vmatprep.subr.bf16.mxu0 %v4551
        %7663 = vmatpush1.bf16.msra.mxu0 %v4550
        %7664 = vmatprep.subr.bf16.mxu0 %v4567
        %7665 = vmatpush1.bf16.msra.mxu0 %v4566
        %7666 = vmatprep.subr.bf16.mxu0 %v4583
        %7667 = vmatpush1.bf16.msra.mxu0 %v4582
        %7668 = vmatprep.subr.bf16.mxu0 %v4599
        %7669 = vmatpush1.bf16.msra.mxu0 %v4598
        %7670 = vmatprep.subr.bf16.mxu0 %v4615
        %7671 = vmatpush1.bf16.msra.mxu0 %v4614
        %7672 = vmatprep.subr.bf16.mxu0 %v4631
        %7673 = vmatpush1.bf16.msra.mxu0 %v4630
        %7674 = vmatprep.subr.bf16.mxu0 %v4647
        %7675 = vmatpush1.bf16.msra.mxu0 %v4646
        %7676 = vmatprep.subr.bf16.mxu0 %v4663
        %7677 = vmatpush1.bf16.msra.mxu0 %v4662
        %7678 = vmatprep.subr.bf16.mxu0 %v4679
        %7679 = vmatpush1.bf16.msra.mxu0 %v4678
        %7680 = vmatprep.subr.bf16.mxu0 %v4695
        %7681 = vmatpush1.bf16.msra.mxu0 %v4694
        %7682 = vmatprep.subr.bf16.mxu0 %v4711
        %7683 = vmatpush1.bf16.msra.mxu0 %v4710
        %7684 = vmatprep.mubr.bf16.mxu0 %v1369
        %7685 = vmatmul.mubr.bf16.gmra.mrb[0].mxu0 %v1368
        %v7686 = vpop.f32.mrb[0].mxu0
        %v7687 = vadd.f32 0.0, %v7686
        %v7688 = vpop.f32.mrb[0].mxu0
        %v7689 = vadd.f32 0.0, %v7688
        %v7690 = vpop.f32.mrb[0].mxu0
        %v7691 = vpop.f32.mrb[0].mxu0
        %7692 = vdwg.mxu0
        %7693 = vmatprep.subr.bf16.mxu0 %v4727
        %7694 = vmatpush1.bf16.msra.mxu0 %v4726
        %7695 = vmatprep.subr.bf16.mxu0 %v4743
        %7696 = vmatpush1.bf16.msra.mxu0 %v4742
        %7697 = vmatprep.subr.bf16.mxu0 %v4759
        %7698 = vmatpush1.bf16.msra.mxu0 %v4758
        %7699 = vmatprep.subr.bf16.mxu0 %v4775
        %7700 = vmatpush1.bf16.msra.mxu0 %v4774
        %7701 = vmatprep.subr.bf16.mxu0 %v4791
        %7702 = vmatpush1.bf16.msra.mxu0 %v4790
        %7703 = vmatprep.subr.bf16.mxu0 %v4807
        %7704 = vmatpush1.bf16.msra.mxu0 %v4806
        %7705 = vmatprep.subr.bf16.mxu0 %v4823
        %7706 = vmatpush1.bf16.msra.mxu0 %v4822
        %7707 = vmatprep.subr.bf16.mxu0 %v4839
        %7708 = vmatpush1.bf16.msra.mxu0 %v4838
        %7709 = vmatprep.subr.bf16.mxu0 %v4855
        %7710 = vmatpush1.bf16.msra.mxu0 %v4854
        %7711 = vmatprep.subr.bf16.mxu0 %v4871
        %7712 = vmatpush1.bf16.msra.mxu0 %v4870
        %7713 = vmatprep.subr.bf16.mxu0 %v4887
        %7714 = vmatpush1.bf16.msra.mxu0 %v4886
        %7715 = vmatprep.subr.bf16.mxu0 %v4903
        %7716 = vmatpush1.bf16.msra.mxu0 %v4902
        %7717 = vmatprep.subr.bf16.mxu0 %v4919
        %7718 = vmatpush1.bf16.msra.mxu0 %v4918
        %7719 = vmatprep.subr.bf16.mxu0 %v4935
        %7720 = vmatpush1.bf16.msra.mxu0 %v4934
        %7721 = vmatprep.subr.bf16.mxu0 %v4951
        %7722 = vmatpush1.bf16.msra.mxu0 %v4950
        %7723 = vmatprep.subr.bf16.mxu0 %v4967
        %7724 = vmatpush1.bf16.msra.mxu0 %v4966
        %7725 = vmatprep.mubr.bf16.mxu0 %v1371
        %7726 = vmatmul.mubr.bf16.gmra.mrb[0].mxu0 %v1370
        %v7727 = vpop.f32.mrb[0].mxu0
        %v7728 = vadd.f32 %v7687, %v7727
        %v7729 = vpop.f32.mrb[0].mxu0
        %v7730 = vadd.f32 %v7689, %v7729
        %v7731 = vpop.f32.mrb[0].mxu0
        %v7732 = vpop.f32.mrb[0].mxu0
        %7733 = vdwg.mxu0
        %7734 = vmatprep.subr.bf16.mxu0 %v4983
        %7735 = vmatpush1.bf16.msra.mxu0 %v4982
        %7736 = vmatprep.subr.bf16.mxu0 %v4999
        %7737 = vmatpush1.bf16.msra.mxu0 %v4998
        %7738 = vmatprep.subr.bf16.mxu0 %v5015
        %7739 = vmatpush1.bf16.msra.mxu0 %v5014
        %7740 = vmatprep.subr.bf16.mxu0 %v5031
        %7741 = vmatpush1.bf16.msra.mxu0 %v5030
        %7742 = vmatprep.subr.bf16.mxu0 %v5047
        %7743 = vmatpush1.bf16.msra.mxu0 %v5046
        %7744 = vmatprep.subr.bf16.mxu0 %v5063
        %7745 = vmatpush1.bf16.msra.mxu0 %v5062
        %7746 = vmatprep.subr.bf16.mxu0 %v5079
        %7747 = vmatpush1.bf16.msra.mxu0 %v5078
        %7748 = vmatprep.subr.bf16.mxu0 %v5095
        %7749 = vmatpush1.bf16.msra.mxu0 %v5094
        %7750 = vmatprep.subr.bf16.mxu0 %v5111
        %7751 = vmatpush1.bf16.msra.mxu0 %v5110
        %7752 = vmatprep.subr.bf16.mxu0 %v5127
        %7753 = vmatpush1.bf16.msra.mxu0 %v5126
        %7754 = vmatprep.subr.bf16.mxu0 %v5143
        %7755 = vmatpush1.bf16.msra.mxu0 %v5142
        %7756 = vmatprep.subr.bf16.mxu0 %v5159
        %7757 = vmatpush1.bf16.msra.mxu0 %v5158
        %7758 = vmatprep.subr.bf16.mxu0 %v5175
        %7759 = vmatpush1.bf16.msra.mxu0 %v5174
        %7760 = vmatprep.subr.bf16.mxu0 %v5191
        %7761 = vmatpush1.bf16.msra.mxu0 %v5190
        %7762 = vmatprep.subr.bf16.mxu0 %v5207
        %7763 = vmatpush1.bf16.msra.mxu0 %v5206
        %7764 = vmatprep.subr.bf16.mxu0 %v5223
        %7765 = vmatpush1.bf16.msra.mxu0 %v5222
        %7766 = vmatprep.mubr.bf16.mxu0 %v1373
        %7767 = vmatmul.mubr.bf16.gmra.mrb[0].mxu0 %v1372
        %v7768 = vpop.f32.mrb[0].mxu0
        %v7769 = vadd.f32 %v7728, %v7768
        %v7770 = vpop.f32.mrb[0].mxu0
        %v7771 = vadd.f32 %v7730, %v7770
        %v7772 = vpop.f32.mrb[0].mxu0
        %v7773 = vpop.f32.mrb[0].mxu0
        %7774 = vdwg.mxu0
        %7775 = vmatprep.subr.bf16.mxu0 %v5239
        %7776 = vmatpush1.bf16.msra.mxu0 %v5238
        %7777 = vmatprep.subr.bf16.mxu0 %v5255
        %7778 = vmatpush1.bf16.msra.mxu0 %v5254
        %7779 = vmatprep.subr.bf16.mxu0 %v5271
        %7780 = vmatpush1.bf16.msra.mxu0 %v5270
        %7781 = vmatprep.subr.bf16.mxu0 %v5287
        %7782 = vmatpush1.bf16.msra.mxu0 %v5286
        %7783 = vmatprep.subr.bf16.mxu0 %v5303
        %7784 = vmatpush1.bf16.msra.mxu0 %v5302
        %7785 = vmatprep.subr.bf16.mxu0 %v5319
        %7786 = vmatpush1.bf16.msra.mxu0 %v5318
        %7787 = vmatprep.subr.bf16.mxu0 %v5335
        %7788 = vmatpush1.bf16.msra.mxu0 %v5334
        %7789 = vmatprep.subr.bf16.mxu0 %v5351
        %7790 = vmatpush1.bf16.msra.mxu0 %v5350
        %7791 = vmatprep.subr.bf16.mxu0 %v5367
        %7792 = vmatpush1.bf16.msra.mxu0 %v5366
        %7793 = vmatprep.subr.bf16.mxu0 %v5383
        %7794 = vmatpush1.bf16.msra.mxu0 %v5382
        %7795 = vmatprep.subr.bf16.mxu0 %v5399
        %7796 = vmatpush1.bf16.msra.mxu0 %v5398
        %7797 = vmatprep.subr.bf16.mxu0 %v5415
        %7798 = vmatpush1.bf16.msra.mxu0 %v5414
        %7799 = vmatprep.subr.bf16.mxu0 %v5431
        %7800 = vmatpush1.bf16.msra.mxu0 %v5430
        %7801 = vmatprep.subr.bf16.mxu0 %v5447
        %7802 = vmatpush1.bf16.msra.mxu0 %v5446
        %7803 = vmatprep.subr.bf16.mxu0 %v5463
        %7804 = vmatpush1.bf16.msra.mxu0 %v5462
        %7805 = vmatprep.subr.bf16.mxu0 %v5479
        %7806 = vmatpush1.bf16.msra.mxu0 %v5478
        %7807 = vmatprep.mubr.bf16.mxu0 %v1375
        %7808 = vmatmul.mubr.bf16.gmra.mrb[0].mxu0 %v1374
        %v7809 = vpop.f32.mrb[0].mxu0
        %v7810 = vadd.f32 %v7769, %v7809
        %v7811 = vpop.f32.mrb[0].mxu0
        %v7812 = vadd.f32 %v7771, %v7811
        %v7813 = vpop.f32.mrb[0].mxu0
        %v7814 = vpop.f32.mrb[0].mxu0
        %7815 = vdwg.mxu0
        %v7816 = vadd.f32 %v316, %v6662
        %v7817 = vadd.f32 %v317, %v6664
        %v7818 = vadd.f32 %v318, %v6826
        %v7819 = vadd.f32 %v319, %v6828
        %v7820 = vadd.f32 %v320, %v6990
        %v7821 = vadd.f32 %v321, %v6992
        %v7822 = vadd.f32 %v322, %v7154
        %v7823 = vadd.f32 %v323, %v7156
        %v7824 = vadd.f32 %v324, %v7318
        %v7825 = vadd.f32 %v325, %v7320
        %v7826 = vadd.f32 %v326, %v7482
        %v7827 = vadd.f32 %v327, %v7484
        %v7828 = vadd.f32 %v328, %v7646
        %v7829 = vadd.f32 %v329, %v7648
        %v7830 = vadd.f32 %v330, %v7810
        %v7831 = vadd.f32 %v331, %v7812
        %7832 = vst [vmem:[#allocation2] sm:$0xff] %v7816
        %7833 = vst [vmem:[#allocation2 + $0x8] sm:$0xff] %v7817
        %7834 = vst [vmem:[#allocation2 + $0x10] sm:$0xff] %v7818
        %7835 = vst [vmem:[#allocation2 + $0x18] sm:$0xff] %v7819
        %7836 = vst [vmem:[#allocation2 + $0x20] sm:$0xff] %v7820
        %7837 = vst [vmem:[#allocation2 + $0x28] sm:$0xff] %v7821
        %7838 = vst [vmem:[#allocation2 + $0x30] sm:$0xff] %v7822
        %7839 = vst [vmem:[#allocation2 + $0x38] sm:$0xff] %v7823
        %7840 = vst [vmem:[#allocation2 + $0x40] sm:$0xff] %v7824
        %7841 = vst [vmem:[#allocation2 + $0x48] sm:$0xff] %v7825
        %7842 = vst [vmem:[#allocation2 + $0x50] sm:$0xff] %v7826
        %7843 = vst [vmem:[#allocation2 + $0x58] sm:$0xff] %v7827
        %7844 = vst [vmem:[#allocation2 + $0x60] sm:$0xff] %v7828
        %7845 = vst [vmem:[#allocation2 + $0x68] sm:$0xff] %v7829
        %7846 = vst [vmem:[#allocation2 + $0x70] sm:$0xff] %v7830
        %7847 = vst [vmem:[#allocation2 + $0x78] sm:$0xff] %v7831
        %p7848 = scmp.eq.s32.totalorder %s27, 10
        // Predicated region
        $region45: #{pallas_fc1.1} parent=31 // pred_check
          %p7849 = pneg %p7848
        $region46: #{pallas_fc1.1} parent=31 // pred_check_branch
          %7851 = sbr.rel (%p7849) target = $region48
        $region47: #{pallas_fc1.1} parent=31 // pred_region
          %v7852 = vld [vmem:[#allocation2] sm:$0xff]
          %v7853 = vld [vmem:[#allocation2 + $0x8] sm:$0xff]
          %v7854 = vld [vmem:[#allocation2 + $0x10] sm:$0xff]
          %v7855 = vld [vmem:[#allocation2 + $0x18] sm:$0xff]
          %v7856 = vld [vmem:[#allocation2 + $0x20] sm:$0xff]
          %v7857 = vld [vmem:[#allocation2 + $0x28] sm:$0xff]
          %v7858 = vld [vmem:[#allocation2 + $0x30] sm:$0xff]
          %v7859 = vld [vmem:[#allocation2 + $0x38] sm:$0xff]
          %v7860 = vld [vmem:[#allocation2 + $0x40] sm:$0xff]
          %v7861 = vld [vmem:[#allocation2 + $0x48] sm:$0xff]
          %v7862 = vld [vmem:[#allocation2 + $0x50] sm:$0xff]
          %v7863 = vld [vmem:[#allocation2 + $0x58] sm:$0xff]
          %v7864 = vld [vmem:[#allocation2 + $0x60] sm:$0xff]
          %v7865 = vld [vmem:[#allocation2 + $0x68] sm:$0xff]
          %v7866 = vld [vmem:[#allocation2 + $0x70] sm:$0xff]
          %v7867 = vld [vmem:[#allocation2 + $0x78] sm:$0xff]
          %v7868 = vld [vmem:[%s232] sm:$0xff]
          %v7869 = vld [vmem:[%s232 + $0x8] sm:$0xff]
          %v7872 = vlaneseq
          %v7873 = vshrl.u32 %v7872, 7
          %v7874 = vsub.s32 0, %v7873
          %v7875 = vrot.slane %v7868, %v7874
          %v7876 = vlaneseq
          %v7877 = vshrl.u32 %v7876, 7
          %v7878 = vsub.s32 1, %v7877
          %v7879 = vrot.slane %v7868, %v7878
          %v7880 = vlaneseq
          %v7881 = vshrl.u32 %v7880, 7
          %v7882 = vsub.s32 2, %v7881
          %v7883 = vrot.slane %v7868, %v7882
          %v7884 = vlaneseq
          %v7885 = vshrl.u32 %v7884, 7
          %v7886 = vsub.s32 3, %v7885
          %v7887 = vrot.slane %v7868, %v7886
          %v7888 = vlaneseq
          %v7889 = vshrl.u32 %v7888, 7
          %v7890 = vsub.s32 4, %v7889
          %v7891 = vrot.slane %v7868, %v7890
          %v7892 = vlaneseq
          %v7893 = vshrl.u32 %v7892, 7
          %v7894 = vsub.s32 5, %v7893
          %v7895 = vrot.slane %v7868, %v7894
          %v7896 = vlaneseq
          %v7897 = vshrl.u32 %v7896, 7
          %v7898 = vsub.s32 6, %v7897
          %v7899 = vrot.slane %v7868, %v7898
          %v7900 = vlaneseq
          %v7901 = vshrl.u32 %v7900, 7
          %v7902 = vsub.s32 7, %v7901
          %v7903 = vrot.slane %v7868, %v7902
          %v7904 = vlaneseq
          %v7905 = vshrl.u32 %v7904, 7
          %v7906 = vsub.s32 0, %v7905
          %v7907 = vrot.slane %v7869, %v7906
          %v7908 = vlaneseq
          %v7909 = vshrl.u32 %v7908, 7
          %v7910 = vsub.s32 1, %v7909
          %v7911 = vrot.slane %v7869, %v7910
          %v7912 = vlaneseq
          %v7913 = vshrl.u32 %v7912, 7
          %v7914 = vsub.s32 2, %v7913
          %v7915 = vrot.slane %v7869, %v7914
          %v7916 = vlaneseq
          %v7917 = vshrl.u32 %v7916, 7
          %v7918 = vsub.s32 3, %v7917
          %v7919 = vrot.slane %v7869, %v7918
          %v7920 = vlaneseq
          %v7921 = vshrl.u32 %v7920, 7
          %v7922 = vsub.s32 4, %v7921
          %v7923 = vrot.slane %v7869, %v7922
          %v7924 = vlaneseq
          %v7925 = vshrl.u32 %v7924, 7
          %v7926 = vsub.s32 5, %v7925
          %v7927 = vrot.slane %v7869, %v7926
          %v7928 = vlaneseq
          %v7929 = vshrl.u32 %v7928, 7
          %v7930 = vsub.s32 6, %v7929
          %v7931 = vrot.slane %v7869, %v7930
          %v7932 = vlaneseq
          %v7933 = vshrl.u32 %v7932, 7
          %v7934 = vsub.s32 7, %v7933
          %v7935 = vrot.slane %v7869, %v7934
          %v7952 = vadd.f32 %v7852, %v7875
          %v7953 = vadd.f32 %v7853, %v7879
          %v7954 = vadd.f32 %v7854, %v7883
          %v7955 = vadd.f32 %v7855, %v7887
          %v7956 = vadd.f32 %v7856, %v7891
          %v7957 = vadd.f32 %v7857, %v7895
          %v7958 = vadd.f32 %v7858, %v7899
          %v7959 = vadd.f32 %v7859, %v7903
          %v7960 = vadd.f32 %v7860, %v7907
          %v7961 = vadd.f32 %v7861, %v7911
          %v7962 = vadd.f32 %v7862, %v7915
          %v7963 = vadd.f32 %v7863, %v7919
          %v7964 = vadd.f32 %v7864, %v7923
          %v7965 = vadd.f32 %v7865, %v7927
          %v7966 = vadd.f32 %v7866, %v7931
          %v7967 = vadd.f32 %v7867, %v7935
          %7968 = vst [vmem:[%s285] sm:$0xff] %v7952
          %7969 = vst [vmem:[%s285 + $0x8] sm:$0xff] %v7953
          %7970 = vst [vmem:[%s285 + $0x10] sm:$0xff] %v7954
          %7971 = vst [vmem:[%s285 + $0x18] sm:$0xff] %v7955
          %7972 = vst [vmem:[%s285 + $0x20] sm:$0xff] %v7956
          %7973 = vst [vmem:[%s285 + $0x28] sm:$0xff] %v7957
          %7974 = vst [vmem:[%s285 + $0x30] sm:$0xff] %v7958
          %7975 = vst [vmem:[%s285 + $0x38] sm:$0xff] %v7959
          %7976 = vst [vmem:[%s285 + $0x40] sm:$0xff] %v7960
          %7977 = vst [vmem:[%s285 + $0x48] sm:$0xff] %v7961
          %7978 = vst [vmem:[%s285 + $0x50] sm:$0xff] %v7962
          %7979 = vst [vmem:[%s285 + $0x58] sm:$0xff] %v7963
          %7980 = vst [vmem:[%s285 + $0x60] sm:$0xff] %v7964
          %7981 = vst [vmem:[%s285 + $0x68] sm:$0xff] %v7965
          %7982 = vst [vmem:[%s285 + $0x70] sm:$0xff] %v7966
          %7983 = vst [vmem:[%s285 + $0x78] sm:$0xff] %v7967
        $region48: #{pallas_fc1.1} parent=31 // pred_fallthru
          _
        %s7984 = smul.u32 16, %s26
        %p7985 = scmp.lt.s32.totalorder %s25, 0
        %s7986 = scalar_select %p7985, %s25, 0
        %p7987 = scmp.lt.s32.totalorder %s7984, 31
        %s7988 = scalar_select %p7987, %s7984, 31
        %s7989 = smul.addr %s7986, 32
        %s7990 = sadd.s32 %s7988, %s7989
        %s7991 = smul.addr %s7990, 8
        %s7992 = scalar_lea.vmem %s3, %s7991
        // Predicated region
        $region49: #{pallas_fc1.1} parent=31 // pred_check
          %p7993 = pneg %p139
        $region50: #{pallas_fc1.1} parent=31 // pred_check_branch
          %7995 = sbr.rel (%p7993) target = $region52
        $region51: #{pallas_fc1.1} parent=31 // pred_region
          %s7996 = smul.u32 16, %s26
        $region52: #{pallas_fc1.1} parent=31 // pred_fallthru
          _
      $region32: #{pallas_fc1.1} parent=5 // pred_fallthru
        _
      %p7997 = scmp.le.s32.totalorder 2, %s15
      // Predicated region
      $region53: #{pallas_fc1.1} parent=5 // pred_check
        %p7998 = pneg %p7997
      $region54: #{pallas_fc1.1} parent=5 // pred_check_branch
        %8000 = sbr.rel (%p7998) target = $region56
      $region55: #{pallas_fc1.1} parent=5 // pred_region
        %s8001 = ssub.s32 %s15, 2
        // Predicated region
        $region57: #{pallas_fc1.1} parent=55 // pred_check
          %p8002 = pneg %p145
        $region58: #{pallas_fc1.1} parent=55 // pred_check_branch
          %8004 = sbr.rel (%p8002) target = $region60
        $region59: #{pallas_fc1.1} parent=55 // pred_region
          %s8005 = smul.u32 16, %s29
          %p8006 = scmp.lt.s32.totalorder %s28, 0
          %s8007 = scalar_select %p8006, %s28, 0
          %p8008 = scmp.lt.s32.totalorder %s8005, 31
          %s8009 = scalar_select %p8008, %s8005, 31
          %s8010 = smul.addr %s8007, 32
          %s8011 = sadd.s32 %s8009, %s8010
          %s8012 = smul.addr %s8011, 8
          %s8013 = scalar_lea.vmem %s3, %s8012
        $region60: #{pallas_fc1.1} parent=55 // pred_fallthru
          _
      $region56: #{pallas_fc1.1} parent=5 // pred_fallthru
        _
    $region6: #{pallas_fc1.1} parent=1 // loop_footer
      %s19 = sadd.s32 1, %s15
    $region7: #{pallas_fc1.1} parent=1 // loop_footer_branch
      %14 = sbr.rel target = $region3
    $region8: #{pallas_fc1.1} parent=1 // loop_exit
      _
    %8014 = vsyncpa [#allocation4], 1
    %s8015 = scalar_lea.sflag [#allocation4], 1
    %8016 = vsyncpa %s8015, 1
    %8017 = vsyncpa [#allocation6], 1
    %s8018 = scalar_lea.sflag [#allocation6], 1
    %8019 = vsyncpa %s8018, 1

</llo_original>
